<compile_context>
chip_gen: v7x
topology: tpu7x:2x2x1
jax: 0.10.0
libtpu: 0.0.40
codegen_flags: <defaults>
</compile_context>

<pallas_src>
import math
import functools

import jax
import jax.numpy as jnp
from jax import lax
from jax.experimental import pallas as pl
from jax.experimental.pallas import tpu as pltpu

# ---- module config (matches ActorNetwork defaults) ----
INPUT_DIMS = 32          # d_model (divisible by n_heads)
N_HEADS = 4
N_LAYERS = 2
DIM_FF = 2048            # PyTorch TransformerEncoderLayer default dim_feedforward
STATIC_DIMS = 1
N_ACTIONS = 4
HID1, HID2 = 512, 256
MAX_POS = 128
LN_EPS = 1e-5
LEAKY_SLOPE = 0.01       # nn.LeakyReLU default negative_slope

# kernel-input order (after dyn2, pos, stat, mask)
KPARAM_ORDER = [
    "wq", "bq", "wk", "bk", "wv", "bv", "ow_t", "ob",
    "lin1_w", "lin1_b", "lin2_w", "lin2_b",
    "n1_w", "n1_b", "n2_w", "n2_b",
    "fcs_w_row", "fcs_b",
    "fc1_w_dyn", "fc1_w_stat", "fc1_b",
    "fc2_w", "fc2_b", "fc3_w", "fc3_b",
]


def _mm_t(x, w):
    """x:(N,K) contracted with w:(M,K) -> (N,M) == x @ w.T ; bf16 MXU, f32 acc."""
    return lax.dot_general(x.astype(jnp.bfloat16), w.astype(jnp.bfloat16),
                           (((1,), (1,)), ((), ())),
                           preferred_element_type=jnp.float32)


def _mm(x, w):
    """x:(N,K) @ w:(K,M) -> (N,M) ; bf16 MXU, f32 accumulate."""
    return lax.dot_general(x.astype(jnp.bfloat16), w.astype(jnp.bfloat16),
                           (((1,), (0,)), ((), ())),
                           preferred_element_type=jnp.float32)


def _layernorm(x, w, b):
    # single-pass stats: var = E[x^2] - mean^2 (halves cross-lane reductions)
    mu = jnp.mean(x, axis=-1, keepdims=True)
    ms = jnp.mean(x * x, axis=-1, keepdims=True)
    var = ms - mu * mu
    return (x - mu) * lax.rsqrt(var + LN_EPS) * w + b


def _leaky_relu(x):
    return jnp.where(x >= 0, x, LEAKY_SLOPE * x)


def _forward_math(B, S, recip,
                  dyn2, pos, stat, mask,
                  wq, bq, wk, bk, wv, bv, ow_t, ob,
                  lin1_w, lin1_b, lin2_w, lin2_b,
                  n1_w, n1_b, n2_w, n2_b,
                  fcs_w_row, fcs_b,
                  fc1_w_dyn, fc1_w_stat, fc1_b,
                  fc2_w, fc2_b, fc3_w, fc3_b):
    """Shared math: Pallas kernel body AND the pure-JAX reference."""
    D = dyn2.shape[-1]
    H = N_HEADS
    hd = D // H
    N = B * S
    scale = 1.0 / math.sqrt(hd)

    # positional encoding broadcast over batch inside the kernel (pos is (S, D))
    x = dyn2 + jnp.concatenate([pos] * B, axis=0)                    # (N, D)

    for l in range(N_LAYERS):
        # ---- multi-head self attention (post-norm encoder layer, eval mode) ----
        q = _mm_t(x, wq[l]) + bq[l]                                  # (N, D)
        k = _mm_t(x, wk[l]) + bk[l]
        v = _mm_t(x, wv[l]) + bv[l]
        attn = jnp.zeros((N, D), jnp.float32)
        for h in range(H):                                           # static unroll
            c0, c1 = h * hd, (h + 1) * hd
            qh = q[:, c0:c1] * scale
            kh = k[:, c0:c1]
            vh = v[:, c0:c1]
            s = _mm_t(qh, kh) + mask                                 # (N, N), block-diag mask
            s = s - jnp.max(s, axis=-1, keepdims=True)
            p = jnp.exp(s)
            p = p * recip(jnp.sum(p, axis=-1, keepdims=True))
            pv = _mm(p, vh)                                          # (N, hd)
            attn = attn + _mm(pv, ow_t[l * H + h])                   # fused per-head out_proj
        attn = attn + ob[l]
        x = _layernorm(x + attn, n1_w[l], n1_b[l])

        # ---- feed-forward block (relu activation) ----
        h1 = jnp.maximum(_mm_t(x, lin1_w[l]) + lin1_b[l], 0.0)       # (N, FF)
        h2 = _mm_t(h1, lin2_w[l]) + lin2_b[l]                        # (N, D)
        x = _layernorm(x + h2, n2_w[l], n2_b[l])

    # transformer_out[:, -1, :]  -> last row of each sequence (sublane gather)
    last = jnp.concatenate(
        [x[b * S + S - 1: b * S + S, :] for b in range(B)], axis=0)  # (B, D)

    # fc_static is a K=1 matmul -> do it on the VPU instead of the MXU
    static_enc = stat * fcs_w_row + fcs_b                            # (B, D)

    # fc1 over concat(last, static_enc) without the lane-axis concat
    h1 = _leaky_relu(_mm_t(last, fc1_w_dyn)
                     + _mm_t(static_enc, fc1_w_stat) + fc1_b)        # (B, 512)
    h2 = _leaky_relu(_mm_t(h1, fc2_w) + fc2_b)                       # (B, 256)
    logits = _mm_t(h2, fc3_w) + fc3_b                                # (B, A)

    # final action softmax (exact, f32)
    z = logits - jnp.max(logits, axis=-1, keepdims=True)
    e = jnp.exp(z)
    return e / jnp.sum(e, axis=-1, keepdims=True)


def _actor_kernel(B, S, *refs):
    in_refs, out_ref = refs[:-1], refs[-1]
    vals = [r[...] for r in in_refs]
    recip = lambda d: pl.reciprocal(d, approx=True)   # EUP slot, off the VALU
    out_ref[...] = _forward_math(B, S, recip, *vals).astype(out_ref.dtype)


def _prep_kernel_params(params):
    """Split / transpose / bf16-cast PyTorch-layout params into kernel layout."""
    D, H, L = INPUT_DIMS, N_HEADS, N_LAYERS
    hd = D // H
    bf16 = lambda a: a.astype(jnp.bfloat16)
    ipw, ipb = params["in_proj_w"], params["in_proj_b"]              # (L,3D,D),(L,3D)
    # per-head transposed out_proj: ow_t[l*H+h] = out_proj_w[l][:, h*hd:(h+1)*hd].T
    ow_t = jnp.transpose(params["out_proj_w"], (0, 2, 1)).reshape(L * H, hd, D)
    return {
        "wq": bf16(ipw[:, :D, :]),          "bq": ipb[:, :D],
        "wk": bf16(ipw[:, D:2 * D, :]),     "bk": ipb[:, D:2 * D],
        "wv": bf16(ipw[:, 2 * D:, :]),      "bv": ipb[:, 2 * D:],
        "ow_t": bf16(ow_t),                 "ob": params["out_proj_b"],
        "lin1_w": bf16(params["lin1_w"]),   "lin1_b": params["lin1_b"],
        "lin2_w": bf16(params["lin2_w"]),   "lin2_b": params["lin2_b"],
        "n1_w": params["n1_w"],             "n1_b": params["n1_b"],
        "n2_w": params["n2_w"],             "n2_b": params["n2_b"],
        "fcs_w_row": jnp.transpose(params["fcs_w"]),                 # (1, D)
        "fcs_b": params["fcs_b"],
        "fc1_w_dyn": bf16(params["fc1_w"][:, :D]),
        "fc1_w_stat": bf16(params["fc1_w"][:, D:]),
        "fc1_b": params["fc1_b"],
        "fc2_w": bf16(params["fc2_w"]),     "fc2_b": params["fc2_b"],
        "fc3_w": bf16(params["fc3_w"]),     "fc3_b": params["fc3_b"],
    }


def _block_diag_mask(B, S):
    ids = jnp.arange(B * S) // S
    return jnp.where(ids[:, None] == ids[None, :], 0.0, -1e30).astype(jnp.float32)


def actor_forward(dynamic_state, static_state, params):
    B, S, D = dynamic_state.shape
    n_actions = params["fc3_w"].shape[0]
    # glue reshapes / casts in plain JAX; all compute inside the kernel
    dyn2 = dynamic_state.reshape(B * S, D).astype(jnp.float32)
    pos = params["pos"][0, :S, :].astype(jnp.float32)                # (S, D)
    stat = static_state.astype(jnp.float32)
    mask = _block_diag_mask(B, S)                                    # (B*S, B*S)

    kp = _prep_kernel_params(params)
    inputs = [dyn2, pos, stat, mask] + [kp[k] for k in KPARAM_ORDER]

    # advisory cost estimate so XLA can overlap neighbors with this DMA-bound call
    N, hd = B * S, D // N_HEADS
    flops_layer = (3 * 2 * N * D * D
                   + N_HEADS * (2 * 2 * N * N * hd + 2 * N * hd * D)
                   + 2 * 2 * N * D * DIM_FF)
    flops = N_LAYERS * flops_layer + 2 * B * (2 * D * HID1 + HID1 * HID2 + HID2 * n_actions)
    transc = N_LAYERS * N_HEADS * N * N + B * n_actions
    nbytes = sum(int(x.size) * x.dtype.itemsize for x in inputs) + B * n_actions * 4

    vmem = lambda: pl.BlockSpec(memory_space=pltpu.MemorySpace.VMEM)
    return pl.pallas_call(
        functools.partial(_actor_kernel, B, S),
        out_shape=jax.ShapeDtypeStruct((B, n_actions), jnp.float32),
        in_specs=[vmem() for _ in inputs],
        out_specs=vmem(),
        cost_estimate=pl.CostEstimate(flops=flops, transcendentals=transc,
                                      bytes_accessed=nbytes),
    )(*inputs)


def init_params(key, n_actions=N_ACTIONS):
    """f32 master weights in PyTorch layout (out_features, in_features)."""
    D, FF, L, A = INPUT_DIMS, DIM_FF, N_LAYERS, n_actions
    ks = iter(jax.random.split(key, 32))

    def w(shape, scale=0.02):
        return (scale * jax.random.normal(next(ks), shape)).astype(jnp.float32)

    return {
        "pos": jnp.zeros((1, MAX_POS, D), jnp.float32),   # nn.Parameter(torch.zeros)
        "in_proj_w": w((L, 3 * D, D)), "in_proj_b": w((L, 3 * D), 0.01),
        "out_proj_w": w((L, D, D)),    "out_proj_b": w((L, D), 0.01),
        "lin1_w": w((L, FF, D)),       "lin1_b": w((L, FF), 0.01),
        "lin2_w": w((L, D, FF)),       "lin2_b": w((L, D), 0.01),
        "n1_w": jnp.ones((L, D), jnp.float32), "n1_b": jnp.zeros((L, D), jnp.float32),
        "n2_w": jnp.ones((L, D), jnp.float32), "n2_b": jnp.zeros((L, D), jnp.float32),
        "fcs_w": w((D, STATIC_DIMS)),  "fcs_b": w((1, D), 0.01),
        "fc1_w": w((HID1, 2 * D)),     "fc1_b": w((1, HID1), 0.01),
        "fc2_w": w((HID2, HID1)),      "fc2_b": w((1, HID2), 0.01),
        "fc3_w": w((A, HID2)),         "fc3_b": w((1, A), 0.01),
    }


if __name__ == "__main__":
    key = jax.random.PRNGKey(0)
    kparam, kdyn, kstat = jax.random.split(key, 3)
    params = init_params(kparam)

    B, S = 2, 8
    dynamic_state = jax.random.normal(kdyn, (B, S, INPUT_DIMS), jnp.float32)
    static_state = jax.random.normal(kstat, (B, STATIC_DIMS), jnp.float32)

    out = actor_forward(dynamic_state, static_state, params)
    out = jax.block_until_ready(out)

    # pure-JAX reference of the same bf16-weight math (exact softmax reciprocal)
    dyn2 = dynamic_state.reshape(B * S, INPUT_DIMS)
    pos = params["pos"][0, :S, :]
    mask = _block_diag_mask(B, S)
    kp = _prep_kernel_params(params)
    ref = _forward_math(B, S, lambda d: 1.0 / d,
                        dyn2, pos, static_state, mask,
                        *[kp[k] for k in KPARAM_ORDER])

    assert out.shape == (B, N_ACTIONS)
    assert jnp.allclose(jnp.sum(out, axis=-1), 1.0, atol=1e-4)
    assert jnp.allclose(out, ref, atol=2e-3, rtol=2e-2), (out, ref)

    print("KERNEL_OK")
</pallas_src>

<mosaic_0001>
module attributes {stable_mosaic.version = 11 : i64} {
  func.func @_actor_kernel(%arg0: memref<16x32xf32, #tpu.memory_space<vmem>>, %arg1: memref<8x32xf32, #tpu.memory_space<vmem>>, %arg2: memref<2x1xf32, #tpu.memory_space<vmem>>, %arg3: memref<16x16xf32, #tpu.memory_space<vmem>>, %arg4: memref<2x32x32xbf16, #tpu.memory_space<vmem>>, %arg5: memref<2x32xf32, #tpu.memory_space<vmem>>, %arg6: memref<2x32x32xbf16, #tpu.memory_space<vmem>>, %arg7: memref<2x32xf32, #tpu.memory_space<vmem>>, %arg8: memref<2x32x32xbf16, #tpu.memory_space<vmem>>, %arg9: memref<2x32xf32, #tpu.memory_space<vmem>>, %arg10: memref<8x8x32xbf16, #tpu.memory_space<vmem>>, %arg11: memref<2x32xf32, #tpu.memory_space<vmem>>, %arg12: memref<2x2048x32xbf16, #tpu.memory_space<vmem>>, %arg13: memref<2x2048xf32, #tpu.memory_space<vmem>>, %arg14: memref<2x32x2048xbf16, #tpu.memory_space<vmem>>, %arg15: memref<2x32xf32, #tpu.memory_space<vmem>>, %arg16: memref<2x32xf32, #tpu.memory_space<vmem>>, %arg17: memref<2x32xf32, #tpu.memory_space<vmem>>, %arg18: memref<2x32xf32, #tpu.memory_space<vmem>>, %arg19: memref<2x32xf32, #tpu.memory_space<vmem>>, %arg20: memref<1x32xf32, #tpu.memory_space<vmem>>, %arg21: memref<1x32xf32, #tpu.memory_space<vmem>>, %arg22: memref<512x32xbf16, #tpu.memory_space<vmem>>, %arg23: memref<512x32xbf16, #tpu.memory_space<vmem>>, %arg24: memref<1x512xf32, #tpu.memory_space<vmem>>, %arg25: memref<256x512xbf16, #tpu.memory_space<vmem>>, %arg26: memref<1x256xf32, #tpu.memory_space<vmem>>, %arg27: memref<4x256xbf16, #tpu.memory_space<vmem>>, %arg28: memref<1x4xf32, #tpu.memory_space<vmem>>, %arg29: memref<2x4xf32, #tpu.memory_space<vmem>>) attributes {dimension_semantics = [], scalar_prefetch = 0 : i64, scratch_operands = 0 : i64, tpu.core_type = #tpu.core_type<tc>} {
    %c0 = arith.constant 0 : index
    %c0_0 = arith.constant 0 : index
    %0 = vector.load %arg0[%c0, %c0_0] : memref<16x32xf32, #tpu.memory_space<vmem>>, vector<16x32xf32>
    %c0_1 = arith.constant 0 : index
    %c0_2 = arith.constant 0 : index
    %1 = vector.load %arg1[%c0_1, %c0_2] : memref<8x32xf32, #tpu.memory_space<vmem>>, vector<8x32xf32>
    %c0_3 = arith.constant 0 : index
    %c0_4 = arith.constant 0 : index
    %2 = vector.load %arg2[%c0_3, %c0_4] : memref<2x1xf32, #tpu.memory_space<vmem>>, vector<2x1xf32>
    %c0_5 = arith.constant 0 : index
    %c0_6 = arith.constant 0 : index
    %3 = vector.load %arg3[%c0_5, %c0_6] : memref<16x16xf32, #tpu.memory_space<vmem>>, vector<16x16xf32>
    %c0_7 = arith.constant 0 : index
    %c0_8 = arith.constant 0 : index
    %c0_9 = arith.constant 0 : index
    %4 = vector.load %arg4[%c0_7, %c0_8, %c0_9] : memref<2x32x32xbf16, #tpu.memory_space<vmem>>, vector<2x32x32xbf16>
    %c0_10 = arith.constant 0 : index
    %c0_11 = arith.constant 0 : index
    %5 = vector.load %arg5[%c0_10, %c0_11] : memref<2x32xf32, #tpu.memory_space<vmem>>, vector<2x32xf32>
    %c0_12 = arith.constant 0 : index
    %c0_13 = arith.constant 0 : index
    %c0_14 = arith.constant 0 : index
    %6 = vector.load %arg6[%c0_12, %c0_13, %c0_14] : memref<2x32x32xbf16, #tpu.memory_space<vmem>>, vector<2x32x32xbf16>
    %c0_15 = arith.constant 0 : index
    %c0_16 = arith.constant 0 : index
    %7 = vector.load %arg7[%c0_15, %c0_16] : memref<2x32xf32, #tpu.memory_space<vmem>>, vector<2x32xf32>
    %c0_17 = arith.constant 0 : index
    %c0_18 = arith.constant 0 : index
    %c0_19 = arith.constant 0 : index
    %8 = vector.load %arg8[%c0_17, %c0_18, %c0_19] : memref<2x32x32xbf16, #tpu.memory_space<vmem>>, vector<2x32x32xbf16>
    %c0_20 = arith.constant 0 : index
    %c0_21 = arith.constant 0 : index
    %9 = vector.load %arg9[%c0_20, %c0_21] : memref<2x32xf32, #tpu.memory_space<vmem>>, vector<2x32xf32>
    %c0_22 = arith.constant 0 : index
    %c0_23 = arith.constant 0 : index
    %c0_24 = arith.constant 0 : index
    %10 = vector.load %arg10[%c0_22, %c0_23, %c0_24] : memref<8x8x32xbf16, #tpu.memory_space<vmem>>, vector<8x8x32xbf16>
    %c0_25 = arith.constant 0 : index
    %c0_26 = arith.constant 0 : index
    %11 = vector.load %arg11[%c0_25, %c0_26] : memref<2x32xf32, #tpu.memory_space<vmem>>, vector<2x32xf32>
    %c0_27 = arith.constant 0 : index
    %c0_28 = arith.constant 0 : index
    %c0_29 = arith.constant 0 : index
    %12 = vector.load %arg12[%c0_27, %c0_28, %c0_29] : memref<2x2048x32xbf16, #tpu.memory_space<vmem>>, vector<2x2048x32xbf16>
    %c0_30 = arith.constant 0 : index
    %c0_31 = arith.constant 0 : index
    %13 = vector.load %arg13[%c0_30, %c0_31] : memref<2x2048xf32, #tpu.memory_space<vmem>>, vector<2x2048xf32>
    %c0_32 = arith.constant 0 : index
    %c0_33 = arith.constant 0 : index
    %c0_34 = arith.constant 0 : index
    %14 = vector.load %arg14[%c0_32, %c0_33, %c0_34] : memref<2x32x2048xbf16, #tpu.memory_space<vmem>>, vector<2x32x2048xbf16>
    %c0_35 = arith.constant 0 : index
    %c0_36 = arith.constant 0 : index
    %15 = vector.load %arg15[%c0_35, %c0_36] : memref<2x32xf32, #tpu.memory_space<vmem>>, vector<2x32xf32>
    %c0_37 = arith.constant 0 : index
    %c0_38 = arith.constant 0 : index
    %16 = vector.load %arg16[%c0_37, %c0_38] : memref<2x32xf32, #tpu.memory_space<vmem>>, vector<2x32xf32>
    %c0_39 = arith.constant 0 : index
    %c0_40 = arith.constant 0 : index
    %17 = vector.load %arg17[%c0_39, %c0_40] : memref<2x32xf32, #tpu.memory_space<vmem>>, vector<2x32xf32>
    %c0_41 = arith.constant 0 : index
    %c0_42 = arith.constant 0 : index
    %18 = vector.load %arg18[%c0_41, %c0_42] : memref<2x32xf32, #tpu.memory_space<vmem>>, vector<2x32xf32>
    %c0_43 = arith.constant 0 : index
    %c0_44 = arith.constant 0 : index
    %19 = vector.load %arg19[%c0_43, %c0_44] : memref<2x32xf32, #tpu.memory_space<vmem>>, vector<2x32xf32>
    %c0_45 = arith.constant 0 : index
    %c0_46 = arith.constant 0 : index
    %20 = vector.load %arg20[%c0_45, %c0_46] : memref<1x32xf32, #tpu.memory_space<vmem>>, vector<1x32xf32>
    %c0_47 = arith.constant 0 : index
    %c0_48 = arith.constant 0 : index
    %21 = vector.load %arg21[%c0_47, %c0_48] : memref<1x32xf32, #tpu.memory_space<vmem>>, vector<1x32xf32>
    %c0_49 = arith.constant 0 : index
    %c0_50 = arith.constant 0 : index
    %22 = vector.load %arg22[%c0_49, %c0_50] : memref<512x32xbf16, #tpu.memory_space<vmem>>, vector<512x32xbf16>
    %c0_51 = arith.constant 0 : index
    %c0_52 = arith.constant 0 : index
    %23 = vector.load %arg23[%c0_51, %c0_52] : memref<512x32xbf16, #tpu.memory_space<vmem>>, vector<512x32xbf16>
    %c0_53 = arith.constant 0 : index
    %c0_54 = arith.constant 0 : index
    %24 = vector.load %arg24[%c0_53, %c0_54] : memref<1x512xf32, #tpu.memory_space<vmem>>, vector<1x512xf32>
    %c0_55 = arith.constant 0 : index
    %c0_56 = arith.constant 0 : index
    %25 = vector.load %arg25[%c0_55, %c0_56] : memref<256x512xbf16, #tpu.memory_space<vmem>>, vector<256x512xbf16>
    %c0_57 = arith.constant 0 : index
    %c0_58 = arith.constant 0 : index
    %26 = vector.load %arg26[%c0_57, %c0_58] : memref<1x256xf32, #tpu.memory_space<vmem>>, vector<1x256xf32>
    %c0_59 = arith.constant 0 : index
    %c0_60 = arith.constant 0 : index
    %27 = vector.load %arg27[%c0_59, %c0_60] : memref<4x256xbf16, #tpu.memory_space<vmem>>, vector<4x256xbf16>
    %c0_61 = arith.constant 0 : index
    %c0_62 = arith.constant 0 : index
    %28 = vector.load %arg28[%c0_61, %c0_62] : memref<1x4xf32, #tpu.memory_space<vmem>>, vector<1x4xf32>
    %29 = tpu.concatenate %1, %1 in 0 : vector<8x32xf32>, vector<8x32xf32> -> vector<16x32xf32>
    %30 = arith.addf %0, %29 : vector<16x32xf32>
    %31 = vector.extract_strided_slice %4 {offsets = [0, 0, 0], sizes = [1, 32, 32], strides = [1, 1, 1]} : vector<2x32x32xbf16> to vector<1x32x32xbf16>
    %32 = vector.shape_cast %31 : vector<1x32x32xbf16> to vector<32x32xbf16>
    %33 = arith.truncf %30 : vector<16x32xf32> to vector<16x32xbf16>
    %cst = arith.constant dense<0.000000e+00> : vector<16x32xf32>
    %34 = tpu.matmul %33, %32, %cst {dimension_numbers = #tpu.dot_dimension_numbers<[1], [1], [0], [0], [0, 0, 1, 0], [], []>} : vector<16x32xbf16>, vector<32x32xbf16>, vector<16x32xf32> -> vector<16x32xf32>
    %35 = vector.extract_strided_slice %5 {offsets = [0, 0], sizes = [1, 32], strides = [1, 1]} : vector<2x32xf32> to vector<1x32xf32>
    %36 = vector.shape_cast %35 : vector<1x32xf32> to vector<32xf32>
    %37 = vector.shape_cast %36 : vector<32xf32> to vector<1x32xf32>
    %38 = vector.broadcast %37 : vector<1x32xf32> to vector<16x32xf32>
    %39 = arith.addf %34, %38 : vector<16x32xf32>
    %40 = vector.extract_strided_slice %6 {offsets = [0, 0, 0], sizes = [1, 32, 32], strides = [1, 1, 1]} : vector<2x32x32xbf16> to vector<1x32x32xbf16>
    %41 = vector.shape_cast %40 : vector<1x32x32xbf16> to vector<32x32xbf16>
    %42 = arith.truncf %30 : vector<16x32xf32> to vector<16x32xbf16>
    %cst_63 = arith.constant dense<0.000000e+00> : vector<16x32xf32>
    %43 = tpu.matmul %42, %41, %cst_63 {dimension_numbers = #tpu.dot_dimension_numbers<[1], [1], [0], [0], [0, 0, 1, 0], [], []>} : vector<16x32xbf16>, vector<32x32xbf16>, vector<16x32xf32> -> vector<16x32xf32>
    %44 = vector.extract_strided_slice %7 {offsets = [0, 0], sizes = [1, 32], strides = [1, 1]} : vector<2x32xf32> to vector<1x32xf32>
    %45 = vector.shape_cast %44 : vector<1x32xf32> to vector<32xf32>
    %46 = vector.shape_cast %45 : vector<32xf32> to vector<1x32xf32>
    %47 = vector.broadcast %46 : vector<1x32xf32> to vector<16x32xf32>
    %48 = arith.addf %43, %47 : vector<16x32xf32>
    %49 = vector.extract_strided_slice %8 {offsets = [0, 0, 0], sizes = [1, 32, 32], strides = [1, 1, 1]} : vector<2x32x32xbf16> to vector<1x32x32xbf16>
    %50 = vector.shape_cast %49 : vector<1x32x32xbf16> to vector<32x32xbf16>
    %51 = arith.truncf %30 : vector<16x32xf32> to vector<16x32xbf16>
    %cst_64 = arith.constant dense<0.000000e+00> : vector<16x32xf32>
    %52 = tpu.matmul %51, %50, %cst_64 {dimension_numbers = #tpu.dot_dimension_numbers<[1], [1], [0], [0], [0, 0, 1, 0], [], []>} : vector<16x32xbf16>, vector<32x32xbf16>, vector<16x32xf32> -> vector<16x32xf32>
    %53 = vector.extract_strided_slice %9 {offsets = [0, 0], sizes = [1, 32], strides = [1, 1]} : vector<2x32xf32> to vector<1x32xf32>
    %54 = vector.shape_cast %53 : vector<1x32xf32> to vector<32xf32>
    %55 = vector.shape_cast %54 : vector<32xf32> to vector<1x32xf32>
    %56 = vector.broadcast %55 : vector<1x32xf32> to vector<16x32xf32>
    %57 = arith.addf %52, %56 : vector<16x32xf32>
    %cst_65 = arith.constant 0.000000e+00 : f32
    %58 = vector.broadcast %cst_65 : f32 to vector<16x32xf32>
    %59 = vector.extract_strided_slice %39 {offsets = [0, 0], sizes = [16, 8], strides = [1, 1]} : vector<16x32xf32> to vector<16x8xf32>
    %cst_66 = arith.constant 0.353553385 : f32
    %60 = vector.broadcast %cst_66 : f32 to vector<16x8xf32>
    %61 = arith.mulf %59, %60 : vector<16x8xf32>
    %62 = vector.extract_strided_slice %48 {offsets = [0, 0], sizes = [16, 8], strides = [1, 1]} : vector<16x32xf32> to vector<16x8xf32>
    %63 = vector.extract_strided_slice %57 {offsets = [0, 0], sizes = [16, 8], strides = [1, 1]} : vector<16x32xf32> to vector<16x8xf32>
    %64 = arith.truncf %61 : vector<16x8xf32> to vector<16x8xbf16>
    %65 = arith.truncf %62 : vector<16x8xf32> to vector<16x8xbf16>
    %cst_67 = arith.constant dense<0.000000e+00> : vector<16x16xf32>
    %66 = tpu.matmul %64, %65, %cst_67 {dimension_numbers = #tpu.dot_dimension_numbers<[1], [1], [0], [0], [0, 0, 1, 0], [], []>} : vector<16x8xbf16>, vector<16x8xbf16>, vector<16x16xf32> -> vector<16x16xf32>
    %67 = arith.addf %66, %3 : vector<16x16xf32>
    %cst_68 = arith.constant dense<0xFF800000> : vector<16xf32>
    %68 = vector.multi_reduction <maximumf>, %67, %cst_68 [1] : vector<16x16xf32> to vector<16xf32>
    %69 = vector.shape_cast %68 : vector<16xf32> to vector<16x1xf32>
    %70 = vector.broadcast %69 : vector<16x1xf32> to vector<16x16xf32>
    %71 = arith.subf %67, %70 : vector<16x16xf32>
    %72 = math.exp %71 : vector<16x16xf32>
    %cst_69 = arith.constant dense<0.000000e+00> : vector<16xf32>
    %73 = vector.multi_reduction <add>, %72, %cst_69 [1] : vector<16x16xf32> to vector<16xf32>
    %74 = vector.shape_cast %73 : vector<16xf32> to vector<16x1xf32>
    %75 = tpu.reciprocal %74 {approx = true} : vector<16x1xf32> -> vector<16x1xf32>
    %76 = vector.broadcast %75 : vector<16x1xf32> to vector<16x16xf32>
    %77 = arith.mulf %72, %76 : vector<16x16xf32>
    %78 = arith.truncf %77 : vector<16x16xf32> to vector<16x16xbf16>
    %79 = arith.truncf %63 : vector<16x8xf32> to vector<16x8xbf16>
    %cst_70 = arith.constant dense<0.000000e+00> : vector<16x8xf32>
    %80 = tpu.matmul %78, %79, %cst_70 {dimension_numbers = #tpu.dot_dimension_numbers<[1], [0], [0], [1], [0, 0, 1, 1], [], []>} : vector<16x16xbf16>, vector<16x8xbf16>, vector<16x8xf32> -> vector<16x8xf32>
    %81 = vector.extract_strided_slice %10 {offsets = [0, 0, 0], sizes = [1, 8, 32], strides = [1, 1, 1]} : vector<8x8x32xbf16> to vector<1x8x32xbf16>
    %82 = vector.shape_cast %81 : vector<1x8x32xbf16> to vector<8x32xbf16>
    %83 = arith.truncf %80 : vector<16x8xf32> to vector<16x8xbf16>
    %cst_71 = arith.constant dense<0.000000e+00> : vector<16x32xf32>
    %84 = tpu.matmul %83, %82, %cst_71 {dimension_numbers = #tpu.dot_dimension_numbers<[1], [0], [0], [1], [0, 0, 1, 1], [], []>} : vector<16x8xbf16>, vector<8x32xbf16>, vector<16x32xf32> -> vector<16x32xf32>
    %85 = arith.addf %58, %84 : vector<16x32xf32>
    %86 = vector.extract_strided_slice %39 {offsets = [0, 8], sizes = [16, 8], strides = [1, 1]} : vector<16x32xf32> to vector<16x8xf32>
    %cst_72 = arith.constant 0.353553385 : f32
    %87 = vector.broadcast %cst_72 : f32 to vector<16x8xf32>
    %88 = arith.mulf %86, %87 : vector<16x8xf32>
    %89 = vector.extract_strided_slice %48 {offsets = [0, 8], sizes = [16, 8], strides = [1, 1]} : vector<16x32xf32> to vector<16x8xf32>
    %90 = vector.extract_strided_slice %57 {offsets = [0, 8], sizes = [16, 8], strides = [1, 1]} : vector<16x32xf32> to vector<16x8xf32>
    %91 = arith.truncf %88 : vector<16x8xf32> to vector<16x8xbf16>
    %92 = arith.truncf %89 : vector<16x8xf32> to vector<16x8xbf16>
    %cst_73 = arith.constant dense<0.000000e+00> : vector<16x16xf32>
    %93 = tpu.matmul %91, %92, %cst_73 {dimension_numbers = #tpu.dot_dimension_numbers<[1], [1], [0], [0], [0, 0, 1, 0], [], []>} : vector<16x8xbf16>, vector<16x8xbf16>, vector<16x16xf32> -> vector<16x16xf32>
    %94 = arith.addf %93, %3 : vector<16x16xf32>
    %cst_74 = arith.constant dense<0xFF800000> : vector<16xf32>
    %95 = vector.multi_reduction <maximumf>, %94, %cst_74 [1] : vector<16x16xf32> to vector<16xf32>
    %96 = vector.shape_cast %95 : vector<16xf32> to vector<16x1xf32>
    %97 = vector.broadcast %96 : vector<16x1xf32> to vector<16x16xf32>
    %98 = arith.subf %94, %97 : vector<16x16xf32>
    %99 = math.exp %98 : vector<16x16xf32>
    %cst_75 = arith.constant dense<0.000000e+00> : vector<16xf32>
    %100 = vector.multi_reduction <add>, %99, %cst_75 [1] : vector<16x16xf32> to vector<16xf32>
    %101 = vector.shape_cast %100 : vector<16xf32> to vector<16x1xf32>
    %102 = tpu.reciprocal %101 {approx = true} : vector<16x1xf32> -> vector<16x1xf32>
    %103 = vector.broadcast %102 : vector<16x1xf32> to vector<16x16xf32>
    %104 = arith.mulf %99, %103 : vector<16x16xf32>
    %105 = arith.truncf %104 : vector<16x16xf32> to vector<16x16xbf16>
    %106 = arith.truncf %90 : vector<16x8xf32> to vector<16x8xbf16>
    %cst_76 = arith.constant dense<0.000000e+00> : vector<16x8xf32>
    %107 = tpu.matmul %105, %106, %cst_76 {dimension_numbers = #tpu.dot_dimension_numbers<[1], [0], [0], [1], [0, 0, 1, 1], [], []>} : vector<16x16xbf16>, vector<16x8xbf16>, vector<16x8xf32> -> vector<16x8xf32>
    %108 = vector.extract_strided_slice %10 {offsets = [1, 0, 0], sizes = [1, 8, 32], strides = [1, 1, 1]} : vector<8x8x32xbf16> to vector<1x8x32xbf16>
    %109 = vector.shape_cast %108 : vector<1x8x32xbf16> to vector<8x32xbf16>
    %110 = arith.truncf %107 : vector<16x8xf32> to vector<16x8xbf16>
    %cst_77 = arith.constant dense<0.000000e+00> : vector<16x32xf32>
    %111 = tpu.matmul %110, %109, %cst_77 {dimension_numbers = #tpu.dot_dimension_numbers<[1], [0], [0], [1], [0, 0, 1, 1], [], []>} : vector<16x8xbf16>, vector<8x32xbf16>, vector<16x32xf32> -> vector<16x32xf32>
    %112 = arith.addf %85, %111 : vector<16x32xf32>
    %113 = vector.extract_strided_slice %39 {offsets = [0, 16], sizes = [16, 8], strides = [1, 1]} : vector<16x32xf32> to vector<16x8xf32>
    %cst_78 = arith.constant 0.353553385 : f32
    %114 = vector.broadcast %cst_78 : f32 to vector<16x8xf32>
    %115 = arith.mulf %113, %114 : vector<16x8xf32>
    %116 = vector.extract_strided_slice %48 {offsets = [0, 16], sizes = [16, 8], strides = [1, 1]} : vector<16x32xf32> to vector<16x8xf32>
    %117 = vector.extract_strided_slice %57 {offsets = [0, 16], sizes = [16, 8], strides = [1, 1]} : vector<16x32xf32> to vector<16x8xf32>
    %118 = arith.truncf %115 : vector<16x8xf32> to vector<16x8xbf16>
    %119 = arith.truncf %116 : vector<16x8xf32> to vector<16x8xbf16>
    %cst_79 = arith.constant dense<0.000000e+00> : vector<16x16xf32>
    %120 = tpu.matmul %118, %119, %cst_79 {dimension_numbers = #tpu.dot_dimension_numbers<[1], [1], [0], [0], [0, 0, 1, 0], [], []>} : vector<16x8xbf16>, vector<16x8xbf16>, vector<16x16xf32> -> vector<16x16xf32>
    %121 = arith.addf %120, %3 : vector<16x16xf32>
    %cst_80 = arith.constant dense<0xFF800000> : vector<16xf32>
    %122 = vector.multi_reduction <maximumf>, %121, %cst_80 [1] : vector<16x16xf32> to vector<16xf32>
    %123 = vector.shape_cast %122 : vector<16xf32> to vector<16x1xf32>
    %124 = vector.broadcast %123 : vector<16x1xf32> to vector<16x16xf32>
    %125 = arith.subf %121, %124 : vector<16x16xf32>
    %126 = math.exp %125 : vector<16x16xf32>
    %cst_81 = arith.constant dense<0.000000e+00> : vector<16xf32>
    %127 = vector.multi_reduction <add>, %126, %cst_81 [1] : vector<16x16xf32> to vector<16xf32>
    %128 = vector.shape_cast %127 : vector<16xf32> to vector<16x1xf32>
    %129 = tpu.reciprocal %128 {approx = true} : vector<16x1xf32> -> vector<16x1xf32>
    %130 = vector.broadcast %129 : vector<16x1xf32> to vector<16x16xf32>
    %131 = arith.mulf %126, %130 : vector<16x16xf32>
    %132 = arith.truncf %131 : vector<16x16xf32> to vector<16x16xbf16>
    %133 = arith.truncf %117 : vector<16x8xf32> to vector<16x8xbf16>
    %cst_82 = arith.constant dense<0.000000e+00> : vector<16x8xf32>
    %134 = tpu.matmul %132, %133, %cst_82 {dimension_numbers = #tpu.dot_dimension_numbers<[1], [0], [0], [1], [0, 0, 1, 1], [], []>} : vector<16x16xbf16>, vector<16x8xbf16>, vector<16x8xf32> -> vector<16x8xf32>
    %135 = vector.extract_strided_slice %10 {offsets = [2, 0, 0], sizes = [1, 8, 32], strides = [1, 1, 1]} : vector<8x8x32xbf16> to vector<1x8x32xbf16>
    %136 = vector.shape_cast %135 : vector<1x8x32xbf16> to vector<8x32xbf16>
    %137 = arith.truncf %134 : vector<16x8xf32> to vector<16x8xbf16>
    %cst_83 = arith.constant dense<0.000000e+00> : vector<16x32xf32>
    %138 = tpu.matmul %137, %136, %cst_83 {dimension_numbers = #tpu.dot_dimension_numbers<[1], [0], [0], [1], [0, 0, 1, 1], [], []>} : vector<16x8xbf16>, vector<8x32xbf16>, vector<16x32xf32> -> vector<16x32xf32>
    %139 = arith.addf %112, %138 : vector<16x32xf32>
    %140 = vector.extract_strided_slice %39 {offsets = [0, 24], sizes = [16, 8], strides = [1, 1]} : vector<16x32xf32> to vector<16x8xf32>
    %cst_84 = arith.constant 0.353553385 : f32
    %141 = vector.broadcast %cst_84 : f32 to vector<16x8xf32>
    %142 = arith.mulf %140, %141 : vector<16x8xf32>
    %143 = vector.extract_strided_slice %48 {offsets = [0, 24], sizes = [16, 8], strides = [1, 1]} : vector<16x32xf32> to vector<16x8xf32>
    %144 = vector.extract_strided_slice %57 {offsets = [0, 24], sizes = [16, 8], strides = [1, 1]} : vector<16x32xf32> to vector<16x8xf32>
    %145 = arith.truncf %142 : vector<16x8xf32> to vector<16x8xbf16>
    %146 = arith.truncf %143 : vector<16x8xf32> to vector<16x8xbf16>
    %cst_85 = arith.constant dense<0.000000e+00> : vector<16x16xf32>
    %147 = tpu.matmul %145, %146, %cst_85 {dimension_numbers = #tpu.dot_dimension_numbers<[1], [1], [0], [0], [0, 0, 1, 0], [], []>} : vector<16x8xbf16>, vector<16x8xbf16>, vector<16x16xf32> -> vector<16x16xf32>
    %148 = arith.addf %147, %3 : vector<16x16xf32>
    %cst_86 = arith.constant dense<0xFF800000> : vector<16xf32>
    %149 = vector.multi_reduction <maximumf>, %148, %cst_86 [1] : vector<16x16xf32> to vector<16xf32>
    %150 = vector.shape_cast %149 : vector<16xf32> to vector<16x1xf32>
    %151 = vector.broadcast %150 : vector<16x1xf32> to vector<16x16xf32>
    %152 = arith.subf %148, %151 : vector<16x16xf32>
    %153 = math.exp %152 : vector<16x16xf32>
    %cst_87 = arith.constant dense<0.000000e+00> : vector<16xf32>
    %154 = vector.multi_reduction <add>, %153, %cst_87 [1] : vector<16x16xf32> to vector<16xf32>
    %155 = vector.shape_cast %154 : vector<16xf32> to vector<16x1xf32>
    %156 = tpu.reciprocal %155 {approx = true} : vector<16x1xf32> -> vector<16x1xf32>
    %157 = vector.broadcast %156 : vector<16x1xf32> to vector<16x16xf32>
    %158 = arith.mulf %153, %157 : vector<16x16xf32>
    %159 = arith.truncf %158 : vector<16x16xf32> to vector<16x16xbf16>
    %160 = arith.truncf %144 : vector<16x8xf32> to vector<16x8xbf16>
    %cst_88 = arith.constant dense<0.000000e+00> : vector<16x8xf32>
    %161 = tpu.matmul %159, %160, %cst_88 {dimension_numbers = #tpu.dot_dimension_numbers<[1], [0], [0], [1], [0, 0, 1, 1], [], []>} : vector<16x16xbf16>, vector<16x8xbf16>, vector<16x8xf32> -> vector<16x8xf32>
    %162 = vector.extract_strided_slice %10 {offsets = [3, 0, 0], sizes = [1, 8, 32], strides = [1, 1, 1]} : vector<8x8x32xbf16> to vector<1x8x32xbf16>
    %163 = vector.shape_cast %162 : vector<1x8x32xbf16> to vector<8x32xbf16>
    %164 = arith.truncf %161 : vector<16x8xf32> to vector<16x8xbf16>
    %cst_89 = arith.constant dense<0.000000e+00> : vector<16x32xf32>
    %165 = tpu.matmul %164, %163, %cst_89 {dimension_numbers = #tpu.dot_dimension_numbers<[1], [0], [0], [1], [0, 0, 1, 1], [], []>} : vector<16x8xbf16>, vector<8x32xbf16>, vector<16x32xf32> -> vector<16x32xf32>
    %166 = arith.addf %139, %165 : vector<16x32xf32>
    %167 = vector.extract_strided_slice %11 {offsets = [0, 0], sizes = [1, 32], strides = [1, 1]} : vector<2x32xf32> to vector<1x32xf32>
    %168 = vector.shape_cast %167 : vector<1x32xf32> to vector<32xf32>
    %169 = vector.shape_cast %168 : vector<32xf32> to vector<1x32xf32>
    %170 = vector.broadcast %169 : vector<1x32xf32> to vector<16x32xf32>
    %171 = arith.addf %166, %170 : vector<16x32xf32>
    %172 = arith.addf %30, %171 : vector<16x32xf32>
    %173 = vector.extract_strided_slice %16 {offsets = [0, 0], sizes = [1, 32], strides = [1, 1]} : vector<2x32xf32> to vector<1x32xf32>
    %174 = vector.shape_cast %173 : vector<1x32xf32> to vector<32xf32>
    %175 = vector.extract_strided_slice %17 {offsets = [0, 0], sizes = [1, 32], strides = [1, 1]} : vector<2x32xf32> to vector<1x32xf32>
    %176 = vector.shape_cast %175 : vector<1x32xf32> to vector<32xf32>
    %cst_90 = arith.constant dense<0.000000e+00> : vector<16xf32>
    %177 = vector.multi_reduction <add>, %172, %cst_90 [1] : vector<16x32xf32> to vector<16xf32>
    %178 = vector.shape_cast %177 : vector<16xf32> to vector<16x1xf32>
    %cst_91 = arith.constant 3.200000e+01 : f32
    %179 = vector.broadcast %cst_91 : f32 to vector<16x1xf32>
    %180 = arith.divf %178, %179 : vector<16x1xf32>
    %181 = arith.mulf %172, %172 : vector<16x32xf32>
    %cst_92 = arith.constant dense<0.000000e+00> : vector<16xf32>
    %182 = vector.multi_reduction <add>, %181, %cst_92 [1] : vector<16x32xf32> to vector<16xf32>
    %183 = vector.shape_cast %182 : vector<16xf32> to vector<16x1xf32>
    %cst_93 = arith.constant 3.200000e+01 : f32
    %184 = vector.broadcast %cst_93 : f32 to vector<16x1xf32>
    %185 = arith.divf %183, %184 : vector<16x1xf32>
    %186 = arith.mulf %180, %180 : vector<16x1xf32>
    %187 = arith.subf %185, %186 : vector<16x1xf32>
    %188 = vector.broadcast %180 : vector<16x1xf32> to vector<16x32xf32>
    %189 = arith.subf %172, %188 : vector<16x32xf32>
    %cst_94 = arith.constant 9.99999974E-6 : f32
    %190 = vector.broadcast %cst_94 : f32 to vector<16x1xf32>
    %191 = arith.addf %187, %190 : vector<16x1xf32>
    %192 = math.rsqrt %191 : vector<16x1xf32>
    %193 = vector.broadcast %192 : vector<16x1xf32> to vector<16x32xf32>
    %194 = arith.mulf %189, %193 : vector<16x32xf32>
    %195 = vector.shape_cast %174 : vector<32xf32> to vector<1x32xf32>
    %196 = vector.broadcast %195 : vector<1x32xf32> to vector<16x32xf32>
    %197 = arith.mulf %194, %196 : vector<16x32xf32>
    %198 = vector.shape_cast %176 : vector<32xf32> to vector<1x32xf32>
    %199 = vector.broadcast %198 : vector<1x32xf32> to vector<16x32xf32>
    %200 = arith.addf %197, %199 : vector<16x32xf32>
    %201 = vector.extract_strided_slice %12 {offsets = [0, 0, 0], sizes = [1, 2048, 32], strides = [1, 1, 1]} : vector<2x2048x32xbf16> to vector<1x2048x32xbf16>
    %202 = vector.shape_cast %201 : vector<1x2048x32xbf16> to vector<2048x32xbf16>
    %203 = arith.truncf %200 : vector<16x32xf32> to vector<16x32xbf16>
    %cst_95 = arith.constant dense<0.000000e+00> : vector<16x2048xf32>
    %204 = tpu.matmul %203, %202, %cst_95 {dimension_numbers = #tpu.dot_dimension_numbers<[1], [1], [0], [0], [0, 0, 1, 0], [], []>} : vector<16x32xbf16>, vector<2048x32xbf16>, vector<16x2048xf32> -> vector<16x2048xf32>
    %205 = vector.extract_strided_slice %13 {offsets = [0, 0], sizes = [1, 2048], strides = [1, 1]} : vector<2x2048xf32> to vector<1x2048xf32>
    %206 = vector.shape_cast %205 : vector<1x2048xf32> to vector<2048xf32>
    %207 = vector.shape_cast %206 : vector<2048xf32> to vector<1x2048xf32>
    %208 = vector.broadcast %207 : vector<1x2048xf32> to vector<16x2048xf32>
    %209 = arith.addf %204, %208 : vector<16x2048xf32>
    %cst_96 = arith.constant 0.000000e+00 : f32
    %210 = vector.broadcast %cst_96 : f32 to vector<16x2048xf32>
    %211 = arith.maximumf %209, %210 : vector<16x2048xf32>
    %212 = vector.extract_strided_slice %14 {offsets = [0, 0, 0], sizes = [1, 32, 2048], strides = [1, 1, 1]} : vector<2x32x2048xbf16> to vector<1x32x2048xbf16>
    %213 = vector.shape_cast %212 : vector<1x32x2048xbf16> to vector<32x2048xbf16>
    %214 = arith.truncf %211 : vector<16x2048xf32> to vector<16x2048xbf16>
    %cst_97 = arith.constant dense<0.000000e+00> : vector<16x32xf32>
    %215 = tpu.matmul %214, %213, %cst_97 {dimension_numbers = #tpu.dot_dimension_numbers<[1], [1], [0], [0], [0, 0, 1, 0], [], []>} : vector<16x2048xbf16>, vector<32x2048xbf16>, vector<16x32xf32> -> vector<16x32xf32>
    %216 = vector.extract_strided_slice %15 {offsets = [0, 0], sizes = [1, 32], strides = [1, 1]} : vector<2x32xf32> to vector<1x32xf32>
    %217 = vector.shape_cast %216 : vector<1x32xf32> to vector<32xf32>
    %218 = vector.shape_cast %217 : vector<32xf32> to vector<1x32xf32>
    %219 = vector.broadcast %218 : vector<1x32xf32> to vector<16x32xf32>
    %220 = arith.addf %215, %219 : vector<16x32xf32>
    %221 = arith.addf %200, %220 : vector<16x32xf32>
    %222 = vector.extract_strided_slice %18 {offsets = [0, 0], sizes = [1, 32], strides = [1, 1]} : vector<2x32xf32> to vector<1x32xf32>
    %223 = vector.shape_cast %222 : vector<1x32xf32> to vector<32xf32>
    %224 = vector.extract_strided_slice %19 {offsets = [0, 0], sizes = [1, 32], strides = [1, 1]} : vector<2x32xf32> to vector<1x32xf32>
    %225 = vector.shape_cast %224 : vector<1x32xf32> to vector<32xf32>
    %cst_98 = arith.constant dense<0.000000e+00> : vector<16xf32>
    %226 = vector.multi_reduction <add>, %221, %cst_98 [1] : vector<16x32xf32> to vector<16xf32>
    %227 = vector.shape_cast %226 : vector<16xf32> to vector<16x1xf32>
    %cst_99 = arith.constant 3.200000e+01 : f32
    %228 = vector.broadcast %cst_99 : f32 to vector<16x1xf32>
    %229 = arith.divf %227, %228 : vector<16x1xf32>
    %230 = arith.mulf %221, %221 : vector<16x32xf32>
    %cst_100 = arith.constant dense<0.000000e+00> : vector<16xf32>
    %231 = vector.multi_reduction <add>, %230, %cst_100 [1] : vector<16x32xf32> to vector<16xf32>
    %232 = vector.shape_cast %231 : vector<16xf32> to vector<16x1xf32>
    %cst_101 = arith.constant 3.200000e+01 : f32
    %233 = vector.broadcast %cst_101 : f32 to vector<16x1xf32>
    %234 = arith.divf %232, %233 : vector<16x1xf32>
    %235 = arith.mulf %229, %229 : vector<16x1xf32>
    %236 = arith.subf %234, %235 : vector<16x1xf32>
    %237 = vector.broadcast %229 : vector<16x1xf32> to vector<16x32xf32>
    %238 = arith.subf %221, %237 : vector<16x32xf32>
    %cst_102 = arith.constant 9.99999974E-6 : f32
    %239 = vector.broadcast %cst_102 : f32 to vector<16x1xf32>
    %240 = arith.addf %236, %239 : vector<16x1xf32>
    %241 = math.rsqrt %240 : vector<16x1xf32>
    %242 = vector.broadcast %241 : vector<16x1xf32> to vector<16x32xf32>
    %243 = arith.mulf %238, %242 : vector<16x32xf32>
    %244 = vector.shape_cast %223 : vector<32xf32> to vector<1x32xf32>
    %245 = vector.broadcast %244 : vector<1x32xf32> to vector<16x32xf32>
    %246 = arith.mulf %243, %245 : vector<16x32xf32>
    %247 = vector.shape_cast %225 : vector<32xf32> to vector<1x32xf32>
    %248 = vector.broadcast %247 : vector<1x32xf32> to vector<16x32xf32>
    %249 = arith.addf %246, %248 : vector<16x32xf32>
    %250 = vector.extract_strided_slice %4 {offsets = [1, 0, 0], sizes = [1, 32, 32], strides = [1, 1, 1]} : vector<2x32x32xbf16> to vector<1x32x32xbf16>
    %251 = vector.shape_cast %250 : vector<1x32x32xbf16> to vector<32x32xbf16>
    %252 = arith.truncf %249 : vector<16x32xf32> to vector<16x32xbf16>
    %cst_103 = arith.constant dense<0.000000e+00> : vector<16x32xf32>
    %253 = tpu.matmul %252, %251, %cst_103 {dimension_numbers = #tpu.dot_dimension_numbers<[1], [1], [0], [0], [0, 0, 1, 0], [], []>} : vector<16x32xbf16>, vector<32x32xbf16>, vector<16x32xf32> -> vector<16x32xf32>
    %254 = vector.extract_strided_slice %5 {offsets = [1, 0], sizes = [1, 32], strides = [1, 1]} : vector<2x32xf32> to vector<1x32xf32>
    %255 = vector.shape_cast %254 : vector<1x32xf32> to vector<32xf32>
    %256 = vector.shape_cast %255 : vector<32xf32> to vector<1x32xf32>
    %257 = vector.broadcast %256 : vector<1x32xf32> to vector<16x32xf32>
    %258 = arith.addf %253, %257 : vector<16x32xf32>
    %259 = vector.extract_strided_slice %6 {offsets = [1, 0, 0], sizes = [1, 32, 32], strides = [1, 1, 1]} : vector<2x32x32xbf16> to vector<1x32x32xbf16>
    %260 = vector.shape_cast %259 : vector<1x32x32xbf16> to vector<32x32xbf16>
    %261 = arith.truncf %249 : vector<16x32xf32> to vector<16x32xbf16>
    %cst_104 = arith.constant dense<0.000000e+00> : vector<16x32xf32>
    %262 = tpu.matmul %261, %260, %cst_104 {dimension_numbers = #tpu.dot_dimension_numbers<[1], [1], [0], [0], [0, 0, 1, 0], [], []>} : vector<16x32xbf16>, vector<32x32xbf16>, vector<16x32xf32> -> vector<16x32xf32>
    %263 = vector.extract_strided_slice %7 {offsets = [1, 0], sizes = [1, 32], strides = [1, 1]} : vector<2x32xf32> to vector<1x32xf32>
    %264 = vector.shape_cast %263 : vector<1x32xf32> to vector<32xf32>
    %265 = vector.shape_cast %264 : vector<32xf32> to vector<1x32xf32>
    %266 = vector.broadcast %265 : vector<1x32xf32> to vector<16x32xf32>
    %267 = arith.addf %262, %266 : vector<16x32xf32>
    %268 = vector.extract_strided_slice %8 {offsets = [1, 0, 0], sizes = [1, 32, 32], strides = [1, 1, 1]} : vector<2x32x32xbf16> to vector<1x32x32xbf16>
    %269 = vector.shape_cast %268 : vector<1x32x32xbf16> to vector<32x32xbf16>
    %270 = arith.truncf %249 : vector<16x32xf32> to vector<16x32xbf16>
    %cst_105 = arith.constant dense<0.000000e+00> : vector<16x32xf32>
    %271 = tpu.matmul %270, %269, %cst_105 {dimension_numbers = #tpu.dot_dimension_numbers<[1], [1], [0], [0], [0, 0, 1, 0], [], []>} : vector<16x32xbf16>, vector<32x32xbf16>, vector<16x32xf32> -> vector<16x32xf32>
    %272 = vector.extract_strided_slice %9 {offsets = [1, 0], sizes = [1, 32], strides = [1, 1]} : vector<2x32xf32> to vector<1x32xf32>
    %273 = vector.shape_cast %272 : vector<1x32xf32> to vector<32xf32>
    %274 = vector.shape_cast %273 : vector<32xf32> to vector<1x32xf32>
    %275 = vector.broadcast %274 : vector<1x32xf32> to vector<16x32xf32>
    %276 = arith.addf %271, %275 : vector<16x32xf32>
    %cst_106 = arith.constant 0.000000e+00 : f32
    %277 = vector.broadcast %cst_106 : f32 to vector<16x32xf32>
    %278 = vector.extract_strided_slice %258 {offsets = [0, 0], sizes = [16, 8], strides = [1, 1]} : vector<16x32xf32> to vector<16x8xf32>
    %cst_107 = arith.constant 0.353553385 : f32
    %279 = vector.broadcast %cst_107 : f32 to vector<16x8xf32>
    %280 = arith.mulf %278, %279 : vector<16x8xf32>
    %281 = vector.extract_strided_slice %267 {offsets = [0, 0], sizes = [16, 8], strides = [1, 1]} : vector<16x32xf32> to vector<16x8xf32>
    %282 = vector.extract_strided_slice %276 {offsets = [0, 0], sizes = [16, 8], strides = [1, 1]} : vector<16x32xf32> to vector<16x8xf32>
    %283 = arith.truncf %280 : vector<16x8xf32> to vector<16x8xbf16>
    %284 = arith.truncf %281 : vector<16x8xf32> to vector<16x8xbf16>
    %cst_108 = arith.constant dense<0.000000e+00> : vector<16x16xf32>
    %285 = tpu.matmul %283, %284, %cst_108 {dimension_numbers = #tpu.dot_dimension_numbers<[1], [1], [0], [0], [0, 0, 1, 0], [], []>} : vector<16x8xbf16>, vector<16x8xbf16>, vector<16x16xf32> -> vector<16x16xf32>
    %286 = arith.addf %285, %3 : vector<16x16xf32>
    %cst_109 = arith.constant dense<0xFF800000> : vector<16xf32>
    %287 = vector.multi_reduction <maximumf>, %286, %cst_109 [1] : vector<16x16xf32> to vector<16xf32>
    %288 = vector.shape_cast %287 : vector<16xf32> to vector<16x1xf32>
    %289 = vector.broadcast %288 : vector<16x1xf32> to vector<16x16xf32>
    %290 = arith.subf %286, %289 : vector<16x16xf32>
    %291 = math.exp %290 : vector<16x16xf32>
    %cst_110 = arith.constant dense<0.000000e+00> : vector<16xf32>
    %292 = vector.multi_reduction <add>, %291, %cst_110 [1] : vector<16x16xf32> to vector<16xf32>
    %293 = vector.shape_cast %292 : vector<16xf32> to vector<16x1xf32>
    %294 = tpu.reciprocal %293 {approx = true} : vector<16x1xf32> -> vector<16x1xf32>
    %295 = vector.broadcast %294 : vector<16x1xf32> to vector<16x16xf32>
    %296 = arith.mulf %291, %295 : vector<16x16xf32>
    %297 = arith.truncf %296 : vector<16x16xf32> to vector<16x16xbf16>
    %298 = arith.truncf %282 : vector<16x8xf32> to vector<16x8xbf16>
    %cst_111 = arith.constant dense<0.000000e+00> : vector<16x8xf32>
    %299 = tpu.matmul %297, %298, %cst_111 {dimension_numbers = #tpu.dot_dimension_numbers<[1], [0], [0], [1], [0, 0, 1, 1], [], []>} : vector<16x16xbf16>, vector<16x8xbf16>, vector<16x8xf32> -> vector<16x8xf32>
    %300 = vector.extract_strided_slice %10 {offsets = [4, 0, 0], sizes = [1, 8, 32], strides = [1, 1, 1]} : vector<8x8x32xbf16> to vector<1x8x32xbf16>
    %301 = vector.shape_cast %300 : vector<1x8x32xbf16> to vector<8x32xbf16>
    %302 = arith.truncf %299 : vector<16x8xf32> to vector<16x8xbf16>
    %cst_112 = arith.constant dense<0.000000e+00> : vector<16x32xf32>
    %303 = tpu.matmul %302, %301, %cst_112 {dimension_numbers = #tpu.dot_dimension_numbers<[1], [0], [0], [1], [0, 0, 1, 1], [], []>} : vector<16x8xbf16>, vector<8x32xbf16>, vector<16x32xf32> -> vector<16x32xf32>
    %304 = arith.addf %277, %303 : vector<16x32xf32>
    %305 = vector.extract_strided_slice %258 {offsets = [0, 8], sizes = [16, 8], strides = [1, 1]} : vector<16x32xf32> to vector<16x8xf32>
    %cst_113 = arith.constant 0.353553385 : f32
    %306 = vector.broadcast %cst_113 : f32 to vector<16x8xf32>
    %307 = arith.mulf %305, %306 : vector<16x8xf32>
    %308 = vector.extract_strided_slice %267 {offsets = [0, 8], sizes = [16, 8], strides = [1, 1]} : vector<16x32xf32> to vector<16x8xf32>
    %309 = vector.extract_strided_slice %276 {offsets = [0, 8], sizes = [16, 8], strides = [1, 1]} : vector<16x32xf32> to vector<16x8xf32>
    %310 = arith.truncf %307 : vector<16x8xf32> to vector<16x8xbf16>
    %311 = arith.truncf %308 : vector<16x8xf32> to vector<16x8xbf16>
    %cst_114 = arith.constant dense<0.000000e+00> : vector<16x16xf32>
    %312 = tpu.matmul %310, %311, %cst_114 {dimension_numbers = #tpu.dot_dimension_numbers<[1], [1], [0], [0], [0, 0, 1, 0], [], []>} : vector<16x8xbf16>, vector<16x8xbf16>, vector<16x16xf32> -> vector<16x16xf32>
    %313 = arith.addf %312, %3 : vector<16x16xf32>
    %cst_115 = arith.constant dense<0xFF800000> : vector<16xf32>
    %314 = vector.multi_reduction <maximumf>, %313, %cst_115 [1] : vector<16x16xf32> to vector<16xf32>
    %315 = vector.shape_cast %314 : vector<16xf32> to vector<16x1xf32>
    %316 = vector.broadcast %315 : vector<16x1xf32> to vector<16x16xf32>
    %317 = arith.subf %313, %316 : vector<16x16xf32>
    %318 = math.exp %317 : vector<16x16xf32>
    %cst_116 = arith.constant dense<0.000000e+00> : vector<16xf32>
    %319 = vector.multi_reduction <add>, %318, %cst_116 [1] : vector<16x16xf32> to vector<16xf32>
    %320 = vector.shape_cast %319 : vector<16xf32> to vector<16x1xf32>
    %321 = tpu.reciprocal %320 {approx = true} : vector<16x1xf32> -> vector<16x1xf32>
    %322 = vector.broadcast %321 : vector<16x1xf32> to vector<16x16xf32>
    %323 = arith.mulf %318, %322 : vector<16x16xf32>
    %324 = arith.truncf %323 : vector<16x16xf32> to vector<16x16xbf16>
    %325 = arith.truncf %309 : vector<16x8xf32> to vector<16x8xbf16>
    %cst_117 = arith.constant dense<0.000000e+00> : vector<16x8xf32>
    %326 = tpu.matmul %324, %325, %cst_117 {dimension_numbers = #tpu.dot_dimension_numbers<[1], [0], [0], [1], [0, 0, 1, 1], [], []>} : vector<16x16xbf16>, vector<16x8xbf16>, vector<16x8xf32> -> vector<16x8xf32>
    %327 = vector.extract_strided_slice %10 {offsets = [5, 0, 0], sizes = [1, 8, 32], strides = [1, 1, 1]} : vector<8x8x32xbf16> to vector<1x8x32xbf16>
    %328 = vector.shape_cast %327 : vector<1x8x32xbf16> to vector<8x32xbf16>
    %329 = arith.truncf %326 : vector<16x8xf32> to vector<16x8xbf16>
    %cst_118 = arith.constant dense<0.000000e+00> : vector<16x32xf32>
    %330 = tpu.matmul %329, %328, %cst_118 {dimension_numbers = #tpu.dot_dimension_numbers<[1], [0], [0], [1], [0, 0, 1, 1], [], []>} : vector<16x8xbf16>, vector<8x32xbf16>, vector<16x32xf32> -> vector<16x32xf32>
    %331 = arith.addf %304, %330 : vector<16x32xf32>
    %332 = vector.extract_strided_slice %258 {offsets = [0, 16], sizes = [16, 8], strides = [1, 1]} : vector<16x32xf32> to vector<16x8xf32>
    %cst_119 = arith.constant 0.353553385 : f32
    %333 = vector.broadcast %cst_119 : f32 to vector<16x8xf32>
    %334 = arith.mulf %332, %333 : vector<16x8xf32>
    %335 = vector.extract_strided_slice %267 {offsets = [0, 16], sizes = [16, 8], strides = [1, 1]} : vector<16x32xf32> to vector<16x8xf32>
    %336 = vector.extract_strided_slice %276 {offsets = [0, 16], sizes = [16, 8], strides = [1, 1]} : vector<16x32xf32> to vector<16x8xf32>
    %337 = arith.truncf %334 : vector<16x8xf32> to vector<16x8xbf16>
    %338 = arith.truncf %335 : vector<16x8xf32> to vector<16x8xbf16>
    %cst_120 = arith.constant dense<0.000000e+00> : vector<16x16xf32>
    %339 = tpu.matmul %337, %338, %cst_120 {dimension_numbers = #tpu.dot_dimension_numbers<[1], [1], [0], [0], [0, 0, 1, 0], [], []>} : vector<16x8xbf16>, vector<16x8xbf16>, vector<16x16xf32> -> vector<16x16xf32>
    %340 = arith.addf %339, %3 : vector<16x16xf32>
    %cst_121 = arith.constant dense<0xFF800000> : vector<16xf32>
    %341 = vector.multi_reduction <maximumf>, %340, %cst_121 [1] : vector<16x16xf32> to vector<16xf32>
    %342 = vector.shape_cast %341 : vector<16xf32> to vector<16x1xf32>
    %343 = vector.broadcast %342 : vector<16x1xf32> to vector<16x16xf32>
    %344 = arith.subf %340, %343 : vector<16x16xf32>
    %345 = math.exp %344 : vector<16x16xf32>
    %cst_122 = arith.constant dense<0.000000e+00> : vector<16xf32>
    %346 = vector.multi_reduction <add>, %345, %cst_122 [1] : vector<16x16xf32> to vector<16xf32>
    %347 = vector.shape_cast %346 : vector<16xf32> to vector<16x1xf32>
    %348 = tpu.reciprocal %347 {approx = true} : vector<16x1xf32> -> vector<16x1xf32>
    %349 = vector.broadcast %348 : vector<16x1xf32> to vector<16x16xf32>
    %350 = arith.mulf %345, %349 : vector<16x16xf32>
    %351 = arith.truncf %350 : vector<16x16xf32> to vector<16x16xbf16>
    %352 = arith.truncf %336 : vector<16x8xf32> to vector<16x8xbf16>
    %cst_123 = arith.constant dense<0.000000e+00> : vector<16x8xf32>
    %353 = tpu.matmul %351, %352, %cst_123 {dimension_numbers = #tpu.dot_dimension_numbers<[1], [0], [0], [1], [0, 0, 1, 1], [], []>} : vector<16x16xbf16>, vector<16x8xbf16>, vector<16x8xf32> -> vector<16x8xf32>
    %354 = vector.extract_strided_slice %10 {offsets = [6, 0, 0], sizes = [1, 8, 32], strides = [1, 1, 1]} : vector<8x8x32xbf16> to vector<1x8x32xbf16>
    %355 = vector.shape_cast %354 : vector<1x8x32xbf16> to vector<8x32xbf16>
    %356 = arith.truncf %353 : vector<16x8xf32> to vector<16x8xbf16>
    %cst_124 = arith.constant dense<0.000000e+00> : vector<16x32xf32>
    %357 = tpu.matmul %356, %355, %cst_124 {dimension_numbers = #tpu.dot_dimension_numbers<[1], [0], [0], [1], [0, 0, 1, 1], [], []>} : vector<16x8xbf16>, vector<8x32xbf16>, vector<16x32xf32> -> vector<16x32xf32>
    %358 = arith.addf %331, %357 : vector<16x32xf32>
    %359 = vector.extract_strided_slice %258 {offsets = [0, 24], sizes = [16, 8], strides = [1, 1]} : vector<16x32xf32> to vector<16x8xf32>
    %cst_125 = arith.constant 0.353553385 : f32
    %360 = vector.broadcast %cst_125 : f32 to vector<16x8xf32>
    %361 = arith.mulf %359, %360 : vector<16x8xf32>
    %362 = vector.extract_strided_slice %267 {offsets = [0, 24], sizes = [16, 8], strides = [1, 1]} : vector<16x32xf32> to vector<16x8xf32>
    %363 = vector.extract_strided_slice %276 {offsets = [0, 24], sizes = [16, 8], strides = [1, 1]} : vector<16x32xf32> to vector<16x8xf32>
    %364 = arith.truncf %361 : vector<16x8xf32> to vector<16x8xbf16>
    %365 = arith.truncf %362 : vector<16x8xf32> to vector<16x8xbf16>
    %cst_126 = arith.constant dense<0.000000e+00> : vector<16x16xf32>
    %366 = tpu.matmul %364, %365, %cst_126 {dimension_numbers = #tpu.dot_dimension_numbers<[1], [1], [0], [0], [0, 0, 1, 0], [], []>} : vector<16x8xbf16>, vector<16x8xbf16>, vector<16x16xf32> -> vector<16x16xf32>
    %367 = arith.addf %366, %3 : vector<16x16xf32>
    %cst_127 = arith.constant dense<0xFF800000> : vector<16xf32>
    %368 = vector.multi_reduction <maximumf>, %367, %cst_127 [1] : vector<16x16xf32> to vector<16xf32>
    %369 = vector.shape_cast %368 : vector<16xf32> to vector<16x1xf32>
    %370 = vector.broadcast %369 : vector<16x1xf32> to vector<16x16xf32>
    %371 = arith.subf %367, %370 : vector<16x16xf32>
    %372 = math.exp %371 : vector<16x16xf32>
    %cst_128 = arith.constant dense<0.000000e+00> : vector<16xf32>
    %373 = vector.multi_reduction <add>, %372, %cst_128 [1] : vector<16x16xf32> to vector<16xf32>
    %374 = vector.shape_cast %373 : vector<16xf32> to vector<16x1xf32>
    %375 = tpu.reciprocal %374 {approx = true} : vector<16x1xf32> -> vector<16x1xf32>
    %376 = vector.broadcast %375 : vector<16x1xf32> to vector<16x16xf32>
    %377 = arith.mulf %372, %376 : vector<16x16xf32>
    %378 = arith.truncf %377 : vector<16x16xf32> to vector<16x16xbf16>
    %379 = arith.truncf %363 : vector<16x8xf32> to vector<16x8xbf16>
    %cst_129 = arith.constant dense<0.000000e+00> : vector<16x8xf32>
    %380 = tpu.matmul %378, %379, %cst_129 {dimension_numbers = #tpu.dot_dimension_numbers<[1], [0], [0], [1], [0, 0, 1, 1], [], []>} : vector<16x16xbf16>, vector<16x8xbf16>, vector<16x8xf32> -> vector<16x8xf32>
    %381 = vector.extract_strided_slice %10 {offsets = [7, 0, 0], sizes = [1, 8, 32], strides = [1, 1, 1]} : vector<8x8x32xbf16> to vector<1x8x32xbf16>
    %382 = vector.shape_cast %381 : vector<1x8x32xbf16> to vector<8x32xbf16>
    %383 = arith.truncf %380 : vector<16x8xf32> to vector<16x8xbf16>
    %cst_130 = arith.constant dense<0.000000e+00> : vector<16x32xf32>
    %384 = tpu.matmul %383, %382, %cst_130 {dimension_numbers = #tpu.dot_dimension_numbers<[1], [0], [0], [1], [0, 0, 1, 1], [], []>} : vector<16x8xbf16>, vector<8x32xbf16>, vector<16x32xf32> -> vector<16x32xf32>
    %385 = arith.addf %358, %384 : vector<16x32xf32>
    %386 = vector.extract_strided_slice %11 {offsets = [1, 0], sizes = [1, 32], strides = [1, 1]} : vector<2x32xf32> to vector<1x32xf32>
    %387 = vector.shape_cast %386 : vector<1x32xf32> to vector<32xf32>
    %388 = vector.shape_cast %387 : vector<32xf32> to vector<1x32xf32>
    %389 = vector.broadcast %388 : vector<1x32xf32> to vector<16x32xf32>
    %390 = arith.addf %385, %389 : vector<16x32xf32>
    %391 = arith.addf %249, %390 : vector<16x32xf32>
    %392 = vector.extract_strided_slice %16 {offsets = [1, 0], sizes = [1, 32], strides = [1, 1]} : vector<2x32xf32> to vector<1x32xf32>
    %393 = vector.shape_cast %392 : vector<1x32xf32> to vector<32xf32>
    %394 = vector.extract_strided_slice %17 {offsets = [1, 0], sizes = [1, 32], strides = [1, 1]} : vector<2x32xf32> to vector<1x32xf32>
    %395 = vector.shape_cast %394 : vector<1x32xf32> to vector<32xf32>
    %cst_131 = arith.constant dense<0.000000e+00> : vector<16xf32>
    %396 = vector.multi_reduction <add>, %391, %cst_131 [1] : vector<16x32xf32> to vector<16xf32>
    %397 = vector.shape_cast %396 : vector<16xf32> to vector<16x1xf32>
    %cst_132 = arith.constant 3.200000e+01 : f32
    %398 = vector.broadcast %cst_132 : f32 to vector<16x1xf32>
    %399 = arith.divf %397, %398 : vector<16x1xf32>
    %400 = arith.mulf %391, %391 : vector<16x32xf32>
    %cst_133 = arith.constant dense<0.000000e+00> : vector<16xf32>
    %401 = vector.multi_reduction <add>, %400, %cst_133 [1] : vector<16x32xf32> to vector<16xf32>
    %402 = vector.shape_cast %401 : vector<16xf32> to vector<16x1xf32>
    %cst_134 = arith.constant 3.200000e+01 : f32
    %403 = vector.broadcast %cst_134 : f32 to vector<16x1xf32>
    %404 = arith.divf %402, %403 : vector<16x1xf32>
    %405 = arith.mulf %399, %399 : vector<16x1xf32>
    %406 = arith.subf %404, %405 : vector<16x1xf32>
    %407 = vector.broadcast %399 : vector<16x1xf32> to vector<16x32xf32>
    %408 = arith.subf %391, %407 : vector<16x32xf32>
    %cst_135 = arith.constant 9.99999974E-6 : f32
    %409 = vector.broadcast %cst_135 : f32 to vector<16x1xf32>
    %410 = arith.addf %406, %409 : vector<16x1xf32>
    %411 = math.rsqrt %410 : vector<16x1xf32>
    %412 = vector.broadcast %411 : vector<16x1xf32> to vector<16x32xf32>
    %413 = arith.mulf %408, %412 : vector<16x32xf32>
    %414 = vector.shape_cast %393 : vector<32xf32> to vector<1x32xf32>
    %415 = vector.broadcast %414 : vector<1x32xf32> to vector<16x32xf32>
    %416 = arith.mulf %413, %415 : vector<16x32xf32>
    %417 = vector.shape_cast %395 : vector<32xf32> to vector<1x32xf32>
    %418 = vector.broadcast %417 : vector<1x32xf32> to vector<16x32xf32>
    %419 = arith.addf %416, %418 : vector<16x32xf32>
    %420 = vector.extract_strided_slice %12 {offsets = [1, 0, 0], sizes = [1, 2048, 32], strides = [1, 1, 1]} : vector<2x2048x32xbf16> to vector<1x2048x32xbf16>
    %421 = vector.shape_cast %420 : vector<1x2048x32xbf16> to vector<2048x32xbf16>
    %422 = arith.truncf %419 : vector<16x32xf32> to vector<16x32xbf16>
    %cst_136 = arith.constant dense<0.000000e+00> : vector<16x2048xf32>
    %423 = tpu.matmul %422, %421, %cst_136 {dimension_numbers = #tpu.dot_dimension_numbers<[1], [1], [0], [0], [0, 0, 1, 0], [], []>} : vector<16x32xbf16>, vector<2048x32xbf16>, vector<16x2048xf32> -> vector<16x2048xf32>
    %424 = vector.extract_strided_slice %13 {offsets = [1, 0], sizes = [1, 2048], strides = [1, 1]} : vector<2x2048xf32> to vector<1x2048xf32>
    %425 = vector.shape_cast %424 : vector<1x2048xf32> to vector<2048xf32>
    %426 = vector.shape_cast %425 : vector<2048xf32> to vector<1x2048xf32>
    %427 = vector.broadcast %426 : vector<1x2048xf32> to vector<16x2048xf32>
    %428 = arith.addf %423, %427 : vector<16x2048xf32>
    %cst_137 = arith.constant 0.000000e+00 : f32
    %429 = vector.broadcast %cst_137 : f32 to vector<16x2048xf32>
    %430 = arith.maximumf %428, %429 : vector<16x2048xf32>
    %431 = vector.extract_strided_slice %14 {offsets = [1, 0, 0], sizes = [1, 32, 2048], strides = [1, 1, 1]} : vector<2x32x2048xbf16> to vector<1x32x2048xbf16>
    %432 = vector.shape_cast %431 : vector<1x32x2048xbf16> to vector<32x2048xbf16>
    %433 = arith.truncf %430 : vector<16x2048xf32> to vector<16x2048xbf16>
    %cst_138 = arith.constant dense<0.000000e+00> : vector<16x32xf32>
    %434 = tpu.matmul %433, %432, %cst_138 {dimension_numbers = #tpu.dot_dimension_numbers<[1], [1], [0], [0], [0, 0, 1, 0], [], []>} : vector<16x2048xbf16>, vector<32x2048xbf16>, vector<16x32xf32> -> vector<16x32xf32>
    %435 = vector.extract_strided_slice %15 {offsets = [1, 0], sizes = [1, 32], strides = [1, 1]} : vector<2x32xf32> to vector<1x32xf32>
    %436 = vector.shape_cast %435 : vector<1x32xf32> to vector<32xf32>
    %437 = vector.shape_cast %436 : vector<32xf32> to vector<1x32xf32>
    %438 = vector.broadcast %437 : vector<1x32xf32> to vector<16x32xf32>
    %439 = arith.addf %434, %438 : vector<16x32xf32>
    %440 = arith.addf %419, %439 : vector<16x32xf32>
    %441 = vector.extract_strided_slice %18 {offsets = [1, 0], sizes = [1, 32], strides = [1, 1]} : vector<2x32xf32> to vector<1x32xf32>
    %442 = vector.shape_cast %441 : vector<1x32xf32> to vector<32xf32>
    %443 = vector.extract_strided_slice %19 {offsets = [1, 0], sizes = [1, 32], strides = [1, 1]} : vector<2x32xf32> to vector<1x32xf32>
    %444 = vector.shape_cast %443 : vector<1x32xf32> to vector<32xf32>
    %cst_139 = arith.constant dense<0.000000e+00> : vector<16xf32>
    %445 = vector.multi_reduction <add>, %440, %cst_139 [1] : vector<16x32xf32> to vector<16xf32>
    %446 = vector.shape_cast %445 : vector<16xf32> to vector<16x1xf32>
    %cst_140 = arith.constant 3.200000e+01 : f32
    %447 = vector.broadcast %cst_140 : f32 to vector<16x1xf32>
    %448 = arith.divf %446, %447 : vector<16x1xf32>
    %449 = arith.mulf %440, %440 : vector<16x32xf32>
    %cst_141 = arith.constant dense<0.000000e+00> : vector<16xf32>
    %450 = vector.multi_reduction <add>, %449, %cst_141 [1] : vector<16x32xf32> to vector<16xf32>
    %451 = vector.shape_cast %450 : vector<16xf32> to vector<16x1xf32>
    %cst_142 = arith.constant 3.200000e+01 : f32
    %452 = vector.broadcast %cst_142 : f32 to vector<16x1xf32>
    %453 = arith.divf %451, %452 : vector<16x1xf32>
    %454 = arith.mulf %448, %448 : vector<16x1xf32>
    %455 = arith.subf %453, %454 : vector<16x1xf32>
    %456 = vector.broadcast %448 : vector<16x1xf32> to vector<16x32xf32>
    %457 = arith.subf %440, %456 : vector<16x32xf32>
    %cst_143 = arith.constant 9.99999974E-6 : f32
    %458 = vector.broadcast %cst_143 : f32 to vector<16x1xf32>
    %459 = arith.addf %455, %458 : vector<16x1xf32>
    %460 = math.rsqrt %459 : vector<16x1xf32>
    %461 = vector.broadcast %460 : vector<16x1xf32> to vector<16x32xf32>
    %462 = arith.mulf %457, %461 : vector<16x32xf32>
    %463 = vector.shape_cast %442 : vector<32xf32> to vector<1x32xf32>
    %464 = vector.broadcast %463 : vector<1x32xf32> to vector<16x32xf32>
    %465 = arith.mulf %462, %464 : vector<16x32xf32>
    %466 = vector.shape_cast %444 : vector<32xf32> to vector<1x32xf32>
    %467 = vector.broadcast %466 : vector<1x32xf32> to vector<16x32xf32>
    %468 = arith.addf %465, %467 : vector<16x32xf32>
    %469 = vector.extract_strided_slice %468 {offsets = [7, 0], sizes = [1, 32], strides = [1, 1]} : vector<16x32xf32> to vector<1x32xf32>
    %470 = vector.extract_strided_slice %468 {offsets = [15, 0], sizes = [1, 32], strides = [1, 1]} : vector<16x32xf32> to vector<1x32xf32>
    %471 = tpu.concatenate %469, %470 in 0 : vector<1x32xf32>, vector<1x32xf32> -> vector<2x32xf32>
    %472 = vector.broadcast %2 : vector<2x1xf32> to vector<2x32xf32>
    %473 = vector.broadcast %20 : vector<1x32xf32> to vector<2x32xf32>
    %474 = arith.mulf %472, %473 : vector<2x32xf32>
    %475 = vector.broadcast %21 : vector<1x32xf32> to vector<2x32xf32>
    %476 = arith.addf %474, %475 : vector<2x32xf32>
    %477 = arith.truncf %471 : vector<2x32xf32> to vector<2x32xbf16>
    %cst_144 = arith.constant dense<0.000000e+00> : vector<2x512xf32>
    %478 = tpu.matmul %477, %22, %cst_144 {dimension_numbers = #tpu.dot_dimension_numbers<[1], [1], [0], [0], [0, 0, 1, 0], [], []>} : vector<2x32xbf16>, vector<512x32xbf16>, vector<2x512xf32> -> vector<2x512xf32>
    %479 = arith.truncf %476 : vector<2x32xf32> to vector<2x32xbf16>
    %cst_145 = arith.constant dense<0.000000e+00> : vector<2x512xf32>
    %480 = tpu.matmul %479, %23, %cst_145 {dimension_numbers = #tpu.dot_dimension_numbers<[1], [1], [0], [0], [0, 0, 1, 0], [], []>} : vector<2x32xbf16>, vector<512x32xbf16>, vector<2x512xf32> -> vector<2x512xf32>
    %481 = arith.addf %478, %480 : vector<2x512xf32>
    %482 = vector.broadcast %24 : vector<1x512xf32> to vector<2x512xf32>
    %483 = arith.addf %481, %482 : vector<2x512xf32>
    %cst_146 = arith.constant 0.000000e+00 : f32
    %484 = vector.broadcast %cst_146 : f32 to vector<2x512xf32>
    %485 = arith.cmpf oge, %483, %484 : vector<2x512xf32>
    %cst_147 = arith.constant 0.00999999977 : f32
    %486 = vector.broadcast %cst_147 : f32 to vector<2x512xf32>
    %487 = arith.mulf %486, %483 : vector<2x512xf32>
    %488 = arith.select %485, %483, %487 : vector<2x512xi1>, vector<2x512xf32>
    %489 = arith.truncf %488 : vector<2x512xf32> to vector<2x512xbf16>
    %cst_148 = arith.constant dense<0.000000e+00> : vector<2x256xf32>
    %490 = tpu.matmul %489, %25, %cst_148 {dimension_numbers = #tpu.dot_dimension_numbers<[1], [1], [0], [0], [0, 0, 1, 0], [], []>} : vector<2x512xbf16>, vector<256x512xbf16>, vector<2x256xf32> -> vector<2x256xf32>
    %491 = vector.broadcast %26 : vector<1x256xf32> to vector<2x256xf32>
    %492 = arith.addf %490, %491 : vector<2x256xf32>
    %cst_149 = arith.constant 0.000000e+00 : f32
    %493 = vector.broadcast %cst_149 : f32 to vector<2x256xf32>
    %494 = arith.cmpf oge, %492, %493 : vector<2x256xf32>
    %cst_150 = arith.constant 0.00999999977 : f32
    %495 = vector.broadcast %cst_150 : f32 to vector<2x256xf32>
    %496 = arith.mulf %495, %492 : vector<2x256xf32>
    %497 = arith.select %494, %492, %496 : vector<2x256xi1>, vector<2x256xf32>
    %498 = arith.truncf %497 : vector<2x256xf32> to vector<2x256xbf16>
    %cst_151 = arith.constant dense<0.000000e+00> : vector<2x4xf32>
    %499 = tpu.matmul %498, %27, %cst_151 {dimension_numbers = #tpu.dot_dimension_numbers<[1], [1], [0], [0], [0, 0, 1, 0], [], []>} : vector<2x256xbf16>, vector<4x256xbf16>, vector<2x4xf32> -> vector<2x4xf32>
    %500 = vector.broadcast %28 : vector<1x4xf32> to vector<2x4xf32>
    %501 = arith.addf %499, %500 : vector<2x4xf32>
    %cst_152 = arith.constant dense<0xFF800000> : vector<2xf32>
    %502 = vector.multi_reduction <maximumf>, %501, %cst_152 [1] : vector<2x4xf32> to vector<2xf32>
    %503 = vector.shape_cast %502 : vector<2xf32> to vector<2x1xf32>
    %504 = vector.broadcast %503 : vector<2x1xf32> to vector<2x4xf32>
    %505 = arith.subf %501, %504 : vector<2x4xf32>
    %506 = math.exp %505 : vector<2x4xf32>
    %cst_153 = arith.constant dense<0.000000e+00> : vector<2xf32>
    %507 = vector.multi_reduction <add>, %506, %cst_153 [1] : vector<2x4xf32> to vector<2xf32>
    %508 = vector.shape_cast %507 : vector<2xf32> to vector<2x1xf32>
    %509 = vector.broadcast %508 : vector<2x1xf32> to vector<2x4xf32>
    %510 = arith.divf %506, %509 : vector<2x4xf32>
    %c0_154 = arith.constant 0 : index
    %c0_155 = arith.constant 0 : index
    %511 = vector.load %arg29[%c0_154, %c0_155] : memref<2x4xf32, #tpu.memory_space<vmem>>, vector<2x4xf32>
    tpu.vector_store %arg29[%c0_154, %c0_155], %510 {strides = array<i32>} : memref<2x4xf32, #tpu.memory_space<vmem>>, vector<2x4xf32>,
    return
  }
}

</mosaic_0001>

<llo_original>
// kernel: tpu_custom_call.1
$region0: #{tpu_custom_call.1}
  #allocation0 [shape = 'u32[]', space=smem, size = 0x4, offset = 0x4, fixed_abs, tag = 'smem constant byte address 0x4 - core index']
  #allocation1 [shape = 'u32[144,128]{1,0:T(1,128)}', space=vmem, size = 0x12000, scoped, tag = 'internal scratch']
  %s0 = inlined_call_operand.smem [shape: u32[30], index: -1, kind: input, shape index: {}]
  %s1 = sld [smem:[%s0]]
  %s2 = scalar_lea.smem %s0, 1
  %s3 = sld [smem:[%s2]]
  %s4 = scalar_lea.smem %s0, 2
  %s5 = sld [smem:[%s4]]
  %s6 = scalar_lea.smem %s0, 3
  %s7 = sld [smem:[%s6]]
  %s8 = scalar_lea.smem %s0, 4
  %s9 = sld [smem:[%s8]]
  %s10 = scalar_lea.smem %s0, 5
  %s11 = sld [smem:[%s10]]
  %s12 = scalar_lea.smem %s0, 6
  %s13 = sld [smem:[%s12]]
  %s14 = scalar_lea.smem %s0, 7
  %s15 = sld [smem:[%s14]]
  %s16 = scalar_lea.smem %s0, 8
  %s17 = sld [smem:[%s16]]
  %s18 = scalar_lea.smem %s0, 9
  %s19 = sld [smem:[%s18]]
  %s20 = scalar_lea.smem %s0, 10
  %s21 = sld [smem:[%s20]]
  %s22 = scalar_lea.smem %s0, 11
  %s23 = sld [smem:[%s22]]
  %s24 = scalar_lea.smem %s0, 12
  %s25 = sld [smem:[%s24]]
  %s26 = scalar_lea.smem %s0, 13
  %s27 = sld [smem:[%s26]]
  %s28 = scalar_lea.smem %s0, 14
  %s29 = sld [smem:[%s28]]
  %s30 = scalar_lea.smem %s0, 15
  %s31 = sld [smem:[%s30]]
  %s32 = scalar_lea.smem %s0, 16
  %s33 = sld [smem:[%s32]]
  %s34 = scalar_lea.smem %s0, 17
  %s35 = sld [smem:[%s34]]
  %s36 = scalar_lea.smem %s0, 18
  %s37 = sld [smem:[%s36]]
  %s38 = scalar_lea.smem %s0, 19
  %s39 = sld [smem:[%s38]]
  %s40 = scalar_lea.smem %s0, 20
  %s41 = sld [smem:[%s40]]
  %s42 = scalar_lea.smem %s0, 21
  %s43 = sld [smem:[%s42]]
  %s44 = scalar_lea.smem %s0, 22
  %s45 = sld [smem:[%s44]]
  %s46 = scalar_lea.smem %s0, 23
  %s47 = sld [smem:[%s46]]
  %s48 = scalar_lea.smem %s0, 24
  %s49 = sld [smem:[%s48]]
  %s50 = scalar_lea.smem %s0, 25
  %s51 = sld [smem:[%s50]]
  %s52 = scalar_lea.smem %s0, 26
  %s53 = sld [smem:[%s52]]
  %s54 = scalar_lea.smem %s0, 27
  %s55 = sld [smem:[%s54]]
  %s56 = scalar_lea.smem %s0, 28
  %s57 = sld [smem:[%s56]]
  %s58 = scalar_lea.smem %s0, 29
  %s59 = sld [smem:[%s58]]
  %s60 = sld [smem:[#allocation0]]
  $region126: #{tpu_custom_call.1} parent=0
    _
  %s62 = ssub.s32 1, %s60
  %s63 = scalar_select 0, %s62, %s60
  $region1: #{tpu_custom_call.1} parent=0
    #allocation2 [shape = 'u8[1024]{0}', space=vmem, size = 0x400, scoped, tag = 'output window, operand 0, single buffered']
    #allocation3 [shape = 's32[1]{0}', space=sflag, size = 0x4, scoped, tag = 'scoped memory for tpu_custom_call.1']
    %64 = vsyncpa [#allocation3], 0
    // Predicated region
    $region2: #{tpu_custom_call.1} parent=1 // pred_check
      _
    $region3: #{tpu_custom_call.1} parent=1 // pred_check_branch
      %66 = sbr.rel (0) target = $region5
    $region4: #{tpu_custom_call.1} parent=1 // pred_region
      _
    $region5: #{tpu_custom_call.1} parent=1 // pred_fallthru
      _
    // Predicated region
    $region6: #{tpu_custom_call.1} parent=1 // pred_check
      _
    $region7: #{tpu_custom_call.1} parent=1 // pred_check_branch
      %68 = sbr.rel (0) target = $region9
    $region8: #{tpu_custom_call.1} parent=1 // pred_region
      _
    $region9: #{tpu_custom_call.1} parent=1 // pred_fallthru
      _
    // Predicated region
    $region10: #{tpu_custom_call.1} parent=1 // pred_check
      _
    $region11: #{tpu_custom_call.1} parent=1 // pred_check_branch
      %70 = sbr.rel (0) target = $region13
    $region12: #{tpu_custom_call.1} parent=1 // pred_region
      _
    $region13: #{tpu_custom_call.1} parent=1 // pred_fallthru
      _
    // Predicated region
    $region14: #{tpu_custom_call.1} parent=1 // pred_check
      _
    $region15: #{tpu_custom_call.1} parent=1 // pred_check_branch
      %72 = sbr.rel (0) target = $region17
    $region16: #{tpu_custom_call.1} parent=1 // pred_region
      _
    $region17: #{tpu_custom_call.1} parent=1 // pred_fallthru
      _
    // Predicated region
    $region18: #{tpu_custom_call.1} parent=1 // pred_check
      _
    $region19: #{tpu_custom_call.1} parent=1 // pred_check_branch
      %74 = sbr.rel (0) target = $region21
    $region20: #{tpu_custom_call.1} parent=1 // pred_region
      _
    $region21: #{tpu_custom_call.1} parent=1 // pred_fallthru
      _
    // Predicated region
    $region22: #{tpu_custom_call.1} parent=1 // pred_check
      _
    $region23: #{tpu_custom_call.1} parent=1 // pred_check_branch
      %76 = sbr.rel (0) target = $region25
    $region24: #{tpu_custom_call.1} parent=1 // pred_region
      _
    $region25: #{tpu_custom_call.1} parent=1 // pred_fallthru
      _
    // Predicated region
    $region26: #{tpu_custom_call.1} parent=1 // pred_check
      _
    $region27: #{tpu_custom_call.1} parent=1 // pred_check_branch
      %78 = sbr.rel (0) target = $region29
    $region28: #{tpu_custom_call.1} parent=1 // pred_region
      _
    $region29: #{tpu_custom_call.1} parent=1 // pred_fallthru
      _
    // Predicated region
    $region30: #{tpu_custom_call.1} parent=1 // pred_check
      _
    $region31: #{tpu_custom_call.1} parent=1 // pred_check_branch
      %80 = sbr.rel (0) target = $region33
    $region32: #{tpu_custom_call.1} parent=1 // pred_region
      _
    $region33: #{tpu_custom_call.1} parent=1 // pred_fallthru
      _
    // Predicated region
    $region34: #{tpu_custom_call.1} parent=1 // pred_check
      _
    $region35: #{tpu_custom_call.1} parent=1 // pred_check_branch
      %82 = sbr.rel (0) target = $region37
    $region36: #{tpu_custom_call.1} parent=1 // pred_region
      _
    $region37: #{tpu_custom_call.1} parent=1 // pred_fallthru
      _
    // Predicated region
    $region38: #{tpu_custom_call.1} parent=1 // pred_check
      _
    $region39: #{tpu_custom_call.1} parent=1 // pred_check_branch
      %84 = sbr.rel (0) target = $region41
    $region40: #{tpu_custom_call.1} parent=1 // pred_region
      _
    $region41: #{tpu_custom_call.1} parent=1 // pred_fallthru
      _
    // Predicated region
    $region42: #{tpu_custom_call.1} parent=1 // pred_check
      _
    $region43: #{tpu_custom_call.1} parent=1 // pred_check_branch
      %86 = sbr.rel (0) target = $region45
    $region44: #{tpu_custom_call.1} parent=1 // pred_region
      _
    $region45: #{tpu_custom_call.1} parent=1 // pred_fallthru
      _
    // Predicated region
    $region46: #{tpu_custom_call.1} parent=1 // pred_check
      _
    $region47: #{tpu_custom_call.1} parent=1 // pred_check_branch
      %88 = sbr.rel (0) target = $region49
    $region48: #{tpu_custom_call.1} parent=1 // pred_region
      _
    $region49: #{tpu_custom_call.1} parent=1 // pred_fallthru
      _
    // Predicated region
    $region50: #{tpu_custom_call.1} parent=1 // pred_check
      _
    $region51: #{tpu_custom_call.1} parent=1 // pred_check_branch
      %90 = sbr.rel (0) target = $region53
    $region52: #{tpu_custom_call.1} parent=1 // pred_region
      _
    $region53: #{tpu_custom_call.1} parent=1 // pred_fallthru
      _
    // Predicated region
    $region54: #{tpu_custom_call.1} parent=1 // pred_check
      _
    $region55: #{tpu_custom_call.1} parent=1 // pred_check_branch
      %92 = sbr.rel (0) target = $region57
    $region56: #{tpu_custom_call.1} parent=1 // pred_region
      _
    $region57: #{tpu_custom_call.1} parent=1 // pred_fallthru
      _
    // Predicated region
    $region58: #{tpu_custom_call.1} parent=1 // pred_check
      _
    $region59: #{tpu_custom_call.1} parent=1 // pred_check_branch
      %94 = sbr.rel (0) target = $region61
    $region60: #{tpu_custom_call.1} parent=1 // pred_region
      _
    $region61: #{tpu_custom_call.1} parent=1 // pred_fallthru
      _
    // Predicated region
    $region62: #{tpu_custom_call.1} parent=1 // pred_check
      _
    $region63: #{tpu_custom_call.1} parent=1 // pred_check_branch
      %96 = sbr.rel (0) target = $region65
    $region64: #{tpu_custom_call.1} parent=1 // pred_region
      _
    $region65: #{tpu_custom_call.1} parent=1 // pred_fallthru
      _
    // Predicated region
    $region66: #{tpu_custom_call.1} parent=1 // pred_check
      _
    $region67: #{tpu_custom_call.1} parent=1 // pred_check_branch
      %98 = sbr.rel (0) target = $region69
    $region68: #{tpu_custom_call.1} parent=1 // pred_region
      _
    $region69: #{tpu_custom_call.1} parent=1 // pred_fallthru
      _
    // Predicated region
    $region70: #{tpu_custom_call.1} parent=1 // pred_check
      _
    $region71: #{tpu_custom_call.1} parent=1 // pred_check_branch
      %100 = sbr.rel (0) target = $region73
    $region72: #{tpu_custom_call.1} parent=1 // pred_region
      _
    $region73: #{tpu_custom_call.1} parent=1 // pred_fallthru
      _
    // Predicated region
    $region74: #{tpu_custom_call.1} parent=1 // pred_check
      _
    $region75: #{tpu_custom_call.1} parent=1 // pred_check_branch
      %102 = sbr.rel (0) target = $region77
    $region76: #{tpu_custom_call.1} parent=1 // pred_region
      _
    $region77: #{tpu_custom_call.1} parent=1 // pred_fallthru
      _
    // Predicated region
    $region78: #{tpu_custom_call.1} parent=1 // pred_check
      _
    $region79: #{tpu_custom_call.1} parent=1 // pred_check_branch
      %104 = sbr.rel (0) target = $region81
    $region80: #{tpu_custom_call.1} parent=1 // pred_region
      _
    $region81: #{tpu_custom_call.1} parent=1 // pred_fallthru
      _
    // Predicated region
    $region82: #{tpu_custom_call.1} parent=1 // pred_check
      _
    $region83: #{tpu_custom_call.1} parent=1 // pred_check_branch
      %106 = sbr.rel (0) target = $region85
    $region84: #{tpu_custom_call.1} parent=1 // pred_region
      _
    $region85: #{tpu_custom_call.1} parent=1 // pred_fallthru
      _
    // Predicated region
    $region86: #{tpu_custom_call.1} parent=1 // pred_check
      _
    $region87: #{tpu_custom_call.1} parent=1 // pred_check_branch
      %108 = sbr.rel (0) target = $region89
    $region88: #{tpu_custom_call.1} parent=1 // pred_region
      _
    $region89: #{tpu_custom_call.1} parent=1 // pred_fallthru
      _
    // Predicated region
    $region90: #{tpu_custom_call.1} parent=1 // pred_check
      _
    $region91: #{tpu_custom_call.1} parent=1 // pred_check_branch
      %110 = sbr.rel (0) target = $region93
    $region92: #{tpu_custom_call.1} parent=1 // pred_region
      _
    $region93: #{tpu_custom_call.1} parent=1 // pred_fallthru
      _
    // Predicated region
    $region94: #{tpu_custom_call.1} parent=1 // pred_check
      _
    $region95: #{tpu_custom_call.1} parent=1 // pred_check_branch
      %112 = sbr.rel (0) target = $region97
    $region96: #{tpu_custom_call.1} parent=1 // pred_region
      _
    $region97: #{tpu_custom_call.1} parent=1 // pred_fallthru
      _
    // Predicated region
    $region98: #{tpu_custom_call.1} parent=1 // pred_check
      _
    $region99: #{tpu_custom_call.1} parent=1 // pred_check_branch
      %114 = sbr.rel (0) target = $region101
    $region100: #{tpu_custom_call.1} parent=1 // pred_region
      _
    $region101: #{tpu_custom_call.1} parent=1 // pred_fallthru
      _
    // Predicated region
    $region102: #{tpu_custom_call.1} parent=1 // pred_check
      _
    $region103: #{tpu_custom_call.1} parent=1 // pred_check_branch
      %116 = sbr.rel (0) target = $region105
    $region104: #{tpu_custom_call.1} parent=1 // pred_region
      _
    $region105: #{tpu_custom_call.1} parent=1 // pred_fallthru
      _
    // Predicated region
    $region106: #{tpu_custom_call.1} parent=1 // pred_check
      _
    $region107: #{tpu_custom_call.1} parent=1 // pred_check_branch
      %118 = sbr.rel (0) target = $region109
    $region108: #{tpu_custom_call.1} parent=1 // pred_region
      _
    $region109: #{tpu_custom_call.1} parent=1 // pred_fallthru
      _
    // Predicated region
    $region110: #{tpu_custom_call.1} parent=1 // pred_check
      _
    $region111: #{tpu_custom_call.1} parent=1 // pred_check_branch
      %120 = sbr.rel (0) target = $region113
    $region112: #{tpu_custom_call.1} parent=1 // pred_region
      _
    $region113: #{tpu_custom_call.1} parent=1 // pred_fallthru
      _
    // Predicated region
    $region114: #{tpu_custom_call.1} parent=1 // pred_check
      _
    $region115: #{tpu_custom_call.1} parent=1 // pred_check_branch
      %122 = sbr.rel (0) target = $region117
    $region116: #{tpu_custom_call.1} parent=1 // pred_region
      _
    $region117: #{tpu_custom_call.1} parent=1 // pred_fallthru
      _
    %v124 = vld [vmem:[%s1] sm:$0xff]
    %v125 = vld [vmem:[%s1 + $0x8] sm:$0xff]
    %v126 = vld [vmem:[%s3] sm:$0xff]
    %v127 = vld [vmem:[%s5] sm:$0x3]
    %v128 = vld [vmem:[%s7] sm:$0xff]
    %v129 = vld [vmem:[%s7 + $0x8] sm:$0xff]
    %v130 = vld [vmem:[%s9] sm:$0xf]
    %v131 = vld [vmem:[%s9 + $0x4] sm:$0xf]
    %v132 = vld [vmem:[%s9 + $0x8] sm:$0xf]
    %v133 = vld [vmem:[%s9 + $0xc] sm:$0xf]
    %v134 = vld [vmem:[%s9 + $0x10] sm:$0xf]
    %v135 = vld [vmem:[%s9 + $0x14] sm:$0xf]
    %v136 = vld [vmem:[%s9 + $0x18] sm:$0xf]
    %v137 = vld [vmem:[%s9 + $0x1c] sm:$0xf]
    %v138 = vld [vmem:[%s11] sm:$0x3]
    %v139 = vld [vmem:[%s13] sm:$0xf]
    %v140 = vld [vmem:[%s13 + $0x4] sm:$0xf]
    %v141 = vld [vmem:[%s13 + $0x8] sm:$0xf]
    %v142 = vld [vmem:[%s13 + $0xc] sm:$0xf]
    %v143 = vld [vmem:[%s13 + $0x10] sm:$0xf]
    %v144 = vld [vmem:[%s13 + $0x14] sm:$0xf]
    %v145 = vld [vmem:[%s13 + $0x18] sm:$0xf]
    %v146 = vld [vmem:[%s13 + $0x1c] sm:$0xf]
    %v147 = vld [vmem:[%s15] sm:$0x3]
    %v148 = vld [vmem:[%s17] sm:$0xf]
    %v149 = vld [vmem:[%s17 + $0x4] sm:$0xf]
    %v150 = vld [vmem:[%s17 + $0x8] sm:$0xf]
    %v151 = vld [vmem:[%s17 + $0xc] sm:$0xf]
    %v152 = vld [vmem:[%s17 + $0x10] sm:$0xf]
    %v153 = vld [vmem:[%s17 + $0x14] sm:$0xf]
    %v154 = vld [vmem:[%s17 + $0x18] sm:$0xf]
    %v155 = vld [vmem:[%s17 + $0x1c] sm:$0xf]
    %v156 = vld [vmem:[%s19] sm:$0x3]
    %v157 = vld [vmem:[%s21] sm:$0xf]
    %v158 = vld [vmem:[%s21 + $0x4] sm:$0xf]
    %v159 = vld [vmem:[%s21 + $0x8] sm:$0xf]
    %v160 = vld [vmem:[%s21 + $0xc] sm:$0xf]
    %v161 = vld [vmem:[%s21 + $0x10] sm:$0xf]
    %v162 = vld [vmem:[%s21 + $0x14] sm:$0xf]
    %v163 = vld [vmem:[%s21 + $0x18] sm:$0xf]
    %v164 = vld [vmem:[%s21 + $0x1c] sm:$0xf]
    %v165 = vld [vmem:[%s23] sm:$0x3]
    %v166 = vld [vmem:[%s25] sm:$0xf]
    %v167 = vld [vmem:[%s25 + $0x4] sm:$0xf]
    %v168 = vld [vmem:[%s25 + $0x8] sm:$0xf]
    %v169 = vld [vmem:[%s25 + $0xc] sm:$0xf]
    %v170 = vld [vmem:[%s25 + $0x10] sm:$0xf]
    %v171 = vld [vmem:[%s25 + $0x14] sm:$0xf]
    %v172 = vld [vmem:[%s25 + $0x18] sm:$0xf]
    %v173 = vld [vmem:[%s25 + $0x1c] sm:$0xf]
    %v174 = vld [vmem:[%s25 + $0x20] sm:$0xf]
    %v175 = vld [vmem:[%s25 + $0x24] sm:$0xf]
    %v176 = vld [vmem:[%s25 + $0x28] sm:$0xf]
    %v177 = vld [vmem:[%s25 + $0x2c] sm:$0xf]
    %v178 = vld [vmem:[%s25 + $0x30] sm:$0xf]
    %v179 = vld [vmem:[%s25 + $0x34] sm:$0xf]
    %v180 = vld [vmem:[%s25 + $0x38] sm:$0xf]
    %v181 = vld [vmem:[%s25 + $0x3c] sm:$0xf]
    %v182 = vld [vmem:[%s25 + $0x40] sm:$0xf]
    %v183 = vld [vmem:[%s25 + $0x44] sm:$0xf]
    %v184 = vld [vmem:[%s25 + $0x48] sm:$0xf]
    %v185 = vld [vmem:[%s25 + $0x4c] sm:$0xf]
    %v186 = vld [vmem:[%s25 + $0x50] sm:$0xf]
    %v187 = vld [vmem:[%s25 + $0x54] sm:$0xf]
    %v188 = vld [vmem:[%s25 + $0x58] sm:$0xf]
    %v189 = vld [vmem:[%s25 + $0x5c] sm:$0xf]
    %v190 = vld [vmem:[%s25 + $0x60] sm:$0xf]
    %v191 = vld [vmem:[%s25 + $0x64] sm:$0xf]
    %v192 = vld [vmem:[%s25 + $0x68] sm:$0xf]
    %v193 = vld [vmem:[%s25 + $0x6c] sm:$0xf]
    %v194 = vld [vmem:[%s25 + $0x70] sm:$0xf]
    %v195 = vld [vmem:[%s25 + $0x74] sm:$0xf]
    %v196 = vld [vmem:[%s25 + $0x78] sm:$0xf]
    %v197 = vld [vmem:[%s25 + $0x7c] sm:$0xf]
    %v198 = vld [vmem:[%s25 + $0x80] sm:$0xf]
    %v199 = vld [vmem:[%s25 + $0x84] sm:$0xf]
    %v200 = vld [vmem:[%s25 + $0x88] sm:$0xf]
    %v201 = vld [vmem:[%s25 + $0x8c] sm:$0xf]
    %v202 = vld [vmem:[%s25 + $0x90] sm:$0xf]
    %v203 = vld [vmem:[%s25 + $0x94] sm:$0xf]
    %v204 = vld [vmem:[%s25 + $0x98] sm:$0xf]
    %v205 = vld [vmem:[%s25 + $0x9c] sm:$0xf]
    %v206 = vld [vmem:[%s25 + $0xa0] sm:$0xf]
    %v207 = vld [vmem:[%s25 + $0xa4] sm:$0xf]
    %v208 = vld [vmem:[%s25 + $0xa8] sm:$0xf]
    %v209 = vld [vmem:[%s25 + $0xac] sm:$0xf]
    %v210 = vld [vmem:[%s25 + $0xb0] sm:$0xf]
    %v211 = vld [vmem:[%s25 + $0xb4] sm:$0xf]
    %v212 = vld [vmem:[%s25 + $0xb8] sm:$0xf]
    %v213 = vld [vmem:[%s25 + $0xbc] sm:$0xf]
    %v214 = vld [vmem:[%s25 + $0xc0] sm:$0xf]
    %v215 = vld [vmem:[%s25 + $0xc4] sm:$0xf]
    %v216 = vld [vmem:[%s25 + $0xc8] sm:$0xf]
    %v217 = vld [vmem:[%s25 + $0xcc] sm:$0xf]
    %v218 = vld [vmem:[%s25 + $0xd0] sm:$0xf]
    %v219 = vld [vmem:[%s25 + $0xd4] sm:$0xf]
    %v220 = vld [vmem:[%s25 + $0xd8] sm:$0xf]
    %v221 = vld [vmem:[%s25 + $0xdc] sm:$0xf]
    %v222 = vld [vmem:[%s25 + $0xe0] sm:$0xf]
    %v223 = vld [vmem:[%s25 + $0xe4] sm:$0xf]
    %v224 = vld [vmem:[%s25 + $0xe8] sm:$0xf]
    %v225 = vld [vmem:[%s25 + $0xec] sm:$0xf]
    %v226 = vld [vmem:[%s25 + $0xf0] sm:$0xf]
    %v227 = vld [vmem:[%s25 + $0xf4] sm:$0xf]
    %v228 = vld [vmem:[%s25 + $0xf8] sm:$0xf]
    %v229 = vld [vmem:[%s25 + $0xfc] sm:$0xf]
    %v230 = vld [vmem:[%s25 + $0x100] sm:$0xf]
    %v231 = vld [vmem:[%s25 + $0x104] sm:$0xf]
    %v232 = vld [vmem:[%s25 + $0x108] sm:$0xf]
    %v233 = vld [vmem:[%s25 + $0x10c] sm:$0xf]
    %v234 = vld [vmem:[%s25 + $0x110] sm:$0xf]
    %v235 = vld [vmem:[%s25 + $0x114] sm:$0xf]
    %v236 = vld [vmem:[%s25 + $0x118] sm:$0xf]
    %v237 = vld [vmem:[%s25 + $0x11c] sm:$0xf]
    %v238 = vld [vmem:[%s25 + $0x120] sm:$0xf]
    %v239 = vld [vmem:[%s25 + $0x124] sm:$0xf]
    %v240 = vld [vmem:[%s25 + $0x128] sm:$0xf]
    %v241 = vld [vmem:[%s25 + $0x12c] sm:$0xf]
    %v242 = vld [vmem:[%s25 + $0x130] sm:$0xf]
    %v243 = vld [vmem:[%s25 + $0x134] sm:$0xf]
    %v244 = vld [vmem:[%s25 + $0x138] sm:$0xf]
    %v245 = vld [vmem:[%s25 + $0x13c] sm:$0xf]
    %v246 = vld [vmem:[%s25 + $0x140] sm:$0xf]
    %v247 = vld [vmem:[%s25 + $0x144] sm:$0xf]
    %v248 = vld [vmem:[%s25 + $0x148] sm:$0xf]
    %v249 = vld [vmem:[%s25 + $0x14c] sm:$0xf]
    %v250 = vld [vmem:[%s25 + $0x150] sm:$0xf]
    %v251 = vld [vmem:[%s25 + $0x154] sm:$0xf]
    %v252 = vld [vmem:[%s25 + $0x158] sm:$0xf]
    %v253 = vld [vmem:[%s25 + $0x15c] sm:$0xf]
    %v254 = vld [vmem:[%s25 + $0x160] sm:$0xf]
    %v255 = vld [vmem:[%s25 + $0x164] sm:$0xf]
    %v256 = vld [vmem:[%s25 + $0x168] sm:$0xf]
    %v257 = vld [vmem:[%s25 + $0x16c] sm:$0xf]
    %v258 = vld [vmem:[%s25 + $0x170] sm:$0xf]
    %v259 = vld [vmem:[%s25 + $0x174] sm:$0xf]
    %v260 = vld [vmem:[%s25 + $0x178] sm:$0xf]
    %v261 = vld [vmem:[%s25 + $0x17c] sm:$0xf]
    %v262 = vld [vmem:[%s25 + $0x180] sm:$0xf]
    %v263 = vld [vmem:[%s25 + $0x184] sm:$0xf]
    %v264 = vld [vmem:[%s25 + $0x188] sm:$0xf]
    %v265 = vld [vmem:[%s25 + $0x18c] sm:$0xf]
    %v266 = vld [vmem:[%s25 + $0x190] sm:$0xf]
    %v267 = vld [vmem:[%s25 + $0x194] sm:$0xf]
    %v268 = vld [vmem:[%s25 + $0x198] sm:$0xf]
    %v269 = vld [vmem:[%s25 + $0x19c] sm:$0xf]
    %v270 = vld [vmem:[%s25 + $0x1a0] sm:$0xf]
    %v271 = vld [vmem:[%s25 + $0x1a4] sm:$0xf]
    %v272 = vld [vmem:[%s25 + $0x1a8] sm:$0xf]
    %v273 = vld [vmem:[%s25 + $0x1ac] sm:$0xf]
    %v274 = vld [vmem:[%s25 + $0x1b0] sm:$0xf]
    %v275 = vld [vmem:[%s25 + $0x1b4] sm:$0xf]
    %v276 = vld [vmem:[%s25 + $0x1b8] sm:$0xf]
    %v277 = vld [vmem:[%s25 + $0x1bc] sm:$0xf]
    %v278 = vld [vmem:[%s25 + $0x1c0] sm:$0xf]
    %v279 = vld [vmem:[%s25 + $0x1c4] sm:$0xf]
    %v280 = vld [vmem:[%s25 + $0x1c8] sm:$0xf]
    %v281 = vld [vmem:[%s25 + $0x1cc] sm:$0xf]
    %v282 = vld [vmem:[%s25 + $0x1d0] sm:$0xf]
    %v283 = vld [vmem:[%s25 + $0x1d4] sm:$0xf]
    %v284 = vld [vmem:[%s25 + $0x1d8] sm:$0xf]
    %v285 = vld [vmem:[%s25 + $0x1dc] sm:$0xf]
    %v286 = vld [vmem:[%s25 + $0x1e0] sm:$0xf]
    %v287 = vld [vmem:[%s25 + $0x1e4] sm:$0xf]
    %v288 = vld [vmem:[%s25 + $0x1e8] sm:$0xf]
    %v289 = vld [vmem:[%s25 + $0x1ec] sm:$0xf]
    %v290 = vld [vmem:[%s25 + $0x1f0] sm:$0xf]
    %v291 = vld [vmem:[%s25 + $0x1f4] sm:$0xf]
    %v292 = vld [vmem:[%s25 + $0x1f8] sm:$0xf]
    %v293 = vld [vmem:[%s25 + $0x1fc] sm:$0xf]
    %v294 = vld [vmem:[%s25 + $0x200] sm:$0xf]
    %v295 = vld [vmem:[%s25 + $0x204] sm:$0xf]
    %v296 = vld [vmem:[%s25 + $0x208] sm:$0xf]
    %v297 = vld [vmem:[%s25 + $0x20c] sm:$0xf]
    %v298 = vld [vmem:[%s25 + $0x210] sm:$0xf]
    %v299 = vld [vmem:[%s25 + $0x214] sm:$0xf]
    %v300 = vld [vmem:[%s25 + $0x218] sm:$0xf]
    %v301 = vld [vmem:[%s25 + $0x21c] sm:$0xf]
    %v302 = vld [vmem:[%s25 + $0x220] sm:$0xf]
    %v303 = vld [vmem:[%s25 + $0x224] sm:$0xf]
    %v304 = vld [vmem:[%s25 + $0x228] sm:$0xf]
    %v305 = vld [vmem:[%s25 + $0x22c] sm:$0xf]
    %v306 = vld [vmem:[%s25 + $0x230] sm:$0xf]
    %v307 = vld [vmem:[%s25 + $0x234] sm:$0xf]
    %v308 = vld [vmem:[%s25 + $0x238] sm:$0xf]
    %v309 = vld [vmem:[%s25 + $0x23c] sm:$0xf]
    %v310 = vld [vmem:[%s25 + $0x240] sm:$0xf]
    %v311 = vld [vmem:[%s25 + $0x244] sm:$0xf]
    %v312 = vld [vmem:[%s25 + $0x248] sm:$0xf]
    %v313 = vld [vmem:[%s25 + $0x24c] sm:$0xf]
    %v314 = vld [vmem:[%s25 + $0x250] sm:$0xf]
    %v315 = vld [vmem:[%s25 + $0x254] sm:$0xf]
    %v316 = vld [vmem:[%s25 + $0x258] sm:$0xf]
    %v317 = vld [vmem:[%s25 + $0x25c] sm:$0xf]
    %v318 = vld [vmem:[%s25 + $0x260] sm:$0xf]
    %v319 = vld [vmem:[%s25 + $0x264] sm:$0xf]
    %v320 = vld [vmem:[%s25 + $0x268] sm:$0xf]
    %v321 = vld [vmem:[%s25 + $0x26c] sm:$0xf]
    %v322 = vld [vmem:[%s25 + $0x270] sm:$0xf]
    %v323 = vld [vmem:[%s25 + $0x274] sm:$0xf]
    %v324 = vld [vmem:[%s25 + $0x278] sm:$0xf]
    %v325 = vld [vmem:[%s25 + $0x27c] sm:$0xf]
    %v326 = vld [vmem:[%s25 + $0x280] sm:$0xf]
    %v327 = vld [vmem:[%s25 + $0x284] sm:$0xf]
    %v328 = vld [vmem:[%s25 + $0x288] sm:$0xf]
    %v329 = vld [vmem:[%s25 + $0x28c] sm:$0xf]
    %v330 = vld [vmem:[%s25 + $0x290] sm:$0xf]
    %v331 = vld [vmem:[%s25 + $0x294] sm:$0xf]
    %v332 = vld [vmem:[%s25 + $0x298] sm:$0xf]
    %v333 = vld [vmem:[%s25 + $0x29c] sm:$0xf]
    %v334 = vld [vmem:[%s25 + $0x2a0] sm:$0xf]
    %v335 = vld [vmem:[%s25 + $0x2a4] sm:$0xf]
    %v336 = vld [vmem:[%s25 + $0x2a8] sm:$0xf]
    %v337 = vld [vmem:[%s25 + $0x2ac] sm:$0xf]
    %v338 = vld [vmem:[%s25 + $0x2b0] sm:$0xf]
    %v339 = vld [vmem:[%s25 + $0x2b4] sm:$0xf]
    %v340 = vld [vmem:[%s25 + $0x2b8] sm:$0xf]
    %v341 = vld [vmem:[%s25 + $0x2bc] sm:$0xf]
    %v342 = vld [vmem:[%s25 + $0x2c0] sm:$0xf]
    %v343 = vld [vmem:[%s25 + $0x2c4] sm:$0xf]
    %v344 = vld [vmem:[%s25 + $0x2c8] sm:$0xf]
    %v345 = vld [vmem:[%s25 + $0x2cc] sm:$0xf]
    %v346 = vld [vmem:[%s25 + $0x2d0] sm:$0xf]
    %v347 = vld [vmem:[%s25 + $0x2d4] sm:$0xf]
    %v348 = vld [vmem:[%s25 + $0x2d8] sm:$0xf]
    %v349 = vld [vmem:[%s25 + $0x2dc] sm:$0xf]
    %v350 = vld [vmem:[%s25 + $0x2e0] sm:$0xf]
    %v351 = vld [vmem:[%s25 + $0x2e4] sm:$0xf]
    %v352 = vld [vmem:[%s25 + $0x2e8] sm:$0xf]
    %v353 = vld [vmem:[%s25 + $0x2ec] sm:$0xf]
    %v354 = vld [vmem:[%s25 + $0x2f0] sm:$0xf]
    %v355 = vld [vmem:[%s25 + $0x2f4] sm:$0xf]
    %v356 = vld [vmem:[%s25 + $0x2f8] sm:$0xf]
    %v357 = vld [vmem:[%s25 + $0x2fc] sm:$0xf]
    %v358 = vld [vmem:[%s25 + $0x300] sm:$0xf]
    %v359 = vld [vmem:[%s25 + $0x304] sm:$0xf]
    %v360 = vld [vmem:[%s25 + $0x308] sm:$0xf]
    %v361 = vld [vmem:[%s25 + $0x30c] sm:$0xf]
    %v362 = vld [vmem:[%s25 + $0x310] sm:$0xf]
    %v363 = vld [vmem:[%s25 + $0x314] sm:$0xf]
    %v364 = vld [vmem:[%s25 + $0x318] sm:$0xf]
    %v365 = vld [vmem:[%s25 + $0x31c] sm:$0xf]
    %v366 = vld [vmem:[%s25 + $0x320] sm:$0xf]
    %v367 = vld [vmem:[%s25 + $0x324] sm:$0xf]
    %v368 = vld [vmem:[%s25 + $0x328] sm:$0xf]
    %v369 = vld [vmem:[%s25 + $0x32c] sm:$0xf]
    %v370 = vld [vmem:[%s25 + $0x330] sm:$0xf]
    %v371 = vld [vmem:[%s25 + $0x334] sm:$0xf]
    %v372 = vld [vmem:[%s25 + $0x338] sm:$0xf]
    %v373 = vld [vmem:[%s25 + $0x33c] sm:$0xf]
    %v374 = vld [vmem:[%s25 + $0x340] sm:$0xf]
    %v375 = vld [vmem:[%s25 + $0x344] sm:$0xf]
    %v376 = vld [vmem:[%s25 + $0x348] sm:$0xf]
    %v377 = vld [vmem:[%s25 + $0x34c] sm:$0xf]
    %v378 = vld [vmem:[%s25 + $0x350] sm:$0xf]
    %v379 = vld [vmem:[%s25 + $0x354] sm:$0xf]
    %v380 = vld [vmem:[%s25 + $0x358] sm:$0xf]
    %v381 = vld [vmem:[%s25 + $0x35c] sm:$0xf]
    %v382 = vld [vmem:[%s25 + $0x360] sm:$0xf]
    %v383 = vld [vmem:[%s25 + $0x364] sm:$0xf]
    %v384 = vld [vmem:[%s25 + $0x368] sm:$0xf]
    %v385 = vld [vmem:[%s25 + $0x36c] sm:$0xf]
    %v386 = vld [vmem:[%s25 + $0x370] sm:$0xf]
    %v387 = vld [vmem:[%s25 + $0x374] sm:$0xf]
    %v388 = vld [vmem:[%s25 + $0x378] sm:$0xf]
    %v389 = vld [vmem:[%s25 + $0x37c] sm:$0xf]
    %v390 = vld [vmem:[%s25 + $0x380] sm:$0xf]
    %v391 = vld [vmem:[%s25 + $0x384] sm:$0xf]
    %v392 = vld [vmem:[%s25 + $0x388] sm:$0xf]
    %v393 = vld [vmem:[%s25 + $0x38c] sm:$0xf]
    %v394 = vld [vmem:[%s25 + $0x390] sm:$0xf]
    %v395 = vld [vmem:[%s25 + $0x394] sm:$0xf]
    %v396 = vld [vmem:[%s25 + $0x398] sm:$0xf]
    %v397 = vld [vmem:[%s25 + $0x39c] sm:$0xf]
    %v398 = vld [vmem:[%s25 + $0x3a0] sm:$0xf]
    %v399 = vld [vmem:[%s25 + $0x3a4] sm:$0xf]
    %v400 = vld [vmem:[%s25 + $0x3a8] sm:$0xf]
    %v401 = vld [vmem:[%s25 + $0x3ac] sm:$0xf]
    %v402 = vld [vmem:[%s25 + $0x3b0] sm:$0xf]
    %v403 = vld [vmem:[%s25 + $0x3b4] sm:$0xf]
    %v404 = vld [vmem:[%s25 + $0x3b8] sm:$0xf]
    %v405 = vld [vmem:[%s25 + $0x3bc] sm:$0xf]
    %v406 = vld [vmem:[%s25 + $0x3c0] sm:$0xf]
    %v407 = vld [vmem:[%s25 + $0x3c4] sm:$0xf]
    %v408 = vld [vmem:[%s25 + $0x3c8] sm:$0xf]
    %v409 = vld [vmem:[%s25 + $0x3cc] sm:$0xf]
    %v410 = vld [vmem:[%s25 + $0x3d0] sm:$0xf]
    %v411 = vld [vmem:[%s25 + $0x3d4] sm:$0xf]
    %v412 = vld [vmem:[%s25 + $0x3d8] sm:$0xf]
    %v413 = vld [vmem:[%s25 + $0x3dc] sm:$0xf]
    %v414 = vld [vmem:[%s25 + $0x3e0] sm:$0xf]
    %v415 = vld [vmem:[%s25 + $0x3e4] sm:$0xf]
    %v416 = vld [vmem:[%s25 + $0x3e8] sm:$0xf]
    %v417 = vld [vmem:[%s25 + $0x3ec] sm:$0xf]
    %v418 = vld [vmem:[%s25 + $0x3f0] sm:$0xf]
    %v419 = vld [vmem:[%s25 + $0x3f4] sm:$0xf]
    %v420 = vld [vmem:[%s25 + $0x3f8] sm:$0xf]
    %v421 = vld [vmem:[%s25 + $0x3fc] sm:$0xf]
    %v422 = vld [vmem:[%s25 + $0x400] sm:$0xf]
    %v423 = vld [vmem:[%s25 + $0x404] sm:$0xf]
    %v424 = vld [vmem:[%s25 + $0x408] sm:$0xf]
    %v425 = vld [vmem:[%s25 + $0x40c] sm:$0xf]
    %v426 = vld [vmem:[%s25 + $0x410] sm:$0xf]
    %v427 = vld [vmem:[%s25 + $0x414] sm:$0xf]
    %v428 = vld [vmem:[%s25 + $0x418] sm:$0xf]
    %v429 = vld [vmem:[%s25 + $0x41c] sm:$0xf]
    %v430 = vld [vmem:[%s25 + $0x420] sm:$0xf]
    %v431 = vld [vmem:[%s25 + $0x424] sm:$0xf]
    %v432 = vld [vmem:[%s25 + $0x428] sm:$0xf]
    %v433 = vld [vmem:[%s25 + $0x42c] sm:$0xf]
    %v434 = vld [vmem:[%s25 + $0x430] sm:$0xf]
    %v435 = vld [vmem:[%s25 + $0x434] sm:$0xf]
    %v436 = vld [vmem:[%s25 + $0x438] sm:$0xf]
    %v437 = vld [vmem:[%s25 + $0x43c] sm:$0xf]
    %v438 = vld [vmem:[%s25 + $0x440] sm:$0xf]
    %v439 = vld [vmem:[%s25 + $0x444] sm:$0xf]
    %v440 = vld [vmem:[%s25 + $0x448] sm:$0xf]
    %v441 = vld [vmem:[%s25 + $0x44c] sm:$0xf]
    %v442 = vld [vmem:[%s25 + $0x450] sm:$0xf]
    %v443 = vld [vmem:[%s25 + $0x454] sm:$0xf]
    %v444 = vld [vmem:[%s25 + $0x458] sm:$0xf]
    %v445 = vld [vmem:[%s25 + $0x45c] sm:$0xf]
    %v446 = vld [vmem:[%s25 + $0x460] sm:$0xf]
    %v447 = vld [vmem:[%s25 + $0x464] sm:$0xf]
    %v448 = vld [vmem:[%s25 + $0x468] sm:$0xf]
    %v449 = vld [vmem:[%s25 + $0x46c] sm:$0xf]
    %v450 = vld [vmem:[%s25 + $0x470] sm:$0xf]
    %v451 = vld [vmem:[%s25 + $0x474] sm:$0xf]
    %v452 = vld [vmem:[%s25 + $0x478] sm:$0xf]
    %v453 = vld [vmem:[%s25 + $0x47c] sm:$0xf]
    %v454 = vld [vmem:[%s25 + $0x480] sm:$0xf]
    %v455 = vld [vmem:[%s25 + $0x484] sm:$0xf]
    %v456 = vld [vmem:[%s25 + $0x488] sm:$0xf]
    %v457 = vld [vmem:[%s25 + $0x48c] sm:$0xf]
    %v458 = vld [vmem:[%s25 + $0x490] sm:$0xf]
    %v459 = vld [vmem:[%s25 + $0x494] sm:$0xf]
    %v460 = vld [vmem:[%s25 + $0x498] sm:$0xf]
    %v461 = vld [vmem:[%s25 + $0x49c] sm:$0xf]
    %v462 = vld [vmem:[%s25 + $0x4a0] sm:$0xf]
    %v463 = vld [vmem:[%s25 + $0x4a4] sm:$0xf]
    %v464 = vld [vmem:[%s25 + $0x4a8] sm:$0xf]
    %v465 = vld [vmem:[%s25 + $0x4ac] sm:$0xf]
    %v466 = vld [vmem:[%s25 + $0x4b0] sm:$0xf]
    %v467 = vld [vmem:[%s25 + $0x4b4] sm:$0xf]
    %v468 = vld [vmem:[%s25 + $0x4b8] sm:$0xf]
    %v469 = vld [vmem:[%s25 + $0x4bc] sm:$0xf]
    %v470 = vld [vmem:[%s25 + $0x4c0] sm:$0xf]
    %v471 = vld [vmem:[%s25 + $0x4c4] sm:$0xf]
    %v472 = vld [vmem:[%s25 + $0x4c8] sm:$0xf]
    %v473 = vld [vmem:[%s25 + $0x4cc] sm:$0xf]
    %v474 = vld [vmem:[%s25 + $0x4d0] sm:$0xf]
    %v475 = vld [vmem:[%s25 + $0x4d4] sm:$0xf]
    %v476 = vld [vmem:[%s25 + $0x4d8] sm:$0xf]
    %v477 = vld [vmem:[%s25 + $0x4dc] sm:$0xf]
    %v478 = vld [vmem:[%s25 + $0x4e0] sm:$0xf]
    %v479 = vld [vmem:[%s25 + $0x4e4] sm:$0xf]
    %v480 = vld [vmem:[%s25 + $0x4e8] sm:$0xf]
    %v481 = vld [vmem:[%s25 + $0x4ec] sm:$0xf]
    %v482 = vld [vmem:[%s25 + $0x4f0] sm:$0xf]
    %v483 = vld [vmem:[%s25 + $0x4f4] sm:$0xf]
    %v484 = vld [vmem:[%s25 + $0x4f8] sm:$0xf]
    %v485 = vld [vmem:[%s25 + $0x4fc] sm:$0xf]
    %v486 = vld [vmem:[%s25 + $0x500] sm:$0xf]
    %v487 = vld [vmem:[%s25 + $0x504] sm:$0xf]
    %v488 = vld [vmem:[%s25 + $0x508] sm:$0xf]
    %v489 = vld [vmem:[%s25 + $0x50c] sm:$0xf]
    %v490 = vld [vmem:[%s25 + $0x510] sm:$0xf]
    %v491 = vld [vmem:[%s25 + $0x514] sm:$0xf]
    %v492 = vld [vmem:[%s25 + $0x518] sm:$0xf]
    %v493 = vld [vmem:[%s25 + $0x51c] sm:$0xf]
    %v494 = vld [vmem:[%s25 + $0x520] sm:$0xf]
    %v495 = vld [vmem:[%s25 + $0x524] sm:$0xf]
    %v496 = vld [vmem:[%s25 + $0x528] sm:$0xf]
    %v497 = vld [vmem:[%s25 + $0x52c] sm:$0xf]
    %v498 = vld [vmem:[%s25 + $0x530] sm:$0xf]
    %v499 = vld [vmem:[%s25 + $0x534] sm:$0xf]
    %v500 = vld [vmem:[%s25 + $0x538] sm:$0xf]
    %v501 = vld [vmem:[%s25 + $0x53c] sm:$0xf]
    %v502 = vld [vmem:[%s25 + $0x540] sm:$0xf]
    %v503 = vld [vmem:[%s25 + $0x544] sm:$0xf]
    %v504 = vld [vmem:[%s25 + $0x548] sm:$0xf]
    %v505 = vld [vmem:[%s25 + $0x54c] sm:$0xf]
    %v506 = vld [vmem:[%s25 + $0x550] sm:$0xf]
    %v507 = vld [vmem:[%s25 + $0x554] sm:$0xf]
    %v508 = vld [vmem:[%s25 + $0x558] sm:$0xf]
    %v509 = vld [vmem:[%s25 + $0x55c] sm:$0xf]
    %v510 = vld [vmem:[%s25 + $0x560] sm:$0xf]
    %v511 = vld [vmem:[%s25 + $0x564] sm:$0xf]
    %v512 = vld [vmem:[%s25 + $0x568] sm:$0xf]
    %v513 = vld [vmem:[%s25 + $0x56c] sm:$0xf]
    %v514 = vld [vmem:[%s25 + $0x570] sm:$0xf]
    %v515 = vld [vmem:[%s25 + $0x574] sm:$0xf]
    %v516 = vld [vmem:[%s25 + $0x578] sm:$0xf]
    %v517 = vld [vmem:[%s25 + $0x57c] sm:$0xf]
    %v518 = vld [vmem:[%s25 + $0x580] sm:$0xf]
    %v519 = vld [vmem:[%s25 + $0x584] sm:$0xf]
    %v520 = vld [vmem:[%s25 + $0x588] sm:$0xf]
    %v521 = vld [vmem:[%s25 + $0x58c] sm:$0xf]
    %v522 = vld [vmem:[%s25 + $0x590] sm:$0xf]
    %v523 = vld [vmem:[%s25 + $0x594] sm:$0xf]
    %v524 = vld [vmem:[%s25 + $0x598] sm:$0xf]
    %v525 = vld [vmem:[%s25 + $0x59c] sm:$0xf]
    %v526 = vld [vmem:[%s25 + $0x5a0] sm:$0xf]
    %v527 = vld [vmem:[%s25 + $0x5a4] sm:$0xf]
    %v528 = vld [vmem:[%s25 + $0x5a8] sm:$0xf]
    %v529 = vld [vmem:[%s25 + $0x5ac] sm:$0xf]
    %v530 = vld [vmem:[%s25 + $0x5b0] sm:$0xf]
    %v531 = vld [vmem:[%s25 + $0x5b4] sm:$0xf]
    %v532 = vld [vmem:[%s25 + $0x5b8] sm:$0xf]
    %v533 = vld [vmem:[%s25 + $0x5bc] sm:$0xf]
    %v534 = vld [vmem:[%s25 + $0x5c0] sm:$0xf]
    %v535 = vld [vmem:[%s25 + $0x5c4] sm:$0xf]
    %v536 = vld [vmem:[%s25 + $0x5c8] sm:$0xf]
    %v537 = vld [vmem:[%s25 + $0x5cc] sm:$0xf]
    %v538 = vld [vmem:[%s25 + $0x5d0] sm:$0xf]
    %v539 = vld [vmem:[%s25 + $0x5d4] sm:$0xf]
    %v540 = vld [vmem:[%s25 + $0x5d8] sm:$0xf]
    %v541 = vld [vmem:[%s25 + $0x5dc] sm:$0xf]
    %v542 = vld [vmem:[%s25 + $0x5e0] sm:$0xf]
    %v543 = vld [vmem:[%s25 + $0x5e4] sm:$0xf]
    %v544 = vld [vmem:[%s25 + $0x5e8] sm:$0xf]
    %v545 = vld [vmem:[%s25 + $0x5ec] sm:$0xf]
    %v546 = vld [vmem:[%s25 + $0x5f0] sm:$0xf]
    %v547 = vld [vmem:[%s25 + $0x5f4] sm:$0xf]
    %v548 = vld [vmem:[%s25 + $0x5f8] sm:$0xf]
    %v549 = vld [vmem:[%s25 + $0x5fc] sm:$0xf]
    %v550 = vld [vmem:[%s25 + $0x600] sm:$0xf]
    %v551 = vld [vmem:[%s25 + $0x604] sm:$0xf]
    %v552 = vld [vmem:[%s25 + $0x608] sm:$0xf]
    %v553 = vld [vmem:[%s25 + $0x60c] sm:$0xf]
    %v554 = vld [vmem:[%s25 + $0x610] sm:$0xf]
    %v555 = vld [vmem:[%s25 + $0x614] sm:$0xf]
    %v556 = vld [vmem:[%s25 + $0x618] sm:$0xf]
    %v557 = vld [vmem:[%s25 + $0x61c] sm:$0xf]
    %v558 = vld [vmem:[%s25 + $0x620] sm:$0xf]
    %v559 = vld [vmem:[%s25 + $0x624] sm:$0xf]
    %v560 = vld [vmem:[%s25 + $0x628] sm:$0xf]
    %v561 = vld [vmem:[%s25 + $0x62c] sm:$0xf]
    %v562 = vld [vmem:[%s25 + $0x630] sm:$0xf]
    %v563 = vld [vmem:[%s25 + $0x634] sm:$0xf]
    %v564 = vld [vmem:[%s25 + $0x638] sm:$0xf]
    %v565 = vld [vmem:[%s25 + $0x63c] sm:$0xf]
    %v566 = vld [vmem:[%s25 + $0x640] sm:$0xf]
    %v567 = vld [vmem:[%s25 + $0x644] sm:$0xf]
    %v568 = vld [vmem:[%s25 + $0x648] sm:$0xf]
    %v569 = vld [vmem:[%s25 + $0x64c] sm:$0xf]
    %v570 = vld [vmem:[%s25 + $0x650] sm:$0xf]
    %v571 = vld [vmem:[%s25 + $0x654] sm:$0xf]
    %v572 = vld [vmem:[%s25 + $0x658] sm:$0xf]
    %v573 = vld [vmem:[%s25 + $0x65c] sm:$0xf]
    %v574 = vld [vmem:[%s25 + $0x660] sm:$0xf]
    %v575 = vld [vmem:[%s25 + $0x664] sm:$0xf]
    %v576 = vld [vmem:[%s25 + $0x668] sm:$0xf]
    %v577 = vld [vmem:[%s25 + $0x66c] sm:$0xf]
    %v578 = vld [vmem:[%s25 + $0x670] sm:$0xf]
    %v579 = vld [vmem:[%s25 + $0x674] sm:$0xf]
    %v580 = vld [vmem:[%s25 + $0x678] sm:$0xf]
    %v581 = vld [vmem:[%s25 + $0x67c] sm:$0xf]
    %v582 = vld [vmem:[%s25 + $0x680] sm:$0xf]
    %v583 = vld [vmem:[%s25 + $0x684] sm:$0xf]
    %v584 = vld [vmem:[%s25 + $0x688] sm:$0xf]
    %v585 = vld [vmem:[%s25 + $0x68c] sm:$0xf]
    %v586 = vld [vmem:[%s25 + $0x690] sm:$0xf]
    %v587 = vld [vmem:[%s25 + $0x694] sm:$0xf]
    %v588 = vld [vmem:[%s25 + $0x698] sm:$0xf]
    %v589 = vld [vmem:[%s25 + $0x69c] sm:$0xf]
    %v590 = vld [vmem:[%s25 + $0x6a0] sm:$0xf]
    %v591 = vld [vmem:[%s25 + $0x6a4] sm:$0xf]
    %v592 = vld [vmem:[%s25 + $0x6a8] sm:$0xf]
    %v593 = vld [vmem:[%s25 + $0x6ac] sm:$0xf]
    %v594 = vld [vmem:[%s25 + $0x6b0] sm:$0xf]
    %v595 = vld [vmem:[%s25 + $0x6b4] sm:$0xf]
    %v596 = vld [vmem:[%s25 + $0x6b8] sm:$0xf]
    %v597 = vld [vmem:[%s25 + $0x6bc] sm:$0xf]
    %v598 = vld [vmem:[%s25 + $0x6c0] sm:$0xf]
    %v599 = vld [vmem:[%s25 + $0x6c4] sm:$0xf]
    %v600 = vld [vmem:[%s25 + $0x6c8] sm:$0xf]
    %v601 = vld [vmem:[%s25 + $0x6cc] sm:$0xf]
    %v602 = vld [vmem:[%s25 + $0x6d0] sm:$0xf]
    %v603 = vld [vmem:[%s25 + $0x6d4] sm:$0xf]
    %v604 = vld [vmem:[%s25 + $0x6d8] sm:$0xf]
    %v605 = vld [vmem:[%s25 + $0x6dc] sm:$0xf]
    %v606 = vld [vmem:[%s25 + $0x6e0] sm:$0xf]
    %v607 = vld [vmem:[%s25 + $0x6e4] sm:$0xf]
    %v608 = vld [vmem:[%s25 + $0x6e8] sm:$0xf]
    %v609 = vld [vmem:[%s25 + $0x6ec] sm:$0xf]
    %v610 = vld [vmem:[%s25 + $0x6f0] sm:$0xf]
    %v611 = vld [vmem:[%s25 + $0x6f4] sm:$0xf]
    %v612 = vld [vmem:[%s25 + $0x6f8] sm:$0xf]
    %v613 = vld [vmem:[%s25 + $0x6fc] sm:$0xf]
    %v614 = vld [vmem:[%s25 + $0x700] sm:$0xf]
    %v615 = vld [vmem:[%s25 + $0x704] sm:$0xf]
    %v616 = vld [vmem:[%s25 + $0x708] sm:$0xf]
    %v617 = vld [vmem:[%s25 + $0x70c] sm:$0xf]
    %v618 = vld [vmem:[%s25 + $0x710] sm:$0xf]
    %v619 = vld [vmem:[%s25 + $0x714] sm:$0xf]
    %v620 = vld [vmem:[%s25 + $0x718] sm:$0xf]
    %v621 = vld [vmem:[%s25 + $0x71c] sm:$0xf]
    %v622 = vld [vmem:[%s25 + $0x720] sm:$0xf]
    %v623 = vld [vmem:[%s25 + $0x724] sm:$0xf]
    %v624 = vld [vmem:[%s25 + $0x728] sm:$0xf]
    %v625 = vld [vmem:[%s25 + $0x72c] sm:$0xf]
    %v626 = vld [vmem:[%s25 + $0x730] sm:$0xf]
    %v627 = vld [vmem:[%s25 + $0x734] sm:$0xf]
    %v628 = vld [vmem:[%s25 + $0x738] sm:$0xf]
    %v629 = vld [vmem:[%s25 + $0x73c] sm:$0xf]
    %v630 = vld [vmem:[%s25 + $0x740] sm:$0xf]
    %v631 = vld [vmem:[%s25 + $0x744] sm:$0xf]
    %v632 = vld [vmem:[%s25 + $0x748] sm:$0xf]
    %v633 = vld [vmem:[%s25 + $0x74c] sm:$0xf]
    %v634 = vld [vmem:[%s25 + $0x750] sm:$0xf]
    %v635 = vld [vmem:[%s25 + $0x754] sm:$0xf]
    %v636 = vld [vmem:[%s25 + $0x758] sm:$0xf]
    %v637 = vld [vmem:[%s25 + $0x75c] sm:$0xf]
    %v638 = vld [vmem:[%s25 + $0x760] sm:$0xf]
    %v639 = vld [vmem:[%s25 + $0x764] sm:$0xf]
    %v640 = vld [vmem:[%s25 + $0x768] sm:$0xf]
    %v641 = vld [vmem:[%s25 + $0x76c] sm:$0xf]
    %v642 = vld [vmem:[%s25 + $0x770] sm:$0xf]
    %v643 = vld [vmem:[%s25 + $0x774] sm:$0xf]
    %v644 = vld [vmem:[%s25 + $0x778] sm:$0xf]
    %v645 = vld [vmem:[%s25 + $0x77c] sm:$0xf]
    %v646 = vld [vmem:[%s25 + $0x780] sm:$0xf]
    %v647 = vld [vmem:[%s25 + $0x784] sm:$0xf]
    %v648 = vld [vmem:[%s25 + $0x788] sm:$0xf]
    %v649 = vld [vmem:[%s25 + $0x78c] sm:$0xf]
    %v650 = vld [vmem:[%s25 + $0x790] sm:$0xf]
    %v651 = vld [vmem:[%s25 + $0x794] sm:$0xf]
    %v652 = vld [vmem:[%s25 + $0x798] sm:$0xf]
    %v653 = vld [vmem:[%s25 + $0x79c] sm:$0xf]
    %v654 = vld [vmem:[%s25 + $0x7a0] sm:$0xf]
    %v655 = vld [vmem:[%s25 + $0x7a4] sm:$0xf]
    %v656 = vld [vmem:[%s25 + $0x7a8] sm:$0xf]
    %v657 = vld [vmem:[%s25 + $0x7ac] sm:$0xf]
    %v658 = vld [vmem:[%s25 + $0x7b0] sm:$0xf]
    %v659 = vld [vmem:[%s25 + $0x7b4] sm:$0xf]
    %v660 = vld [vmem:[%s25 + $0x7b8] sm:$0xf]
    %v661 = vld [vmem:[%s25 + $0x7bc] sm:$0xf]
    %v662 = vld [vmem:[%s25 + $0x7c0] sm:$0xf]
    %v663 = vld [vmem:[%s25 + $0x7c4] sm:$0xf]
    %v664 = vld [vmem:[%s25 + $0x7c8] sm:$0xf]
    %v665 = vld [vmem:[%s25 + $0x7cc] sm:$0xf]
    %v666 = vld [vmem:[%s25 + $0x7d0] sm:$0xf]
    %v667 = vld [vmem:[%s25 + $0x7d4] sm:$0xf]
    %v668 = vld [vmem:[%s25 + $0x7d8] sm:$0xf]
    %v669 = vld [vmem:[%s25 + $0x7dc] sm:$0xf]
    %v670 = vld [vmem:[%s25 + $0x7e0] sm:$0xf]
    %v671 = vld [vmem:[%s25 + $0x7e4] sm:$0xf]
    %v672 = vld [vmem:[%s25 + $0x7e8] sm:$0xf]
    %v673 = vld [vmem:[%s25 + $0x7ec] sm:$0xf]
    %v674 = vld [vmem:[%s25 + $0x7f0] sm:$0xf]
    %v675 = vld [vmem:[%s25 + $0x7f4] sm:$0xf]
    %v676 = vld [vmem:[%s25 + $0x7f8] sm:$0xf]
    %v677 = vld [vmem:[%s25 + $0x7fc] sm:$0xf]
    %v678 = vld [vmem:[%s27] sm:$0xff]
    %v679 = vld [vmem:[%s27 + $0x8] sm:$0xff]
    %v680 = vld [vmem:[%s27 + $0x10] sm:$0xff]
    %v681 = vld [vmem:[%s27 + $0x18] sm:$0xff]
    %v682 = vld [vmem:[%s29] sm:$0xff]
    %v683 = vld [vmem:[%s29 + $0x8] sm:$0xff]
    %v684 = vld [vmem:[%s29 + $0x10] sm:$0xff]
    %v685 = vld [vmem:[%s29 + $0x18] sm:$0xff]
    %v686 = vld [vmem:[%s29 + $0x20] sm:$0xff]
    %v687 = vld [vmem:[%s29 + $0x28] sm:$0xff]
    %v688 = vld [vmem:[%s29 + $0x30] sm:$0xff]
    %v689 = vld [vmem:[%s29 + $0x38] sm:$0xff]
    %v690 = vld [vmem:[%s29 + $0x40] sm:$0xff]
    %v691 = vld [vmem:[%s29 + $0x48] sm:$0xff]
    %v692 = vld [vmem:[%s29 + $0x50] sm:$0xff]
    %v693 = vld [vmem:[%s29 + $0x58] sm:$0xff]
    %v694 = vld [vmem:[%s29 + $0x60] sm:$0xff]
    %v695 = vld [vmem:[%s29 + $0x68] sm:$0xff]
    %v696 = vld [vmem:[%s29 + $0x70] sm:$0xff]
    %v697 = vld [vmem:[%s29 + $0x78] sm:$0xff]
    %v698 = vld [vmem:[%s29 + $0x80] sm:$0xff]
    %v699 = vld [vmem:[%s29 + $0x88] sm:$0xff]
    %v700 = vld [vmem:[%s29 + $0x90] sm:$0xff]
    %v701 = vld [vmem:[%s29 + $0x98] sm:$0xff]
    %v702 = vld [vmem:[%s29 + $0xa0] sm:$0xff]
    %v703 = vld [vmem:[%s29 + $0xa8] sm:$0xff]
    %v704 = vld [vmem:[%s29 + $0xb0] sm:$0xff]
    %v705 = vld [vmem:[%s29 + $0xb8] sm:$0xff]
    %v706 = vld [vmem:[%s29 + $0xc0] sm:$0xff]
    %v707 = vld [vmem:[%s29 + $0xc8] sm:$0xff]
    %v708 = vld [vmem:[%s29 + $0xd0] sm:$0xff]
    %v709 = vld [vmem:[%s29 + $0xd8] sm:$0xff]
    %v710 = vld [vmem:[%s29 + $0xe0] sm:$0xff]
    %v711 = vld [vmem:[%s29 + $0xe8] sm:$0xff]
    %v712 = vld [vmem:[%s29 + $0xf0] sm:$0xff]
    %v713 = vld [vmem:[%s29 + $0xf8] sm:$0xff]
    %v714 = vld [vmem:[%s29 + $0x100] sm:$0xff]
    %v715 = vld [vmem:[%s29 + $0x108] sm:$0xff]
    %v716 = vld [vmem:[%s29 + $0x110] sm:$0xff]
    %v717 = vld [vmem:[%s29 + $0x118] sm:$0xff]
    %v718 = vld [vmem:[%s29 + $0x120] sm:$0xff]
    %v719 = vld [vmem:[%s29 + $0x128] sm:$0xff]
    %v720 = vld [vmem:[%s29 + $0x130] sm:$0xff]
    %v721 = vld [vmem:[%s29 + $0x138] sm:$0xff]
    %v722 = vld [vmem:[%s29 + $0x140] sm:$0xff]
    %v723 = vld [vmem:[%s29 + $0x148] sm:$0xff]
    %v724 = vld [vmem:[%s29 + $0x150] sm:$0xff]
    %v725 = vld [vmem:[%s29 + $0x158] sm:$0xff]
    %v726 = vld [vmem:[%s29 + $0x160] sm:$0xff]
    %v727 = vld [vmem:[%s29 + $0x168] sm:$0xff]
    %v728 = vld [vmem:[%s29 + $0x170] sm:$0xff]
    %v729 = vld [vmem:[%s29 + $0x178] sm:$0xff]
    %v730 = vld [vmem:[%s29 + $0x180] sm:$0xff]
    %v731 = vld [vmem:[%s29 + $0x188] sm:$0xff]
    %v732 = vld [vmem:[%s29 + $0x190] sm:$0xff]
    %v733 = vld [vmem:[%s29 + $0x198] sm:$0xff]
    %v734 = vld [vmem:[%s29 + $0x1a0] sm:$0xff]
    %v735 = vld [vmem:[%s29 + $0x1a8] sm:$0xff]
    %v736 = vld [vmem:[%s29 + $0x1b0] sm:$0xff]
    %v737 = vld [vmem:[%s29 + $0x1b8] sm:$0xff]
    %v738 = vld [vmem:[%s29 + $0x1c0] sm:$0xff]
    %v739 = vld [vmem:[%s29 + $0x1c8] sm:$0xff]
    %v740 = vld [vmem:[%s29 + $0x1d0] sm:$0xff]
    %v741 = vld [vmem:[%s29 + $0x1d8] sm:$0xff]
    %v742 = vld [vmem:[%s29 + $0x1e0] sm:$0xff]
    %v743 = vld [vmem:[%s29 + $0x1e8] sm:$0xff]
    %v744 = vld [vmem:[%s29 + $0x1f0] sm:$0xff]
    %v745 = vld [vmem:[%s29 + $0x1f8] sm:$0xff]
    %v746 = vld [vmem:[%s31] sm:$0x3]
    %v747 = vld [vmem:[%s33] sm:$0x3]
    %v748 = vld [vmem:[%s35] sm:$0x3]
    %v749 = vld [vmem:[%s37] sm:$0x3]
    %v750 = vld [vmem:[%s39] sm:$0x3]
    %v751 = vld [vmem:[%s41] sm:$0x1]
    %v752 = vld [vmem:[%s43] sm:$0x1]
    %v753 = vld [vmem:[%s45] sm:$0xf]
    %v754 = vld [vmem:[%s45 + $0x4] sm:$0xf]
    %v755 = vld [vmem:[%s45 + $0x8] sm:$0xf]
    %v756 = vld [vmem:[%s45 + $0xc] sm:$0xf]
    %v757 = vld [vmem:[%s45 + $0x10] sm:$0xf]
    %v758 = vld [vmem:[%s45 + $0x14] sm:$0xf]
    %v759 = vld [vmem:[%s45 + $0x18] sm:$0xf]
    %v760 = vld [vmem:[%s45 + $0x1c] sm:$0xf]
    %v761 = vld [vmem:[%s45 + $0x20] sm:$0xf]
    %v762 = vld [vmem:[%s45 + $0x24] sm:$0xf]
    %v763 = vld [vmem:[%s45 + $0x28] sm:$0xf]
    %v764 = vld [vmem:[%s45 + $0x2c] sm:$0xf]
    %v765 = vld [vmem:[%s45 + $0x30] sm:$0xf]
    %v766 = vld [vmem:[%s45 + $0x34] sm:$0xf]
    %v767 = vld [vmem:[%s45 + $0x38] sm:$0xf]
    %v768 = vld [vmem:[%s45 + $0x3c] sm:$0xf]
    %v769 = vld [vmem:[%s45 + $0x40] sm:$0xf]
    %v770 = vld [vmem:[%s45 + $0x44] sm:$0xf]
    %v771 = vld [vmem:[%s45 + $0x48] sm:$0xf]
    %v772 = vld [vmem:[%s45 + $0x4c] sm:$0xf]
    %v773 = vld [vmem:[%s45 + $0x50] sm:$0xf]
    %v774 = vld [vmem:[%s45 + $0x54] sm:$0xf]
    %v775 = vld [vmem:[%s45 + $0x58] sm:$0xf]
    %v776 = vld [vmem:[%s45 + $0x5c] sm:$0xf]
    %v777 = vld [vmem:[%s45 + $0x60] sm:$0xf]
    %v778 = vld [vmem:[%s45 + $0x64] sm:$0xf]
    %v779 = vld [vmem:[%s45 + $0x68] sm:$0xf]
    %v780 = vld [vmem:[%s45 + $0x6c] sm:$0xf]
    %v781 = vld [vmem:[%s45 + $0x70] sm:$0xf]
    %v782 = vld [vmem:[%s45 + $0x74] sm:$0xf]
    %v783 = vld [vmem:[%s45 + $0x78] sm:$0xf]
    %v784 = vld [vmem:[%s45 + $0x7c] sm:$0xf]
    %v785 = vld [vmem:[%s45 + $0x80] sm:$0xf]
    %v786 = vld [vmem:[%s45 + $0x84] sm:$0xf]
    %v787 = vld [vmem:[%s45 + $0x88] sm:$0xf]
    %v788 = vld [vmem:[%s45 + $0x8c] sm:$0xf]
    %v789 = vld [vmem:[%s45 + $0x90] sm:$0xf]
    %v790 = vld [vmem:[%s45 + $0x94] sm:$0xf]
    %v791 = vld [vmem:[%s45 + $0x98] sm:$0xf]
    %v792 = vld [vmem:[%s45 + $0x9c] sm:$0xf]
    %v793 = vld [vmem:[%s45 + $0xa0] sm:$0xf]
    %v794 = vld [vmem:[%s45 + $0xa4] sm:$0xf]
    %v795 = vld [vmem:[%s45 + $0xa8] sm:$0xf]
    %v796 = vld [vmem:[%s45 + $0xac] sm:$0xf]
    %v797 = vld [vmem:[%s45 + $0xb0] sm:$0xf]
    %v798 = vld [vmem:[%s45 + $0xb4] sm:$0xf]
    %v799 = vld [vmem:[%s45 + $0xb8] sm:$0xf]
    %v800 = vld [vmem:[%s45 + $0xbc] sm:$0xf]
    %v801 = vld [vmem:[%s45 + $0xc0] sm:$0xf]
    %v802 = vld [vmem:[%s45 + $0xc4] sm:$0xf]
    %v803 = vld [vmem:[%s45 + $0xc8] sm:$0xf]
    %v804 = vld [vmem:[%s45 + $0xcc] sm:$0xf]
    %v805 = vld [vmem:[%s45 + $0xd0] sm:$0xf]
    %v806 = vld [vmem:[%s45 + $0xd4] sm:$0xf]
    %v807 = vld [vmem:[%s45 + $0xd8] sm:$0xf]
    %v808 = vld [vmem:[%s45 + $0xdc] sm:$0xf]
    %v809 = vld [vmem:[%s45 + $0xe0] sm:$0xf]
    %v810 = vld [vmem:[%s45 + $0xe4] sm:$0xf]
    %v811 = vld [vmem:[%s45 + $0xe8] sm:$0xf]
    %v812 = vld [vmem:[%s45 + $0xec] sm:$0xf]
    %v813 = vld [vmem:[%s45 + $0xf0] sm:$0xf]
    %v814 = vld [vmem:[%s45 + $0xf4] sm:$0xf]
    %v815 = vld [vmem:[%s45 + $0xf8] sm:$0xf]
    %v816 = vld [vmem:[%s45 + $0xfc] sm:$0xf]
    %v817 = vld [vmem:[%s47] sm:$0xf]
    %v818 = vld [vmem:[%s47 + $0x4] sm:$0xf]
    %v819 = vld [vmem:[%s47 + $0x8] sm:$0xf]
    %v820 = vld [vmem:[%s47 + $0xc] sm:$0xf]
    %v821 = vld [vmem:[%s47 + $0x10] sm:$0xf]
    %v822 = vld [vmem:[%s47 + $0x14] sm:$0xf]
    %v823 = vld [vmem:[%s47 + $0x18] sm:$0xf]
    %v824 = vld [vmem:[%s47 + $0x1c] sm:$0xf]
    %v825 = vld [vmem:[%s47 + $0x20] sm:$0xf]
    %v826 = vld [vmem:[%s47 + $0x24] sm:$0xf]
    %v827 = vld [vmem:[%s47 + $0x28] sm:$0xf]
    %v828 = vld [vmem:[%s47 + $0x2c] sm:$0xf]
    %v829 = vld [vmem:[%s47 + $0x30] sm:$0xf]
    %v830 = vld [vmem:[%s47 + $0x34] sm:$0xf]
    %v831 = vld [vmem:[%s47 + $0x38] sm:$0xf]
    %v832 = vld [vmem:[%s47 + $0x3c] sm:$0xf]
    %v833 = vld [vmem:[%s47 + $0x40] sm:$0xf]
    %v834 = vld [vmem:[%s47 + $0x44] sm:$0xf]
    %v835 = vld [vmem:[%s47 + $0x48] sm:$0xf]
    %v836 = vld [vmem:[%s47 + $0x4c] sm:$0xf]
    %v837 = vld [vmem:[%s47 + $0x50] sm:$0xf]
    %v838 = vld [vmem:[%s47 + $0x54] sm:$0xf]
    %v839 = vld [vmem:[%s47 + $0x58] sm:$0xf]
    %v840 = vld [vmem:[%s47 + $0x5c] sm:$0xf]
    %v841 = vld [vmem:[%s47 + $0x60] sm:$0xf]
    %v842 = vld [vmem:[%s47 + $0x64] sm:$0xf]
    %v843 = vld [vmem:[%s47 + $0x68] sm:$0xf]
    %v844 = vld [vmem:[%s47 + $0x6c] sm:$0xf]
    %v845 = vld [vmem:[%s47 + $0x70] sm:$0xf]
    %v846 = vld [vmem:[%s47 + $0x74] sm:$0xf]
    %v847 = vld [vmem:[%s47 + $0x78] sm:$0xf]
    %v848 = vld [vmem:[%s47 + $0x7c] sm:$0xf]
    %v849 = vld [vmem:[%s47 + $0x80] sm:$0xf]
    %v850 = vld [vmem:[%s47 + $0x84] sm:$0xf]
    %v851 = vld [vmem:[%s47 + $0x88] sm:$0xf]
    %v852 = vld [vmem:[%s47 + $0x8c] sm:$0xf]
    %v853 = vld [vmem:[%s47 + $0x90] sm:$0xf]
    %v854 = vld [vmem:[%s47 + $0x94] sm:$0xf]
    %v855 = vld [vmem:[%s47 + $0x98] sm:$0xf]
    %v856 = vld [vmem:[%s47 + $0x9c] sm:$0xf]
    %v857 = vld [vmem:[%s47 + $0xa0] sm:$0xf]
    %v858 = vld [vmem:[%s47 + $0xa4] sm:$0xf]
    %v859 = vld [vmem:[%s47 + $0xa8] sm:$0xf]
    %v860 = vld [vmem:[%s47 + $0xac] sm:$0xf]
    %v861 = vld [vmem:[%s47 + $0xb0] sm:$0xf]
    %v862 = vld [vmem:[%s47 + $0xb4] sm:$0xf]
    %v863 = vld [vmem:[%s47 + $0xb8] sm:$0xf]
    %v864 = vld [vmem:[%s47 + $0xbc] sm:$0xf]
    %v865 = vld [vmem:[%s47 + $0xc0] sm:$0xf]
    %v866 = vld [vmem:[%s47 + $0xc4] sm:$0xf]
    %v867 = vld [vmem:[%s47 + $0xc8] sm:$0xf]
    %v868 = vld [vmem:[%s47 + $0xcc] sm:$0xf]
    %v869 = vld [vmem:[%s47 + $0xd0] sm:$0xf]
    %v870 = vld [vmem:[%s47 + $0xd4] sm:$0xf]
    %v871 = vld [vmem:[%s47 + $0xd8] sm:$0xf]
    %v872 = vld [vmem:[%s47 + $0xdc] sm:$0xf]
    %v873 = vld [vmem:[%s47 + $0xe0] sm:$0xf]
    %v874 = vld [vmem:[%s47 + $0xe4] sm:$0xf]
    %v875 = vld [vmem:[%s47 + $0xe8] sm:$0xf]
    %v876 = vld [vmem:[%s47 + $0xec] sm:$0xf]
    %v877 = vld [vmem:[%s47 + $0xf0] sm:$0xf]
    %v878 = vld [vmem:[%s47 + $0xf4] sm:$0xf]
    %v879 = vld [vmem:[%s47 + $0xf8] sm:$0xf]
    %v880 = vld [vmem:[%s47 + $0xfc] sm:$0xf]
    %v881 = vld [vmem:[%s49] sm:$0xf]
    %v882 = vld [vmem:[%s51] sm:$0xff]
    %v883 = vld [vmem:[%s51 + $0x8] sm:$0xff]
    %v884 = vld [vmem:[%s51 + $0x10] sm:$0xff]
    %v885 = vld [vmem:[%s51 + $0x18] sm:$0xff]
    %v886 = vld [vmem:[%s51 + $0x20] sm:$0xff]
    %v887 = vld [vmem:[%s51 + $0x28] sm:$0xff]
    %v888 = vld [vmem:[%s51 + $0x30] sm:$0xff]
    %v889 = vld [vmem:[%s51 + $0x38] sm:$0xff]
    %v890 = vld [vmem:[%s51 + $0x40] sm:$0xff]
    %v891 = vld [vmem:[%s51 + $0x48] sm:$0xff]
    %v892 = vld [vmem:[%s51 + $0x50] sm:$0xff]
    %v893 = vld [vmem:[%s51 + $0x58] sm:$0xff]
    %v894 = vld [vmem:[%s51 + $0x60] sm:$0xff]
    %v895 = vld [vmem:[%s51 + $0x68] sm:$0xff]
    %v896 = vld [vmem:[%s51 + $0x70] sm:$0xff]
    %v897 = vld [vmem:[%s51 + $0x78] sm:$0xff]
    %v898 = vld [vmem:[%s51 + $0x80] sm:$0xff]
    %v899 = vld [vmem:[%s51 + $0x88] sm:$0xff]
    %v900 = vld [vmem:[%s51 + $0x90] sm:$0xff]
    %v901 = vld [vmem:[%s51 + $0x98] sm:$0xff]
    %v902 = vld [vmem:[%s51 + $0xa0] sm:$0xff]
    %v903 = vld [vmem:[%s51 + $0xa8] sm:$0xff]
    %v904 = vld [vmem:[%s51 + $0xb0] sm:$0xff]
    %v905 = vld [vmem:[%s51 + $0xb8] sm:$0xff]
    %v906 = vld [vmem:[%s51 + $0xc0] sm:$0xff]
    %v907 = vld [vmem:[%s51 + $0xc8] sm:$0xff]
    %v908 = vld [vmem:[%s51 + $0xd0] sm:$0xff]
    %v909 = vld [vmem:[%s51 + $0xd8] sm:$0xff]
    %v910 = vld [vmem:[%s51 + $0xe0] sm:$0xff]
    %v911 = vld [vmem:[%s51 + $0xe8] sm:$0xff]
    %v912 = vld [vmem:[%s51 + $0xf0] sm:$0xff]
    %v913 = vld [vmem:[%s51 + $0xf8] sm:$0xff]
    %v914 = vld [vmem:[%s51 + $0x100] sm:$0xff]
    %v915 = vld [vmem:[%s51 + $0x108] sm:$0xff]
    %v916 = vld [vmem:[%s51 + $0x110] sm:$0xff]
    %v917 = vld [vmem:[%s51 + $0x118] sm:$0xff]
    %v918 = vld [vmem:[%s51 + $0x120] sm:$0xff]
    %v919 = vld [vmem:[%s51 + $0x128] sm:$0xff]
    %v920 = vld [vmem:[%s51 + $0x130] sm:$0xff]
    %v921 = vld [vmem:[%s51 + $0x138] sm:$0xff]
    %v922 = vld [vmem:[%s51 + $0x140] sm:$0xff]
    %v923 = vld [vmem:[%s51 + $0x148] sm:$0xff]
    %v924 = vld [vmem:[%s51 + $0x150] sm:$0xff]
    %v925 = vld [vmem:[%s51 + $0x158] sm:$0xff]
    %v926 = vld [vmem:[%s51 + $0x160] sm:$0xff]
    %v927 = vld [vmem:[%s51 + $0x168] sm:$0xff]
    %v928 = vld [vmem:[%s51 + $0x170] sm:$0xff]
    %v929 = vld [vmem:[%s51 + $0x178] sm:$0xff]
    %v930 = vld [vmem:[%s51 + $0x180] sm:$0xff]
    %v931 = vld [vmem:[%s51 + $0x188] sm:$0xff]
    %v932 = vld [vmem:[%s51 + $0x190] sm:$0xff]
    %v933 = vld [vmem:[%s51 + $0x198] sm:$0xff]
    %v934 = vld [vmem:[%s51 + $0x1a0] sm:$0xff]
    %v935 = vld [vmem:[%s51 + $0x1a8] sm:$0xff]
    %v936 = vld [vmem:[%s51 + $0x1b0] sm:$0xff]
    %v937 = vld [vmem:[%s51 + $0x1b8] sm:$0xff]
    %v938 = vld [vmem:[%s51 + $0x1c0] sm:$0xff]
    %v939 = vld [vmem:[%s51 + $0x1c8] sm:$0xff]
    %v940 = vld [vmem:[%s51 + $0x1d0] sm:$0xff]
    %v941 = vld [vmem:[%s51 + $0x1d8] sm:$0xff]
    %v942 = vld [vmem:[%s51 + $0x1e0] sm:$0xff]
    %v943 = vld [vmem:[%s51 + $0x1e8] sm:$0xff]
    %v944 = vld [vmem:[%s51 + $0x1f0] sm:$0xff]
    %v945 = vld [vmem:[%s51 + $0x1f8] sm:$0xff]
    %v946 = vld [vmem:[%s53] sm:$0x3]
    %v947 = vld [vmem:[%s55] sm:$0xf]
    %v948 = vld [vmem:[%s57] sm:$0x1]
    %v949 = vadd.f32 %v124, %v126
    %v950 = vadd.f32 %v125, %v126
    %v951 = vpack.c.bf16 %v950, %v949
    %v952 = vlaneseq
    %v953 = vshrl.u32 %v952, 7
    %v954 = vsub.s32 0, %v953
    %v955 = vrot.slane %v138, %v954
    %v960 = vunpack.c.l.b16 %v130
    %v961 = vunpack.c.l.b16 %v131
    %v962 = vunpack.c.l.b16 %v132
    %v963 = vunpack.c.l.b16 %v133
    %v964 = vpack.c.b16 %v961, %v960
    %v965 = vpack.c.b16 %v963, %v962
    %vm966 = vcmask 261120
    %v968 = vsel %vm966, %v951, 0
    %v971 = vsel %vm966, %v964, 0
    %v974 = vsel %vm966, %v965, 0
    %976 = vmatprep.subr.bf16.mxu0 0
    %977 = vmatpush1.bf16.xpose.msra.mxu0 %v971
    %978 = vmatprep.subr.bf16.mxu0 0
    %979 = vmatpush1.bf16.xpose.msra.mxu0 %v974
    %980 = vmatprep.subr.bf16.mxu0 0
    %981 = vmatpush1.bf16.xpose.msra.mxu0 0
    %982 = vmatprep.subr.bf16.mxu0 0
    %983 = vmatpush1.bf16.xpose.msra.mxu0 0
    %984 = vmatprep.subr.bf16.mxu0 0
    %985 = vmatpush1.bf16.xpose.msra.mxu0 0
    %986 = vmatprep.subr.bf16.mxu0 0
    %987 = vmatpush1.bf16.xpose.msra.mxu0 0
    %988 = vmatprep.subr.bf16.mxu0 0
    %989 = vmatpush1.bf16.xpose.msra.mxu0 0
    %990 = vmatprep.subr.bf16.mxu0 0
    %991 = vmatpush1.bf16.xpose.msra.mxu0 0
    %992 = vmatprep.subr.bf16.mxu0 0
    %993 = vmatpush1.bf16.xpose.msra.mxu0 0
    %994 = vmatprep.subr.bf16.mxu0 0
    %995 = vmatpush1.bf16.xpose.msra.mxu0 0
    %996 = vmatprep.subr.bf16.mxu0 0
    %997 = vmatpush1.bf16.xpose.msra.mxu0 0
    %998 = vmatprep.subr.bf16.mxu0 0
    %999 = vmatpush1.bf16.xpose.msra.mxu0 0
    %1000 = vmatprep.subr.bf16.mxu0 0
    %1001 = vmatpush1.bf16.xpose.msra.mxu0 0
    %1002 = vmatprep.subr.bf16.mxu0 0
    %1003 = vmatpush1.bf16.xpose.msra.mxu0 0
    %1004 = vmatprep.subr.bf16.mxu0 0
    %1005 = vmatpush1.bf16.xpose.msra.mxu0 0
    %1006 = vmatprep.subr.bf16.mxu0 0
    %1007 = vmatpush1.bf16.xpose.msra.mxu0 0
    %1008 = vmatprep.mubr.bf16.mxu0 0
    %1009 = vmatmul.mubr.bf16.gmra.mrb[0].mxu0 %v968
    %v1010 = vpop.f32.mrb[0].mxu0
    %v1011 = vadd.f32 %v955, %v1010
    %v1012 = vpop.f32.mrb[0].mxu0
    %v1013 = vpop.f32.mrb[0].mxu0
    %v1014 = vadd.f32 %v955, %v1013
    %v1015 = vpop.f32.mrb[0].mxu0
    %1016 = vdwg.mxu0
    %v1017 = vlaneseq
    %v1018 = vshrl.u32 %v1017, 7
    %v1019 = vsub.s32 0, %v1018
    %v1020 = vrot.slane %v147, %v1019
    %v1025 = vunpack.c.l.b16 %v139
    %v1026 = vunpack.c.l.b16 %v140
    %v1027 = vunpack.c.l.b16 %v141
    %v1028 = vunpack.c.l.b16 %v142
    %v1029 = vpack.c.b16 %v1026, %v1025
    %v1030 = vpack.c.b16 %v1028, %v1027
    %v1032 = vsel %vm966, %v1029, 0
    %v1035 = vsel %vm966, %v1030, 0
    %1037 = vmatprep.subr.bf16.mxu0 0
    %1038 = vmatpush1.bf16.xpose.msra.mxu0 %v1032
    %1039 = vmatprep.subr.bf16.mxu0 0
    %1040 = vmatpush1.bf16.xpose.msra.mxu0 %v1035
    %1041 = vmatprep.subr.bf16.mxu0 0
    %1042 = vmatpush1.bf16.xpose.msra.mxu0 0
    %1043 = vmatprep.subr.bf16.mxu0 0
    %1044 = vmatpush1.bf16.xpose.msra.mxu0 0
    %1045 = vmatprep.subr.bf16.mxu0 0
    %1046 = vmatpush1.bf16.xpose.msra.mxu0 0
    %1047 = vmatprep.subr.bf16.mxu0 0
    %1048 = vmatpush1.bf16.xpose.msra.mxu0 0
    %1049 = vmatprep.subr.bf16.mxu0 0
    %1050 = vmatpush1.bf16.xpose.msra.mxu0 0
    %1051 = vmatprep.subr.bf16.mxu0 0
    %1052 = vmatpush1.bf16.xpose.msra.mxu0 0
    %1053 = vmatprep.subr.bf16.mxu0 0
    %1054 = vmatpush1.bf16.xpose.msra.mxu0 0
    %1055 = vmatprep.subr.bf16.mxu0 0
    %1056 = vmatpush1.bf16.xpose.msra.mxu0 0
    %1057 = vmatprep.subr.bf16.mxu0 0
    %1058 = vmatpush1.bf16.xpose.msra.mxu0 0
    %1059 = vmatprep.subr.bf16.mxu0 0
    %1060 = vmatpush1.bf16.xpose.msra.mxu0 0
    %1061 = vmatprep.subr.bf16.mxu0 0
    %1062 = vmatpush1.bf16.xpose.msra.mxu0 0
    %1063 = vmatprep.subr.bf16.mxu0 0
    %1064 = vmatpush1.bf16.xpose.msra.mxu0 0
    %1065 = vmatprep.subr.bf16.mxu0 0
    %1066 = vmatpush1.bf16.xpose.msra.mxu0 0
    %1067 = vmatprep.subr.bf16.mxu0 0
    %1068 = vmatpush1.bf16.xpose.msra.mxu0 0
    %1069 = vmatprep.mubr.bf16.mxu0 0
    %1070 = vmatmul.mubr.bf16.gmra.mrb[0].mxu0 %v968
    %v1071 = vpop.f32.mrb[0].mxu0
    %v1072 = vadd.f32 %v1020, %v1071
    %v1073 = vpop.f32.mrb[0].mxu0
    %v1074 = vpop.f32.mrb[0].mxu0
    %v1075 = vadd.f32 %v1020, %v1074
    %v1076 = vpop.f32.mrb[0].mxu0
    %1077 = vdwg.mxu0
    %v1078 = vlaneseq
    %v1079 = vshrl.u32 %v1078, 7
    %v1080 = vsub.s32 0, %v1079
    %v1081 = vrot.slane %v156, %v1080
    %v1086 = vunpack.c.l.b16 %v148
    %v1087 = vunpack.c.l.b16 %v149
    %v1088 = vunpack.c.l.b16 %v150
    %v1089 = vunpack.c.l.b16 %v151
    %v1090 = vpack.c.b16 %v1087, %v1086
    %v1091 = vpack.c.b16 %v1089, %v1088
    %v1093 = vsel %vm966, %v1090, 0
    %v1096 = vsel %vm966, %v1091, 0
    %1098 = vmatprep.subr.bf16.mxu0 0
    %1099 = vmatpush1.bf16.xpose.msra.mxu0 %v1093
    %1100 = vmatprep.subr.bf16.mxu0 0
    %1101 = vmatpush1.bf16.xpose.msra.mxu0 %v1096
    %1102 = vmatprep.subr.bf16.mxu0 0
    %1103 = vmatpush1.bf16.xpose.msra.mxu0 0
    %1104 = vmatprep.subr.bf16.mxu0 0
    %1105 = vmatpush1.bf16.xpose.msra.mxu0 0
    %1106 = vmatprep.subr.bf16.mxu0 0
    %1107 = vmatpush1.bf16.xpose.msra.mxu0 0
    %1108 = vmatprep.subr.bf16.mxu0 0
    %1109 = vmatpush1.bf16.xpose.msra.mxu0 0
    %1110 = vmatprep.subr.bf16.mxu0 0
    %1111 = vmatpush1.bf16.xpose.msra.mxu0 0
    %1112 = vmatprep.subr.bf16.mxu0 0
    %1113 = vmatpush1.bf16.xpose.msra.mxu0 0
    %1114 = vmatprep.subr.bf16.mxu0 0
    %1115 = vmatpush1.bf16.xpose.msra.mxu0 0
    %1116 = vmatprep.subr.bf16.mxu0 0
    %1117 = vmatpush1.bf16.xpose.msra.mxu0 0
    %1118 = vmatprep.subr.bf16.mxu0 0
    %1119 = vmatpush1.bf16.xpose.msra.mxu0 0
    %1120 = vmatprep.subr.bf16.mxu0 0
    %1121 = vmatpush1.bf16.xpose.msra.mxu0 0
    %1122 = vmatprep.subr.bf16.mxu0 0
    %1123 = vmatpush1.bf16.xpose.msra.mxu0 0
    %1124 = vmatprep.subr.bf16.mxu0 0
    %1125 = vmatpush1.bf16.xpose.msra.mxu0 0
    %1126 = vmatprep.subr.bf16.mxu0 0
    %1127 = vmatpush1.bf16.xpose.msra.mxu0 0
    %1128 = vmatprep.subr.bf16.mxu0 0
    %1129 = vmatpush1.bf16.xpose.msra.mxu0 0
    %1130 = vmatprep.mubr.bf16.mxu0 0
    %1131 = vmatmul.mubr.bf16.gmra.mrb[0].mxu0 %v968
    %v1132 = vpop.f32.mrb[0].mxu0
    %v1133 = vadd.f32 %v1081, %v1132
    %v1134 = vpop.f32.mrb[0].mxu0
    %v1135 = vpop.f32.mrb[0].mxu0
    %v1136 = vadd.f32 %v1081, %v1135
    %v1137 = vpop.f32.mrb[0].mxu0
    %1138 = vdwg.mxu0
    %v1139 = vmul.f32 %v1011, 0.35355338
    %v1140 = vmul.f32 %v1014, 0.35355338
    %v1141 = vpack.c.bf16 %v1140, %v1139
    %v1142 = vpack.c.bf16 %v1075, %v1072
    %vm1143 = vcmask 64512
    %v1145 = vsel %vm1143, %v1141, 0
    %v1148 = vsel %vm1143, %v1142, 0
    %1150 = vmatprep.subr.bf16.mxu0 0
    %1151 = vmatpush1.bf16.xpose.msra.mxu0 %v1148
    %1152 = vmatprep.subr.bf16.mxu0 0
    %1153 = vmatpush1.bf16.xpose.msra.mxu0 0
    %1154 = vmatprep.subr.bf16.mxu0 0
    %1155 = vmatpush1.bf16.xpose.msra.mxu0 0
    %1156 = vmatprep.subr.bf16.mxu0 0
    %1157 = vmatpush1.bf16.xpose.msra.mxu0 0
    %1158 = vmatprep.subr.bf16.mxu0 0
    %1159 = vmatpush1.bf16.xpose.msra.mxu0 0
    %1160 = vmatprep.subr.bf16.mxu0 0
    %1161 = vmatpush1.bf16.xpose.msra.mxu0 0
    %1162 = vmatprep.subr.bf16.mxu0 0
    %1163 = vmatpush1.bf16.xpose.msra.mxu0 0
    %1164 = vmatprep.subr.bf16.mxu0 0
    %1165 = vmatpush1.bf16.xpose.msra.mxu0 0
    %1166 = vmatprep.subr.bf16.mxu0 0
    %1167 = vmatpush1.bf16.xpose.msra.mxu0 0
    %1168 = vmatprep.subr.bf16.mxu0 0
    %1169 = vmatpush1.bf16.xpose.msra.mxu0 0
    %1170 = vmatprep.subr.bf16.mxu0 0
    %1171 = vmatpush1.bf16.xpose.msra.mxu0 0
    %1172 = vmatprep.subr.bf16.mxu0 0
    %1173 = vmatpush1.bf16.xpose.msra.mxu0 0
    %1174 = vmatprep.subr.bf16.mxu0 0
    %1175 = vmatpush1.bf16.xpose.msra.mxu0 0
    %1176 = vmatprep.subr.bf16.mxu0 0
    %1177 = vmatpush1.bf16.xpose.msra.mxu0 0
    %1178 = vmatprep.subr.bf16.mxu0 0
    %1179 = vmatpush1.bf16.xpose.msra.mxu0 0
    %1180 = vmatprep.subr.bf16.mxu0 0
    %1181 = vmatpush1.bf16.xpose.msra.mxu0 0
    %1182 = vmatprep.mubr.bf16.mxu0 0
    %1183 = vmatmul.mubr.bf16.gmra.mrb[0].mxu0 %v1145
    %v1184 = vpop.f32.mrb[0].mxu0
    %v1185 = vadd.f32 %v128, %v1184
    %v1186 = vpop.f32.mrb[0].mxu0
    %v1187 = vpop.f32.mrb[0].mxu0
    %v1188 = vadd.f32 %v129, %v1187
    %v1189 = vpop.f32.mrb[0].mxu0
    %1190 = vdwg.mxu0
    %vm1191 = vcmask 130048
    %v1192 = vsel %vm1191, %v1185, -inf
    %1193 = vmax.xlane.f32.xlu0 %v1192
    %v1194 = vpop.xlane.xlu0 %1193
    %v1195 = vsel %vm1191, %v1188, -inf
    %1196 = vmax.xlane.f32.xlu0 %v1195
    %v1197 = vpop.xlane.xlu0 %1196
    %v1198 = vsub.f32 %v1185, %v1194
    %v1199 = vsub.f32 %v1188, %v1197
    %v1200 = vmul.f32 %v1198, 1.442695
    %v1201 = vpow.pop %v1200
    %v1202 = vmul.f32 %v1199, 1.442695
    %v1203 = vpow.pop %v1202
    %v1204 = vsel %vm1191, %v1201, 0.0
    %1205 = vadd.xlane.f32.xlu0 %v1204
    %v1206 = vpop.xlane.xlu0 %1205
    %v1207 = vsel %vm1191, %v1203, 0.0
    %1208 = vadd.xlane.f32.xlu0 %v1207
    %v1209 = vpop.xlane.xlu0 %1208
    %v1210 = vrcp.pop %v1206
    %v1211 = vrcp.pop %v1209
    %v1212 = vmul.f32 %v1201, %v1210
    %v1213 = vmul.f32 %v1203, %v1211
    %v1214 = vpack.c.bf16 %v1213, %v1212
    %v1215 = vpack.c.bf16 %v1136, %v1133
    %v1217 = vsel %vm1191, %v1214, 0
    %1219 = vmatprep.subr.bf16.mxu0 0
    %1220 = vmatpush1.bf16.msra.mxu0 %v1215
    %1221 = vmatprep.subr.bf16.mxu0 0
    %1222 = vmatpush1.bf16.msra.mxu0 0
    %1223 = vmatprep.subr.bf16.mxu0 0
    %1224 = vmatpush1.bf16.msra.mxu0 0
    %1225 = vmatprep.subr.bf16.mxu0 0
    %1226 = vmatpush1.bf16.msra.mxu0 0
    %1227 = vmatprep.subr.bf16.mxu0 0
    %1228 = vmatpush1.bf16.msra.mxu0 0
    %1229 = vmatprep.subr.bf16.mxu0 0
    %1230 = vmatpush1.bf16.msra.mxu0 0
    %1231 = vmatprep.subr.bf16.mxu0 0
    %1232 = vmatpush1.bf16.msra.mxu0 0
    %1233 = vmatprep.subr.bf16.mxu0 0
    %1234 = vmatpush1.bf16.msra.mxu0 0
    %1235 = vmatprep.subr.bf16.mxu0 0
    %1236 = vmatpush1.bf16.msra.mxu0 0
    %1237 = vmatprep.subr.bf16.mxu0 0
    %1238 = vmatpush1.bf16.msra.mxu0 0
    %1239 = vmatprep.subr.bf16.mxu0 0
    %1240 = vmatpush1.bf16.msra.mxu0 0
    %1241 = vmatprep.subr.bf16.mxu0 0
    %1242 = vmatpush1.bf16.msra.mxu0 0
    %1243 = vmatprep.subr.bf16.mxu0 0
    %1244 = vmatpush1.bf16.msra.mxu0 0
    %1245 = vmatprep.subr.bf16.mxu0 0
    %1246 = vmatpush1.bf16.msra.mxu0 0
    %1247 = vmatprep.subr.bf16.mxu0 0
    %1248 = vmatpush1.bf16.msra.mxu0 0
    %1249 = vmatprep.subr.bf16.mxu0 0
    %1250 = vmatpush1.bf16.msra.mxu0 0
    %1251 = vmatprep.mubr.bf16.mxu0 0
    %1252 = vmatmul.mubr.bf16.gmra.mrb[0].mxu0 %v1217
    %v1253 = vpop.f32.mrb[0].mxu0
    %v1254 = vadd.f32 0.0, %v1253
    %v1255 = vpop.f32.mrb[0].mxu0
    %v1256 = vpop.f32.mrb[0].mxu0
    %v1257 = vadd.f32 0.0, %v1256
    %v1258 = vpop.f32.mrb[0].mxu0
    %1259 = vdwg.mxu0
    %v1260 = vpack.c.bf16 %v1257, %v1254
    %1262 = vrot.lane.b32.xlu0 %v1141, 120
    %v1263 = vpop.permute.xlu0 %1262
    %1265 = vrot.lane.b32.xlu0 %v1142, 120
    %v1266 = vpop.permute.xlu0 %1265
    %v1268 = vsel %vm1143, %v1263, 0
    %v1271 = vsel %vm1143, %v1266, 0
    %1273 = vmatprep.subr.bf16.mxu0 0
    %1274 = vmatpush1.bf16.xpose.msra.mxu0 %v1271
    %1275 = vmatprep.subr.bf16.mxu0 0
    %1276 = vmatpush1.bf16.xpose.msra.mxu0 0
    %1277 = vmatprep.subr.bf16.mxu0 0
    %1278 = vmatpush1.bf16.xpose.msra.mxu0 0
    %1279 = vmatprep.subr.bf16.mxu0 0
    %1280 = vmatpush1.bf16.xpose.msra.mxu0 0
    %1281 = vmatprep.subr.bf16.mxu0 0
    %1282 = vmatpush1.bf16.xpose.msra.mxu0 0
    %1283 = vmatprep.subr.bf16.mxu0 0
    %1284 = vmatpush1.bf16.xpose.msra.mxu0 0
    %1285 = vmatprep.subr.bf16.mxu0 0
    %1286 = vmatpush1.bf16.xpose.msra.mxu0 0
    %1287 = vmatprep.subr.bf16.mxu0 0
    %1288 = vmatpush1.bf16.xpose.msra.mxu0 0
    %1289 = vmatprep.subr.bf16.mxu0 0
    %1290 = vmatpush1.bf16.xpose.msra.mxu0 0
    %1291 = vmatprep.subr.bf16.mxu0 0
    %1292 = vmatpush1.bf16.xpose.msra.mxu0 0
    %1293 = vmatprep.subr.bf16.mxu0 0
    %1294 = vmatpush1.bf16.xpose.msra.mxu0 0
    %1295 = vmatprep.subr.bf16.mxu0 0
    %1296 = vmatpush1.bf16.xpose.msra.mxu0 0
    %1297 = vmatprep.subr.bf16.mxu0 0
    %1298 = vmatpush1.bf16.xpose.msra.mxu0 0
    %1299 = vmatprep.subr.bf16.mxu0 0
    %1300 = vmatpush1.bf16.xpose.msra.mxu0 0
    %1301 = vmatprep.subr.bf16.mxu0 0
    %1302 = vmatpush1.bf16.xpose.msra.mxu0 0
    %1303 = vmatprep.subr.bf16.mxu0 0
    %1304 = vmatpush1.bf16.xpose.msra.mxu0 0
    %1305 = vmatprep.mubr.bf16.mxu0 0
    %1306 = vmatmul.mubr.bf16.gmra.mrb[0].mxu0 %v1268
    %v1307 = vpop.f32.mrb[0].mxu0
    %v1308 = vadd.f32 %v128, %v1307
    %v1309 = vpop.f32.mrb[0].mxu0
    %v1310 = vpop.f32.mrb[0].mxu0
    %v1311 = vadd.f32 %v129, %v1310
    %v1312 = vpop.f32.mrb[0].mxu0
    %1313 = vdwg.mxu0
    %v1314 = vsel %vm1191, %v1308, -inf
    %1315 = vmax.xlane.f32.xlu0 %v1314
    %v1316 = vpop.xlane.xlu0 %1315
    %v1317 = vsel %vm1191, %v1311, -inf
    %1318 = vmax.xlane.f32.xlu0 %v1317
    %v1319 = vpop.xlane.xlu0 %1318
    %v1320 = vsub.f32 %v1308, %v1316
    %v1321 = vsub.f32 %v1311, %v1319
    %v1322 = vmul.f32 %v1320, 1.442695
    %v1323 = vpow.pop %v1322
    %v1324 = vmul.f32 %v1321, 1.442695
    %v1325 = vpow.pop %v1324
    %v1326 = vsel %vm1191, %v1323, 0.0
    %1327 = vadd.xlane.f32.xlu0 %v1326
    %v1328 = vpop.xlane.xlu0 %1327
    %v1329 = vsel %vm1191, %v1325, 0.0
    %1330 = vadd.xlane.f32.xlu0 %v1329
    %v1331 = vpop.xlane.xlu0 %1330
    %v1332 = vrcp.pop %v1328
    %v1333 = vrcp.pop %v1331
    %v1334 = vmul.f32 %v1323, %v1332
    %v1335 = vmul.f32 %v1325, %v1333
    %v1336 = vpack.c.bf16 %v1335, %v1334
    %1338 = vrot.lane.b32.xlu0 %v1215, 120
    %v1339 = vpop.permute.xlu0 %1338
    %v1342 = vsel %vm1191, %v1336, 0
    %1344 = vmatprep.subr.bf16.mxu0 0
    %1345 = vmatpush1.bf16.msra.mxu0 %v1339
    %1346 = vmatprep.subr.bf16.mxu0 0
    %1347 = vmatpush1.bf16.msra.mxu0 0
    %1348 = vmatprep.subr.bf16.mxu0 0
    %1349 = vmatpush1.bf16.msra.mxu0 0
    %1350 = vmatprep.subr.bf16.mxu0 0
    %1351 = vmatpush1.bf16.msra.mxu0 0
    %1352 = vmatprep.subr.bf16.mxu0 0
    %1353 = vmatpush1.bf16.msra.mxu0 0
    %1354 = vmatprep.subr.bf16.mxu0 0
    %1355 = vmatpush1.bf16.msra.mxu0 0
    %1356 = vmatprep.subr.bf16.mxu0 0
    %1357 = vmatpush1.bf16.msra.mxu0 0
    %1358 = vmatprep.subr.bf16.mxu0 0
    %1359 = vmatpush1.bf16.msra.mxu0 0
    %1360 = vmatprep.subr.bf16.mxu0 0
    %1361 = vmatpush1.bf16.msra.mxu0 0
    %1362 = vmatprep.subr.bf16.mxu0 0
    %1363 = vmatpush1.bf16.msra.mxu0 0
    %1364 = vmatprep.subr.bf16.mxu0 0
    %1365 = vmatpush1.bf16.msra.mxu0 0
    %1366 = vmatprep.subr.bf16.mxu0 0
    %1367 = vmatpush1.bf16.msra.mxu0 0
    %1368 = vmatprep.subr.bf16.mxu0 0
    %1369 = vmatpush1.bf16.msra.mxu0 0
    %1370 = vmatprep.subr.bf16.mxu0 0
    %1371 = vmatpush1.bf16.msra.mxu0 0
    %1372 = vmatprep.subr.bf16.mxu0 0
    %1373 = vmatpush1.bf16.msra.mxu0 0
    %1374 = vmatprep.subr.bf16.mxu0 0
    %1375 = vmatpush1.bf16.msra.mxu0 0
    %1376 = vmatprep.mubr.bf16.mxu0 0
    %1377 = vmatmul.mubr.bf16.gmra.mrb[0].mxu0 %v1342
    %v1378 = vpop.f32.mrb[0].mxu0
    %v1379 = vadd.f32 0.0, %v1378
    %v1380 = vpop.f32.mrb[0].mxu0
    %v1381 = vpop.f32.mrb[0].mxu0
    %v1382 = vadd.f32 0.0, %v1381
    %v1383 = vpop.f32.mrb[0].mxu0
    %1384 = vdwg.mxu0
    %v1385 = vpack.c.bf16 %v1382, %v1379
    %v1387 = vsel %vm1143, %v1385, 0
    %vm1389 = vcmask 1043456
    %v1391 = vsel %vm1389, %v158, 0
    %1393 = vmatprep.subr.bf16.mxu0 0
    %1394 = vmatpush1.bf16.msra.mxu0 %v1391
    %1395 = vmatprep.subr.bf16.mxu0 0
    %1396 = vmatpush1.bf16.msra.mxu0 0
    %1397 = vmatprep.subr.bf16.mxu0 0
    %1398 = vmatpush1.bf16.msra.mxu0 0
    %1399 = vmatprep.subr.bf16.mxu0 0
    %1400 = vmatpush1.bf16.msra.mxu0 0
    %1401 = vmatprep.subr.bf16.mxu0 0
    %1402 = vmatpush1.bf16.msra.mxu0 0
    %1403 = vmatprep.subr.bf16.mxu0 0
    %1404 = vmatpush1.bf16.msra.mxu0 0
    %1405 = vmatprep.subr.bf16.mxu0 0
    %1406 = vmatpush1.bf16.msra.mxu0 0
    %1407 = vmatprep.subr.bf16.mxu0 0
    %1408 = vmatpush1.bf16.msra.mxu0 0
    %1409 = vmatprep.subr.bf16.mxu0 0
    %1410 = vmatpush1.bf16.msra.mxu0 0
    %1411 = vmatprep.subr.bf16.mxu0 0
    %1412 = vmatpush1.bf16.msra.mxu0 0
    %1413 = vmatprep.subr.bf16.mxu0 0
    %1414 = vmatpush1.bf16.msra.mxu0 0
    %1415 = vmatprep.subr.bf16.mxu0 0
    %1416 = vmatpush1.bf16.msra.mxu0 0
    %1417 = vmatprep.subr.bf16.mxu0 0
    %1418 = vmatpush1.bf16.msra.mxu0 0
    %1419 = vmatprep.subr.bf16.mxu0 0
    %1420 = vmatpush1.bf16.msra.mxu0 0
    %1421 = vmatprep.subr.bf16.mxu0 0
    %1422 = vmatpush1.bf16.msra.mxu0 0
    %1423 = vmatprep.subr.bf16.mxu0 0
    %1424 = vmatpush1.bf16.msra.mxu0 0
    %1425 = vmatprep.mubr.bf16.mxu0 0
    %1426 = vmatmul.mubr.bf16.gmra.mrb[0].mxu0 %v1387
    %v1427 = vpop.f32.mrb[0].mxu0
    %v1428 = vadd.f32 0.0, %v1427
    %v1429 = vpop.f32.mrb[0].mxu0
    %v1430 = vpop.f32.mrb[0].mxu0
    %v1431 = vadd.f32 0.0, %v1430
    %v1432 = vpop.f32.mrb[0].mxu0
    %1433 = vdwg.mxu0
    %v1435 = vsel %vm1143, %v1260, 0
    %v1438 = vsel %vm1389, %v157, 0
    %1440 = vmatprep.subr.bf16.mxu0 0
    %1441 = vmatpush1.bf16.msra.mxu0 %v1438
    %1442 = vmatprep.subr.bf16.mxu0 0
    %1443 = vmatpush1.bf16.msra.mxu0 0
    %1444 = vmatprep.subr.bf16.mxu0 0
    %1445 = vmatpush1.bf16.msra.mxu0 0
    %1446 = vmatprep.subr.bf16.mxu0 0
    %1447 = vmatpush1.bf16.msra.mxu0 0
    %1448 = vmatprep.subr.bf16.mxu0 0
    %1449 = vmatpush1.bf16.msra.mxu0 0
    %1450 = vmatprep.subr.bf16.mxu0 0
    %1451 = vmatpush1.bf16.msra.mxu0 0
    %1452 = vmatprep.subr.bf16.mxu0 0
    %1453 = vmatpush1.bf16.msra.mxu0 0
    %1454 = vmatprep.subr.bf16.mxu0 0
    %1455 = vmatpush1.bf16.msra.mxu0 0
    %1456 = vmatprep.subr.bf16.mxu0 0
    %1457 = vmatpush1.bf16.msra.mxu0 0
    %1458 = vmatprep.subr.bf16.mxu0 0
    %1459 = vmatpush1.bf16.msra.mxu0 0
    %1460 = vmatprep.subr.bf16.mxu0 0
    %1461 = vmatpush1.bf16.msra.mxu0 0
    %1462 = vmatprep.subr.bf16.mxu0 0
    %1463 = vmatpush1.bf16.msra.mxu0 0
    %1464 = vmatprep.subr.bf16.mxu0 0
    %1465 = vmatpush1.bf16.msra.mxu0 0
    %1466 = vmatprep.subr.bf16.mxu0 0
    %1467 = vmatpush1.bf16.msra.mxu0 0
    %1468 = vmatprep.subr.bf16.mxu0 0
    %1469 = vmatpush1.bf16.msra.mxu0 0
    %1470 = vmatprep.subr.bf16.mxu0 0
    %1471 = vmatpush1.bf16.msra.mxu0 0
    %1472 = vmatprep.mubr.bf16.mxu0 0
    %1473 = vmatmul.mubr.bf16.gmra.mrb[0].mxu0 %v1435
    %v1474 = vpop.f32.mrb[0].mxu0
    %v1475 = vadd.f32 %v1428, %v1474
    %v1476 = vpop.f32.mrb[0].mxu0
    %v1477 = vpop.f32.mrb[0].mxu0
    %v1478 = vadd.f32 %v1431, %v1477
    %v1479 = vpop.f32.mrb[0].mxu0
    %1480 = vdwg.mxu0
    %1481 = vrot.lane.b32.xlu0 %v1141, 112
    %v1482 = vpop.permute.xlu0 %1481
    %1483 = vrot.lane.b32.xlu0 %v1142, 112
    %v1484 = vpop.permute.xlu0 %1483
    %v1486 = vsel %vm1143, %v1482, 0
    %v1489 = vsel %vm1143, %v1484, 0
    %1491 = vmatprep.subr.bf16.mxu0 0
    %1492 = vmatpush1.bf16.xpose.msra.mxu0 %v1489
    %1493 = vmatprep.subr.bf16.mxu0 0
    %1494 = vmatpush1.bf16.xpose.msra.mxu0 0
    %1495 = vmatprep.subr.bf16.mxu0 0
    %1496 = vmatpush1.bf16.xpose.msra.mxu0 0
    %1497 = vmatprep.subr.bf16.mxu0 0
    %1498 = vmatpush1.bf16.xpose.msra.mxu0 0
    %1499 = vmatprep.subr.bf16.mxu0 0
    %1500 = vmatpush1.bf16.xpose.msra.mxu0 0
    %1501 = vmatprep.subr.bf16.mxu0 0
    %1502 = vmatpush1.bf16.xpose.msra.mxu0 0
    %1503 = vmatprep.subr.bf16.mxu0 0
    %1504 = vmatpush1.bf16.xpose.msra.mxu0 0
    %1505 = vmatprep.subr.bf16.mxu0 0
    %1506 = vmatpush1.bf16.xpose.msra.mxu0 0
    %1507 = vmatprep.subr.bf16.mxu0 0
    %1508 = vmatpush1.bf16.xpose.msra.mxu0 0
    %1509 = vmatprep.subr.bf16.mxu0 0
    %1510 = vmatpush1.bf16.xpose.msra.mxu0 0
    %1511 = vmatprep.subr.bf16.mxu0 0
    %1512 = vmatpush1.bf16.xpose.msra.mxu0 0
    %1513 = vmatprep.subr.bf16.mxu0 0
    %1514 = vmatpush1.bf16.xpose.msra.mxu0 0
    %1515 = vmatprep.subr.bf16.mxu0 0
    %1516 = vmatpush1.bf16.xpose.msra.mxu0 0
    %1517 = vmatprep.subr.bf16.mxu0 0
    %1518 = vmatpush1.bf16.xpose.msra.mxu0 0
    %1519 = vmatprep.subr.bf16.mxu0 0
    %1520 = vmatpush1.bf16.xpose.msra.mxu0 0
    %1521 = vmatprep.subr.bf16.mxu0 0
    %1522 = vmatpush1.bf16.xpose.msra.mxu0 0
    %1523 = vmatprep.mubr.bf16.mxu0 0
    %1524 = vmatmul.mubr.bf16.gmra.mrb[0].mxu0 %v1486
    %v1525 = vpop.f32.mrb[0].mxu0
    %v1526 = vadd.f32 %v128, %v1525
    %v1527 = vpop.f32.mrb[0].mxu0
    %v1528 = vpop.f32.mrb[0].mxu0
    %v1529 = vadd.f32 %v129, %v1528
    %v1530 = vpop.f32.mrb[0].mxu0
    %1531 = vdwg.mxu0
    %v1532 = vsel %vm1191, %v1526, -inf
    %1533 = vmax.xlane.f32.xlu0 %v1532
    %v1534 = vpop.xlane.xlu0 %1533
    %v1535 = vsel %vm1191, %v1529, -inf
    %1536 = vmax.xlane.f32.xlu0 %v1535
    %v1537 = vpop.xlane.xlu0 %1536
    %v1538 = vsub.f32 %v1526, %v1534
    %v1539 = vsub.f32 %v1529, %v1537
    %v1540 = vmul.f32 %v1538, 1.442695
    %v1541 = vpow.pop %v1540
    %v1542 = vmul.f32 %v1539, 1.442695
    %v1543 = vpow.pop %v1542
    %v1544 = vsel %vm1191, %v1541, 0.0
    %1545 = vadd.xlane.f32.xlu0 %v1544
    %v1546 = vpop.xlane.xlu0 %1545
    %v1547 = vsel %vm1191, %v1543, 0.0
    %1548 = vadd.xlane.f32.xlu0 %v1547
    %v1549 = vpop.xlane.xlu0 %1548
    %v1550 = vrcp.pop %v1546
    %v1551 = vrcp.pop %v1549
    %v1552 = vmul.f32 %v1541, %v1550
    %v1553 = vmul.f32 %v1543, %v1551
    %v1554 = vpack.c.bf16 %v1553, %v1552
    %1555 = vrot.lane.b32.xlu0 %v1215, 112
    %v1556 = vpop.permute.xlu0 %1555
    %v1559 = vsel %vm1191, %v1554, 0
    %1561 = vmatprep.subr.bf16.mxu0 0
    %1562 = vmatpush1.bf16.msra.mxu0 %v1556
    %1563 = vmatprep.subr.bf16.mxu0 0
    %1564 = vmatpush1.bf16.msra.mxu0 0
    %1565 = vmatprep.subr.bf16.mxu0 0
    %1566 = vmatpush1.bf16.msra.mxu0 0
    %1567 = vmatprep.subr.bf16.mxu0 0
    %1568 = vmatpush1.bf16.msra.mxu0 0
    %1569 = vmatprep.subr.bf16.mxu0 0
    %1570 = vmatpush1.bf16.msra.mxu0 0
    %1571 = vmatprep.subr.bf16.mxu0 0
    %1572 = vmatpush1.bf16.msra.mxu0 0
    %1573 = vmatprep.subr.bf16.mxu0 0
    %1574 = vmatpush1.bf16.msra.mxu0 0
    %1575 = vmatprep.subr.bf16.mxu0 0
    %1576 = vmatpush1.bf16.msra.mxu0 0
    %1577 = vmatprep.subr.bf16.mxu0 0
    %1578 = vmatpush1.bf16.msra.mxu0 0
    %1579 = vmatprep.subr.bf16.mxu0 0
    %1580 = vmatpush1.bf16.msra.mxu0 0
    %1581 = vmatprep.subr.bf16.mxu0 0
    %1582 = vmatpush1.bf16.msra.mxu0 0
    %1583 = vmatprep.subr.bf16.mxu0 0
    %1584 = vmatpush1.bf16.msra.mxu0 0
    %1585 = vmatprep.subr.bf16.mxu0 0
    %1586 = vmatpush1.bf16.msra.mxu0 0
    %1587 = vmatprep.subr.bf16.mxu0 0
    %1588 = vmatpush1.bf16.msra.mxu0 0
    %1589 = vmatprep.subr.bf16.mxu0 0
    %1590 = vmatpush1.bf16.msra.mxu0 0
    %1591 = vmatprep.subr.bf16.mxu0 0
    %1592 = vmatpush1.bf16.msra.mxu0 0
    %1593 = vmatprep.mubr.bf16.mxu0 0
    %1594 = vmatmul.mubr.bf16.gmra.mrb[0].mxu0 %v1559
    %v1595 = vpop.f32.mrb[0].mxu0
    %v1596 = vadd.f32 0.0, %v1595
    %v1597 = vpop.f32.mrb[0].mxu0
    %v1598 = vpop.f32.mrb[0].mxu0
    %v1599 = vadd.f32 0.0, %v1598
    %v1600 = vpop.f32.mrb[0].mxu0
    %1601 = vdwg.mxu0
    %v1602 = vpack.c.bf16 %v1599, %v1596
    %v1604 = vsel %vm1143, %v1602, 0
    %v1607 = vsel %vm1389, %v159, 0
    %1609 = vmatprep.subr.bf16.mxu0 0
    %1610 = vmatpush1.bf16.msra.mxu0 %v1607
    %1611 = vmatprep.subr.bf16.mxu0 0
    %1612 = vmatpush1.bf16.msra.mxu0 0
    %1613 = vmatprep.subr.bf16.mxu0 0
    %1614 = vmatpush1.bf16.msra.mxu0 0
    %1615 = vmatprep.subr.bf16.mxu0 0
    %1616 = vmatpush1.bf16.msra.mxu0 0
    %1617 = vmatprep.subr.bf16.mxu0 0
    %1618 = vmatpush1.bf16.msra.mxu0 0
    %1619 = vmatprep.subr.bf16.mxu0 0
    %1620 = vmatpush1.bf16.msra.mxu0 0
    %1621 = vmatprep.subr.bf16.mxu0 0
    %1622 = vmatpush1.bf16.msra.mxu0 0
    %1623 = vmatprep.subr.bf16.mxu0 0
    %1624 = vmatpush1.bf16.msra.mxu0 0
    %1625 = vmatprep.subr.bf16.mxu0 0
    %1626 = vmatpush1.bf16.msra.mxu0 0
    %1627 = vmatprep.subr.bf16.mxu0 0
    %1628 = vmatpush1.bf16.msra.mxu0 0
    %1629 = vmatprep.subr.bf16.mxu0 0
    %1630 = vmatpush1.bf16.msra.mxu0 0
    %1631 = vmatprep.subr.bf16.mxu0 0
    %1632 = vmatpush1.bf16.msra.mxu0 0
    %1633 = vmatprep.subr.bf16.mxu0 0
    %1634 = vmatpush1.bf16.msra.mxu0 0
    %1635 = vmatprep.subr.bf16.mxu0 0
    %1636 = vmatpush1.bf16.msra.mxu0 0
    %1637 = vmatprep.subr.bf16.mxu0 0
    %1638 = vmatpush1.bf16.msra.mxu0 0
    %1639 = vmatprep.subr.bf16.mxu0 0
    %1640 = vmatpush1.bf16.msra.mxu0 0
    %1641 = vmatprep.mubr.bf16.mxu0 0
    %1642 = vmatmul.mubr.bf16.gmra.mrb[0].mxu0 %v1604
    %v1643 = vpop.f32.mrb[0].mxu0
    %v1644 = vadd.f32 0.0, %v1643
    %v1645 = vpop.f32.mrb[0].mxu0
    %v1646 = vpop.f32.mrb[0].mxu0
    %v1647 = vadd.f32 0.0, %v1646
    %v1648 = vpop.f32.mrb[0].mxu0
    %1649 = vdwg.mxu0
    %v1650 = vadd.f32 %v1475, %v1644
    %v1651 = vadd.f32 %v1478, %v1647
    %1652 = vrot.lane.b32.xlu0 %v1141, 104
    %v1653 = vpop.permute.xlu0 %1652
    %1654 = vrot.lane.b32.xlu0 %v1142, 104
    %v1655 = vpop.permute.xlu0 %1654
    %v1657 = vsel %vm1143, %v1653, 0
    %v1660 = vsel %vm1143, %v1655, 0
    %1662 = vmatprep.subr.bf16.mxu0 0
    %1663 = vmatpush1.bf16.xpose.msra.mxu0 %v1660
    %1664 = vmatprep.subr.bf16.mxu0 0
    %1665 = vmatpush1.bf16.xpose.msra.mxu0 0
    %1666 = vmatprep.subr.bf16.mxu0 0
    %1667 = vmatpush1.bf16.xpose.msra.mxu0 0
    %1668 = vmatprep.subr.bf16.mxu0 0
    %1669 = vmatpush1.bf16.xpose.msra.mxu0 0
    %1670 = vmatprep.subr.bf16.mxu0 0
    %1671 = vmatpush1.bf16.xpose.msra.mxu0 0
    %1672 = vmatprep.subr.bf16.mxu0 0
    %1673 = vmatpush1.bf16.xpose.msra.mxu0 0
    %1674 = vmatprep.subr.bf16.mxu0 0
    %1675 = vmatpush1.bf16.xpose.msra.mxu0 0
    %1676 = vmatprep.subr.bf16.mxu0 0
    %1677 = vmatpush1.bf16.xpose.msra.mxu0 0
    %1678 = vmatprep.subr.bf16.mxu0 0
    %1679 = vmatpush1.bf16.xpose.msra.mxu0 0
    %1680 = vmatprep.subr.bf16.mxu0 0
    %1681 = vmatpush1.bf16.xpose.msra.mxu0 0
    %1682 = vmatprep.subr.bf16.mxu0 0
    %1683 = vmatpush1.bf16.xpose.msra.mxu0 0
    %1684 = vmatprep.subr.bf16.mxu0 0
    %1685 = vmatpush1.bf16.xpose.msra.mxu0 0
    %1686 = vmatprep.subr.bf16.mxu0 0
    %1687 = vmatpush1.bf16.xpose.msra.mxu0 0
    %1688 = vmatprep.subr.bf16.mxu0 0
    %1689 = vmatpush1.bf16.xpose.msra.mxu0 0
    %1690 = vmatprep.subr.bf16.mxu0 0
    %1691 = vmatpush1.bf16.xpose.msra.mxu0 0
    %1692 = vmatprep.subr.bf16.mxu0 0
    %1693 = vmatpush1.bf16.xpose.msra.mxu0 0
    %1694 = vmatprep.mubr.bf16.mxu0 0
    %1695 = vmatmul.mubr.bf16.gmra.mrb[0].mxu0 %v1657
    %v1696 = vpop.f32.mrb[0].mxu0
    %v1697 = vadd.f32 %v128, %v1696
    %v1698 = vpop.f32.mrb[0].mxu0
    %v1699 = vpop.f32.mrb[0].mxu0
    %v1700 = vadd.f32 %v129, %v1699
    %v1701 = vpop.f32.mrb[0].mxu0
    %1702 = vdwg.mxu0
    %v1703 = vsel %vm1191, %v1697, -inf
    %1704 = vmax.xlane.f32.xlu0 %v1703
    %v1705 = vpop.xlane.xlu0 %1704
    %v1706 = vsel %vm1191, %v1700, -inf
    %1707 = vmax.xlane.f32.xlu0 %v1706
    %v1708 = vpop.xlane.xlu0 %1707
    %v1709 = vsub.f32 %v1697, %v1705
    %v1710 = vsub.f32 %v1700, %v1708
    %v1711 = vmul.f32 %v1709, 1.442695
    %v1712 = vpow.pop %v1711
    %v1713 = vmul.f32 %v1710, 1.442695
    %v1714 = vpow.pop %v1713
    %v1715 = vsel %vm1191, %v1712, 0.0
    %1716 = vadd.xlane.f32.xlu0 %v1715
    %v1717 = vpop.xlane.xlu0 %1716
    %v1718 = vsel %vm1191, %v1714, 0.0
    %1719 = vadd.xlane.f32.xlu0 %v1718
    %v1720 = vpop.xlane.xlu0 %1719
    %v1721 = vrcp.pop %v1717
    %v1722 = vrcp.pop %v1720
    %v1723 = vmul.f32 %v1712, %v1721
    %v1724 = vmul.f32 %v1714, %v1722
    %v1725 = vpack.c.bf16 %v1724, %v1723
    %1726 = vrot.lane.b32.xlu0 %v1215, 104
    %v1727 = vpop.permute.xlu0 %1726
    %v1730 = vsel %vm1191, %v1725, 0
    %1732 = vmatprep.subr.bf16.mxu0 0
    %1733 = vmatpush1.bf16.msra.mxu0 %v1727
    %1734 = vmatprep.subr.bf16.mxu0 0
    %1735 = vmatpush1.bf16.msra.mxu0 0
    %1736 = vmatprep.subr.bf16.mxu0 0
    %1737 = vmatpush1.bf16.msra.mxu0 0
    %1738 = vmatprep.subr.bf16.mxu0 0
    %1739 = vmatpush1.bf16.msra.mxu0 0
    %1740 = vmatprep.subr.bf16.mxu0 0
    %1741 = vmatpush1.bf16.msra.mxu0 0
    %1742 = vmatprep.subr.bf16.mxu0 0
    %1743 = vmatpush1.bf16.msra.mxu0 0
    %1744 = vmatprep.subr.bf16.mxu0 0
    %1745 = vmatpush1.bf16.msra.mxu0 0
    %1746 = vmatprep.subr.bf16.mxu0 0
    %1747 = vmatpush1.bf16.msra.mxu0 0
    %1748 = vmatprep.subr.bf16.mxu0 0
    %1749 = vmatpush1.bf16.msra.mxu0 0
    %1750 = vmatprep.subr.bf16.mxu0 0
    %1751 = vmatpush1.bf16.msra.mxu0 0
    %1752 = vmatprep.subr.bf16.mxu0 0
    %1753 = vmatpush1.bf16.msra.mxu0 0
    %1754 = vmatprep.subr.bf16.mxu0 0
    %1755 = vmatpush1.bf16.msra.mxu0 0
    %1756 = vmatprep.subr.bf16.mxu0 0
    %1757 = vmatpush1.bf16.msra.mxu0 0
    %1758 = vmatprep.subr.bf16.mxu0 0
    %1759 = vmatpush1.bf16.msra.mxu0 0
    %1760 = vmatprep.subr.bf16.mxu0 0
    %1761 = vmatpush1.bf16.msra.mxu0 0
    %1762 = vmatprep.subr.bf16.mxu0 0
    %1763 = vmatpush1.bf16.msra.mxu0 0
    %1764 = vmatprep.mubr.bf16.mxu0 0
    %1765 = vmatmul.mubr.bf16.gmra.mrb[0].mxu0 %v1730
    %v1766 = vpop.f32.mrb[0].mxu0
    %v1767 = vadd.f32 0.0, %v1766
    %v1768 = vpop.f32.mrb[0].mxu0
    %v1769 = vpop.f32.mrb[0].mxu0
    %v1770 = vadd.f32 0.0, %v1769
    %v1771 = vpop.f32.mrb[0].mxu0
    %1772 = vdwg.mxu0
    %v1773 = vpack.c.bf16 %v1770, %v1767
    %v1775 = vsel %vm1143, %v1773, 0
    %v1778 = vsel %vm1389, %v160, 0
    %1780 = vmatprep.subr.bf16.mxu0 0
    %1781 = vmatpush1.bf16.msra.mxu0 %v1778
    %1782 = vmatprep.subr.bf16.mxu0 0
    %1783 = vmatpush1.bf16.msra.mxu0 0
    %1784 = vmatprep.subr.bf16.mxu0 0
    %1785 = vmatpush1.bf16.msra.mxu0 0
    %1786 = vmatprep.subr.bf16.mxu0 0
    %1787 = vmatpush1.bf16.msra.mxu0 0
    %1788 = vmatprep.subr.bf16.mxu0 0
    %1789 = vmatpush1.bf16.msra.mxu0 0
    %1790 = vmatprep.subr.bf16.mxu0 0
    %1791 = vmatpush1.bf16.msra.mxu0 0
    %1792 = vmatprep.subr.bf16.mxu0 0
    %1793 = vmatpush1.bf16.msra.mxu0 0
    %1794 = vmatprep.subr.bf16.mxu0 0
    %1795 = vmatpush1.bf16.msra.mxu0 0
    %1796 = vmatprep.subr.bf16.mxu0 0
    %1797 = vmatpush1.bf16.msra.mxu0 0
    %1798 = vmatprep.subr.bf16.mxu0 0
    %1799 = vmatpush1.bf16.msra.mxu0 0
    %1800 = vmatprep.subr.bf16.mxu0 0
    %1801 = vmatpush1.bf16.msra.mxu0 0
    %1802 = vmatprep.subr.bf16.mxu0 0
    %1803 = vmatpush1.bf16.msra.mxu0 0
    %1804 = vmatprep.subr.bf16.mxu0 0
    %1805 = vmatpush1.bf16.msra.mxu0 0
    %1806 = vmatprep.subr.bf16.mxu0 0
    %1807 = vmatpush1.bf16.msra.mxu0 0
    %1808 = vmatprep.subr.bf16.mxu0 0
    %1809 = vmatpush1.bf16.msra.mxu0 0
    %1810 = vmatprep.subr.bf16.mxu0 0
    %1811 = vmatpush1.bf16.msra.mxu0 0
    %1812 = vmatprep.mubr.bf16.mxu0 0
    %1813 = vmatmul.mubr.bf16.gmra.mrb[0].mxu0 %v1775
    %v1814 = vpop.f32.mrb[0].mxu0
    %v1815 = vadd.f32 0.0, %v1814
    %v1816 = vpop.f32.mrb[0].mxu0
    %v1817 = vpop.f32.mrb[0].mxu0
    %v1818 = vadd.f32 0.0, %v1817
    %v1819 = vpop.f32.mrb[0].mxu0
    %1820 = vdwg.mxu0
    %v1821 = vadd.f32 %v1650, %v1815
    %v1822 = vadd.f32 %v1651, %v1818
    %v1823 = vlaneseq
    %v1824 = vshrl.u32 %v1823, 7
    %v1825 = vsub.s32 0, %v1824
    %v1826 = vrot.slane %v165, %v1825
    %v1827 = vadd.f32 %v1821, %v1826
    %v1828 = vadd.f32 %v1822, %v1826
    %v1829 = vadd.f32 %v949, %v1827
    %v1830 = vadd.f32 %v950, %v1828
    %v1831 = vsel %vm966, %v1829, 0.0
    %1832 = vadd.xlane.f32.xlu0 %v1831
    %v1833 = vpop.xlane.xlu0 %1832
    %v1834 = vsel %vm966, %v1830, 0.0
    %1835 = vadd.xlane.f32.xlu0 %v1834
    %v1836 = vpop.xlane.xlu0 %1835
    %v1837 = vrcp.pop 32.0
    %v1838 = vmul.f32 %v1833, %v1837
    %v1839 = vmul.f32 %v1836, %v1837
    %v1840 = vmul.f32 %v1829, %v1829
    %v1841 = vmul.f32 %v1830, %v1830
    %v1842 = vsel %vm966, %v1840, 0.0
    %1843 = vadd.xlane.f32.xlu0 %v1842
    %v1844 = vpop.xlane.xlu0 %1843
    %v1845 = vsel %vm966, %v1841, 0.0
    %1846 = vadd.xlane.f32.xlu0 %v1845
    %v1847 = vpop.xlane.xlu0 %1846
    %v1848 = vmul.f32 %v1844, %v1837
    %v1849 = vmul.f32 %v1847, %v1837
    %v1850 = vmul.f32 %v1838, %v1838
    %v1851 = vmul.f32 %v1839, %v1839
    %v1852 = vsub.f32 %v1848, %v1850
    %v1853 = vsub.f32 %v1849, %v1851
    %v1854 = vsub.f32 %v1829, %v1838
    %v1855 = vsub.f32 %v1830, %v1839
    %v1856 = vadd.f32 %v1852, 1e-05
    %v1857 = vadd.f32 %v1853, 1e-05
    %v1858 = vrsqrt.pop %v1856
    %v1859 = vrsqrt.pop %v1857
    %v1860 = vmul.f32 %v1854, %v1858
    %v1861 = vmul.f32 %v1855, %v1859
    %v1862 = vlaneseq
    %v1863 = vshrl.u32 %v1862, 7
    %v1864 = vsub.s32 0, %v1863
    %v1865 = vrot.slane %v747, %v1864
    %v1866 = vmul.f32 %v1860, %v1865
    %v1867 = vmul.f32 %v1861, %v1865
    %v1868 = vlaneseq
    %v1869 = vshrl.u32 %v1868, 7
    %v1870 = vsub.s32 0, %v1869
    %v1871 = vrot.slane %v748, %v1870
    %v1872 = vadd.f32 %v1866, %v1871
    %v1873 = vadd.f32 %v1867, %v1871
    %v1874 = vpack.c.bf16 %v1873, %v1872
    %v1879 = vlaneseq
    %v1880 = vshrl.u32 %v1879, 7
    %v1881 = vsub.s32 0, %v1880
    %v1882 = vrot.slane %v678, %v1881
    %v1883 = vlaneseq
    %v1884 = vshrl.u32 %v1883, 7
    %v1885 = vsub.s32 2, %v1884
    %v1886 = vrot.slane %v678, %v1885
    %v1887 = vlaneseq
    %v1888 = vshrl.u32 %v1887, 7
    %v1889 = vsub.s32 4, %v1888
    %v1890 = vrot.slane %v678, %v1889
    %v1891 = vlaneseq
    %v1892 = vshrl.u32 %v1891, 7
    %v1893 = vsub.s32 6, %v1892
    %v1894 = vrot.slane %v678, %v1893
    %v1895 = vlaneseq
    %v1896 = vshrl.u32 %v1895, 7
    %v1897 = vsub.s32 0, %v1896
    %v1898 = vrot.slane %v679, %v1897
    %v1899 = vlaneseq
    %v1900 = vshrl.u32 %v1899, 7
    %v1901 = vsub.s32 2, %v1900
    %v1902 = vrot.slane %v679, %v1901
    %v1903 = vlaneseq
    %v1904 = vshrl.u32 %v1903, 7
    %v1905 = vsub.s32 4, %v1904
    %v1906 = vrot.slane %v679, %v1905
    %v1907 = vlaneseq
    %v1908 = vshrl.u32 %v1907, 7
    %v1909 = vsub.s32 6, %v1908
    %v1910 = vrot.slane %v679, %v1909
    %v1911 = vlaneseq
    %v1912 = vshrl.u32 %v1911, 7
    %v1913 = vsub.s32 0, %v1912
    %v1914 = vrot.slane %v680, %v1913
    %v1915 = vlaneseq
    %v1916 = vshrl.u32 %v1915, 7
    %v1917 = vsub.s32 2, %v1916
    %v1918 = vrot.slane %v680, %v1917
    %v1919 = vlaneseq
    %v1920 = vshrl.u32 %v1919, 7
    %v1921 = vsub.s32 4, %v1920
    %v1922 = vrot.slane %v680, %v1921
    %v1923 = vlaneseq
    %v1924 = vshrl.u32 %v1923, 7
    %v1925 = vsub.s32 6, %v1924
    %v1926 = vrot.slane %v680, %v1925
    %v1927 = vlaneseq
    %v1928 = vshrl.u32 %v1927, 7
    %v1929 = vsub.s32 0, %v1928
    %v1930 = vrot.slane %v681, %v1929
    %v1931 = vlaneseq
    %v1932 = vshrl.u32 %v1931, 7
    %v1933 = vsub.s32 2, %v1932
    %v1934 = vrot.slane %v681, %v1933
    %v1935 = vlaneseq
    %v1936 = vshrl.u32 %v1935, 7
    %v1937 = vsub.s32 4, %v1936
    %v1938 = vrot.slane %v681, %v1937
    %v1939 = vlaneseq
    %v1940 = vshrl.u32 %v1939, 7
    %v1941 = vsub.s32 6, %v1940
    %v1942 = vrot.slane %v681, %v1941
    %v1959 = vlaneseq
    %v1960 = vshrl.u32 %v1959, 7
    %v1961 = vsub.s32 0, %v1960
    %v1962 = vrot.slane %v1882, %v1961
    %v1963 = vlaneseq
    %v1964 = vshrl.u32 %v1963, 7
    %v1965 = vsub.s32 0, %v1964
    %v1966 = vrot.slane %v1886, %v1965
    %v1967 = vlaneseq
    %v1968 = vshrl.u32 %v1967, 7
    %v1969 = vsub.s32 0, %v1968
    %v1970 = vrot.slane %v1890, %v1969
    %v1971 = vlaneseq
    %v1972 = vshrl.u32 %v1971, 7
    %v1973 = vsub.s32 0, %v1972
    %v1974 = vrot.slane %v1894, %v1973
    %v1975 = vlaneseq
    %v1976 = vshrl.u32 %v1975, 7
    %v1977 = vsub.s32 0, %v1976
    %v1978 = vrot.slane %v1898, %v1977
    %v1979 = vlaneseq
    %v1980 = vshrl.u32 %v1979, 7
    %v1981 = vsub.s32 0, %v1980
    %v1982 = vrot.slane %v1902, %v1981
    %v1983 = vlaneseq
    %v1984 = vshrl.u32 %v1983, 7
    %v1985 = vsub.s32 0, %v1984
    %v1986 = vrot.slane %v1906, %v1985
    %v1987 = vlaneseq
    %v1988 = vshrl.u32 %v1987, 7
    %v1989 = vsub.s32 0, %v1988
    %v1990 = vrot.slane %v1910, %v1989
    %v1991 = vlaneseq
    %v1992 = vshrl.u32 %v1991, 7
    %v1993 = vsub.s32 0, %v1992
    %v1994 = vrot.slane %v1914, %v1993
    %v1995 = vlaneseq
    %v1996 = vshrl.u32 %v1995, 7
    %v1997 = vsub.s32 0, %v1996
    %v1998 = vrot.slane %v1918, %v1997
    %v1999 = vlaneseq
    %v2000 = vshrl.u32 %v1999, 7
    %v2001 = vsub.s32 0, %v2000
    %v2002 = vrot.slane %v1922, %v2001
    %v2003 = vlaneseq
    %v2004 = vshrl.u32 %v2003, 7
    %v2005 = vsub.s32 0, %v2004
    %v2006 = vrot.slane %v1926, %v2005
    %v2007 = vlaneseq
    %v2008 = vshrl.u32 %v2007, 7
    %v2009 = vsub.s32 0, %v2008
    %v2010 = vrot.slane %v1930, %v2009
    %v2011 = vlaneseq
    %v2012 = vshrl.u32 %v2011, 7
    %v2013 = vsub.s32 0, %v2012
    %v2014 = vrot.slane %v1934, %v2013
    %v2015 = vlaneseq
    %v2016 = vshrl.u32 %v2015, 7
    %v2017 = vsub.s32 0, %v2016
    %v2018 = vrot.slane %v1938, %v2017
    %v2019 = vlaneseq
    %v2020 = vshrl.u32 %v2019, 7
    %v2021 = vsub.s32 0, %v2020
    %v2022 = vrot.slane %v1942, %v2021
    %v2279 = vunpack.c.l.b16 %v166
    %v2280 = vunpack.c.l.b16 %v167
    %v2281 = vunpack.c.l.b16 %v168
    %v2282 = vunpack.c.l.b16 %v169
    %v2283 = vunpack.c.l.b16 %v170
    %v2284 = vunpack.c.l.b16 %v171
    %v2285 = vunpack.c.l.b16 %v172
    %v2286 = vunpack.c.l.b16 %v173
    %v2287 = vunpack.c.l.b16 %v174
    %v2288 = vunpack.c.l.b16 %v175
    %v2289 = vunpack.c.l.b16 %v176
    %v2290 = vunpack.c.l.b16 %v177
    %v2291 = vunpack.c.l.b16 %v178
    %v2292 = vunpack.c.l.b16 %v179
    %v2293 = vunpack.c.l.b16 %v180
    %v2294 = vunpack.c.l.b16 %v181
    %v2295 = vunpack.c.l.b16 %v182
    %v2296 = vunpack.c.l.b16 %v183
    %v2297 = vunpack.c.l.b16 %v184
    %v2298 = vunpack.c.l.b16 %v185
    %v2299 = vunpack.c.l.b16 %v186
    %v2300 = vunpack.c.l.b16 %v187
    %v2301 = vunpack.c.l.b16 %v188
    %v2302 = vunpack.c.l.b16 %v189
    %v2303 = vunpack.c.l.b16 %v190
    %v2304 = vunpack.c.l.b16 %v191
    %v2305 = vunpack.c.l.b16 %v192
    %v2306 = vunpack.c.l.b16 %v193
    %v2307 = vunpack.c.l.b16 %v194
    %v2308 = vunpack.c.l.b16 %v195
    %v2309 = vunpack.c.l.b16 %v196
    %v2310 = vunpack.c.l.b16 %v197
    %v2311 = vunpack.c.l.b16 %v198
    %v2312 = vunpack.c.l.b16 %v199
    %v2313 = vunpack.c.l.b16 %v200
    %v2314 = vunpack.c.l.b16 %v201
    %v2315 = vunpack.c.l.b16 %v202
    %v2316 = vunpack.c.l.b16 %v203
    %v2317 = vunpack.c.l.b16 %v204
    %v2318 = vunpack.c.l.b16 %v205
    %v2319 = vunpack.c.l.b16 %v206
    %v2320 = vunpack.c.l.b16 %v207
    %v2321 = vunpack.c.l.b16 %v208
    %v2322 = vunpack.c.l.b16 %v209
    %v2323 = vunpack.c.l.b16 %v210
    %v2324 = vunpack.c.l.b16 %v211
    %v2325 = vunpack.c.l.b16 %v212
    %v2326 = vunpack.c.l.b16 %v213
    %v2327 = vunpack.c.l.b16 %v214
    %v2328 = vunpack.c.l.b16 %v215
    %v2329 = vunpack.c.l.b16 %v216
    %v2330 = vunpack.c.l.b16 %v217
    %v2331 = vunpack.c.l.b16 %v218
    %v2332 = vunpack.c.l.b16 %v219
    %v2333 = vunpack.c.l.b16 %v220
    %v2334 = vunpack.c.l.b16 %v221
    %v2335 = vunpack.c.l.b16 %v222
    %v2336 = vunpack.c.l.b16 %v223
    %v2337 = vunpack.c.l.b16 %v224
    %v2338 = vunpack.c.l.b16 %v225
    %v2339 = vunpack.c.l.b16 %v226
    %v2340 = vunpack.c.l.b16 %v227
    %v2341 = vunpack.c.l.b16 %v228
    %v2342 = vunpack.c.l.b16 %v229
    %v2343 = vunpack.c.l.b16 %v230
    %v2344 = vunpack.c.l.b16 %v231
    %v2345 = vunpack.c.l.b16 %v232
    %v2346 = vunpack.c.l.b16 %v233
    %v2347 = vunpack.c.l.b16 %v234
    %v2348 = vunpack.c.l.b16 %v235
    %v2349 = vunpack.c.l.b16 %v236
    %v2350 = vunpack.c.l.b16 %v237
    %v2351 = vunpack.c.l.b16 %v238
    %v2352 = vunpack.c.l.b16 %v239
    %v2353 = vunpack.c.l.b16 %v240
    %v2354 = vunpack.c.l.b16 %v241
    %v2355 = vunpack.c.l.b16 %v242
    %v2356 = vunpack.c.l.b16 %v243
    %v2357 = vunpack.c.l.b16 %v244
    %v2358 = vunpack.c.l.b16 %v245
    %v2359 = vunpack.c.l.b16 %v246
    %v2360 = vunpack.c.l.b16 %v247
    %v2361 = vunpack.c.l.b16 %v248
    %v2362 = vunpack.c.l.b16 %v249
    %v2363 = vunpack.c.l.b16 %v250
    %v2364 = vunpack.c.l.b16 %v251
    %v2365 = vunpack.c.l.b16 %v252
    %v2366 = vunpack.c.l.b16 %v253
    %v2367 = vunpack.c.l.b16 %v254
    %v2368 = vunpack.c.l.b16 %v255
    %v2369 = vunpack.c.l.b16 %v256
    %v2370 = vunpack.c.l.b16 %v257
    %v2371 = vunpack.c.l.b16 %v258
    %v2372 = vunpack.c.l.b16 %v259
    %v2373 = vunpack.c.l.b16 %v260
    %v2374 = vunpack.c.l.b16 %v261
    %v2375 = vunpack.c.l.b16 %v262
    %v2376 = vunpack.c.l.b16 %v263
    %v2377 = vunpack.c.l.b16 %v264
    %v2378 = vunpack.c.l.b16 %v265
    %v2379 = vunpack.c.l.b16 %v266
    %v2380 = vunpack.c.l.b16 %v267
    %v2381 = vunpack.c.l.b16 %v268
    %v2382 = vunpack.c.l.b16 %v269
    %v2383 = vunpack.c.l.b16 %v270
    %v2384 = vunpack.c.l.b16 %v271
    %v2385 = vunpack.c.l.b16 %v272
    %v2386 = vunpack.c.l.b16 %v273
    %v2387 = vunpack.c.l.b16 %v274
    %v2388 = vunpack.c.l.b16 %v275
    %v2389 = vunpack.c.l.b16 %v276
    %v2390 = vunpack.c.l.b16 %v277
    %v2391 = vunpack.c.l.b16 %v278
    %v2392 = vunpack.c.l.b16 %v279
    %v2393 = vunpack.c.l.b16 %v280
    %v2394 = vunpack.c.l.b16 %v281
    %v2395 = vunpack.c.l.b16 %v282
    %v2396 = vunpack.c.l.b16 %v283
    %v2397 = vunpack.c.l.b16 %v284
    %v2398 = vunpack.c.l.b16 %v285
    %v2399 = vunpack.c.l.b16 %v286
    %v2400 = vunpack.c.l.b16 %v287
    %v2401 = vunpack.c.l.b16 %v288
    %v2402 = vunpack.c.l.b16 %v289
    %v2403 = vunpack.c.l.b16 %v290
    %v2404 = vunpack.c.l.b16 %v291
    %v2405 = vunpack.c.l.b16 %v292
    %v2406 = vunpack.c.l.b16 %v293
    %v2407 = vunpack.c.l.b16 %v294
    %v2408 = vunpack.c.l.b16 %v295
    %v2409 = vunpack.c.l.b16 %v296
    %v2410 = vunpack.c.l.b16 %v297
    %v2411 = vunpack.c.l.b16 %v298
    %v2412 = vunpack.c.l.b16 %v299
    %v2413 = vunpack.c.l.b16 %v300
    %v2414 = vunpack.c.l.b16 %v301
    %v2415 = vunpack.c.l.b16 %v302
    %v2416 = vunpack.c.l.b16 %v303
    %v2417 = vunpack.c.l.b16 %v304
    %v2418 = vunpack.c.l.b16 %v305
    %v2419 = vunpack.c.l.b16 %v306
    %v2420 = vunpack.c.l.b16 %v307
    %v2421 = vunpack.c.l.b16 %v308
    %v2422 = vunpack.c.l.b16 %v309
    %v2423 = vunpack.c.l.b16 %v310
    %v2424 = vunpack.c.l.b16 %v311
    %v2425 = vunpack.c.l.b16 %v312
    %v2426 = vunpack.c.l.b16 %v313
    %v2427 = vunpack.c.l.b16 %v314
    %v2428 = vunpack.c.l.b16 %v315
    %v2429 = vunpack.c.l.b16 %v316
    %v2430 = vunpack.c.l.b16 %v317
    %v2431 = vunpack.c.l.b16 %v318
    %v2432 = vunpack.c.l.b16 %v319
    %v2433 = vunpack.c.l.b16 %v320
    %v2434 = vunpack.c.l.b16 %v321
    %v2435 = vunpack.c.l.b16 %v322
    %v2436 = vunpack.c.l.b16 %v323
    %v2437 = vunpack.c.l.b16 %v324
    %v2438 = vunpack.c.l.b16 %v325
    %v2439 = vunpack.c.l.b16 %v326
    %v2440 = vunpack.c.l.b16 %v327
    %v2441 = vunpack.c.l.b16 %v328
    %v2442 = vunpack.c.l.b16 %v329
    %v2443 = vunpack.c.l.b16 %v330
    %v2444 = vunpack.c.l.b16 %v331
    %v2445 = vunpack.c.l.b16 %v332
    %v2446 = vunpack.c.l.b16 %v333
    %v2447 = vunpack.c.l.b16 %v334
    %v2448 = vunpack.c.l.b16 %v335
    %v2449 = vunpack.c.l.b16 %v336
    %v2450 = vunpack.c.l.b16 %v337
    %v2451 = vunpack.c.l.b16 %v338
    %v2452 = vunpack.c.l.b16 %v339
    %v2453 = vunpack.c.l.b16 %v340
    %v2454 = vunpack.c.l.b16 %v341
    %v2455 = vunpack.c.l.b16 %v342
    %v2456 = vunpack.c.l.b16 %v343
    %v2457 = vunpack.c.l.b16 %v344
    %v2458 = vunpack.c.l.b16 %v345
    %v2459 = vunpack.c.l.b16 %v346
    %v2460 = vunpack.c.l.b16 %v347
    %v2461 = vunpack.c.l.b16 %v348
    %v2462 = vunpack.c.l.b16 %v349
    %v2463 = vunpack.c.l.b16 %v350
    %v2464 = vunpack.c.l.b16 %v351
    %v2465 = vunpack.c.l.b16 %v352
    %v2466 = vunpack.c.l.b16 %v353
    %v2467 = vunpack.c.l.b16 %v354
    %v2468 = vunpack.c.l.b16 %v355
    %v2469 = vunpack.c.l.b16 %v356
    %v2470 = vunpack.c.l.b16 %v357
    %v2471 = vunpack.c.l.b16 %v358
    %v2472 = vunpack.c.l.b16 %v359
    %v2473 = vunpack.c.l.b16 %v360
    %v2474 = vunpack.c.l.b16 %v361
    %v2475 = vunpack.c.l.b16 %v362
    %v2476 = vunpack.c.l.b16 %v363
    %v2477 = vunpack.c.l.b16 %v364
    %v2478 = vunpack.c.l.b16 %v365
    %v2479 = vunpack.c.l.b16 %v366
    %v2480 = vunpack.c.l.b16 %v367
    %v2481 = vunpack.c.l.b16 %v368
    %v2482 = vunpack.c.l.b16 %v369
    %v2483 = vunpack.c.l.b16 %v370
    %v2484 = vunpack.c.l.b16 %v371
    %v2485 = vunpack.c.l.b16 %v372
    %v2486 = vunpack.c.l.b16 %v373
    %v2487 = vunpack.c.l.b16 %v374
    %v2488 = vunpack.c.l.b16 %v375
    %v2489 = vunpack.c.l.b16 %v376
    %v2490 = vunpack.c.l.b16 %v377
    %v2491 = vunpack.c.l.b16 %v378
    %v2492 = vunpack.c.l.b16 %v379
    %v2493 = vunpack.c.l.b16 %v380
    %v2494 = vunpack.c.l.b16 %v381
    %v2495 = vunpack.c.l.b16 %v382
    %v2496 = vunpack.c.l.b16 %v383
    %v2497 = vunpack.c.l.b16 %v384
    %v2498 = vunpack.c.l.b16 %v385
    %v2499 = vunpack.c.l.b16 %v386
    %v2500 = vunpack.c.l.b16 %v387
    %v2501 = vunpack.c.l.b16 %v388
    %v2502 = vunpack.c.l.b16 %v389
    %v2503 = vunpack.c.l.b16 %v390
    %v2504 = vunpack.c.l.b16 %v391
    %v2505 = vunpack.c.l.b16 %v392
    %v2506 = vunpack.c.l.b16 %v393
    %v2507 = vunpack.c.l.b16 %v394
    %v2508 = vunpack.c.l.b16 %v395
    %v2509 = vunpack.c.l.b16 %v396
    %v2510 = vunpack.c.l.b16 %v397
    %v2511 = vunpack.c.l.b16 %v398
    %v2512 = vunpack.c.l.b16 %v399
    %v2513 = vunpack.c.l.b16 %v400
    %v2514 = vunpack.c.l.b16 %v401
    %v2515 = vunpack.c.l.b16 %v402
    %v2516 = vunpack.c.l.b16 %v403
    %v2517 = vunpack.c.l.b16 %v404
    %v2518 = vunpack.c.l.b16 %v405
    %v2519 = vunpack.c.l.b16 %v406
    %v2520 = vunpack.c.l.b16 %v407
    %v2521 = vunpack.c.l.b16 %v408
    %v2522 = vunpack.c.l.b16 %v409
    %v2523 = vunpack.c.l.b16 %v410
    %v2524 = vunpack.c.l.b16 %v411
    %v2525 = vunpack.c.l.b16 %v412
    %v2526 = vunpack.c.l.b16 %v413
    %v2527 = vunpack.c.l.b16 %v414
    %v2528 = vunpack.c.l.b16 %v415
    %v2529 = vunpack.c.l.b16 %v416
    %v2530 = vunpack.c.l.b16 %v417
    %v2531 = vunpack.c.l.b16 %v418
    %v2532 = vunpack.c.l.b16 %v419
    %v2533 = vunpack.c.l.b16 %v420
    %v2534 = vunpack.c.l.b16 %v421
    %v2535 = vpack.c.b16 %v2280, %v2279
    %v2536 = vpack.c.b16 %v2282, %v2281
    %v2537 = vpack.c.b16 %v2284, %v2283
    %v2538 = vpack.c.b16 %v2286, %v2285
    %v2539 = vpack.c.b16 %v2288, %v2287
    %v2540 = vpack.c.b16 %v2290, %v2289
    %v2541 = vpack.c.b16 %v2292, %v2291
    %v2542 = vpack.c.b16 %v2294, %v2293
    %v2543 = vpack.c.b16 %v2296, %v2295
    %v2544 = vpack.c.b16 %v2298, %v2297
    %v2545 = vpack.c.b16 %v2300, %v2299
    %v2546 = vpack.c.b16 %v2302, %v2301
    %v2547 = vpack.c.b16 %v2304, %v2303
    %v2548 = vpack.c.b16 %v2306, %v2305
    %v2549 = vpack.c.b16 %v2308, %v2307
    %v2550 = vpack.c.b16 %v2310, %v2309
    %v2551 = vpack.c.b16 %v2312, %v2311
    %v2552 = vpack.c.b16 %v2314, %v2313
    %v2553 = vpack.c.b16 %v2316, %v2315
    %v2554 = vpack.c.b16 %v2318, %v2317
    %v2555 = vpack.c.b16 %v2320, %v2319
    %v2556 = vpack.c.b16 %v2322, %v2321
    %v2557 = vpack.c.b16 %v2324, %v2323
    %v2558 = vpack.c.b16 %v2326, %v2325
    %v2559 = vpack.c.b16 %v2328, %v2327
    %v2560 = vpack.c.b16 %v2330, %v2329
    %v2561 = vpack.c.b16 %v2332, %v2331
    %v2562 = vpack.c.b16 %v2334, %v2333
    %v2563 = vpack.c.b16 %v2336, %v2335
    %v2564 = vpack.c.b16 %v2338, %v2337
    %v2565 = vpack.c.b16 %v2340, %v2339
    %v2566 = vpack.c.b16 %v2342, %v2341
    %v2567 = vpack.c.b16 %v2344, %v2343
    %v2568 = vpack.c.b16 %v2346, %v2345
    %v2569 = vpack.c.b16 %v2348, %v2347
    %v2570 = vpack.c.b16 %v2350, %v2349
    %v2571 = vpack.c.b16 %v2352, %v2351
    %v2572 = vpack.c.b16 %v2354, %v2353
    %v2573 = vpack.c.b16 %v2356, %v2355
    %v2574 = vpack.c.b16 %v2358, %v2357
    %v2575 = vpack.c.b16 %v2360, %v2359
    %v2576 = vpack.c.b16 %v2362, %v2361
    %v2577 = vpack.c.b16 %v2364, %v2363
    %v2578 = vpack.c.b16 %v2366, %v2365
    %v2579 = vpack.c.b16 %v2368, %v2367
    %v2580 = vpack.c.b16 %v2370, %v2369
    %v2581 = vpack.c.b16 %v2372, %v2371
    %v2582 = vpack.c.b16 %v2374, %v2373
    %v2583 = vpack.c.b16 %v2376, %v2375
    %v2584 = vpack.c.b16 %v2378, %v2377
    %v2585 = vpack.c.b16 %v2380, %v2379
    %v2586 = vpack.c.b16 %v2382, %v2381
    %v2587 = vpack.c.b16 %v2384, %v2383
    %v2588 = vpack.c.b16 %v2386, %v2385
    %v2589 = vpack.c.b16 %v2388, %v2387
    %v2590 = vpack.c.b16 %v2390, %v2389
    %v2591 = vpack.c.b16 %v2392, %v2391
    %v2592 = vpack.c.b16 %v2394, %v2393
    %v2593 = vpack.c.b16 %v2396, %v2395
    %v2594 = vpack.c.b16 %v2398, %v2397
    %v2595 = vpack.c.b16 %v2400, %v2399
    %v2596 = vpack.c.b16 %v2402, %v2401
    %v2597 = vpack.c.b16 %v2404, %v2403
    %v2598 = vpack.c.b16 %v2406, %v2405
    %v2599 = vpack.c.b16 %v2408, %v2407
    %v2600 = vpack.c.b16 %v2410, %v2409
    %v2601 = vpack.c.b16 %v2412, %v2411
    %v2602 = vpack.c.b16 %v2414, %v2413
    %v2603 = vpack.c.b16 %v2416, %v2415
    %v2604 = vpack.c.b16 %v2418, %v2417
    %v2605 = vpack.c.b16 %v2420, %v2419
    %v2606 = vpack.c.b16 %v2422, %v2421
    %v2607 = vpack.c.b16 %v2424, %v2423
    %v2608 = vpack.c.b16 %v2426, %v2425
    %v2609 = vpack.c.b16 %v2428, %v2427
    %v2610 = vpack.c.b16 %v2430, %v2429
    %v2611 = vpack.c.b16 %v2432, %v2431
    %v2612 = vpack.c.b16 %v2434, %v2433
    %v2613 = vpack.c.b16 %v2436, %v2435
    %v2614 = vpack.c.b16 %v2438, %v2437
    %v2615 = vpack.c.b16 %v2440, %v2439
    %v2616 = vpack.c.b16 %v2442, %v2441
    %v2617 = vpack.c.b16 %v2444, %v2443
    %v2618 = vpack.c.b16 %v2446, %v2445
    %v2619 = vpack.c.b16 %v2448, %v2447
    %v2620 = vpack.c.b16 %v2450, %v2449
    %v2621 = vpack.c.b16 %v2452, %v2451
    %v2622 = vpack.c.b16 %v2454, %v2453
    %v2623 = vpack.c.b16 %v2456, %v2455
    %v2624 = vpack.c.b16 %v2458, %v2457
    %v2625 = vpack.c.b16 %v2460, %v2459
    %v2626 = vpack.c.b16 %v2462, %v2461
    %v2627 = vpack.c.b16 %v2464, %v2463
    %v2628 = vpack.c.b16 %v2466, %v2465
    %v2629 = vpack.c.b16 %v2468, %v2467
    %v2630 = vpack.c.b16 %v2470, %v2469
    %v2631 = vpack.c.b16 %v2472, %v2471
    %v2632 = vpack.c.b16 %v2474, %v2473
    %v2633 = vpack.c.b16 %v2476, %v2475
    %v2634 = vpack.c.b16 %v2478, %v2477
    %v2635 = vpack.c.b16 %v2480, %v2479
    %v2636 = vpack.c.b16 %v2482, %v2481
    %v2637 = vpack.c.b16 %v2484, %v2483
    %v2638 = vpack.c.b16 %v2486, %v2485
    %v2639 = vpack.c.b16 %v2488, %v2487
    %v2640 = vpack.c.b16 %v2490, %v2489
    %v2641 = vpack.c.b16 %v2492, %v2491
    %v2642 = vpack.c.b16 %v2494, %v2493
    %v2643 = vpack.c.b16 %v2496, %v2495
    %v2644 = vpack.c.b16 %v2498, %v2497
    %v2645 = vpack.c.b16 %v2500, %v2499
    %v2646 = vpack.c.b16 %v2502, %v2501
    %v2647 = vpack.c.b16 %v2504, %v2503
    %v2648 = vpack.c.b16 %v2506, %v2505
    %v2649 = vpack.c.b16 %v2508, %v2507
    %v2650 = vpack.c.b16 %v2510, %v2509
    %v2651 = vpack.c.b16 %v2512, %v2511
    %v2652 = vpack.c.b16 %v2514, %v2513
    %v2653 = vpack.c.b16 %v2516, %v2515
    %v2654 = vpack.c.b16 %v2518, %v2517
    %v2655 = vpack.c.b16 %v2520, %v2519
    %v2656 = vpack.c.b16 %v2522, %v2521
    %v2657 = vpack.c.b16 %v2524, %v2523
    %v2658 = vpack.c.b16 %v2526, %v2525
    %v2659 = vpack.c.b16 %v2528, %v2527
    %v2660 = vpack.c.b16 %v2530, %v2529
    %v2661 = vpack.c.b16 %v2532, %v2531
    %v2662 = vpack.c.b16 %v2534, %v2533
    %v2664 = vsel %vm966, %v1874, 0
    %v2667 = vsel %vm966, %v2535, 0
    %v2670 = vsel %vm966, %v2536, 0
    %v2673 = vsel %vm966, %v2537, 0
    %v2676 = vsel %vm966, %v2538, 0
    %v2679 = vsel %vm966, %v2539, 0
    %v2682 = vsel %vm966, %v2540, 0
    %v2685 = vsel %vm966, %v2541, 0
    %v2688 = vsel %vm966, %v2542, 0
    %v2691 = vsel %vm966, %v2543, 0
    %v2694 = vsel %vm966, %v2544, 0
    %v2697 = vsel %vm966, %v2545, 0
    %v2700 = vsel %vm966, %v2546, 0
    %v2703 = vsel %vm966, %v2547, 0
    %v2706 = vsel %vm966, %v2548, 0
    %v2709 = vsel %vm966, %v2549, 0
    %v2712 = vsel %vm966, %v2550, 0
    %v2715 = vsel %vm966, %v2551, 0
    %v2718 = vsel %vm966, %v2552, 0
    %v2721 = vsel %vm966, %v2553, 0
    %v2724 = vsel %vm966, %v2554, 0
    %v2727 = vsel %vm966, %v2555, 0
    %v2730 = vsel %vm966, %v2556, 0
    %v2733 = vsel %vm966, %v2557, 0
    %v2736 = vsel %vm966, %v2558, 0
    %v2739 = vsel %vm966, %v2559, 0
    %v2742 = vsel %vm966, %v2560, 0
    %v2745 = vsel %vm966, %v2561, 0
    %v2748 = vsel %vm966, %v2562, 0
    %v2751 = vsel %vm966, %v2563, 0
    %v2754 = vsel %vm966, %v2564, 0
    %v2757 = vsel %vm966, %v2565, 0
    %v2760 = vsel %vm966, %v2566, 0
    %v2763 = vsel %vm966, %v2567, 0
    %v2766 = vsel %vm966, %v2568, 0
    %v2769 = vsel %vm966, %v2569, 0
    %v2772 = vsel %vm966, %v2570, 0
    %v2775 = vsel %vm966, %v2571, 0
    %v2778 = vsel %vm966, %v2572, 0
    %v2781 = vsel %vm966, %v2573, 0
    %v2784 = vsel %vm966, %v2574, 0
    %v2787 = vsel %vm966, %v2575, 0
    %v2790 = vsel %vm966, %v2576, 0
    %v2793 = vsel %vm966, %v2577, 0
    %v2796 = vsel %vm966, %v2578, 0
    %v2799 = vsel %vm966, %v2579, 0
    %v2802 = vsel %vm966, %v2580, 0
    %v2805 = vsel %vm966, %v2581, 0
    %v2808 = vsel %vm966, %v2582, 0
    %v2811 = vsel %vm966, %v2583, 0
    %v2814 = vsel %vm966, %v2584, 0
    %v2817 = vsel %vm966, %v2585, 0
    %v2820 = vsel %vm966, %v2586, 0
    %v2823 = vsel %vm966, %v2587, 0
    %v2826 = vsel %vm966, %v2588, 0
    %v2829 = vsel %vm966, %v2589, 0
    %v2832 = vsel %vm966, %v2590, 0
    %v2835 = vsel %vm966, %v2591, 0
    %v2838 = vsel %vm966, %v2592, 0
    %v2841 = vsel %vm966, %v2593, 0
    %v2844 = vsel %vm966, %v2594, 0
    %v2847 = vsel %vm966, %v2595, 0
    %v2850 = vsel %vm966, %v2596, 0
    %v2853 = vsel %vm966, %v2597, 0
    %v2856 = vsel %vm966, %v2598, 0
    %v2859 = vsel %vm966, %v2599, 0
    %v2862 = vsel %vm966, %v2600, 0
    %v2865 = vsel %vm966, %v2601, 0
    %v2868 = vsel %vm966, %v2602, 0
    %v2871 = vsel %vm966, %v2603, 0
    %v2874 = vsel %vm966, %v2604, 0
    %v2877 = vsel %vm966, %v2605, 0
    %v2880 = vsel %vm966, %v2606, 0
    %v2883 = vsel %vm966, %v2607, 0
    %v2886 = vsel %vm966, %v2608, 0
    %v2889 = vsel %vm966, %v2609, 0
    %v2892 = vsel %vm966, %v2610, 0
    %v2895 = vsel %vm966, %v2611, 0
    %v2898 = vsel %vm966, %v2612, 0
    %v2901 = vsel %vm966, %v2613, 0
    %v2904 = vsel %vm966, %v2614, 0
    %v2907 = vsel %vm966, %v2615, 0
    %v2910 = vsel %vm966, %v2616, 0
    %v2913 = vsel %vm966, %v2617, 0
    %v2916 = vsel %vm966, %v2618, 0
    %v2919 = vsel %vm966, %v2619, 0
    %v2922 = vsel %vm966, %v2620, 0
    %v2925 = vsel %vm966, %v2621, 0
    %v2928 = vsel %vm966, %v2622, 0
    %v2931 = vsel %vm966, %v2623, 0
    %v2934 = vsel %vm966, %v2624, 0
    %v2937 = vsel %vm966, %v2625, 0
    %v2940 = vsel %vm966, %v2626, 0
    %v2943 = vsel %vm966, %v2627, 0
    %v2946 = vsel %vm966, %v2628, 0
    %v2949 = vsel %vm966, %v2629, 0
    %v2952 = vsel %vm966, %v2630, 0
    %v2955 = vsel %vm966, %v2631, 0
    %v2958 = vsel %vm966, %v2632, 0
    %v2961 = vsel %vm966, %v2633, 0
    %v2964 = vsel %vm966, %v2634, 0
    %v2967 = vsel %vm966, %v2635, 0
    %v2970 = vsel %vm966, %v2636, 0
    %v2973 = vsel %vm966, %v2637, 0
    %v2976 = vsel %vm966, %v2638, 0
    %v2979 = vsel %vm966, %v2639, 0
    %v2982 = vsel %vm966, %v2640, 0
    %v2985 = vsel %vm966, %v2641, 0
    %v2988 = vsel %vm966, %v2642, 0
    %v2991 = vsel %vm966, %v2643, 0
    %v2994 = vsel %vm966, %v2644, 0
    %v2997 = vsel %vm966, %v2645, 0
    %v3000 = vsel %vm966, %v2646, 0
    %v3003 = vsel %vm966, %v2647, 0
    %v3006 = vsel %vm966, %v2648, 0
    %v3009 = vsel %vm966, %v2649, 0
    %v3012 = vsel %vm966, %v2650, 0
    %v3015 = vsel %vm966, %v2651, 0
    %v3018 = vsel %vm966, %v2652, 0
    %v3021 = vsel %vm966, %v2653, 0
    %v3024 = vsel %vm966, %v2654, 0
    %v3027 = vsel %vm966, %v2655, 0
    %v3030 = vsel %vm966, %v2656, 0
    %v3033 = vsel %vm966, %v2657, 0
    %v3036 = vsel %vm966, %v2658, 0
    %v3039 = vsel %vm966, %v2659, 0
    %v3042 = vsel %vm966, %v2660, 0
    %v3045 = vsel %vm966, %v2661, 0
    %v3048 = vsel %vm966, %v2662, 0
    %3050 = vmatprep.subr.bf16.mxu0 0
    %3051 = vmatpush1.bf16.xpose.msra.mxu0 %v2667
    %3052 = vmatprep.subr.bf16.mxu0 0
    %3053 = vmatpush1.bf16.xpose.msra.mxu0 %v2670
    %3054 = vmatprep.subr.bf16.mxu0 0
    %3055 = vmatpush1.bf16.xpose.msra.mxu0 %v2673
    %3056 = vmatprep.subr.bf16.mxu0 0
    %3057 = vmatpush1.bf16.xpose.msra.mxu0 %v2676
    %3058 = vmatprep.subr.bf16.mxu0 0
    %3059 = vmatpush1.bf16.xpose.msra.mxu0 %v2679
    %3060 = vmatprep.subr.bf16.mxu0 0
    %3061 = vmatpush1.bf16.xpose.msra.mxu0 %v2682
    %3062 = vmatprep.subr.bf16.mxu0 0
    %3063 = vmatpush1.bf16.xpose.msra.mxu0 %v2685
    %3064 = vmatprep.subr.bf16.mxu0 0
    %3065 = vmatpush1.bf16.xpose.msra.mxu0 %v2688
    %3066 = vmatprep.subr.bf16.mxu0 0
    %3067 = vmatpush1.bf16.xpose.msra.mxu0 %v2691
    %3068 = vmatprep.subr.bf16.mxu0 0
    %3069 = vmatpush1.bf16.xpose.msra.mxu0 %v2694
    %3070 = vmatprep.subr.bf16.mxu0 0
    %3071 = vmatpush1.bf16.xpose.msra.mxu0 %v2697
    %3072 = vmatprep.subr.bf16.mxu0 0
    %3073 = vmatpush1.bf16.xpose.msra.mxu0 %v2700
    %3074 = vmatprep.subr.bf16.mxu0 0
    %3075 = vmatpush1.bf16.xpose.msra.mxu0 %v2703
    %3076 = vmatprep.subr.bf16.mxu0 0
    %3077 = vmatpush1.bf16.xpose.msra.mxu0 %v2706
    %3078 = vmatprep.subr.bf16.mxu0 0
    %3079 = vmatpush1.bf16.xpose.msra.mxu0 %v2709
    %3080 = vmatprep.subr.bf16.mxu0 0
    %3081 = vmatpush1.bf16.xpose.msra.mxu0 %v2712
    %3082 = vmatprep.mubr.bf16.mxu0 0
    %3083 = vmatmul.mubr.bf16.gmra.mrb[0].mxu0 %v2664
    %v3084 = vpop.f32.mrb[0].mxu0
    %v3085 = vadd.f32 %v1962, %v3084
    %v3086 = vpop.f32.mrb[0].mxu0
    %v3087 = vadd.f32 %v1966, %v3086
    %v3088 = vpop.f32.mrb[0].mxu0
    %v3089 = vadd.f32 %v1962, %v3088
    %v3090 = vpop.f32.mrb[0].mxu0
    %v3091 = vadd.f32 %v1966, %v3090
    %3092 = vdwg.mxu0
    %3093 = vmatprep.subr.bf16.mxu0 0
    %3094 = vmatpush1.bf16.xpose.msra.mxu0 %v2715
    %3095 = vmatprep.subr.bf16.mxu0 0
    %3096 = vmatpush1.bf16.xpose.msra.mxu0 %v2718
    %3097 = vmatprep.subr.bf16.mxu0 0
    %3098 = vmatpush1.bf16.xpose.msra.mxu0 %v2721
    %3099 = vmatprep.subr.bf16.mxu0 0
    %3100 = vmatpush1.bf16.xpose.msra.mxu0 %v2724
    %3101 = vmatprep.subr.bf16.mxu0 0
    %3102 = vmatpush1.bf16.xpose.msra.mxu0 %v2727
    %3103 = vmatprep.subr.bf16.mxu0 0
    %3104 = vmatpush1.bf16.xpose.msra.mxu0 %v2730
    %3105 = vmatprep.subr.bf16.mxu0 0
    %3106 = vmatpush1.bf16.xpose.msra.mxu0 %v2733
    %3107 = vmatprep.subr.bf16.mxu0 0
    %3108 = vmatpush1.bf16.xpose.msra.mxu0 %v2736
    %3109 = vmatprep.subr.bf16.mxu0 0
    %3110 = vmatpush1.bf16.xpose.msra.mxu0 %v2739
    %3111 = vmatprep.subr.bf16.mxu0 0
    %3112 = vmatpush1.bf16.xpose.msra.mxu0 %v2742
    %3113 = vmatprep.subr.bf16.mxu0 0
    %3114 = vmatpush1.bf16.xpose.msra.mxu0 %v2745
    %3115 = vmatprep.subr.bf16.mxu0 0
    %3116 = vmatpush1.bf16.xpose.msra.mxu0 %v2748
    %3117 = vmatprep.subr.bf16.mxu0 0
    %3118 = vmatpush1.bf16.xpose.msra.mxu0 %v2751
    %3119 = vmatprep.subr.bf16.mxu0 0
    %3120 = vmatpush1.bf16.xpose.msra.mxu0 %v2754
    %3121 = vmatprep.subr.bf16.mxu0 0
    %3122 = vmatpush1.bf16.xpose.msra.mxu0 %v2757
    %3123 = vmatprep.subr.bf16.mxu0 0
    %3124 = vmatpush1.bf16.xpose.msra.mxu0 %v2760
    %3125 = vmatprep.mubr.bf16.mxu0 0
    %3126 = vmatmul.mubr.bf16.gmra.mrb[0].mxu0 %v2664
    %v3127 = vpop.f32.mrb[0].mxu0
    %v3128 = vadd.f32 %v1970, %v3127
    %v3129 = vpop.f32.mrb[0].mxu0
    %v3130 = vadd.f32 %v1974, %v3129
    %v3131 = vpop.f32.mrb[0].mxu0
    %v3132 = vadd.f32 %v1970, %v3131
    %v3133 = vpop.f32.mrb[0].mxu0
    %v3134 = vadd.f32 %v1974, %v3133
    %3135 = vdwg.mxu0
    %3136 = vmatprep.subr.bf16.mxu0 0
    %3137 = vmatpush1.bf16.xpose.msra.mxu0 %v2763
    %3138 = vmatprep.subr.bf16.mxu0 0
    %3139 = vmatpush1.bf16.xpose.msra.mxu0 %v2766
    %3140 = vmatprep.subr.bf16.mxu0 0
    %3141 = vmatpush1.bf16.xpose.msra.mxu0 %v2769
    %3142 = vmatprep.subr.bf16.mxu0 0
    %3143 = vmatpush1.bf16.xpose.msra.mxu0 %v2772
    %3144 = vmatprep.subr.bf16.mxu0 0
    %3145 = vmatpush1.bf16.xpose.msra.mxu0 %v2775
    %3146 = vmatprep.subr.bf16.mxu0 0
    %3147 = vmatpush1.bf16.xpose.msra.mxu0 %v2778
    %3148 = vmatprep.subr.bf16.mxu0 0
    %3149 = vmatpush1.bf16.xpose.msra.mxu0 %v2781
    %3150 = vmatprep.subr.bf16.mxu0 0
    %3151 = vmatpush1.bf16.xpose.msra.mxu0 %v2784
    %3152 = vmatprep.subr.bf16.mxu0 0
    %3153 = vmatpush1.bf16.xpose.msra.mxu0 %v2787
    %3154 = vmatprep.subr.bf16.mxu0 0
    %3155 = vmatpush1.bf16.xpose.msra.mxu0 %v2790
    %3156 = vmatprep.subr.bf16.mxu0 0
    %3157 = vmatpush1.bf16.xpose.msra.mxu0 %v2793
    %3158 = vmatprep.subr.bf16.mxu0 0
    %3159 = vmatpush1.bf16.xpose.msra.mxu0 %v2796
    %3160 = vmatprep.subr.bf16.mxu0 0
    %3161 = vmatpush1.bf16.xpose.msra.mxu0 %v2799
    %3162 = vmatprep.subr.bf16.mxu0 0
    %3163 = vmatpush1.bf16.xpose.msra.mxu0 %v2802
    %3164 = vmatprep.subr.bf16.mxu0 0
    %3165 = vmatpush1.bf16.xpose.msra.mxu0 %v2805
    %3166 = vmatprep.subr.bf16.mxu0 0
    %3167 = vmatpush1.bf16.xpose.msra.mxu0 %v2808
    %3168 = vmatprep.mubr.bf16.mxu0 0
    %3169 = vmatmul.mubr.bf16.gmra.mrb[0].mxu0 %v2664
    %v3170 = vpop.f32.mrb[0].mxu0
    %v3171 = vadd.f32 %v1978, %v3170
    %v3172 = vpop.f32.mrb[0].mxu0
    %v3173 = vadd.f32 %v1982, %v3172
    %v3174 = vpop.f32.mrb[0].mxu0
    %v3175 = vadd.f32 %v1978, %v3174
    %v3176 = vpop.f32.mrb[0].mxu0
    %v3177 = vadd.f32 %v1982, %v3176
    %3178 = vdwg.mxu0
    %3179 = vmatprep.subr.bf16.mxu0 0
    %3180 = vmatpush1.bf16.xpose.msra.mxu0 %v2811
    %3181 = vmatprep.subr.bf16.mxu0 0
    %3182 = vmatpush1.bf16.xpose.msra.mxu0 %v2814
    %3183 = vmatprep.subr.bf16.mxu0 0
    %3184 = vmatpush1.bf16.xpose.msra.mxu0 %v2817
    %3185 = vmatprep.subr.bf16.mxu0 0
    %3186 = vmatpush1.bf16.xpose.msra.mxu0 %v2820
    %3187 = vmatprep.subr.bf16.mxu0 0
    %3188 = vmatpush1.bf16.xpose.msra.mxu0 %v2823
    %3189 = vmatprep.subr.bf16.mxu0 0
    %3190 = vmatpush1.bf16.xpose.msra.mxu0 %v2826
    %3191 = vmatprep.subr.bf16.mxu0 0
    %3192 = vmatpush1.bf16.xpose.msra.mxu0 %v2829
    %3193 = vmatprep.subr.bf16.mxu0 0
    %3194 = vmatpush1.bf16.xpose.msra.mxu0 %v2832
    %3195 = vmatprep.subr.bf16.mxu0 0
    %3196 = vmatpush1.bf16.xpose.msra.mxu0 %v2835
    %3197 = vmatprep.subr.bf16.mxu0 0
    %3198 = vmatpush1.bf16.xpose.msra.mxu0 %v2838
    %3199 = vmatprep.subr.bf16.mxu0 0
    %3200 = vmatpush1.bf16.xpose.msra.mxu0 %v2841
    %3201 = vmatprep.subr.bf16.mxu0 0
    %3202 = vmatpush1.bf16.xpose.msra.mxu0 %v2844
    %3203 = vmatprep.subr.bf16.mxu0 0
    %3204 = vmatpush1.bf16.xpose.msra.mxu0 %v2847
    %3205 = vmatprep.subr.bf16.mxu0 0
    %3206 = vmatpush1.bf16.xpose.msra.mxu0 %v2850
    %3207 = vmatprep.subr.bf16.mxu0 0
    %3208 = vmatpush1.bf16.xpose.msra.mxu0 %v2853
    %3209 = vmatprep.subr.bf16.mxu0 0
    %3210 = vmatpush1.bf16.xpose.msra.mxu0 %v2856
    %3211 = vmatprep.mubr.bf16.mxu0 0
    %3212 = vmatmul.mubr.bf16.gmra.mrb[0].mxu0 %v2664
    %v3213 = vpop.f32.mrb[0].mxu0
    %v3214 = vadd.f32 %v1986, %v3213
    %v3215 = vpop.f32.mrb[0].mxu0
    %v3216 = vadd.f32 %v1990, %v3215
    %v3217 = vpop.f32.mrb[0].mxu0
    %v3218 = vadd.f32 %v1986, %v3217
    %v3219 = vpop.f32.mrb[0].mxu0
    %v3220 = vadd.f32 %v1990, %v3219
    %3221 = vdwg.mxu0
    %3222 = vmatprep.subr.bf16.mxu0 0
    %3223 = vmatpush1.bf16.xpose.msra.mxu0 %v2859
    %3224 = vmatprep.subr.bf16.mxu0 0
    %3225 = vmatpush1.bf16.xpose.msra.mxu0 %v2862
    %3226 = vmatprep.subr.bf16.mxu0 0
    %3227 = vmatpush1.bf16.xpose.msra.mxu0 %v2865
    %3228 = vmatprep.subr.bf16.mxu0 0
    %3229 = vmatpush1.bf16.xpose.msra.mxu0 %v2868
    %3230 = vmatprep.subr.bf16.mxu0 0
    %3231 = vmatpush1.bf16.xpose.msra.mxu0 %v2871
    %3232 = vmatprep.subr.bf16.mxu0 0
    %3233 = vmatpush1.bf16.xpose.msra.mxu0 %v2874
    %3234 = vmatprep.subr.bf16.mxu0 0
    %3235 = vmatpush1.bf16.xpose.msra.mxu0 %v2877
    %3236 = vmatprep.subr.bf16.mxu0 0
    %3237 = vmatpush1.bf16.xpose.msra.mxu0 %v2880
    %3238 = vmatprep.subr.bf16.mxu0 0
    %3239 = vmatpush1.bf16.xpose.msra.mxu0 %v2883
    %3240 = vmatprep.subr.bf16.mxu0 0
    %3241 = vmatpush1.bf16.xpose.msra.mxu0 %v2886
    %3242 = vmatprep.subr.bf16.mxu0 0
    %3243 = vmatpush1.bf16.xpose.msra.mxu0 %v2889
    %3244 = vmatprep.subr.bf16.mxu0 0
    %3245 = vmatpush1.bf16.xpose.msra.mxu0 %v2892
    %3246 = vmatprep.subr.bf16.mxu0 0
    %3247 = vmatpush1.bf16.xpose.msra.mxu0 %v2895
    %3248 = vmatprep.subr.bf16.mxu0 0
    %3249 = vmatpush1.bf16.xpose.msra.mxu0 %v2898
    %3250 = vmatprep.subr.bf16.mxu0 0
    %3251 = vmatpush1.bf16.xpose.msra.mxu0 %v2901
    %3252 = vmatprep.subr.bf16.mxu0 0
    %3253 = vmatpush1.bf16.xpose.msra.mxu0 %v2904
    %3254 = vmatprep.mubr.bf16.mxu0 0
    %3255 = vmatmul.mubr.bf16.gmra.mrb[0].mxu0 %v2664
    %v3256 = vpop.f32.mrb[0].mxu0
    %v3257 = vadd.f32 %v1994, %v3256
    %v3258 = vpop.f32.mrb[0].mxu0
    %v3259 = vadd.f32 %v1998, %v3258
    %v3260 = vpop.f32.mrb[0].mxu0
    %v3261 = vadd.f32 %v1994, %v3260
    %v3262 = vpop.f32.mrb[0].mxu0
    %v3263 = vadd.f32 %v1998, %v3262
    %3264 = vdwg.mxu0
    %3265 = vmatprep.subr.bf16.mxu0 0
    %3266 = vmatpush1.bf16.xpose.msra.mxu0 %v2907
    %3267 = vmatprep.subr.bf16.mxu0 0
    %3268 = vmatpush1.bf16.xpose.msra.mxu0 %v2910
    %3269 = vmatprep.subr.bf16.mxu0 0
    %3270 = vmatpush1.bf16.xpose.msra.mxu0 %v2913
    %3271 = vmatprep.subr.bf16.mxu0 0
    %3272 = vmatpush1.bf16.xpose.msra.mxu0 %v2916
    %3273 = vmatprep.subr.bf16.mxu0 0
    %3274 = vmatpush1.bf16.xpose.msra.mxu0 %v2919
    %3275 = vmatprep.subr.bf16.mxu0 0
    %3276 = vmatpush1.bf16.xpose.msra.mxu0 %v2922
    %3277 = vmatprep.subr.bf16.mxu0 0
    %3278 = vmatpush1.bf16.xpose.msra.mxu0 %v2925
    %3279 = vmatprep.subr.bf16.mxu0 0
    %3280 = vmatpush1.bf16.xpose.msra.mxu0 %v2928
    %3281 = vmatprep.subr.bf16.mxu0 0
    %3282 = vmatpush1.bf16.xpose.msra.mxu0 %v2931
    %3283 = vmatprep.subr.bf16.mxu0 0
    %3284 = vmatpush1.bf16.xpose.msra.mxu0 %v2934
    %3285 = vmatprep.subr.bf16.mxu0 0
    %3286 = vmatpush1.bf16.xpose.msra.mxu0 %v2937
    %3287 = vmatprep.subr.bf16.mxu0 0
    %3288 = vmatpush1.bf16.xpose.msra.mxu0 %v2940
    %3289 = vmatprep.subr.bf16.mxu0 0
    %3290 = vmatpush1.bf16.xpose.msra.mxu0 %v2943
    %3291 = vmatprep.subr.bf16.mxu0 0
    %3292 = vmatpush1.bf16.xpose.msra.mxu0 %v2946
    %3293 = vmatprep.subr.bf16.mxu0 0
    %3294 = vmatpush1.bf16.xpose.msra.mxu0 %v2949
    %3295 = vmatprep.subr.bf16.mxu0 0
    %3296 = vmatpush1.bf16.xpose.msra.mxu0 %v2952
    %3297 = vmatprep.mubr.bf16.mxu0 0
    %3298 = vmatmul.mubr.bf16.gmra.mrb[0].mxu0 %v2664
    %v3299 = vpop.f32.mrb[0].mxu0
    %v3300 = vadd.f32 %v2002, %v3299
    %v3301 = vpop.f32.mrb[0].mxu0
    %v3302 = vadd.f32 %v2006, %v3301
    %v3303 = vpop.f32.mrb[0].mxu0
    %v3304 = vadd.f32 %v2002, %v3303
    %v3305 = vpop.f32.mrb[0].mxu0
    %v3306 = vadd.f32 %v2006, %v3305
    %3307 = vdwg.mxu0
    %3308 = vmatprep.subr.bf16.mxu0 0
    %3309 = vmatpush1.bf16.xpose.msra.mxu0 %v2955
    %3310 = vmatprep.subr.bf16.mxu0 0
    %3311 = vmatpush1.bf16.xpose.msra.mxu0 %v2958
    %3312 = vmatprep.subr.bf16.mxu0 0
    %3313 = vmatpush1.bf16.xpose.msra.mxu0 %v2961
    %3314 = vmatprep.subr.bf16.mxu0 0
    %3315 = vmatpush1.bf16.xpose.msra.mxu0 %v2964
    %3316 = vmatprep.subr.bf16.mxu0 0
    %3317 = vmatpush1.bf16.xpose.msra.mxu0 %v2967
    %3318 = vmatprep.subr.bf16.mxu0 0
    %3319 = vmatpush1.bf16.xpose.msra.mxu0 %v2970
    %3320 = vmatprep.subr.bf16.mxu0 0
    %3321 = vmatpush1.bf16.xpose.msra.mxu0 %v2973
    %3322 = vmatprep.subr.bf16.mxu0 0
    %3323 = vmatpush1.bf16.xpose.msra.mxu0 %v2976
    %3324 = vmatprep.subr.bf16.mxu0 0
    %3325 = vmatpush1.bf16.xpose.msra.mxu0 %v2979
    %3326 = vmatprep.subr.bf16.mxu0 0
    %3327 = vmatpush1.bf16.xpose.msra.mxu0 %v2982
    %3328 = vmatprep.subr.bf16.mxu0 0
    %3329 = vmatpush1.bf16.xpose.msra.mxu0 %v2985
    %3330 = vmatprep.subr.bf16.mxu0 0
    %3331 = vmatpush1.bf16.xpose.msra.mxu0 %v2988
    %3332 = vmatprep.subr.bf16.mxu0 0
    %3333 = vmatpush1.bf16.xpose.msra.mxu0 %v2991
    %3334 = vmatprep.subr.bf16.mxu0 0
    %3335 = vmatpush1.bf16.xpose.msra.mxu0 %v2994
    %3336 = vmatprep.subr.bf16.mxu0 0
    %3337 = vmatpush1.bf16.xpose.msra.mxu0 %v2997
    %3338 = vmatprep.subr.bf16.mxu0 0
    %3339 = vmatpush1.bf16.xpose.msra.mxu0 %v3000
    %3340 = vmatprep.mubr.bf16.mxu0 0
    %3341 = vmatmul.mubr.bf16.gmra.mrb[0].mxu0 %v2664
    %v3342 = vpop.f32.mrb[0].mxu0
    %v3343 = vadd.f32 %v2010, %v3342
    %v3344 = vpop.f32.mrb[0].mxu0
    %v3345 = vadd.f32 %v2014, %v3344
    %v3346 = vpop.f32.mrb[0].mxu0
    %v3347 = vadd.f32 %v2010, %v3346
    %v3348 = vpop.f32.mrb[0].mxu0
    %v3349 = vadd.f32 %v2014, %v3348
    %3350 = vdwg.mxu0
    %3351 = vmatprep.subr.bf16.mxu0 0
    %3352 = vmatpush1.bf16.xpose.msra.mxu0 %v3003
    %3353 = vmatprep.subr.bf16.mxu0 0
    %3354 = vmatpush1.bf16.xpose.msra.mxu0 %v3006
    %3355 = vmatprep.subr.bf16.mxu0 0
    %3356 = vmatpush1.bf16.xpose.msra.mxu0 %v3009
    %3357 = vmatprep.subr.bf16.mxu0 0
    %3358 = vmatpush1.bf16.xpose.msra.mxu0 %v3012
    %3359 = vmatprep.subr.bf16.mxu0 0
    %3360 = vmatpush1.bf16.xpose.msra.mxu0 %v3015
    %3361 = vmatprep.subr.bf16.mxu0 0
    %3362 = vmatpush1.bf16.xpose.msra.mxu0 %v3018
    %3363 = vmatprep.subr.bf16.mxu0 0
    %3364 = vmatpush1.bf16.xpose.msra.mxu0 %v3021
    %3365 = vmatprep.subr.bf16.mxu0 0
    %3366 = vmatpush1.bf16.xpose.msra.mxu0 %v3024
    %3367 = vmatprep.subr.bf16.mxu0 0
    %3368 = vmatpush1.bf16.xpose.msra.mxu0 %v3027
    %3369 = vmatprep.subr.bf16.mxu0 0
    %3370 = vmatpush1.bf16.xpose.msra.mxu0 %v3030
    %3371 = vmatprep.subr.bf16.mxu0 0
    %3372 = vmatpush1.bf16.xpose.msra.mxu0 %v3033
    %3373 = vmatprep.subr.bf16.mxu0 0
    %3374 = vmatpush1.bf16.xpose.msra.mxu0 %v3036
    %3375 = vmatprep.subr.bf16.mxu0 0
    %3376 = vmatpush1.bf16.xpose.msra.mxu0 %v3039
    %3377 = vmatprep.subr.bf16.mxu0 0
    %3378 = vmatpush1.bf16.xpose.msra.mxu0 %v3042
    %3379 = vmatprep.subr.bf16.mxu0 0
    %3380 = vmatpush1.bf16.xpose.msra.mxu0 %v3045
    %3381 = vmatprep.subr.bf16.mxu0 0
    %3382 = vmatpush1.bf16.xpose.msra.mxu0 %v3048
    %3383 = vmatprep.mubr.bf16.mxu0 0
    %3384 = vmatmul.mubr.bf16.gmra.mrb[0].mxu0 %v2664
    %v3385 = vpop.f32.mrb[0].mxu0
    %v3386 = vadd.f32 %v2018, %v3385
    %v3387 = vpop.f32.mrb[0].mxu0
    %v3388 = vadd.f32 %v2022, %v3387
    %v3389 = vpop.f32.mrb[0].mxu0
    %v3390 = vadd.f32 %v2018, %v3389
    %v3391 = vpop.f32.mrb[0].mxu0
    %v3392 = vadd.f32 %v2022, %v3391
    %3393 = vdwg.mxu0
    %v3394 = vmax.f32 %v3085, 0.0
    %v3395 = vmax.f32 %v3087, 0.0
    %v3396 = vmax.f32 %v3128, 0.0
    %v3397 = vmax.f32 %v3130, 0.0
    %v3398 = vmax.f32 %v3171, 0.0
    %v3399 = vmax.f32 %v3173, 0.0
    %v3400 = vmax.f32 %v3214, 0.0
    %v3401 = vmax.f32 %v3216, 0.0
    %v3402 = vmax.f32 %v3257, 0.0
    %v3403 = vmax.f32 %v3259, 0.0
    %v3404 = vmax.f32 %v3300, 0.0
    %v3405 = vmax.f32 %v3302, 0.0
    %v3406 = vmax.f32 %v3343, 0.0
    %v3407 = vmax.f32 %v3345, 0.0
    %v3408 = vmax.f32 %v3386, 0.0
    %v3409 = vmax.f32 %v3388, 0.0
    %v3410 = vmax.f32 %v3089, 0.0
    %v3411 = vmax.f32 %v3091, 0.0
    %v3412 = vmax.f32 %v3132, 0.0
    %v3413 = vmax.f32 %v3134, 0.0
    %v3414 = vmax.f32 %v3175, 0.0
    %v3415 = vmax.f32 %v3177, 0.0
    %v3416 = vmax.f32 %v3218, 0.0
    %v3417 = vmax.f32 %v3220, 0.0
    %v3418 = vmax.f32 %v3261, 0.0
    %v3419 = vmax.f32 %v3263, 0.0
    %v3420 = vmax.f32 %v3304, 0.0
    %v3421 = vmax.f32 %v3306, 0.0
    %v3422 = vmax.f32 %v3347, 0.0
    %v3423 = vmax.f32 %v3349, 0.0
    %v3424 = vmax.f32 %v3390, 0.0
    %v3425 = vmax.f32 %v3392, 0.0
    %v3426 = vpack.c.bf16 %v3410, %v3394
    %v3427 = vpack.c.bf16 %v3411, %v3395
    %v3428 = vpack.c.bf16 %v3412, %v3396
    %v3429 = vpack.c.bf16 %v3413, %v3397
    %v3430 = vpack.c.bf16 %v3414, %v3398
    %v3431 = vpack.c.bf16 %v3415, %v3399
    %v3432 = vpack.c.bf16 %v3416, %v3400
    %v3433 = vpack.c.bf16 %v3417, %v3401
    %v3434 = vpack.c.bf16 %v3418, %v3402
    %v3435 = vpack.c.bf16 %v3419, %v3403
    %v3436 = vpack.c.bf16 %v3420, %v3404
    %v3437 = vpack.c.bf16 %v3421, %v3405
    %v3438 = vpack.c.bf16 %v3422, %v3406
    %v3439 = vpack.c.bf16 %v3423, %v3407
    %v3440 = vpack.c.bf16 %v3424, %v3408
    %v3441 = vpack.c.bf16 %v3425, %v3409
    %v3442 = vlaneseq
    %v3443 = vshrl.u32 %v3442, 7
    %v3444 = vsub.s32 0, %v3443
    %v3445 = vrot.slane %v746, %v3444
    %v3478 = vunpack.c.l.b16 %v682
    %v3479 = vunpack.c.h.b16 %v682
    %v3480 = vunpack.c.l.b16 %v683
    %v3481 = vunpack.c.h.b16 %v683
    %v3482 = vunpack.c.l.b16 %v684
    %v3483 = vunpack.c.h.b16 %v684
    %v3484 = vunpack.c.l.b16 %v685
    %v3485 = vunpack.c.h.b16 %v685
    %v3486 = vunpack.c.l.b16 %v686
    %v3487 = vunpack.c.h.b16 %v686
    %v3488 = vunpack.c.l.b16 %v687
    %v3489 = vunpack.c.h.b16 %v687
    %v3490 = vunpack.c.l.b16 %v688
    %v3491 = vunpack.c.h.b16 %v688
    %v3492 = vunpack.c.l.b16 %v689
    %v3493 = vunpack.c.h.b16 %v689
    %v3494 = vunpack.c.l.b16 %v690
    %v3495 = vunpack.c.h.b16 %v690
    %v3496 = vunpack.c.l.b16 %v691
    %v3497 = vunpack.c.h.b16 %v691
    %v3498 = vunpack.c.l.b16 %v692
    %v3499 = vunpack.c.h.b16 %v692
    %v3500 = vunpack.c.l.b16 %v693
    %v3501 = vunpack.c.h.b16 %v693
    %v3502 = vunpack.c.l.b16 %v694
    %v3503 = vunpack.c.h.b16 %v694
    %v3504 = vunpack.c.l.b16 %v695
    %v3505 = vunpack.c.h.b16 %v695
    %v3506 = vunpack.c.l.b16 %v696
    %v3507 = vunpack.c.h.b16 %v696
    %v3508 = vunpack.c.l.b16 %v697
    %v3509 = vunpack.c.h.b16 %v697
    %v3510 = vunpack.c.l.b16 %v698
    %v3511 = vunpack.c.h.b16 %v698
    %v3512 = vunpack.c.l.b16 %v699
    %v3513 = vunpack.c.h.b16 %v699
    %v3514 = vunpack.c.l.b16 %v700
    %v3515 = vunpack.c.h.b16 %v700
    %v3516 = vunpack.c.l.b16 %v701
    %v3517 = vunpack.c.h.b16 %v701
    %v3518 = vunpack.c.l.b16 %v702
    %v3519 = vunpack.c.h.b16 %v702
    %v3520 = vunpack.c.l.b16 %v703
    %v3521 = vunpack.c.h.b16 %v703
    %v3522 = vunpack.c.l.b16 %v704
    %v3523 = vunpack.c.h.b16 %v704
    %v3524 = vunpack.c.l.b16 %v705
    %v3525 = vunpack.c.h.b16 %v705
    %v3526 = vunpack.c.l.b16 %v706
    %v3527 = vunpack.c.h.b16 %v706
    %v3528 = vunpack.c.l.b16 %v707
    %v3529 = vunpack.c.h.b16 %v707
    %v3530 = vunpack.c.l.b16 %v708
    %v3531 = vunpack.c.h.b16 %v708
    %v3532 = vunpack.c.l.b16 %v709
    %v3533 = vunpack.c.h.b16 %v709
    %v3534 = vunpack.c.l.b16 %v710
    %v3535 = vunpack.c.h.b16 %v710
    %v3536 = vunpack.c.l.b16 %v711
    %v3537 = vunpack.c.h.b16 %v711
    %v3538 = vunpack.c.l.b16 %v712
    %v3539 = vunpack.c.h.b16 %v712
    %v3540 = vunpack.c.l.b16 %v713
    %v3541 = vunpack.c.h.b16 %v713
    %v3542 = vpack.c.b16 %v3494, %v3478
    %v3543 = vpack.c.b16 %v3495, %v3479
    %v3544 = vpack.c.b16 %v3496, %v3480
    %v3545 = vpack.c.b16 %v3497, %v3481
    %v3546 = vpack.c.b16 %v3498, %v3482
    %v3547 = vpack.c.b16 %v3499, %v3483
    %v3548 = vpack.c.b16 %v3500, %v3484
    %v3549 = vpack.c.b16 %v3501, %v3485
    %v3550 = vpack.c.b16 %v3502, %v3486
    %v3551 = vpack.c.b16 %v3503, %v3487
    %v3552 = vpack.c.b16 %v3504, %v3488
    %v3553 = vpack.c.b16 %v3505, %v3489
    %v3554 = vpack.c.b16 %v3506, %v3490
    %v3555 = vpack.c.b16 %v3507, %v3491
    %v3556 = vpack.c.b16 %v3508, %v3492
    %v3557 = vpack.c.b16 %v3509, %v3493
    %v3558 = vpack.c.b16 %v3526, %v3510
    %v3559 = vpack.c.b16 %v3527, %v3511
    %v3560 = vpack.c.b16 %v3528, %v3512
    %v3561 = vpack.c.b16 %v3529, %v3513
    %v3562 = vpack.c.b16 %v3530, %v3514
    %v3563 = vpack.c.b16 %v3531, %v3515
    %v3564 = vpack.c.b16 %v3532, %v3516
    %v3565 = vpack.c.b16 %v3533, %v3517
    %v3566 = vpack.c.b16 %v3534, %v3518
    %v3567 = vpack.c.b16 %v3535, %v3519
    %v3568 = vpack.c.b16 %v3536, %v3520
    %v3569 = vpack.c.b16 %v3537, %v3521
    %v3570 = vpack.c.b16 %v3538, %v3522
    %v3571 = vpack.c.b16 %v3539, %v3523
    %v3572 = vpack.c.b16 %v3540, %v3524
    %v3573 = vpack.c.b16 %v3541, %v3525
    %3606 = vmatprep.subr.bf16.mxu0 %v3543
    %3607 = vmatpush1.bf16.xpose.msra.mxu0 %v3542
    %3608 = vmatprep.subr.bf16.mxu0 %v3559
    %3609 = vmatpush1.bf16.xpose.msra.mxu0 %v3558
    %3610 = vmatprep.subr.bf16.mxu0 0
    %3611 = vmatpush1.bf16.xpose.msra.mxu0 0
    %3612 = vmatprep.subr.bf16.mxu0 0
    %3613 = vmatpush1.bf16.xpose.msra.mxu0 0
    %3614 = vmatprep.subr.bf16.mxu0 0
    %3615 = vmatpush1.bf16.xpose.msra.mxu0 0
    %3616 = vmatprep.subr.bf16.mxu0 0
    %3617 = vmatpush1.bf16.xpose.msra.mxu0 0
    %3618 = vmatprep.subr.bf16.mxu0 0
    %3619 = vmatpush1.bf16.xpose.msra.mxu0 0
    %3620 = vmatprep.subr.bf16.mxu0 0
    %3621 = vmatpush1.bf16.xpose.msra.mxu0 0
    %3622 = vmatprep.subr.bf16.mxu0 0
    %3623 = vmatpush1.bf16.xpose.msra.mxu0 0
    %3624 = vmatprep.subr.bf16.mxu0 0
    %3625 = vmatpush1.bf16.xpose.msra.mxu0 0
    %3626 = vmatprep.subr.bf16.mxu0 0
    %3627 = vmatpush1.bf16.xpose.msra.mxu0 0
    %3628 = vmatprep.subr.bf16.mxu0 0
    %3629 = vmatpush1.bf16.xpose.msra.mxu0 0
    %3630 = vmatprep.subr.bf16.mxu0 0
    %3631 = vmatpush1.bf16.xpose.msra.mxu0 0
    %3632 = vmatprep.subr.bf16.mxu0 0
    %3633 = vmatpush1.bf16.xpose.msra.mxu0 0
    %3634 = vmatprep.subr.bf16.mxu0 0
    %3635 = vmatpush1.bf16.xpose.msra.mxu0 0
    %3636 = vmatprep.subr.bf16.mxu0 0
    %3637 = vmatpush1.bf16.xpose.msra.mxu0 0
    %3638 = vmatprep.mubr.bf16.mxu0 %v3427
    %3639 = vmatmul.mubr.bf16.gmra.mrb[0].mxu0 %v3426
    %v3640 = vpop.f32.mrb[0].mxu0
    %v3641 = vadd.f32 %v3445, %v3640
    %v3642 = vpop.f32.mrb[0].mxu0
    %v3643 = vpop.f32.mrb[0].mxu0
    %v3644 = vadd.f32 %v3445, %v3643
    %v3645 = vpop.f32.mrb[0].mxu0
    %3646 = vdwg.mxu0
    %3647 = vmatprep.subr.bf16.mxu0 %v3545
    %3648 = vmatpush1.bf16.xpose.msra.mxu0 %v3544
    %3649 = vmatprep.subr.bf16.mxu0 %v3561
    %3650 = vmatpush1.bf16.xpose.msra.mxu0 %v3560
    %3651 = vmatprep.subr.bf16.mxu0 0
    %3652 = vmatpush1.bf16.xpose.msra.mxu0 0
    %3653 = vmatprep.subr.bf16.mxu0 0
    %3654 = vmatpush1.bf16.xpose.msra.mxu0 0
    %3655 = vmatprep.subr.bf16.mxu0 0
    %3656 = vmatpush1.bf16.xpose.msra.mxu0 0
    %3657 = vmatprep.subr.bf16.mxu0 0
    %3658 = vmatpush1.bf16.xpose.msra.mxu0 0
    %3659 = vmatprep.subr.bf16.mxu0 0
    %3660 = vmatpush1.bf16.xpose.msra.mxu0 0
    %3661 = vmatprep.subr.bf16.mxu0 0
    %3662 = vmatpush1.bf16.xpose.msra.mxu0 0
    %3663 = vmatprep.subr.bf16.mxu0 0
    %3664 = vmatpush1.bf16.xpose.msra.mxu0 0
    %3665 = vmatprep.subr.bf16.mxu0 0
    %3666 = vmatpush1.bf16.xpose.msra.mxu0 0
    %3667 = vmatprep.subr.bf16.mxu0 0
    %3668 = vmatpush1.bf16.xpose.msra.mxu0 0
    %3669 = vmatprep.subr.bf16.mxu0 0
    %3670 = vmatpush1.bf16.xpose.msra.mxu0 0
    %3671 = vmatprep.subr.bf16.mxu0 0
    %3672 = vmatpush1.bf16.xpose.msra.mxu0 0
    %3673 = vmatprep.subr.bf16.mxu0 0
    %3674 = vmatpush1.bf16.xpose.msra.mxu0 0
    %3675 = vmatprep.subr.bf16.mxu0 0
    %3676 = vmatpush1.bf16.xpose.msra.mxu0 0
    %3677 = vmatprep.subr.bf16.mxu0 0
    %3678 = vmatpush1.bf16.xpose.msra.mxu0 0
    %3679 = vmatprep.mubr.bf16.mxu0 %v3429
    %3680 = vmatmul.mubr.bf16.gmra.mrb[0].mxu0 %v3428
    %v3681 = vpop.f32.mrb[0].mxu0
    %v3682 = vadd.f32 %v3641, %v3681
    %v3683 = vpop.f32.mrb[0].mxu0
    %v3684 = vpop.f32.mrb[0].mxu0
    %v3685 = vadd.f32 %v3644, %v3684
    %v3686 = vpop.f32.mrb[0].mxu0
    %3687 = vdwg.mxu0
    %3688 = vmatprep.subr.bf16.mxu0 %v3547
    %3689 = vmatpush1.bf16.xpose.msra.mxu0 %v3546
    %3690 = vmatprep.subr.bf16.mxu0 %v3563
    %3691 = vmatpush1.bf16.xpose.msra.mxu0 %v3562
    %3692 = vmatprep.subr.bf16.mxu0 0
    %3693 = vmatpush1.bf16.xpose.msra.mxu0 0
    %3694 = vmatprep.subr.bf16.mxu0 0
    %3695 = vmatpush1.bf16.xpose.msra.mxu0 0
    %3696 = vmatprep.subr.bf16.mxu0 0
    %3697 = vmatpush1.bf16.xpose.msra.mxu0 0
    %3698 = vmatprep.subr.bf16.mxu0 0
    %3699 = vmatpush1.bf16.xpose.msra.mxu0 0
    %3700 = vmatprep.subr.bf16.mxu0 0
    %3701 = vmatpush1.bf16.xpose.msra.mxu0 0
    %3702 = vmatprep.subr.bf16.mxu0 0
    %3703 = vmatpush1.bf16.xpose.msra.mxu0 0
    %3704 = vmatprep.subr.bf16.mxu0 0
    %3705 = vmatpush1.bf16.xpose.msra.mxu0 0
    %3706 = vmatprep.subr.bf16.mxu0 0
    %3707 = vmatpush1.bf16.xpose.msra.mxu0 0
    %3708 = vmatprep.subr.bf16.mxu0 0
    %3709 = vmatpush1.bf16.xpose.msra.mxu0 0
    %3710 = vmatprep.subr.bf16.mxu0 0
    %3711 = vmatpush1.bf16.xpose.msra.mxu0 0
    %3712 = vmatprep.subr.bf16.mxu0 0
    %3713 = vmatpush1.bf16.xpose.msra.mxu0 0
    %3714 = vmatprep.subr.bf16.mxu0 0
    %3715 = vmatpush1.bf16.xpose.msra.mxu0 0
    %3716 = vmatprep.subr.bf16.mxu0 0
    %3717 = vmatpush1.bf16.xpose.msra.mxu0 0
    %3718 = vmatprep.subr.bf16.mxu0 0
    %3719 = vmatpush1.bf16.xpose.msra.mxu0 0
    %3720 = vmatprep.mubr.bf16.mxu0 %v3431
    %3721 = vmatmul.mubr.bf16.gmra.mrb[0].mxu0 %v3430
    %v3722 = vpop.f32.mrb[0].mxu0
    %v3723 = vadd.f32 %v3682, %v3722
    %v3724 = vpop.f32.mrb[0].mxu0
    %v3725 = vpop.f32.mrb[0].mxu0
    %v3726 = vadd.f32 %v3685, %v3725
    %v3727 = vpop.f32.mrb[0].mxu0
    %3728 = vdwg.mxu0
    %3729 = vmatprep.subr.bf16.mxu0 %v3549
    %3730 = vmatpush1.bf16.xpose.msra.mxu0 %v3548
    %3731 = vmatprep.subr.bf16.mxu0 %v3565
    %3732 = vmatpush1.bf16.xpose.msra.mxu0 %v3564
    %3733 = vmatprep.subr.bf16.mxu0 0
    %3734 = vmatpush1.bf16.xpose.msra.mxu0 0
    %3735 = vmatprep.subr.bf16.mxu0 0
    %3736 = vmatpush1.bf16.xpose.msra.mxu0 0
    %3737 = vmatprep.subr.bf16.mxu0 0
    %3738 = vmatpush1.bf16.xpose.msra.mxu0 0
    %3739 = vmatprep.subr.bf16.mxu0 0
    %3740 = vmatpush1.bf16.xpose.msra.mxu0 0
    %3741 = vmatprep.subr.bf16.mxu0 0
    %3742 = vmatpush1.bf16.xpose.msra.mxu0 0
    %3743 = vmatprep.subr.bf16.mxu0 0
    %3744 = vmatpush1.bf16.xpose.msra.mxu0 0
    %3745 = vmatprep.subr.bf16.mxu0 0
    %3746 = vmatpush1.bf16.xpose.msra.mxu0 0
    %3747 = vmatprep.subr.bf16.mxu0 0
    %3748 = vmatpush1.bf16.xpose.msra.mxu0 0
    %3749 = vmatprep.subr.bf16.mxu0 0
    %3750 = vmatpush1.bf16.xpose.msra.mxu0 0
    %3751 = vmatprep.subr.bf16.mxu0 0
    %3752 = vmatpush1.bf16.xpose.msra.mxu0 0
    %3753 = vmatprep.subr.bf16.mxu0 0
    %3754 = vmatpush1.bf16.xpose.msra.mxu0 0
    %3755 = vmatprep.subr.bf16.mxu0 0
    %3756 = vmatpush1.bf16.xpose.msra.mxu0 0
    %3757 = vmatprep.subr.bf16.mxu0 0
    %3758 = vmatpush1.bf16.xpose.msra.mxu0 0
    %3759 = vmatprep.subr.bf16.mxu0 0
    %3760 = vmatpush1.bf16.xpose.msra.mxu0 0
    %3761 = vmatprep.mubr.bf16.mxu0 %v3433
    %3762 = vmatmul.mubr.bf16.gmra.mrb[0].mxu0 %v3432
    %v3763 = vpop.f32.mrb[0].mxu0
    %v3764 = vadd.f32 %v3723, %v3763
    %v3765 = vpop.f32.mrb[0].mxu0
    %v3766 = vpop.f32.mrb[0].mxu0
    %v3767 = vadd.f32 %v3726, %v3766
    %v3768 = vpop.f32.mrb[0].mxu0
    %3769 = vdwg.mxu0
    %3770 = vmatprep.subr.bf16.mxu0 %v3551
    %3771 = vmatpush1.bf16.xpose.msra.mxu0 %v3550
    %3772 = vmatprep.subr.bf16.mxu0 %v3567
    %3773 = vmatpush1.bf16.xpose.msra.mxu0 %v3566
    %3774 = vmatprep.subr.bf16.mxu0 0
    %3775 = vmatpush1.bf16.xpose.msra.mxu0 0
    %3776 = vmatprep.subr.bf16.mxu0 0
    %3777 = vmatpush1.bf16.xpose.msra.mxu0 0
    %3778 = vmatprep.subr.bf16.mxu0 0
    %3779 = vmatpush1.bf16.xpose.msra.mxu0 0
    %3780 = vmatprep.subr.bf16.mxu0 0
    %3781 = vmatpush1.bf16.xpose.msra.mxu0 0
    %3782 = vmatprep.subr.bf16.mxu0 0
    %3783 = vmatpush1.bf16.xpose.msra.mxu0 0
    %3784 = vmatprep.subr.bf16.mxu0 0
    %3785 = vmatpush1.bf16.xpose.msra.mxu0 0
    %3786 = vmatprep.subr.bf16.mxu0 0
    %3787 = vmatpush1.bf16.xpose.msra.mxu0 0
    %3788 = vmatprep.subr.bf16.mxu0 0
    %3789 = vmatpush1.bf16.xpose.msra.mxu0 0
    %3790 = vmatprep.subr.bf16.mxu0 0
    %3791 = vmatpush1.bf16.xpose.msra.mxu0 0
    %3792 = vmatprep.subr.bf16.mxu0 0
    %3793 = vmatpush1.bf16.xpose.msra.mxu0 0
    %3794 = vmatprep.subr.bf16.mxu0 0
    %3795 = vmatpush1.bf16.xpose.msra.mxu0 0
    %3796 = vmatprep.subr.bf16.mxu0 0
    %3797 = vmatpush1.bf16.xpose.msra.mxu0 0
    %3798 = vmatprep.subr.bf16.mxu0 0
    %3799 = vmatpush1.bf16.xpose.msra.mxu0 0
    %3800 = vmatprep.subr.bf16.mxu0 0
    %3801 = vmatpush1.bf16.xpose.msra.mxu0 0
    %3802 = vmatprep.mubr.bf16.mxu0 %v3435
    %3803 = vmatmul.mubr.bf16.gmra.mrb[0].mxu0 %v3434
    %v3804 = vpop.f32.mrb[0].mxu0
    %v3805 = vadd.f32 %v3764, %v3804
    %v3806 = vpop.f32.mrb[0].mxu0
    %v3807 = vpop.f32.mrb[0].mxu0
    %v3808 = vadd.f32 %v3767, %v3807
    %v3809 = vpop.f32.mrb[0].mxu0
    %3810 = vdwg.mxu0
    %3811 = vmatprep.subr.bf16.mxu0 %v3553
    %3812 = vmatpush1.bf16.xpose.msra.mxu0 %v3552
    %3813 = vmatprep.subr.bf16.mxu0 %v3569
    %3814 = vmatpush1.bf16.xpose.msra.mxu0 %v3568
    %3815 = vmatprep.subr.bf16.mxu0 0
    %3816 = vmatpush1.bf16.xpose.msra.mxu0 0
    %3817 = vmatprep.subr.bf16.mxu0 0
    %3818 = vmatpush1.bf16.xpose.msra.mxu0 0
    %3819 = vmatprep.subr.bf16.mxu0 0
    %3820 = vmatpush1.bf16.xpose.msra.mxu0 0
    %3821 = vmatprep.subr.bf16.mxu0 0
    %3822 = vmatpush1.bf16.xpose.msra.mxu0 0
    %3823 = vmatprep.subr.bf16.mxu0 0
    %3824 = vmatpush1.bf16.xpose.msra.mxu0 0
    %3825 = vmatprep.subr.bf16.mxu0 0
    %3826 = vmatpush1.bf16.xpose.msra.mxu0 0
    %3827 = vmatprep.subr.bf16.mxu0 0
    %3828 = vmatpush1.bf16.xpose.msra.mxu0 0
    %3829 = vmatprep.subr.bf16.mxu0 0
    %3830 = vmatpush1.bf16.xpose.msra.mxu0 0
    %3831 = vmatprep.subr.bf16.mxu0 0
    %3832 = vmatpush1.bf16.xpose.msra.mxu0 0
    %3833 = vmatprep.subr.bf16.mxu0 0
    %3834 = vmatpush1.bf16.xpose.msra.mxu0 0
    %3835 = vmatprep.subr.bf16.mxu0 0
    %3836 = vmatpush1.bf16.xpose.msra.mxu0 0
    %3837 = vmatprep.subr.bf16.mxu0 0
    %3838 = vmatpush1.bf16.xpose.msra.mxu0 0
    %3839 = vmatprep.subr.bf16.mxu0 0
    %3840 = vmatpush1.bf16.xpose.msra.mxu0 0
    %3841 = vmatprep.subr.bf16.mxu0 0
    %3842 = vmatpush1.bf16.xpose.msra.mxu0 0
    %3843 = vmatprep.mubr.bf16.mxu0 %v3437
    %3844 = vmatmul.mubr.bf16.gmra.mrb[0].mxu0 %v3436
    %v3845 = vpop.f32.mrb[0].mxu0
    %v3846 = vadd.f32 %v3805, %v3845
    %v3847 = vpop.f32.mrb[0].mxu0
    %v3848 = vpop.f32.mrb[0].mxu0
    %v3849 = vadd.f32 %v3808, %v3848
    %v3850 = vpop.f32.mrb[0].mxu0
    %3851 = vdwg.mxu0
    %3852 = vmatprep.subr.bf16.mxu0 %v3555
    %3853 = vmatpush1.bf16.xpose.msra.mxu0 %v3554
    %3854 = vmatprep.subr.bf16.mxu0 %v3571
    %3855 = vmatpush1.bf16.xpose.msra.mxu0 %v3570
    %3856 = vmatprep.subr.bf16.mxu0 0
    %3857 = vmatpush1.bf16.xpose.msra.mxu0 0
    %3858 = vmatprep.subr.bf16.mxu0 0
    %3859 = vmatpush1.bf16.xpose.msra.mxu0 0
    %3860 = vmatprep.subr.bf16.mxu0 0
    %3861 = vmatpush1.bf16.xpose.msra.mxu0 0
    %3862 = vmatprep.subr.bf16.mxu0 0
    %3863 = vmatpush1.bf16.xpose.msra.mxu0 0
    %3864 = vmatprep.subr.bf16.mxu0 0
    %3865 = vmatpush1.bf16.xpose.msra.mxu0 0
    %3866 = vmatprep.subr.bf16.mxu0 0
    %3867 = vmatpush1.bf16.xpose.msra.mxu0 0
    %3868 = vmatprep.subr.bf16.mxu0 0
    %3869 = vmatpush1.bf16.xpose.msra.mxu0 0
    %3870 = vmatprep.subr.bf16.mxu0 0
    %3871 = vmatpush1.bf16.xpose.msra.mxu0 0
    %3872 = vmatprep.subr.bf16.mxu0 0
    %3873 = vmatpush1.bf16.xpose.msra.mxu0 0
    %3874 = vmatprep.subr.bf16.mxu0 0
    %3875 = vmatpush1.bf16.xpose.msra.mxu0 0
    %3876 = vmatprep.subr.bf16.mxu0 0
    %3877 = vmatpush1.bf16.xpose.msra.mxu0 0
    %3878 = vmatprep.subr.bf16.mxu0 0
    %3879 = vmatpush1.bf16.xpose.msra.mxu0 0
    %3880 = vmatprep.subr.bf16.mxu0 0
    %3881 = vmatpush1.bf16.xpose.msra.mxu0 0
    %3882 = vmatprep.subr.bf16.mxu0 0
    %3883 = vmatpush1.bf16.xpose.msra.mxu0 0
    %3884 = vmatprep.mubr.bf16.mxu0 %v3439
    %3885 = vmatmul.mubr.bf16.gmra.mrb[0].mxu0 %v3438
    %v3886 = vpop.f32.mrb[0].mxu0
    %v3887 = vadd.f32 %v3846, %v3886
    %v3888 = vpop.f32.mrb[0].mxu0
    %v3889 = vpop.f32.mrb[0].mxu0
    %v3890 = vadd.f32 %v3849, %v3889
    %v3891 = vpop.f32.mrb[0].mxu0
    %3892 = vdwg.mxu0
    %3893 = vmatprep.subr.bf16.mxu0 %v3557
    %3894 = vmatpush1.bf16.xpose.msra.mxu0 %v3556
    %3895 = vmatprep.subr.bf16.mxu0 %v3573
    %3896 = vmatpush1.bf16.xpose.msra.mxu0 %v3572
    %3897 = vmatprep.subr.bf16.mxu0 0
    %3898 = vmatpush1.bf16.xpose.msra.mxu0 0
    %3899 = vmatprep.subr.bf16.mxu0 0
    %3900 = vmatpush1.bf16.xpose.msra.mxu0 0
    %3901 = vmatprep.subr.bf16.mxu0 0
    %3902 = vmatpush1.bf16.xpose.msra.mxu0 0
    %3903 = vmatprep.subr.bf16.mxu0 0
    %3904 = vmatpush1.bf16.xpose.msra.mxu0 0
    %3905 = vmatprep.subr.bf16.mxu0 0
    %3906 = vmatpush1.bf16.xpose.msra.mxu0 0
    %3907 = vmatprep.subr.bf16.mxu0 0
    %3908 = vmatpush1.bf16.xpose.msra.mxu0 0
    %3909 = vmatprep.subr.bf16.mxu0 0
    %3910 = vmatpush1.bf16.xpose.msra.mxu0 0
    %3911 = vmatprep.subr.bf16.mxu0 0
    %3912 = vmatpush1.bf16.xpose.msra.mxu0 0
    %3913 = vmatprep.subr.bf16.mxu0 0
    %3914 = vmatpush1.bf16.xpose.msra.mxu0 0
    %3915 = vmatprep.subr.bf16.mxu0 0
    %3916 = vmatpush1.bf16.xpose.msra.mxu0 0
    %3917 = vmatprep.subr.bf16.mxu0 0
    %3918 = vmatpush1.bf16.xpose.msra.mxu0 0
    %3919 = vmatprep.subr.bf16.mxu0 0
    %3920 = vmatpush1.bf16.xpose.msra.mxu0 0
    %3921 = vmatprep.subr.bf16.mxu0 0
    %3922 = vmatpush1.bf16.xpose.msra.mxu0 0
    %3923 = vmatprep.subr.bf16.mxu0 0
    %3924 = vmatpush1.bf16.xpose.msra.mxu0 0
    %3925 = vmatprep.mubr.bf16.mxu0 %v3441
    %3926 = vmatmul.mubr.bf16.gmra.mrb[0].mxu0 %v3440
    %v3927 = vpop.f32.mrb[0].mxu0
    %v3928 = vadd.f32 %v3887, %v3927
    %v3929 = vpop.f32.mrb[0].mxu0
    %v3930 = vpop.f32.mrb[0].mxu0
    %v3931 = vadd.f32 %v3890, %v3930
    %v3932 = vpop.f32.mrb[0].mxu0
    %3933 = vdwg.mxu0
    %v3934 = vadd.f32 %v1872, %v3928
    %v3935 = vadd.f32 %v1873, %v3931
    %v3936 = vsel %vm966, %v3934, 0.0
    %3937 = vadd.xlane.f32.xlu0 %v3936
    %v3938 = vpop.xlane.xlu0 %3937
    %v3939 = vsel %vm966, %v3935, 0.0
    %3940 = vadd.xlane.f32.xlu0 %v3939
    %v3941 = vpop.xlane.xlu0 %3940
    %v3942 = vmul.f32 %v3938, %v1837
    %v3943 = vmul.f32 %v3941, %v1837
    %v3944 = vmul.f32 %v3934, %v3934
    %v3945 = vmul.f32 %v3935, %v3935
    %v3946 = vsel %vm966, %v3944, 0.0
    %3947 = vadd.xlane.f32.xlu0 %v3946
    %v3948 = vpop.xlane.xlu0 %3947
    %v3949 = vsel %vm966, %v3945, 0.0
    %3950 = vadd.xlane.f32.xlu0 %v3949
    %v3951 = vpop.xlane.xlu0 %3950
    %v3952 = vmul.f32 %v3948, %v1837
    %v3953 = vmul.f32 %v3951, %v1837
    %v3954 = vmul.f32 %v3942, %v3942
    %v3955 = vmul.f32 %v3943, %v3943
    %v3956 = vsub.f32 %v3952, %v3954
    %v3957 = vsub.f32 %v3953, %v3955
    %v3958 = vsub.f32 %v3934, %v3942
    %v3959 = vsub.f32 %v3935, %v3943
    %v3960 = vadd.f32 %v3956, 1e-05
    %v3961 = vadd.f32 %v3957, 1e-05
    %v3962 = vrsqrt.pop %v3960
    %v3963 = vrsqrt.pop %v3961
    %v3964 = vmul.f32 %v3958, %v3962
    %v3965 = vmul.f32 %v3959, %v3963
    %v3966 = vlaneseq
    %v3967 = vshrl.u32 %v3966, 7
    %v3968 = vsub.s32 0, %v3967
    %v3969 = vrot.slane %v749, %v3968
    %v3970 = vmul.f32 %v3964, %v3969
    %v3971 = vmul.f32 %v3965, %v3969
    %v3972 = vlaneseq
    %v3973 = vshrl.u32 %v3972, 7
    %v3974 = vsub.s32 0, %v3973
    %v3975 = vrot.slane %v750, %v3974
    %v3976 = vadd.f32 %v3970, %v3975
    %v3977 = vadd.f32 %v3971, %v3975
    %v3978 = vpack.c.bf16 %v3977, %v3976
    %v3979 = vlaneseq
    %v3980 = vshrl.u32 %v3979, 7
    %v3981 = vsub.s32 1, %v3980
    %v3982 = vrot.slane %v138, %v3981
    %v3987 = vunpack.c.l.b16 %v134
    %v3988 = vunpack.c.l.b16 %v135
    %v3989 = vunpack.c.l.b16 %v136
    %v3990 = vunpack.c.l.b16 %v137
    %v3991 = vpack.c.b16 %v3988, %v3987
    %v3992 = vpack.c.b16 %v3990, %v3989
    %v3994 = vsel %vm966, %v3978, 0
    %v3997 = vsel %vm966, %v3991, 0
    %v4000 = vsel %vm966, %v3992, 0
    %4002 = vmatprep.subr.bf16.mxu0 0
    %4003 = vmatpush1.bf16.xpose.msra.mxu0 %v3997
    %4004 = vmatprep.subr.bf16.mxu0 0
    %4005 = vmatpush1.bf16.xpose.msra.mxu0 %v4000
    %4006 = vmatprep.subr.bf16.mxu0 0
    %4007 = vmatpush1.bf16.xpose.msra.mxu0 0
    %4008 = vmatprep.subr.bf16.mxu0 0
    %4009 = vmatpush1.bf16.xpose.msra.mxu0 0
    %4010 = vmatprep.subr.bf16.mxu0 0
    %4011 = vmatpush1.bf16.xpose.msra.mxu0 0
    %4012 = vmatprep.subr.bf16.mxu0 0
    %4013 = vmatpush1.bf16.xpose.msra.mxu0 0
    %4014 = vmatprep.subr.bf16.mxu0 0
    %4015 = vmatpush1.bf16.xpose.msra.mxu0 0
    %4016 = vmatprep.subr.bf16.mxu0 0
    %4017 = vmatpush1.bf16.xpose.msra.mxu0 0
    %4018 = vmatprep.subr.bf16.mxu0 0
    %4019 = vmatpush1.bf16.xpose.msra.mxu0 0
    %4020 = vmatprep.subr.bf16.mxu0 0
    %4021 = vmatpush1.bf16.xpose.msra.mxu0 0
    %4022 = vmatprep.subr.bf16.mxu0 0
    %4023 = vmatpush1.bf16.xpose.msra.mxu0 0
    %4024 = vmatprep.subr.bf16.mxu0 0
    %4025 = vmatpush1.bf16.xpose.msra.mxu0 0
    %4026 = vmatprep.subr.bf16.mxu0 0
    %4027 = vmatpush1.bf16.xpose.msra.mxu0 0
    %4028 = vmatprep.subr.bf16.mxu0 0
    %4029 = vmatpush1.bf16.xpose.msra.mxu0 0
    %4030 = vmatprep.subr.bf16.mxu0 0
    %4031 = vmatpush1.bf16.xpose.msra.mxu0 0
    %4032 = vmatprep.subr.bf16.mxu0 0
    %4033 = vmatpush1.bf16.xpose.msra.mxu0 0
    %4034 = vmatprep.mubr.bf16.mxu0 0
    %4035 = vmatmul.mubr.bf16.gmra.mrb[0].mxu0 %v3994
    %v4036 = vpop.f32.mrb[0].mxu0
    %v4037 = vadd.f32 %v3982, %v4036
    %v4038 = vpop.f32.mrb[0].mxu0
    %v4039 = vpop.f32.mrb[0].mxu0
    %v4040 = vadd.f32 %v3982, %v4039
    %v4041 = vpop.f32.mrb[0].mxu0
    %4042 = vdwg.mxu0
    %v4043 = vlaneseq
    %v4044 = vshrl.u32 %v4043, 7
    %v4045 = vsub.s32 1, %v4044
    %v4046 = vrot.slane %v147, %v4045
    %v4051 = vunpack.c.l.b16 %v143
    %v4052 = vunpack.c.l.b16 %v144
    %v4053 = vunpack.c.l.b16 %v145
    %v4054 = vunpack.c.l.b16 %v146
    %v4055 = vpack.c.b16 %v4052, %v4051
    %v4056 = vpack.c.b16 %v4054, %v4053
    %v4058 = vsel %vm966, %v4055, 0
    %v4061 = vsel %vm966, %v4056, 0
    %4063 = vmatprep.subr.bf16.mxu0 0
    %4064 = vmatpush1.bf16.xpose.msra.mxu0 %v4058
    %4065 = vmatprep.subr.bf16.mxu0 0
    %4066 = vmatpush1.bf16.xpose.msra.mxu0 %v4061
    %4067 = vmatprep.subr.bf16.mxu0 0
    %4068 = vmatpush1.bf16.xpose.msra.mxu0 0
    %4069 = vmatprep.subr.bf16.mxu0 0
    %4070 = vmatpush1.bf16.xpose.msra.mxu0 0
    %4071 = vmatprep.subr.bf16.mxu0 0
    %4072 = vmatpush1.bf16.xpose.msra.mxu0 0
    %4073 = vmatprep.subr.bf16.mxu0 0
    %4074 = vmatpush1.bf16.xpose.msra.mxu0 0
    %4075 = vmatprep.subr.bf16.mxu0 0
    %4076 = vmatpush1.bf16.xpose.msra.mxu0 0
    %4077 = vmatprep.subr.bf16.mxu0 0
    %4078 = vmatpush1.bf16.xpose.msra.mxu0 0
    %4079 = vmatprep.subr.bf16.mxu0 0
    %4080 = vmatpush1.bf16.xpose.msra.mxu0 0
    %4081 = vmatprep.subr.bf16.mxu0 0
    %4082 = vmatpush1.bf16.xpose.msra.mxu0 0
    %4083 = vmatprep.subr.bf16.mxu0 0
    %4084 = vmatpush1.bf16.xpose.msra.mxu0 0
    %4085 = vmatprep.subr.bf16.mxu0 0
    %4086 = vmatpush1.bf16.xpose.msra.mxu0 0
    %4087 = vmatprep.subr.bf16.mxu0 0
    %4088 = vmatpush1.bf16.xpose.msra.mxu0 0
    %4089 = vmatprep.subr.bf16.mxu0 0
    %4090 = vmatpush1.bf16.xpose.msra.mxu0 0
    %4091 = vmatprep.subr.bf16.mxu0 0
    %4092 = vmatpush1.bf16.xpose.msra.mxu0 0
    %4093 = vmatprep.subr.bf16.mxu0 0
    %4094 = vmatpush1.bf16.xpose.msra.mxu0 0
    %4095 = vmatprep.mubr.bf16.mxu0 0
    %4096 = vmatmul.mubr.bf16.gmra.mrb[0].mxu0 %v3994
    %v4097 = vpop.f32.mrb[0].mxu0
    %v4098 = vadd.f32 %v4046, %v4097
    %v4099 = vpop.f32.mrb[0].mxu0
    %v4100 = vpop.f32.mrb[0].mxu0
    %v4101 = vadd.f32 %v4046, %v4100
    %v4102 = vpop.f32.mrb[0].mxu0
    %4103 = vdwg.mxu0
    %v4104 = vlaneseq
    %v4105 = vshrl.u32 %v4104, 7
    %v4106 = vsub.s32 1, %v4105
    %v4107 = vrot.slane %v156, %v4106
    %v4112 = vunpack.c.l.b16 %v152
    %v4113 = vunpack.c.l.b16 %v153
    %v4114 = vunpack.c.l.b16 %v154
    %v4115 = vunpack.c.l.b16 %v155
    %v4116 = vpack.c.b16 %v4113, %v4112
    %v4117 = vpack.c.b16 %v4115, %v4114
    %v4119 = vsel %vm966, %v4116, 0
    %v4122 = vsel %vm966, %v4117, 0
    %4124 = vmatprep.subr.bf16.mxu0 0
    %4125 = vmatpush1.bf16.xpose.msra.mxu0 %v4119
    %4126 = vmatprep.subr.bf16.mxu0 0
    %4127 = vmatpush1.bf16.xpose.msra.mxu0 %v4122
    %4128 = vmatprep.subr.bf16.mxu0 0
    %4129 = vmatpush1.bf16.xpose.msra.mxu0 0
    %4130 = vmatprep.subr.bf16.mxu0 0
    %4131 = vmatpush1.bf16.xpose.msra.mxu0 0
    %4132 = vmatprep.subr.bf16.mxu0 0
    %4133 = vmatpush1.bf16.xpose.msra.mxu0 0
    %4134 = vmatprep.subr.bf16.mxu0 0
    %4135 = vmatpush1.bf16.xpose.msra.mxu0 0
    %4136 = vmatprep.subr.bf16.mxu0 0
    %4137 = vmatpush1.bf16.xpose.msra.mxu0 0
    %4138 = vmatprep.subr.bf16.mxu0 0
    %4139 = vmatpush1.bf16.xpose.msra.mxu0 0
    %4140 = vmatprep.subr.bf16.mxu0 0
    %4141 = vmatpush1.bf16.xpose.msra.mxu0 0
    %4142 = vmatprep.subr.bf16.mxu0 0
    %4143 = vmatpush1.bf16.xpose.msra.mxu0 0
    %4144 = vmatprep.subr.bf16.mxu0 0
    %4145 = vmatpush1.bf16.xpose.msra.mxu0 0
    %4146 = vmatprep.subr.bf16.mxu0 0
    %4147 = vmatpush1.bf16.xpose.msra.mxu0 0
    %4148 = vmatprep.subr.bf16.mxu0 0
    %4149 = vmatpush1.bf16.xpose.msra.mxu0 0
    %4150 = vmatprep.subr.bf16.mxu0 0
    %4151 = vmatpush1.bf16.xpose.msra.mxu0 0
    %4152 = vmatprep.subr.bf16.mxu0 0
    %4153 = vmatpush1.bf16.xpose.msra.mxu0 0
    %4154 = vmatprep.subr.bf16.mxu0 0
    %4155 = vmatpush1.bf16.xpose.msra.mxu0 0
    %4156 = vmatprep.mubr.bf16.mxu0 0
    %4157 = vmatmul.mubr.bf16.gmra.mrb[0].mxu0 %v3994
    %v4158 = vpop.f32.mrb[0].mxu0
    %v4159 = vadd.f32 %v4107, %v4158
    %v4160 = vpop.f32.mrb[0].mxu0
    %v4161 = vpop.f32.mrb[0].mxu0
    %v4162 = vadd.f32 %v4107, %v4161
    %v4163 = vpop.f32.mrb[0].mxu0
    %4164 = vdwg.mxu0
    %v4165 = vmul.f32 %v4037, 0.35355338
    %v4166 = vmul.f32 %v4040, 0.35355338
    %v4167 = vpack.c.bf16 %v4166, %v4165
    %v4168 = vpack.c.bf16 %v4101, %v4098
    %v4170 = vsel %vm1143, %v4167, 0
    %v4173 = vsel %vm1143, %v4168, 0
    %4175 = vmatprep.subr.bf16.mxu0 0
    %4176 = vmatpush1.bf16.xpose.msra.mxu0 %v4173
    %4177 = vmatprep.subr.bf16.mxu0 0
    %4178 = vmatpush1.bf16.xpose.msra.mxu0 0
    %4179 = vmatprep.subr.bf16.mxu0 0
    %4180 = vmatpush1.bf16.xpose.msra.mxu0 0
    %4181 = vmatprep.subr.bf16.mxu0 0
    %4182 = vmatpush1.bf16.xpose.msra.mxu0 0
    %4183 = vmatprep.subr.bf16.mxu0 0
    %4184 = vmatpush1.bf16.xpose.msra.mxu0 0
    %4185 = vmatprep.subr.bf16.mxu0 0
    %4186 = vmatpush1.bf16.xpose.msra.mxu0 0
    %4187 = vmatprep.subr.bf16.mxu0 0
    %4188 = vmatpush1.bf16.xpose.msra.mxu0 0
    %4189 = vmatprep.subr.bf16.mxu0 0
    %4190 = vmatpush1.bf16.xpose.msra.mxu0 0
    %4191 = vmatprep.subr.bf16.mxu0 0
    %4192 = vmatpush1.bf16.xpose.msra.mxu0 0
    %4193 = vmatprep.subr.bf16.mxu0 0
    %4194 = vmatpush1.bf16.xpose.msra.mxu0 0
    %4195 = vmatprep.subr.bf16.mxu0 0
    %4196 = vmatpush1.bf16.xpose.msra.mxu0 0
    %4197 = vmatprep.subr.bf16.mxu0 0
    %4198 = vmatpush1.bf16.xpose.msra.mxu0 0
    %4199 = vmatprep.subr.bf16.mxu0 0
    %4200 = vmatpush1.bf16.xpose.msra.mxu0 0
    %4201 = vmatprep.subr.bf16.mxu0 0
    %4202 = vmatpush1.bf16.xpose.msra.mxu0 0
    %4203 = vmatprep.subr.bf16.mxu0 0
    %4204 = vmatpush1.bf16.xpose.msra.mxu0 0
    %4205 = vmatprep.subr.bf16.mxu0 0
    %4206 = vmatpush1.bf16.xpose.msra.mxu0 0
    %4207 = vmatprep.mubr.bf16.mxu0 0
    %4208 = vmatmul.mubr.bf16.gmra.mrb[0].mxu0 %v4170
    %v4209 = vpop.f32.mrb[0].mxu0
    %v4210 = vadd.f32 %v128, %v4209
    %v4211 = vpop.f32.mrb[0].mxu0
    %v4212 = vpop.f32.mrb[0].mxu0
    %v4213 = vadd.f32 %v129, %v4212
    %v4214 = vpop.f32.mrb[0].mxu0
    %4215 = vdwg.mxu0
    %v4216 = vsel %vm1191, %v4210, -inf
    %4217 = vmax.xlane.f32.xlu0 %v4216
    %v4218 = vpop.xlane.xlu0 %4217
    %v4219 = vsel %vm1191, %v4213, -inf
    %4220 = vmax.xlane.f32.xlu0 %v4219
    %v4221 = vpop.xlane.xlu0 %4220
    %v4222 = vsub.f32 %v4210, %v4218
    %v4223 = vsub.f32 %v4213, %v4221
    %v4224 = vmul.f32 %v4222, 1.442695
    %v4225 = vpow.pop %v4224
    %v4226 = vmul.f32 %v4223, 1.442695
    %v4227 = vpow.pop %v4226
    %v4228 = vsel %vm1191, %v4225, 0.0
    %4229 = vadd.xlane.f32.xlu0 %v4228
    %v4230 = vpop.xlane.xlu0 %4229
    %v4231 = vsel %vm1191, %v4227, 0.0
    %4232 = vadd.xlane.f32.xlu0 %v4231
    %v4233 = vpop.xlane.xlu0 %4232
    %v4234 = vrcp.pop %v4230
    %v4235 = vrcp.pop %v4233
    %v4236 = vmul.f32 %v4225, %v4234
    %v4237 = vmul.f32 %v4227, %v4235
    %v4238 = vpack.c.bf16 %v4237, %v4236
    %v4239 = vpack.c.bf16 %v4162, %v4159
    %v4241 = vsel %vm1191, %v4238, 0
    %4243 = vmatprep.subr.bf16.mxu0 0
    %4244 = vmatpush1.bf16.msra.mxu0 %v4239
    %4245 = vmatprep.subr.bf16.mxu0 0
    %4246 = vmatpush1.bf16.msra.mxu0 0
    %4247 = vmatprep.subr.bf16.mxu0 0
    %4248 = vmatpush1.bf16.msra.mxu0 0
    %4249 = vmatprep.subr.bf16.mxu0 0
    %4250 = vmatpush1.bf16.msra.mxu0 0
    %4251 = vmatprep.subr.bf16.mxu0 0
    %4252 = vmatpush1.bf16.msra.mxu0 0
    %4253 = vmatprep.subr.bf16.mxu0 0
    %4254 = vmatpush1.bf16.msra.mxu0 0
    %4255 = vmatprep.subr.bf16.mxu0 0
    %4256 = vmatpush1.bf16.msra.mxu0 0
    %4257 = vmatprep.subr.bf16.mxu0 0
    %4258 = vmatpush1.bf16.msra.mxu0 0
    %4259 = vmatprep.subr.bf16.mxu0 0
    %4260 = vmatpush1.bf16.msra.mxu0 0
    %4261 = vmatprep.subr.bf16.mxu0 0
    %4262 = vmatpush1.bf16.msra.mxu0 0
    %4263 = vmatprep.subr.bf16.mxu0 0
    %4264 = vmatpush1.bf16.msra.mxu0 0
    %4265 = vmatprep.subr.bf16.mxu0 0
    %4266 = vmatpush1.bf16.msra.mxu0 0
    %4267 = vmatprep.subr.bf16.mxu0 0
    %4268 = vmatpush1.bf16.msra.mxu0 0
    %4269 = vmatprep.subr.bf16.mxu0 0
    %4270 = vmatpush1.bf16.msra.mxu0 0
    %4271 = vmatprep.subr.bf16.mxu0 0
    %4272 = vmatpush1.bf16.msra.mxu0 0
    %4273 = vmatprep.subr.bf16.mxu0 0
    %4274 = vmatpush1.bf16.msra.mxu0 0
    %4275 = vmatprep.mubr.bf16.mxu0 0
    %4276 = vmatmul.mubr.bf16.gmra.mrb[0].mxu0 %v4241
    %v4277 = vpop.f32.mrb[0].mxu0
    %v4278 = vadd.f32 0.0, %v4277
    %v4279 = vpop.f32.mrb[0].mxu0
    %v4280 = vpop.f32.mrb[0].mxu0
    %v4281 = vadd.f32 0.0, %v4280
    %v4282 = vpop.f32.mrb[0].mxu0
    %4283 = vdwg.mxu0
    %v4284 = vpack.c.bf16 %v4281, %v4278
    %4286 = vrot.lane.b32.xlu0 %v4167, 120
    %v4287 = vpop.permute.xlu0 %4286
    %4289 = vrot.lane.b32.xlu0 %v4168, 120
    %v4290 = vpop.permute.xlu0 %4289
    %v4292 = vsel %vm1143, %v4287, 0
    %v4295 = vsel %vm1143, %v4290, 0
    %4297 = vmatprep.subr.bf16.mxu0 0
    %4298 = vmatpush1.bf16.xpose.msra.mxu0 %v4295
    %4299 = vmatprep.subr.bf16.mxu0 0
    %4300 = vmatpush1.bf16.xpose.msra.mxu0 0
    %4301 = vmatprep.subr.bf16.mxu0 0
    %4302 = vmatpush1.bf16.xpose.msra.mxu0 0
    %4303 = vmatprep.subr.bf16.mxu0 0
    %4304 = vmatpush1.bf16.xpose.msra.mxu0 0
    %4305 = vmatprep.subr.bf16.mxu0 0
    %4306 = vmatpush1.bf16.xpose.msra.mxu0 0
    %4307 = vmatprep.subr.bf16.mxu0 0
    %4308 = vmatpush1.bf16.xpose.msra.mxu0 0
    %4309 = vmatprep.subr.bf16.mxu0 0
    %4310 = vmatpush1.bf16.xpose.msra.mxu0 0
    %4311 = vmatprep.subr.bf16.mxu0 0
    %4312 = vmatpush1.bf16.xpose.msra.mxu0 0
    %4313 = vmatprep.subr.bf16.mxu0 0
    %4314 = vmatpush1.bf16.xpose.msra.mxu0 0
    %4315 = vmatprep.subr.bf16.mxu0 0
    %4316 = vmatpush1.bf16.xpose.msra.mxu0 0
    %4317 = vmatprep.subr.bf16.mxu0 0
    %4318 = vmatpush1.bf16.xpose.msra.mxu0 0
    %4319 = vmatprep.subr.bf16.mxu0 0
    %4320 = vmatpush1.bf16.xpose.msra.mxu0 0
    %4321 = vmatprep.subr.bf16.mxu0 0
    %4322 = vmatpush1.bf16.xpose.msra.mxu0 0
    %4323 = vmatprep.subr.bf16.mxu0 0
    %4324 = vmatpush1.bf16.xpose.msra.mxu0 0
    %4325 = vmatprep.subr.bf16.mxu0 0
    %4326 = vmatpush1.bf16.xpose.msra.mxu0 0
    %4327 = vmatprep.subr.bf16.mxu0 0
    %4328 = vmatpush1.bf16.xpose.msra.mxu0 0
    %4329 = vmatprep.mubr.bf16.mxu0 0
    %4330 = vmatmul.mubr.bf16.gmra.mrb[0].mxu0 %v4292
    %v4331 = vpop.f32.mrb[0].mxu0
    %v4332 = vadd.f32 %v128, %v4331
    %v4333 = vpop.f32.mrb[0].mxu0
    %v4334 = vpop.f32.mrb[0].mxu0
    %v4335 = vadd.f32 %v129, %v4334
    %v4336 = vpop.f32.mrb[0].mxu0
    %4337 = vdwg.mxu0
    %v4338 = vsel %vm1191, %v4332, -inf
    %4339 = vmax.xlane.f32.xlu0 %v4338
    %v4340 = vpop.xlane.xlu0 %4339
    %v4341 = vsel %vm1191, %v4335, -inf
    %4342 = vmax.xlane.f32.xlu0 %v4341
    %v4343 = vpop.xlane.xlu0 %4342
    %v4344 = vsub.f32 %v4332, %v4340
    %v4345 = vsub.f32 %v4335, %v4343
    %v4346 = vmul.f32 %v4344, 1.442695
    %v4347 = vpow.pop %v4346
    %v4348 = vmul.f32 %v4345, 1.442695
    %v4349 = vpow.pop %v4348
    %v4350 = vsel %vm1191, %v4347, 0.0
    %4351 = vadd.xlane.f32.xlu0 %v4350
    %v4352 = vpop.xlane.xlu0 %4351
    %v4353 = vsel %vm1191, %v4349, 0.0
    %4354 = vadd.xlane.f32.xlu0 %v4353
    %v4355 = vpop.xlane.xlu0 %4354
    %v4356 = vrcp.pop %v4352
    %v4357 = vrcp.pop %v4355
    %v4358 = vmul.f32 %v4347, %v4356
    %v4359 = vmul.f32 %v4349, %v4357
    %v4360 = vpack.c.bf16 %v4359, %v4358
    %4362 = vrot.lane.b32.xlu0 %v4239, 120
    %v4363 = vpop.permute.xlu0 %4362
    %v4366 = vsel %vm1191, %v4360, 0
    %4368 = vmatprep.subr.bf16.mxu0 0
    %4369 = vmatpush1.bf16.msra.mxu0 %v4363
    %4370 = vmatprep.subr.bf16.mxu0 0
    %4371 = vmatpush1.bf16.msra.mxu0 0
    %4372 = vmatprep.subr.bf16.mxu0 0
    %4373 = vmatpush1.bf16.msra.mxu0 0
    %4374 = vmatprep.subr.bf16.mxu0 0
    %4375 = vmatpush1.bf16.msra.mxu0 0
    %4376 = vmatprep.subr.bf16.mxu0 0
    %4377 = vmatpush1.bf16.msra.mxu0 0
    %4378 = vmatprep.subr.bf16.mxu0 0
    %4379 = vmatpush1.bf16.msra.mxu0 0
    %4380 = vmatprep.subr.bf16.mxu0 0
    %4381 = vmatpush1.bf16.msra.mxu0 0
    %4382 = vmatprep.subr.bf16.mxu0 0
    %4383 = vmatpush1.bf16.msra.mxu0 0
    %4384 = vmatprep.subr.bf16.mxu0 0
    %4385 = vmatpush1.bf16.msra.mxu0 0
    %4386 = vmatprep.subr.bf16.mxu0 0
    %4387 = vmatpush1.bf16.msra.mxu0 0
    %4388 = vmatprep.subr.bf16.mxu0 0
    %4389 = vmatpush1.bf16.msra.mxu0 0
    %4390 = vmatprep.subr.bf16.mxu0 0
    %4391 = vmatpush1.bf16.msra.mxu0 0
    %4392 = vmatprep.subr.bf16.mxu0 0
    %4393 = vmatpush1.bf16.msra.mxu0 0
    %4394 = vmatprep.subr.bf16.mxu0 0
    %4395 = vmatpush1.bf16.msra.mxu0 0
    %4396 = vmatprep.subr.bf16.mxu0 0
    %4397 = vmatpush1.bf16.msra.mxu0 0
    %4398 = vmatprep.subr.bf16.mxu0 0
    %4399 = vmatpush1.bf16.msra.mxu0 0
    %4400 = vmatprep.mubr.bf16.mxu0 0
    %4401 = vmatmul.mubr.bf16.gmra.mrb[0].mxu0 %v4366
    %v4402 = vpop.f32.mrb[0].mxu0
    %v4403 = vadd.f32 0.0, %v4402
    %v4404 = vpop.f32.mrb[0].mxu0
    %v4405 = vpop.f32.mrb[0].mxu0
    %v4406 = vadd.f32 0.0, %v4405
    %v4407 = vpop.f32.mrb[0].mxu0
    %4408 = vdwg.mxu0
    %v4409 = vpack.c.bf16 %v4406, %v4403
    %v4411 = vsel %vm1143, %v4409, 0
    %v4414 = vsel %vm1389, %v162, 0
    %4416 = vmatprep.subr.bf16.mxu0 0
    %4417 = vmatpush1.bf16.msra.mxu0 %v4414
    %4418 = vmatprep.subr.bf16.mxu0 0
    %4419 = vmatpush1.bf16.msra.mxu0 0
    %4420 = vmatprep.subr.bf16.mxu0 0
    %4421 = vmatpush1.bf16.msra.mxu0 0
    %4422 = vmatprep.subr.bf16.mxu0 0
    %4423 = vmatpush1.bf16.msra.mxu0 0
    %4424 = vmatprep.subr.bf16.mxu0 0
    %4425 = vmatpush1.bf16.msra.mxu0 0
    %4426 = vmatprep.subr.bf16.mxu0 0
    %4427 = vmatpush1.bf16.msra.mxu0 0
    %4428 = vmatprep.subr.bf16.mxu0 0
    %4429 = vmatpush1.bf16.msra.mxu0 0
    %4430 = vmatprep.subr.bf16.mxu0 0
    %4431 = vmatpush1.bf16.msra.mxu0 0
    %4432 = vmatprep.subr.bf16.mxu0 0
    %4433 = vmatpush1.bf16.msra.mxu0 0
    %4434 = vmatprep.subr.bf16.mxu0 0
    %4435 = vmatpush1.bf16.msra.mxu0 0
    %4436 = vmatprep.subr.bf16.mxu0 0
    %4437 = vmatpush1.bf16.msra.mxu0 0
    %4438 = vmatprep.subr.bf16.mxu0 0
    %4439 = vmatpush1.bf16.msra.mxu0 0
    %4440 = vmatprep.subr.bf16.mxu0 0
    %4441 = vmatpush1.bf16.msra.mxu0 0
    %4442 = vmatprep.subr.bf16.mxu0 0
    %4443 = vmatpush1.bf16.msra.mxu0 0
    %4444 = vmatprep.subr.bf16.mxu0 0
    %4445 = vmatpush1.bf16.msra.mxu0 0
    %4446 = vmatprep.subr.bf16.mxu0 0
    %4447 = vmatpush1.bf16.msra.mxu0 0
    %4448 = vmatprep.mubr.bf16.mxu0 0
    %4449 = vmatmul.mubr.bf16.gmra.mrb[0].mxu0 %v4411
    %v4450 = vpop.f32.mrb[0].mxu0
    %v4451 = vadd.f32 0.0, %v4450
    %v4452 = vpop.f32.mrb[0].mxu0
    %v4453 = vpop.f32.mrb[0].mxu0
    %v4454 = vadd.f32 0.0, %v4453
    %v4455 = vpop.f32.mrb[0].mxu0
    %4456 = vdwg.mxu0
    %v4458 = vsel %vm1143, %v4284, 0
    %v4461 = vsel %vm1389, %v161, 0
    %4463 = vmatprep.subr.bf16.mxu0 0
    %4464 = vmatpush1.bf16.msra.mxu0 %v4461
    %4465 = vmatprep.subr.bf16.mxu0 0
    %4466 = vmatpush1.bf16.msra.mxu0 0
    %4467 = vmatprep.subr.bf16.mxu0 0
    %4468 = vmatpush1.bf16.msra.mxu0 0
    %4469 = vmatprep.subr.bf16.mxu0 0
    %4470 = vmatpush1.bf16.msra.mxu0 0
    %4471 = vmatprep.subr.bf16.mxu0 0
    %4472 = vmatpush1.bf16.msra.mxu0 0
    %4473 = vmatprep.subr.bf16.mxu0 0
    %4474 = vmatpush1.bf16.msra.mxu0 0
    %4475 = vmatprep.subr.bf16.mxu0 0
    %4476 = vmatpush1.bf16.msra.mxu0 0
    %4477 = vmatprep.subr.bf16.mxu0 0
    %4478 = vmatpush1.bf16.msra.mxu0 0
    %4479 = vmatprep.subr.bf16.mxu0 0
    %4480 = vmatpush1.bf16.msra.mxu0 0
    %4481 = vmatprep.subr.bf16.mxu0 0
    %4482 = vmatpush1.bf16.msra.mxu0 0
    %4483 = vmatprep.subr.bf16.mxu0 0
    %4484 = vmatpush1.bf16.msra.mxu0 0
    %4485 = vmatprep.subr.bf16.mxu0 0
    %4486 = vmatpush1.bf16.msra.mxu0 0
    %4487 = vmatprep.subr.bf16.mxu0 0
    %4488 = vmatpush1.bf16.msra.mxu0 0
    %4489 = vmatprep.subr.bf16.mxu0 0
    %4490 = vmatpush1.bf16.msra.mxu0 0
    %4491 = vmatprep.subr.bf16.mxu0 0
    %4492 = vmatpush1.bf16.msra.mxu0 0
    %4493 = vmatprep.subr.bf16.mxu0 0
    %4494 = vmatpush1.bf16.msra.mxu0 0
    %4495 = vmatprep.mubr.bf16.mxu0 0
    %4496 = vmatmul.mubr.bf16.gmra.mrb[0].mxu0 %v4458
    %v4497 = vpop.f32.mrb[0].mxu0
    %v4498 = vadd.f32 %v4451, %v4497
    %v4499 = vpop.f32.mrb[0].mxu0
    %v4500 = vpop.f32.mrb[0].mxu0
    %v4501 = vadd.f32 %v4454, %v4500
    %v4502 = vpop.f32.mrb[0].mxu0
    %4503 = vdwg.mxu0
    %4504 = vrot.lane.b32.xlu0 %v4167, 112
    %v4505 = vpop.permute.xlu0 %4504
    %4506 = vrot.lane.b32.xlu0 %v4168, 112
    %v4507 = vpop.permute.xlu0 %4506
    %v4509 = vsel %vm1143, %v4505, 0
    %v4512 = vsel %vm1143, %v4507, 0
    %4514 = vmatprep.subr.bf16.mxu0 0
    %4515 = vmatpush1.bf16.xpose.msra.mxu0 %v4512
    %4516 = vmatprep.subr.bf16.mxu0 0
    %4517 = vmatpush1.bf16.xpose.msra.mxu0 0
    %4518 = vmatprep.subr.bf16.mxu0 0
    %4519 = vmatpush1.bf16.xpose.msra.mxu0 0
    %4520 = vmatprep.subr.bf16.mxu0 0
    %4521 = vmatpush1.bf16.xpose.msra.mxu0 0
    %4522 = vmatprep.subr.bf16.mxu0 0
    %4523 = vmatpush1.bf16.xpose.msra.mxu0 0
    %4524 = vmatprep.subr.bf16.mxu0 0
    %4525 = vmatpush1.bf16.xpose.msra.mxu0 0
    %4526 = vmatprep.subr.bf16.mxu0 0
    %4527 = vmatpush1.bf16.xpose.msra.mxu0 0
    %4528 = vmatprep.subr.bf16.mxu0 0
    %4529 = vmatpush1.bf16.xpose.msra.mxu0 0
    %4530 = vmatprep.subr.bf16.mxu0 0
    %4531 = vmatpush1.bf16.xpose.msra.mxu0 0
    %4532 = vmatprep.subr.bf16.mxu0 0
    %4533 = vmatpush1.bf16.xpose.msra.mxu0 0
    %4534 = vmatprep.subr.bf16.mxu0 0
    %4535 = vmatpush1.bf16.xpose.msra.mxu0 0
    %4536 = vmatprep.subr.bf16.mxu0 0
    %4537 = vmatpush1.bf16.xpose.msra.mxu0 0
    %4538 = vmatprep.subr.bf16.mxu0 0
    %4539 = vmatpush1.bf16.xpose.msra.mxu0 0
    %4540 = vmatprep.subr.bf16.mxu0 0
    %4541 = vmatpush1.bf16.xpose.msra.mxu0 0
    %4542 = vmatprep.subr.bf16.mxu0 0
    %4543 = vmatpush1.bf16.xpose.msra.mxu0 0
    %4544 = vmatprep.subr.bf16.mxu0 0
    %4545 = vmatpush1.bf16.xpose.msra.mxu0 0
    %4546 = vmatprep.mubr.bf16.mxu0 0
    %4547 = vmatmul.mubr.bf16.gmra.mrb[0].mxu0 %v4509
    %v4548 = vpop.f32.mrb[0].mxu0
    %v4549 = vadd.f32 %v128, %v4548
    %v4550 = vpop.f32.mrb[0].mxu0
    %v4551 = vpop.f32.mrb[0].mxu0
    %v4552 = vadd.f32 %v129, %v4551
    %v4553 = vpop.f32.mrb[0].mxu0
    %4554 = vdwg.mxu0
    %v4555 = vsel %vm1191, %v4549, -inf
    %4556 = vmax.xlane.f32.xlu0 %v4555
    %v4557 = vpop.xlane.xlu0 %4556
    %v4558 = vsel %vm1191, %v4552, -inf
    %4559 = vmax.xlane.f32.xlu0 %v4558
    %v4560 = vpop.xlane.xlu0 %4559
    %v4561 = vsub.f32 %v4549, %v4557
    %v4562 = vsub.f32 %v4552, %v4560
    %v4563 = vmul.f32 %v4561, 1.442695
    %v4564 = vpow.pop %v4563
    %v4565 = vmul.f32 %v4562, 1.442695
    %v4566 = vpow.pop %v4565
    %v4567 = vsel %vm1191, %v4564, 0.0
    %4568 = vadd.xlane.f32.xlu0 %v4567
    %v4569 = vpop.xlane.xlu0 %4568
    %v4570 = vsel %vm1191, %v4566, 0.0
    %4571 = vadd.xlane.f32.xlu0 %v4570
    %v4572 = vpop.xlane.xlu0 %4571
    %v4573 = vrcp.pop %v4569
    %v4574 = vrcp.pop %v4572
    %v4575 = vmul.f32 %v4564, %v4573
    %v4576 = vmul.f32 %v4566, %v4574
    %v4577 = vpack.c.bf16 %v4576, %v4575
    %4578 = vrot.lane.b32.xlu0 %v4239, 112
    %v4579 = vpop.permute.xlu0 %4578
    %v4582 = vsel %vm1191, %v4577, 0
    %4584 = vmatprep.subr.bf16.mxu0 0
    %4585 = vmatpush1.bf16.msra.mxu0 %v4579
    %4586 = vmatprep.subr.bf16.mxu0 0
    %4587 = vmatpush1.bf16.msra.mxu0 0
    %4588 = vmatprep.subr.bf16.mxu0 0
    %4589 = vmatpush1.bf16.msra.mxu0 0
    %4590 = vmatprep.subr.bf16.mxu0 0
    %4591 = vmatpush1.bf16.msra.mxu0 0
    %4592 = vmatprep.subr.bf16.mxu0 0
    %4593 = vmatpush1.bf16.msra.mxu0 0
    %4594 = vmatprep.subr.bf16.mxu0 0
    %4595 = vmatpush1.bf16.msra.mxu0 0
    %4596 = vmatprep.subr.bf16.mxu0 0
    %4597 = vmatpush1.bf16.msra.mxu0 0
    %4598 = vmatprep.subr.bf16.mxu0 0
    %4599 = vmatpush1.bf16.msra.mxu0 0
    %4600 = vmatprep.subr.bf16.mxu0 0
    %4601 = vmatpush1.bf16.msra.mxu0 0
    %4602 = vmatprep.subr.bf16.mxu0 0
    %4603 = vmatpush1.bf16.msra.mxu0 0
    %4604 = vmatprep.subr.bf16.mxu0 0
    %4605 = vmatpush1.bf16.msra.mxu0 0
    %4606 = vmatprep.subr.bf16.mxu0 0
    %4607 = vmatpush1.bf16.msra.mxu0 0
    %4608 = vmatprep.subr.bf16.mxu0 0
    %4609 = vmatpush1.bf16.msra.mxu0 0
    %4610 = vmatprep.subr.bf16.mxu0 0
    %4611 = vmatpush1.bf16.msra.mxu0 0
    %4612 = vmatprep.subr.bf16.mxu0 0
    %4613 = vmatpush1.bf16.msra.mxu0 0
    %4614 = vmatprep.subr.bf16.mxu0 0
    %4615 = vmatpush1.bf16.msra.mxu0 0
    %4616 = vmatprep.mubr.bf16.mxu0 0
    %4617 = vmatmul.mubr.bf16.gmra.mrb[0].mxu0 %v4582
    %v4618 = vpop.f32.mrb[0].mxu0
    %v4619 = vadd.f32 0.0, %v4618
    %v4620 = vpop.f32.mrb[0].mxu0
    %v4621 = vpop.f32.mrb[0].mxu0
    %v4622 = vadd.f32 0.0, %v4621
    %v4623 = vpop.f32.mrb[0].mxu0
    %4624 = vdwg.mxu0
    %v4625 = vpack.c.bf16 %v4622, %v4619
    %v4627 = vsel %vm1143, %v4625, 0
    %v4630 = vsel %vm1389, %v163, 0
    %4632 = vmatprep.subr.bf16.mxu0 0
    %4633 = vmatpush1.bf16.msra.mxu0 %v4630
    %4634 = vmatprep.subr.bf16.mxu0 0
    %4635 = vmatpush1.bf16.msra.mxu0 0
    %4636 = vmatprep.subr.bf16.mxu0 0
    %4637 = vmatpush1.bf16.msra.mxu0 0
    %4638 = vmatprep.subr.bf16.mxu0 0
    %4639 = vmatpush1.bf16.msra.mxu0 0
    %4640 = vmatprep.subr.bf16.mxu0 0
    %4641 = vmatpush1.bf16.msra.mxu0 0
    %4642 = vmatprep.subr.bf16.mxu0 0
    %4643 = vmatpush1.bf16.msra.mxu0 0
    %4644 = vmatprep.subr.bf16.mxu0 0
    %4645 = vmatpush1.bf16.msra.mxu0 0
    %4646 = vmatprep.subr.bf16.mxu0 0
    %4647 = vmatpush1.bf16.msra.mxu0 0
    %4648 = vmatprep.subr.bf16.mxu0 0
    %4649 = vmatpush1.bf16.msra.mxu0 0
    %4650 = vmatprep.subr.bf16.mxu0 0
    %4651 = vmatpush1.bf16.msra.mxu0 0
    %4652 = vmatprep.subr.bf16.mxu0 0
    %4653 = vmatpush1.bf16.msra.mxu0 0
    %4654 = vmatprep.subr.bf16.mxu0 0
    %4655 = vmatpush1.bf16.msra.mxu0 0
    %4656 = vmatprep.subr.bf16.mxu0 0
    %4657 = vmatpush1.bf16.msra.mxu0 0
    %4658 = vmatprep.subr.bf16.mxu0 0
    %4659 = vmatpush1.bf16.msra.mxu0 0
    %4660 = vmatprep.subr.bf16.mxu0 0
    %4661 = vmatpush1.bf16.msra.mxu0 0
    %4662 = vmatprep.subr.bf16.mxu0 0
    %4663 = vmatpush1.bf16.msra.mxu0 0
    %4664 = vmatprep.mubr.bf16.mxu0 0
    %4665 = vmatmul.mubr.bf16.gmra.mrb[0].mxu0 %v4627
    %v4666 = vpop.f32.mrb[0].mxu0
    %v4667 = vadd.f32 0.0, %v4666
    %v4668 = vpop.f32.mrb[0].mxu0
    %v4669 = vpop.f32.mrb[0].mxu0
    %v4670 = vadd.f32 0.0, %v4669
    %v4671 = vpop.f32.mrb[0].mxu0
    %4672 = vdwg.mxu0
    %v4673 = vadd.f32 %v4498, %v4667
    %v4674 = vadd.f32 %v4501, %v4670
    %4675 = vrot.lane.b32.xlu0 %v4167, 104
    %v4676 = vpop.permute.xlu0 %4675
    %4677 = vrot.lane.b32.xlu0 %v4168, 104
    %v4678 = vpop.permute.xlu0 %4677
    %v4680 = vsel %vm1143, %v4676, 0
    %v4683 = vsel %vm1143, %v4678, 0
    %4685 = vmatprep.subr.bf16.mxu0 0
    %4686 = vmatpush1.bf16.xpose.msra.mxu0 %v4683
    %4687 = vmatprep.subr.bf16.mxu0 0
    %4688 = vmatpush1.bf16.xpose.msra.mxu0 0
    %4689 = vmatprep.subr.bf16.mxu0 0
    %4690 = vmatpush1.bf16.xpose.msra.mxu0 0
    %4691 = vmatprep.subr.bf16.mxu0 0
    %4692 = vmatpush1.bf16.xpose.msra.mxu0 0
    %4693 = vmatprep.subr.bf16.mxu0 0
    %4694 = vmatpush1.bf16.xpose.msra.mxu0 0
    %4695 = vmatprep.subr.bf16.mxu0 0
    %4696 = vmatpush1.bf16.xpose.msra.mxu0 0
    %4697 = vmatprep.subr.bf16.mxu0 0
    %4698 = vmatpush1.bf16.xpose.msra.mxu0 0
    %4699 = vmatprep.subr.bf16.mxu0 0
    %4700 = vmatpush1.bf16.xpose.msra.mxu0 0
    %4701 = vmatprep.subr.bf16.mxu0 0
    %4702 = vmatpush1.bf16.xpose.msra.mxu0 0
    %4703 = vmatprep.subr.bf16.mxu0 0
    %4704 = vmatpush1.bf16.xpose.msra.mxu0 0
    %4705 = vmatprep.subr.bf16.mxu0 0
    %4706 = vmatpush1.bf16.xpose.msra.mxu0 0
    %4707 = vmatprep.subr.bf16.mxu0 0
    %4708 = vmatpush1.bf16.xpose.msra.mxu0 0
    %4709 = vmatprep.subr.bf16.mxu0 0
    %4710 = vmatpush1.bf16.xpose.msra.mxu0 0
    %4711 = vmatprep.subr.bf16.mxu0 0
    %4712 = vmatpush1.bf16.xpose.msra.mxu0 0
    %4713 = vmatprep.subr.bf16.mxu0 0
    %4714 = vmatpush1.bf16.xpose.msra.mxu0 0
    %4715 = vmatprep.subr.bf16.mxu0 0
    %4716 = vmatpush1.bf16.xpose.msra.mxu0 0
    %4717 = vmatprep.mubr.bf16.mxu0 0
    %4718 = vmatmul.mubr.bf16.gmra.mrb[0].mxu0 %v4680
    %v4719 = vpop.f32.mrb[0].mxu0
    %v4720 = vadd.f32 %v128, %v4719
    %v4721 = vpop.f32.mrb[0].mxu0
    %v4722 = vpop.f32.mrb[0].mxu0
    %v4723 = vadd.f32 %v129, %v4722
    %v4724 = vpop.f32.mrb[0].mxu0
    %4725 = vdwg.mxu0
    %v4726 = vsel %vm1191, %v4720, -inf
    %4727 = vmax.xlane.f32.xlu0 %v4726
    %v4728 = vpop.xlane.xlu0 %4727
    %v4729 = vsel %vm1191, %v4723, -inf
    %4730 = vmax.xlane.f32.xlu0 %v4729
    %v4731 = vpop.xlane.xlu0 %4730
    %v4732 = vsub.f32 %v4720, %v4728
    %v4733 = vsub.f32 %v4723, %v4731
    %v4734 = vmul.f32 %v4732, 1.442695
    %v4735 = vpow.pop %v4734
    %v4736 = vmul.f32 %v4733, 1.442695
    %v4737 = vpow.pop %v4736
    %v4738 = vsel %vm1191, %v4735, 0.0
    %4739 = vadd.xlane.f32.xlu0 %v4738
    %v4740 = vpop.xlane.xlu0 %4739
    %v4741 = vsel %vm1191, %v4737, 0.0
    %4742 = vadd.xlane.f32.xlu0 %v4741
    %v4743 = vpop.xlane.xlu0 %4742
    %v4744 = vrcp.pop %v4740
    %v4745 = vrcp.pop %v4743
    %v4746 = vmul.f32 %v4735, %v4744
    %v4747 = vmul.f32 %v4737, %v4745
    %v4748 = vpack.c.bf16 %v4747, %v4746
    %4749 = vrot.lane.b32.xlu0 %v4239, 104
    %v4750 = vpop.permute.xlu0 %4749
    %v4753 = vsel %vm1191, %v4748, 0
    %4755 = vmatprep.subr.bf16.mxu0 0
    %4756 = vmatpush1.bf16.msra.mxu0 %v4750
    %4757 = vmatprep.subr.bf16.mxu0 0
    %4758 = vmatpush1.bf16.msra.mxu0 0
    %4759 = vmatprep.subr.bf16.mxu0 0
    %4760 = vmatpush1.bf16.msra.mxu0 0
    %4761 = vmatprep.subr.bf16.mxu0 0
    %4762 = vmatpush1.bf16.msra.mxu0 0
    %4763 = vmatprep.subr.bf16.mxu0 0
    %4764 = vmatpush1.bf16.msra.mxu0 0
    %4765 = vmatprep.subr.bf16.mxu0 0
    %4766 = vmatpush1.bf16.msra.mxu0 0
    %4767 = vmatprep.subr.bf16.mxu0 0
    %4768 = vmatpush1.bf16.msra.mxu0 0
    %4769 = vmatprep.subr.bf16.mxu0 0
    %4770 = vmatpush1.bf16.msra.mxu0 0
    %4771 = vmatprep.subr.bf16.mxu0 0
    %4772 = vmatpush1.bf16.msra.mxu0 0
    %4773 = vmatprep.subr.bf16.mxu0 0
    %4774 = vmatpush1.bf16.msra.mxu0 0
    %4775 = vmatprep.subr.bf16.mxu0 0
    %4776 = vmatpush1.bf16.msra.mxu0 0
    %4777 = vmatprep.subr.bf16.mxu0 0
    %4778 = vmatpush1.bf16.msra.mxu0 0
    %4779 = vmatprep.subr.bf16.mxu0 0
    %4780 = vmatpush1.bf16.msra.mxu0 0
    %4781 = vmatprep.subr.bf16.mxu0 0
    %4782 = vmatpush1.bf16.msra.mxu0 0
    %4783 = vmatprep.subr.bf16.mxu0 0
    %4784 = vmatpush1.bf16.msra.mxu0 0
    %4785 = vmatprep.subr.bf16.mxu0 0
    %4786 = vmatpush1.bf16.msra.mxu0 0
    %4787 = vmatprep.mubr.bf16.mxu0 0
    %4788 = vmatmul.mubr.bf16.gmra.mrb[0].mxu0 %v4753
    %v4789 = vpop.f32.mrb[0].mxu0
    %v4790 = vadd.f32 0.0, %v4789
    %v4791 = vpop.f32.mrb[0].mxu0
    %v4792 = vpop.f32.mrb[0].mxu0
    %v4793 = vadd.f32 0.0, %v4792
    %v4794 = vpop.f32.mrb[0].mxu0
    %4795 = vdwg.mxu0
    %v4796 = vpack.c.bf16 %v4793, %v4790
    %v4798 = vsel %vm1143, %v4796, 0
    %v4801 = vsel %vm1389, %v164, 0
    %4803 = vmatprep.subr.bf16.mxu0 0
    %4804 = vmatpush1.bf16.msra.mxu0 %v4801
    %4805 = vmatprep.subr.bf16.mxu0 0
    %4806 = vmatpush1.bf16.msra.mxu0 0
    %4807 = vmatprep.subr.bf16.mxu0 0
    %4808 = vmatpush1.bf16.msra.mxu0 0
    %4809 = vmatprep.subr.bf16.mxu0 0
    %4810 = vmatpush1.bf16.msra.mxu0 0
    %4811 = vmatprep.subr.bf16.mxu0 0
    %4812 = vmatpush1.bf16.msra.mxu0 0
    %4813 = vmatprep.subr.bf16.mxu0 0
    %4814 = vmatpush1.bf16.msra.mxu0 0
    %4815 = vmatprep.subr.bf16.mxu0 0
    %4816 = vmatpush1.bf16.msra.mxu0 0
    %4817 = vmatprep.subr.bf16.mxu0 0
    %4818 = vmatpush1.bf16.msra.mxu0 0
    %4819 = vmatprep.subr.bf16.mxu0 0
    %4820 = vmatpush1.bf16.msra.mxu0 0
    %4821 = vmatprep.subr.bf16.mxu0 0
    %4822 = vmatpush1.bf16.msra.mxu0 0
    %4823 = vmatprep.subr.bf16.mxu0 0
    %4824 = vmatpush1.bf16.msra.mxu0 0
    %4825 = vmatprep.subr.bf16.mxu0 0
    %4826 = vmatpush1.bf16.msra.mxu0 0
    %4827 = vmatprep.subr.bf16.mxu0 0
    %4828 = vmatpush1.bf16.msra.mxu0 0
    %4829 = vmatprep.subr.bf16.mxu0 0
    %4830 = vmatpush1.bf16.msra.mxu0 0
    %4831 = vmatprep.subr.bf16.mxu0 0
    %4832 = vmatpush1.bf16.msra.mxu0 0
    %4833 = vmatprep.subr.bf16.mxu0 0
    %4834 = vmatpush1.bf16.msra.mxu0 0
    %4835 = vmatprep.mubr.bf16.mxu0 0
    %4836 = vmatmul.mubr.bf16.gmra.mrb[0].mxu0 %v4798
    %v4837 = vpop.f32.mrb[0].mxu0
    %v4838 = vadd.f32 0.0, %v4837
    %v4839 = vpop.f32.mrb[0].mxu0
    %v4840 = vpop.f32.mrb[0].mxu0
    %v4841 = vadd.f32 0.0, %v4840
    %v4842 = vpop.f32.mrb[0].mxu0
    %4843 = vdwg.mxu0
    %v4844 = vadd.f32 %v4673, %v4838
    %v4845 = vadd.f32 %v4674, %v4841
    %v4846 = vlaneseq
    %v4847 = vshrl.u32 %v4846, 7
    %v4848 = vsub.s32 1, %v4847
    %v4849 = vrot.slane %v165, %v4848
    %v4850 = vadd.f32 %v4844, %v4849
    %v4851 = vadd.f32 %v4845, %v4849
    %v4852 = vadd.f32 %v3976, %v4850
    %v4853 = vadd.f32 %v3977, %v4851
    %v4854 = vsel %vm966, %v4852, 0.0
    %4855 = vadd.xlane.f32.xlu0 %v4854
    %v4856 = vpop.xlane.xlu0 %4855
    %v4857 = vsel %vm966, %v4853, 0.0
    %4858 = vadd.xlane.f32.xlu0 %v4857
    %v4859 = vpop.xlane.xlu0 %4858
    %v4860 = vmul.f32 %v4856, %v1837
    %v4861 = vmul.f32 %v4859, %v1837
    %v4862 = vmul.f32 %v4852, %v4852
    %v4863 = vmul.f32 %v4853, %v4853
    %v4864 = vsel %vm966, %v4862, 0.0
    %4865 = vadd.xlane.f32.xlu0 %v4864
    %v4866 = vpop.xlane.xlu0 %4865
    %v4867 = vsel %vm966, %v4863, 0.0
    %4868 = vadd.xlane.f32.xlu0 %v4867
    %v4869 = vpop.xlane.xlu0 %4868
    %v4870 = vmul.f32 %v4866, %v1837
    %v4871 = vmul.f32 %v4869, %v1837
    %v4872 = vmul.f32 %v4860, %v4860
    %v4873 = vmul.f32 %v4861, %v4861
    %v4874 = vsub.f32 %v4870, %v4872
    %v4875 = vsub.f32 %v4871, %v4873
    %v4876 = vsub.f32 %v4852, %v4860
    %v4877 = vsub.f32 %v4853, %v4861
    %v4878 = vadd.f32 %v4874, 1e-05
    %v4879 = vadd.f32 %v4875, 1e-05
    %v4880 = vrsqrt.pop %v4878
    %v4881 = vrsqrt.pop %v4879
    %v4882 = vmul.f32 %v4876, %v4880
    %v4883 = vmul.f32 %v4877, %v4881
    %v4884 = vlaneseq
    %v4885 = vshrl.u32 %v4884, 7
    %v4886 = vsub.s32 1, %v4885
    %v4887 = vrot.slane %v747, %v4886
    %v4888 = vmul.f32 %v4882, %v4887
    %v4889 = vmul.f32 %v4883, %v4887
    %v4890 = vlaneseq
    %v4891 = vshrl.u32 %v4890, 7
    %v4892 = vsub.s32 1, %v4891
    %v4893 = vrot.slane %v748, %v4892
    %v4894 = vadd.f32 %v4888, %v4893
    %v4895 = vadd.f32 %v4889, %v4893
    %v4896 = vpack.c.bf16 %v4895, %v4894
    %v4897 = vlaneseq
    %v4898 = vshrl.u32 %v4897, 7
    %v4899 = vsub.s32 1, %v4898
    %v4900 = vrot.slane %v678, %v4899
    %v4901 = vlaneseq
    %v4902 = vshrl.u32 %v4901, 7
    %v4903 = vsub.s32 3, %v4902
    %v4904 = vrot.slane %v678, %v4903
    %v4905 = vlaneseq
    %v4906 = vshrl.u32 %v4905, 7
    %v4907 = vsub.s32 5, %v4906
    %v4908 = vrot.slane %v678, %v4907
    %v4909 = vlaneseq
    %v4910 = vshrl.u32 %v4909, 7
    %v4911 = vsub.s32 7, %v4910
    %v4912 = vrot.slane %v678, %v4911
    %v4913 = vlaneseq
    %v4914 = vshrl.u32 %v4913, 7
    %v4915 = vsub.s32 1, %v4914
    %v4916 = vrot.slane %v679, %v4915
    %v4917 = vlaneseq
    %v4918 = vshrl.u32 %v4917, 7
    %v4919 = vsub.s32 3, %v4918
    %v4920 = vrot.slane %v679, %v4919
    %v4921 = vlaneseq
    %v4922 = vshrl.u32 %v4921, 7
    %v4923 = vsub.s32 5, %v4922
    %v4924 = vrot.slane %v679, %v4923
    %v4925 = vlaneseq
    %v4926 = vshrl.u32 %v4925, 7
    %v4927 = vsub.s32 7, %v4926
    %v4928 = vrot.slane %v679, %v4927
    %v4929 = vlaneseq
    %v4930 = vshrl.u32 %v4929, 7
    %v4931 = vsub.s32 1, %v4930
    %v4932 = vrot.slane %v680, %v4931
    %v4933 = vlaneseq
    %v4934 = vshrl.u32 %v4933, 7
    %v4935 = vsub.s32 3, %v4934
    %v4936 = vrot.slane %v680, %v4935
    %v4937 = vlaneseq
    %v4938 = vshrl.u32 %v4937, 7
    %v4939 = vsub.s32 5, %v4938
    %v4940 = vrot.slane %v680, %v4939
    %v4941 = vlaneseq
    %v4942 = vshrl.u32 %v4941, 7
    %v4943 = vsub.s32 7, %v4942
    %v4944 = vrot.slane %v680, %v4943
    %v4945 = vlaneseq
    %v4946 = vshrl.u32 %v4945, 7
    %v4947 = vsub.s32 1, %v4946
    %v4948 = vrot.slane %v681, %v4947
    %v4949 = vlaneseq
    %v4950 = vshrl.u32 %v4949, 7
    %v4951 = vsub.s32 3, %v4950
    %v4952 = vrot.slane %v681, %v4951
    %v4953 = vlaneseq
    %v4954 = vshrl.u32 %v4953, 7
    %v4955 = vsub.s32 5, %v4954
    %v4956 = vrot.slane %v681, %v4955
    %v4957 = vlaneseq
    %v4958 = vshrl.u32 %v4957, 7
    %v4959 = vsub.s32 7, %v4958
    %v4960 = vrot.slane %v681, %v4959
    %v4977 = vlaneseq
    %v4978 = vshrl.u32 %v4977, 7
    %v4979 = vsub.s32 1, %v4978
    %v4980 = vrot.slane %v4900, %v4979
    %v4981 = vlaneseq
    %v4982 = vshrl.u32 %v4981, 7
    %v4983 = vsub.s32 1, %v4982
    %v4984 = vrot.slane %v4904, %v4983
    %v4985 = vlaneseq
    %v4986 = vshrl.u32 %v4985, 7
    %v4987 = vsub.s32 1, %v4986
    %v4988 = vrot.slane %v4908, %v4987
    %v4989 = vlaneseq
    %v4990 = vshrl.u32 %v4989, 7
    %v4991 = vsub.s32 1, %v4990
    %v4992 = vrot.slane %v4912, %v4991
    %v4993 = vlaneseq
    %v4994 = vshrl.u32 %v4993, 7
    %v4995 = vsub.s32 1, %v4994
    %v4996 = vrot.slane %v4916, %v4995
    %v4997 = vlaneseq
    %v4998 = vshrl.u32 %v4997, 7
    %v4999 = vsub.s32 1, %v4998
    %v5000 = vrot.slane %v4920, %v4999
    %v5001 = vlaneseq
    %v5002 = vshrl.u32 %v5001, 7
    %v5003 = vsub.s32 1, %v5002
    %v5004 = vrot.slane %v4924, %v5003
    %v5005 = vlaneseq
    %v5006 = vshrl.u32 %v5005, 7
    %v5007 = vsub.s32 1, %v5006
    %v5008 = vrot.slane %v4928, %v5007
    %v5009 = vlaneseq
    %v5010 = vshrl.u32 %v5009, 7
    %v5011 = vsub.s32 1, %v5010
    %v5012 = vrot.slane %v4932, %v5011
    %v5013 = vlaneseq
    %v5014 = vshrl.u32 %v5013, 7
    %v5015 = vsub.s32 1, %v5014
    %v5016 = vrot.slane %v4936, %v5015
    %v5017 = vlaneseq
    %v5018 = vshrl.u32 %v5017, 7
    %v5019 = vsub.s32 1, %v5018
    %v5020 = vrot.slane %v4940, %v5019
    %v5021 = vlaneseq
    %v5022 = vshrl.u32 %v5021, 7
    %v5023 = vsub.s32 1, %v5022
    %v5024 = vrot.slane %v4944, %v5023
    %v5025 = vlaneseq
    %v5026 = vshrl.u32 %v5025, 7
    %v5027 = vsub.s32 1, %v5026
    %v5028 = vrot.slane %v4948, %v5027
    %v5029 = vlaneseq
    %v5030 = vshrl.u32 %v5029, 7
    %v5031 = vsub.s32 1, %v5030
    %v5032 = vrot.slane %v4952, %v5031
    %v5033 = vlaneseq
    %v5034 = vshrl.u32 %v5033, 7
    %v5035 = vsub.s32 1, %v5034
    %v5036 = vrot.slane %v4956, %v5035
    %v5037 = vlaneseq
    %v5038 = vshrl.u32 %v5037, 7
    %v5039 = vsub.s32 1, %v5038
    %v5040 = vrot.slane %v4960, %v5039
    %v5297 = vunpack.c.l.b16 %v422
    %v5298 = vunpack.c.l.b16 %v423
    %v5299 = vunpack.c.l.b16 %v424
    %v5300 = vunpack.c.l.b16 %v425
    %v5301 = vunpack.c.l.b16 %v426
    %v5302 = vunpack.c.l.b16 %v427
    %v5303 = vunpack.c.l.b16 %v428
    %v5304 = vunpack.c.l.b16 %v429
    %v5305 = vunpack.c.l.b16 %v430
    %v5306 = vunpack.c.l.b16 %v431
    %v5307 = vunpack.c.l.b16 %v432
    %v5308 = vunpack.c.l.b16 %v433
    %v5309 = vunpack.c.l.b16 %v434
    %v5310 = vunpack.c.l.b16 %v435
    %v5311 = vunpack.c.l.b16 %v436
    %v5312 = vunpack.c.l.b16 %v437
    %v5313 = vunpack.c.l.b16 %v438
    %v5314 = vunpack.c.l.b16 %v439
    %v5315 = vunpack.c.l.b16 %v440
    %v5316 = vunpack.c.l.b16 %v441
    %v5317 = vunpack.c.l.b16 %v442
    %v5318 = vunpack.c.l.b16 %v443
    %v5319 = vunpack.c.l.b16 %v444
    %v5320 = vunpack.c.l.b16 %v445
    %v5321 = vunpack.c.l.b16 %v446
    %v5322 = vunpack.c.l.b16 %v447
    %v5323 = vunpack.c.l.b16 %v448
    %v5324 = vunpack.c.l.b16 %v449
    %v5325 = vunpack.c.l.b16 %v450
    %v5326 = vunpack.c.l.b16 %v451
    %v5327 = vunpack.c.l.b16 %v452
    %v5328 = vunpack.c.l.b16 %v453
    %v5329 = vunpack.c.l.b16 %v454
    %v5330 = vunpack.c.l.b16 %v455
    %v5331 = vunpack.c.l.b16 %v456
    %v5332 = vunpack.c.l.b16 %v457
    %v5333 = vunpack.c.l.b16 %v458
    %v5334 = vunpack.c.l.b16 %v459
    %v5335 = vunpack.c.l.b16 %v460
    %v5336 = vunpack.c.l.b16 %v461
    %v5337 = vunpack.c.l.b16 %v462
    %v5338 = vunpack.c.l.b16 %v463
    %v5339 = vunpack.c.l.b16 %v464
    %v5340 = vunpack.c.l.b16 %v465
    %v5341 = vunpack.c.l.b16 %v466
    %v5342 = vunpack.c.l.b16 %v467
    %v5343 = vunpack.c.l.b16 %v468
    %v5344 = vunpack.c.l.b16 %v469
    %v5345 = vunpack.c.l.b16 %v470
    %v5346 = vunpack.c.l.b16 %v471
    %v5347 = vunpack.c.l.b16 %v472
    %v5348 = vunpack.c.l.b16 %v473
    %v5349 = vunpack.c.l.b16 %v474
    %v5350 = vunpack.c.l.b16 %v475
    %v5351 = vunpack.c.l.b16 %v476
    %v5352 = vunpack.c.l.b16 %v477
    %v5353 = vunpack.c.l.b16 %v478
    %v5354 = vunpack.c.l.b16 %v479
    %v5355 = vunpack.c.l.b16 %v480
    %v5356 = vunpack.c.l.b16 %v481
    %v5357 = vunpack.c.l.b16 %v482
    %v5358 = vunpack.c.l.b16 %v483
    %v5359 = vunpack.c.l.b16 %v484
    %v5360 = vunpack.c.l.b16 %v485
    %v5361 = vunpack.c.l.b16 %v486
    %v5362 = vunpack.c.l.b16 %v487
    %v5363 = vunpack.c.l.b16 %v488
    %v5364 = vunpack.c.l.b16 %v489
    %v5365 = vunpack.c.l.b16 %v490
    %v5366 = vunpack.c.l.b16 %v491
    %v5367 = vunpack.c.l.b16 %v492
    %v5368 = vunpack.c.l.b16 %v493
    %v5369 = vunpack.c.l.b16 %v494
    %v5370 = vunpack.c.l.b16 %v495
    %v5371 = vunpack.c.l.b16 %v496
    %v5372 = vunpack.c.l.b16 %v497
    %v5373 = vunpack.c.l.b16 %v498
    %v5374 = vunpack.c.l.b16 %v499
    %v5375 = vunpack.c.l.b16 %v500
    %v5376 = vunpack.c.l.b16 %v501
    %v5377 = vunpack.c.l.b16 %v502
    %v5378 = vunpack.c.l.b16 %v503
    %v5379 = vunpack.c.l.b16 %v504
    %v5380 = vunpack.c.l.b16 %v505
    %v5381 = vunpack.c.l.b16 %v506
    %v5382 = vunpack.c.l.b16 %v507
    %v5383 = vunpack.c.l.b16 %v508
    %v5384 = vunpack.c.l.b16 %v509
    %v5385 = vunpack.c.l.b16 %v510
    %v5386 = vunpack.c.l.b16 %v511
    %v5387 = vunpack.c.l.b16 %v512
    %v5388 = vunpack.c.l.b16 %v513
    %v5389 = vunpack.c.l.b16 %v514
    %v5390 = vunpack.c.l.b16 %v515
    %v5391 = vunpack.c.l.b16 %v516
    %v5392 = vunpack.c.l.b16 %v517
    %v5393 = vunpack.c.l.b16 %v518
    %v5394 = vunpack.c.l.b16 %v519
    %v5395 = vunpack.c.l.b16 %v520
    %v5396 = vunpack.c.l.b16 %v521
    %v5397 = vunpack.c.l.b16 %v522
    %v5398 = vunpack.c.l.b16 %v523
    %v5399 = vunpack.c.l.b16 %v524
    %v5400 = vunpack.c.l.b16 %v525
    %v5401 = vunpack.c.l.b16 %v526
    %v5402 = vunpack.c.l.b16 %v527
    %v5403 = vunpack.c.l.b16 %v528
    %v5404 = vunpack.c.l.b16 %v529
    %v5405 = vunpack.c.l.b16 %v530
    %v5406 = vunpack.c.l.b16 %v531
    %v5407 = vunpack.c.l.b16 %v532
    %v5408 = vunpack.c.l.b16 %v533
    %v5409 = vunpack.c.l.b16 %v534
    %v5410 = vunpack.c.l.b16 %v535
    %v5411 = vunpack.c.l.b16 %v536
    %v5412 = vunpack.c.l.b16 %v537
    %v5413 = vunpack.c.l.b16 %v538
    %v5414 = vunpack.c.l.b16 %v539
    %v5415 = vunpack.c.l.b16 %v540
    %v5416 = vunpack.c.l.b16 %v541
    %v5417 = vunpack.c.l.b16 %v542
    %v5418 = vunpack.c.l.b16 %v543
    %v5419 = vunpack.c.l.b16 %v544
    %v5420 = vunpack.c.l.b16 %v545
    %v5421 = vunpack.c.l.b16 %v546
    %v5422 = vunpack.c.l.b16 %v547
    %v5423 = vunpack.c.l.b16 %v548
    %v5424 = vunpack.c.l.b16 %v549
    %v5425 = vunpack.c.l.b16 %v550
    %v5426 = vunpack.c.l.b16 %v551
    %v5427 = vunpack.c.l.b16 %v552
    %v5428 = vunpack.c.l.b16 %v553
    %v5429 = vunpack.c.l.b16 %v554
    %v5430 = vunpack.c.l.b16 %v555
    %v5431 = vunpack.c.l.b16 %v556
    %v5432 = vunpack.c.l.b16 %v557
    %v5433 = vunpack.c.l.b16 %v558
    %v5434 = vunpack.c.l.b16 %v559
    %v5435 = vunpack.c.l.b16 %v560
    %v5436 = vunpack.c.l.b16 %v561
    %v5437 = vunpack.c.l.b16 %v562
    %v5438 = vunpack.c.l.b16 %v563
    %v5439 = vunpack.c.l.b16 %v564
    %v5440 = vunpack.c.l.b16 %v565
    %v5441 = vunpack.c.l.b16 %v566
    %v5442 = vunpack.c.l.b16 %v567
    %v5443 = vunpack.c.l.b16 %v568
    %v5444 = vunpack.c.l.b16 %v569
    %v5445 = vunpack.c.l.b16 %v570
    %v5446 = vunpack.c.l.b16 %v571
    %v5447 = vunpack.c.l.b16 %v572
    %v5448 = vunpack.c.l.b16 %v573
    %v5449 = vunpack.c.l.b16 %v574
    %v5450 = vunpack.c.l.b16 %v575
    %v5451 = vunpack.c.l.b16 %v576
    %v5452 = vunpack.c.l.b16 %v577
    %v5453 = vunpack.c.l.b16 %v578
    %v5454 = vunpack.c.l.b16 %v579
    %v5455 = vunpack.c.l.b16 %v580
    %v5456 = vunpack.c.l.b16 %v581
    %v5457 = vunpack.c.l.b16 %v582
    %v5458 = vunpack.c.l.b16 %v583
    %v5459 = vunpack.c.l.b16 %v584
    %v5460 = vunpack.c.l.b16 %v585
    %v5461 = vunpack.c.l.b16 %v586
    %v5462 = vunpack.c.l.b16 %v587
    %v5463 = vunpack.c.l.b16 %v588
    %v5464 = vunpack.c.l.b16 %v589
    %v5465 = vunpack.c.l.b16 %v590
    %v5466 = vunpack.c.l.b16 %v591
    %v5467 = vunpack.c.l.b16 %v592
    %v5468 = vunpack.c.l.b16 %v593
    %v5469 = vunpack.c.l.b16 %v594
    %v5470 = vunpack.c.l.b16 %v595
    %v5471 = vunpack.c.l.b16 %v596
    %v5472 = vunpack.c.l.b16 %v597
    %v5473 = vunpack.c.l.b16 %v598
    %v5474 = vunpack.c.l.b16 %v599
    %v5475 = vunpack.c.l.b16 %v600
    %v5476 = vunpack.c.l.b16 %v601
    %v5477 = vunpack.c.l.b16 %v602
    %v5478 = vunpack.c.l.b16 %v603
    %v5479 = vunpack.c.l.b16 %v604
    %v5480 = vunpack.c.l.b16 %v605
    %v5481 = vunpack.c.l.b16 %v606
    %v5482 = vunpack.c.l.b16 %v607
    %v5483 = vunpack.c.l.b16 %v608
    %v5484 = vunpack.c.l.b16 %v609
    %v5485 = vunpack.c.l.b16 %v610
    %v5486 = vunpack.c.l.b16 %v611
    %v5487 = vunpack.c.l.b16 %v612
    %v5488 = vunpack.c.l.b16 %v613
    %v5489 = vunpack.c.l.b16 %v614
    %v5490 = vunpack.c.l.b16 %v615
    %v5491 = vunpack.c.l.b16 %v616
    %v5492 = vunpack.c.l.b16 %v617
    %v5493 = vunpack.c.l.b16 %v618
    %v5494 = vunpack.c.l.b16 %v619
    %v5495 = vunpack.c.l.b16 %v620
    %v5496 = vunpack.c.l.b16 %v621
    %v5497 = vunpack.c.l.b16 %v622
    %v5498 = vunpack.c.l.b16 %v623
    %v5499 = vunpack.c.l.b16 %v624
    %v5500 = vunpack.c.l.b16 %v625
    %v5501 = vunpack.c.l.b16 %v626
    %v5502 = vunpack.c.l.b16 %v627
    %v5503 = vunpack.c.l.b16 %v628
    %v5504 = vunpack.c.l.b16 %v629
    %v5505 = vunpack.c.l.b16 %v630
    %v5506 = vunpack.c.l.b16 %v631
    %v5507 = vunpack.c.l.b16 %v632
    %v5508 = vunpack.c.l.b16 %v633
    %v5509 = vunpack.c.l.b16 %v634
    %v5510 = vunpack.c.l.b16 %v635
    %v5511 = vunpack.c.l.b16 %v636
    %v5512 = vunpack.c.l.b16 %v637
    %v5513 = vunpack.c.l.b16 %v638
    %v5514 = vunpack.c.l.b16 %v639
    %v5515 = vunpack.c.l.b16 %v640
    %v5516 = vunpack.c.l.b16 %v641
    %v5517 = vunpack.c.l.b16 %v642
    %v5518 = vunpack.c.l.b16 %v643
    %v5519 = vunpack.c.l.b16 %v644
    %v5520 = vunpack.c.l.b16 %v645
    %v5521 = vunpack.c.l.b16 %v646
    %v5522 = vunpack.c.l.b16 %v647
    %v5523 = vunpack.c.l.b16 %v648
    %v5524 = vunpack.c.l.b16 %v649
    %v5525 = vunpack.c.l.b16 %v650
    %v5526 = vunpack.c.l.b16 %v651
    %v5527 = vunpack.c.l.b16 %v652
    %v5528 = vunpack.c.l.b16 %v653
    %v5529 = vunpack.c.l.b16 %v654
    %v5530 = vunpack.c.l.b16 %v655
    %v5531 = vunpack.c.l.b16 %v656
    %v5532 = vunpack.c.l.b16 %v657
    %v5533 = vunpack.c.l.b16 %v658
    %v5534 = vunpack.c.l.b16 %v659
    %v5535 = vunpack.c.l.b16 %v660
    %v5536 = vunpack.c.l.b16 %v661
    %v5537 = vunpack.c.l.b16 %v662
    %v5538 = vunpack.c.l.b16 %v663
    %v5539 = vunpack.c.l.b16 %v664
    %v5540 = vunpack.c.l.b16 %v665
    %v5541 = vunpack.c.l.b16 %v666
    %v5542 = vunpack.c.l.b16 %v667
    %v5543 = vunpack.c.l.b16 %v668
    %v5544 = vunpack.c.l.b16 %v669
    %v5545 = vunpack.c.l.b16 %v670
    %v5546 = vunpack.c.l.b16 %v671
    %v5547 = vunpack.c.l.b16 %v672
    %v5548 = vunpack.c.l.b16 %v673
    %v5549 = vunpack.c.l.b16 %v674
    %v5550 = vunpack.c.l.b16 %v675
    %v5551 = vunpack.c.l.b16 %v676
    %v5552 = vunpack.c.l.b16 %v677
    %v5553 = vpack.c.b16 %v5298, %v5297
    %v5554 = vpack.c.b16 %v5300, %v5299
    %v5555 = vpack.c.b16 %v5302, %v5301
    %v5556 = vpack.c.b16 %v5304, %v5303
    %v5557 = vpack.c.b16 %v5306, %v5305
    %v5558 = vpack.c.b16 %v5308, %v5307
    %v5559 = vpack.c.b16 %v5310, %v5309
    %v5560 = vpack.c.b16 %v5312, %v5311
    %v5561 = vpack.c.b16 %v5314, %v5313
    %v5562 = vpack.c.b16 %v5316, %v5315
    %v5563 = vpack.c.b16 %v5318, %v5317
    %v5564 = vpack.c.b16 %v5320, %v5319
    %v5565 = vpack.c.b16 %v5322, %v5321
    %v5566 = vpack.c.b16 %v5324, %v5323
    %v5567 = vpack.c.b16 %v5326, %v5325
    %v5568 = vpack.c.b16 %v5328, %v5327
    %v5569 = vpack.c.b16 %v5330, %v5329
    %v5570 = vpack.c.b16 %v5332, %v5331
    %v5571 = vpack.c.b16 %v5334, %v5333
    %v5572 = vpack.c.b16 %v5336, %v5335
    %v5573 = vpack.c.b16 %v5338, %v5337
    %v5574 = vpack.c.b16 %v5340, %v5339
    %v5575 = vpack.c.b16 %v5342, %v5341
    %v5576 = vpack.c.b16 %v5344, %v5343
    %v5577 = vpack.c.b16 %v5346, %v5345
    %v5578 = vpack.c.b16 %v5348, %v5347
    %v5579 = vpack.c.b16 %v5350, %v5349
    %v5580 = vpack.c.b16 %v5352, %v5351
    %v5581 = vpack.c.b16 %v5354, %v5353
    %v5582 = vpack.c.b16 %v5356, %v5355
    %v5583 = vpack.c.b16 %v5358, %v5357
    %v5584 = vpack.c.b16 %v5360, %v5359
    %v5585 = vpack.c.b16 %v5362, %v5361
    %v5586 = vpack.c.b16 %v5364, %v5363
    %v5587 = vpack.c.b16 %v5366, %v5365
    %v5588 = vpack.c.b16 %v5368, %v5367
    %v5589 = vpack.c.b16 %v5370, %v5369
    %v5590 = vpack.c.b16 %v5372, %v5371
    %v5591 = vpack.c.b16 %v5374, %v5373
    %v5592 = vpack.c.b16 %v5376, %v5375
    %v5593 = vpack.c.b16 %v5378, %v5377
    %v5594 = vpack.c.b16 %v5380, %v5379
    %v5595 = vpack.c.b16 %v5382, %v5381
    %v5596 = vpack.c.b16 %v5384, %v5383
    %v5597 = vpack.c.b16 %v5386, %v5385
    %v5598 = vpack.c.b16 %v5388, %v5387
    %v5599 = vpack.c.b16 %v5390, %v5389
    %v5600 = vpack.c.b16 %v5392, %v5391
    %v5601 = vpack.c.b16 %v5394, %v5393
    %v5602 = vpack.c.b16 %v5396, %v5395
    %v5603 = vpack.c.b16 %v5398, %v5397
    %v5604 = vpack.c.b16 %v5400, %v5399
    %v5605 = vpack.c.b16 %v5402, %v5401
    %v5606 = vpack.c.b16 %v5404, %v5403
    %v5607 = vpack.c.b16 %v5406, %v5405
    %v5608 = vpack.c.b16 %v5408, %v5407
    %v5609 = vpack.c.b16 %v5410, %v5409
    %v5610 = vpack.c.b16 %v5412, %v5411
    %v5611 = vpack.c.b16 %v5414, %v5413
    %v5612 = vpack.c.b16 %v5416, %v5415
    %v5613 = vpack.c.b16 %v5418, %v5417
    %v5614 = vpack.c.b16 %v5420, %v5419
    %v5615 = vpack.c.b16 %v5422, %v5421
    %v5616 = vpack.c.b16 %v5424, %v5423
    %v5617 = vpack.c.b16 %v5426, %v5425
    %v5618 = vpack.c.b16 %v5428, %v5427
    %v5619 = vpack.c.b16 %v5430, %v5429
    %v5620 = vpack.c.b16 %v5432, %v5431
    %v5621 = vpack.c.b16 %v5434, %v5433
    %v5622 = vpack.c.b16 %v5436, %v5435
    %v5623 = vpack.c.b16 %v5438, %v5437
    %v5624 = vpack.c.b16 %v5440, %v5439
    %v5625 = vpack.c.b16 %v5442, %v5441
    %v5626 = vpack.c.b16 %v5444, %v5443
    %v5627 = vpack.c.b16 %v5446, %v5445
    %v5628 = vpack.c.b16 %v5448, %v5447
    %v5629 = vpack.c.b16 %v5450, %v5449
    %v5630 = vpack.c.b16 %v5452, %v5451
    %v5631 = vpack.c.b16 %v5454, %v5453
    %v5632 = vpack.c.b16 %v5456, %v5455
    %v5633 = vpack.c.b16 %v5458, %v5457
    %v5634 = vpack.c.b16 %v5460, %v5459
    %v5635 = vpack.c.b16 %v5462, %v5461
    %v5636 = vpack.c.b16 %v5464, %v5463
    %v5637 = vpack.c.b16 %v5466, %v5465
    %v5638 = vpack.c.b16 %v5468, %v5467
    %v5639 = vpack.c.b16 %v5470, %v5469
    %v5640 = vpack.c.b16 %v5472, %v5471
    %v5641 = vpack.c.b16 %v5474, %v5473
    %v5642 = vpack.c.b16 %v5476, %v5475
    %v5643 = vpack.c.b16 %v5478, %v5477
    %v5644 = vpack.c.b16 %v5480, %v5479
    %v5645 = vpack.c.b16 %v5482, %v5481
    %v5646 = vpack.c.b16 %v5484, %v5483
    %v5647 = vpack.c.b16 %v5486, %v5485
    %v5648 = vpack.c.b16 %v5488, %v5487
    %v5649 = vpack.c.b16 %v5490, %v5489
    %v5650 = vpack.c.b16 %v5492, %v5491
    %v5651 = vpack.c.b16 %v5494, %v5493
    %v5652 = vpack.c.b16 %v5496, %v5495
    %v5653 = vpack.c.b16 %v5498, %v5497
    %v5654 = vpack.c.b16 %v5500, %v5499
    %v5655 = vpack.c.b16 %v5502, %v5501
    %v5656 = vpack.c.b16 %v5504, %v5503
    %v5657 = vpack.c.b16 %v5506, %v5505
    %v5658 = vpack.c.b16 %v5508, %v5507
    %v5659 = vpack.c.b16 %v5510, %v5509
    %v5660 = vpack.c.b16 %v5512, %v5511
    %v5661 = vpack.c.b16 %v5514, %v5513
    %v5662 = vpack.c.b16 %v5516, %v5515
    %v5663 = vpack.c.b16 %v5518, %v5517
    %v5664 = vpack.c.b16 %v5520, %v5519
    %v5665 = vpack.c.b16 %v5522, %v5521
    %v5666 = vpack.c.b16 %v5524, %v5523
    %v5667 = vpack.c.b16 %v5526, %v5525
    %v5668 = vpack.c.b16 %v5528, %v5527
    %v5669 = vpack.c.b16 %v5530, %v5529
    %v5670 = vpack.c.b16 %v5532, %v5531
    %v5671 = vpack.c.b16 %v5534, %v5533
    %v5672 = vpack.c.b16 %v5536, %v5535
    %v5673 = vpack.c.b16 %v5538, %v5537
    %v5674 = vpack.c.b16 %v5540, %v5539
    %v5675 = vpack.c.b16 %v5542, %v5541
    %v5676 = vpack.c.b16 %v5544, %v5543
    %v5677 = vpack.c.b16 %v5546, %v5545
    %v5678 = vpack.c.b16 %v5548, %v5547
    %v5679 = vpack.c.b16 %v5550, %v5549
    %v5680 = vpack.c.b16 %v5552, %v5551
    %v5682 = vsel %vm966, %v4896, 0
    %v5685 = vsel %vm966, %v5553, 0
    %v5688 = vsel %vm966, %v5554, 0
    %v5691 = vsel %vm966, %v5555, 0
    %v5694 = vsel %vm966, %v5556, 0
    %v5697 = vsel %vm966, %v5557, 0
    %v5700 = vsel %vm966, %v5558, 0
    %v5703 = vsel %vm966, %v5559, 0
    %v5706 = vsel %vm966, %v5560, 0
    %v5709 = vsel %vm966, %v5561, 0
    %v5712 = vsel %vm966, %v5562, 0
    %v5715 = vsel %vm966, %v5563, 0
    %v5718 = vsel %vm966, %v5564, 0
    %v5721 = vsel %vm966, %v5565, 0
    %v5724 = vsel %vm966, %v5566, 0
    %v5727 = vsel %vm966, %v5567, 0
    %v5730 = vsel %vm966, %v5568, 0
    %v5733 = vsel %vm966, %v5569, 0
    %v5736 = vsel %vm966, %v5570, 0
    %v5739 = vsel %vm966, %v5571, 0
    %v5742 = vsel %vm966, %v5572, 0
    %v5745 = vsel %vm966, %v5573, 0
    %v5748 = vsel %vm966, %v5574, 0
    %v5751 = vsel %vm966, %v5575, 0
    %v5754 = vsel %vm966, %v5576, 0
    %v5757 = vsel %vm966, %v5577, 0
    %v5760 = vsel %vm966, %v5578, 0
    %v5763 = vsel %vm966, %v5579, 0
    %v5766 = vsel %vm966, %v5580, 0
    %v5769 = vsel %vm966, %v5581, 0
    %v5772 = vsel %vm966, %v5582, 0
    %v5775 = vsel %vm966, %v5583, 0
    %v5778 = vsel %vm966, %v5584, 0
    %v5781 = vsel %vm966, %v5585, 0
    %v5784 = vsel %vm966, %v5586, 0
    %v5787 = vsel %vm966, %v5587, 0
    %v5790 = vsel %vm966, %v5588, 0
    %v5793 = vsel %vm966, %v5589, 0
    %v5796 = vsel %vm966, %v5590, 0
    %v5799 = vsel %vm966, %v5591, 0
    %v5802 = vsel %vm966, %v5592, 0
    %v5805 = vsel %vm966, %v5593, 0
    %v5808 = vsel %vm966, %v5594, 0
    %v5811 = vsel %vm966, %v5595, 0
    %v5814 = vsel %vm966, %v5596, 0
    %v5817 = vsel %vm966, %v5597, 0
    %v5820 = vsel %vm966, %v5598, 0
    %v5823 = vsel %vm966, %v5599, 0
    %v5826 = vsel %vm966, %v5600, 0
    %v5829 = vsel %vm966, %v5601, 0
    %v5832 = vsel %vm966, %v5602, 0
    %v5835 = vsel %vm966, %v5603, 0
    %v5838 = vsel %vm966, %v5604, 0
    %v5841 = vsel %vm966, %v5605, 0
    %v5844 = vsel %vm966, %v5606, 0
    %v5847 = vsel %vm966, %v5607, 0
    %v5850 = vsel %vm966, %v5608, 0
    %v5853 = vsel %vm966, %v5609, 0
    %v5856 = vsel %vm966, %v5610, 0
    %v5859 = vsel %vm966, %v5611, 0
    %v5862 = vsel %vm966, %v5612, 0
    %v5865 = vsel %vm966, %v5613, 0
    %v5868 = vsel %vm966, %v5614, 0
    %v5871 = vsel %vm966, %v5615, 0
    %v5874 = vsel %vm966, %v5616, 0
    %v5877 = vsel %vm966, %v5617, 0
    %v5880 = vsel %vm966, %v5618, 0
    %v5883 = vsel %vm966, %v5619, 0
    %v5886 = vsel %vm966, %v5620, 0
    %v5889 = vsel %vm966, %v5621, 0
    %v5892 = vsel %vm966, %v5622, 0
    %v5895 = vsel %vm966, %v5623, 0
    %v5898 = vsel %vm966, %v5624, 0
    %v5901 = vsel %vm966, %v5625, 0
    %v5904 = vsel %vm966, %v5626, 0
    %v5907 = vsel %vm966, %v5627, 0
    %v5910 = vsel %vm966, %v5628, 0
    %v5913 = vsel %vm966, %v5629, 0
    %v5916 = vsel %vm966, %v5630, 0
    %v5919 = vsel %vm966, %v5631, 0
    %v5922 = vsel %vm966, %v5632, 0
    %v5925 = vsel %vm966, %v5633, 0
    %v5928 = vsel %vm966, %v5634, 0
    %v5931 = vsel %vm966, %v5635, 0
    %v5934 = vsel %vm966, %v5636, 0
    %v5937 = vsel %vm966, %v5637, 0
    %v5940 = vsel %vm966, %v5638, 0
    %v5943 = vsel %vm966, %v5639, 0
    %v5946 = vsel %vm966, %v5640, 0
    %v5949 = vsel %vm966, %v5641, 0
    %v5952 = vsel %vm966, %v5642, 0
    %v5955 = vsel %vm966, %v5643, 0
    %v5958 = vsel %vm966, %v5644, 0
    %v5961 = vsel %vm966, %v5645, 0
    %v5964 = vsel %vm966, %v5646, 0
    %v5967 = vsel %vm966, %v5647, 0
    %v5970 = vsel %vm966, %v5648, 0
    %v5973 = vsel %vm966, %v5649, 0
    %v5976 = vsel %vm966, %v5650, 0
    %v5979 = vsel %vm966, %v5651, 0
    %v5982 = vsel %vm966, %v5652, 0
    %v5985 = vsel %vm966, %v5653, 0
    %v5988 = vsel %vm966, %v5654, 0
    %v5991 = vsel %vm966, %v5655, 0
    %v5994 = vsel %vm966, %v5656, 0
    %v5997 = vsel %vm966, %v5657, 0
    %v6000 = vsel %vm966, %v5658, 0
    %v6003 = vsel %vm966, %v5659, 0
    %v6006 = vsel %vm966, %v5660, 0
    %v6009 = vsel %vm966, %v5661, 0
    %v6012 = vsel %vm966, %v5662, 0
    %v6015 = vsel %vm966, %v5663, 0
    %v6018 = vsel %vm966, %v5664, 0
    %v6021 = vsel %vm966, %v5665, 0
    %v6024 = vsel %vm966, %v5666, 0
    %v6027 = vsel %vm966, %v5667, 0
    %v6030 = vsel %vm966, %v5668, 0
    %v6033 = vsel %vm966, %v5669, 0
    %v6036 = vsel %vm966, %v5670, 0
    %v6039 = vsel %vm966, %v5671, 0
    %v6042 = vsel %vm966, %v5672, 0
    %v6045 = vsel %vm966, %v5673, 0
    %v6048 = vsel %vm966, %v5674, 0
    %v6051 = vsel %vm966, %v5675, 0
    %v6054 = vsel %vm966, %v5676, 0
    %v6057 = vsel %vm966, %v5677, 0
    %v6060 = vsel %vm966, %v5678, 0
    %v6063 = vsel %vm966, %v5679, 0
    %v6066 = vsel %vm966, %v5680, 0
    %6068 = vmatprep.subr.bf16.mxu0 0
    %6069 = vmatpush1.bf16.xpose.msra.mxu0 %v5685
    %6070 = vmatprep.subr.bf16.mxu0 0
    %6071 = vmatpush1.bf16.xpose.msra.mxu0 %v5688
    %6072 = vmatprep.subr.bf16.mxu0 0
    %6073 = vmatpush1.bf16.xpose.msra.mxu0 %v5691
    %6074 = vmatprep.subr.bf16.mxu0 0
    %6075 = vmatpush1.bf16.xpose.msra.mxu0 %v5694
    %6076 = vmatprep.subr.bf16.mxu0 0
    %6077 = vmatpush1.bf16.xpose.msra.mxu0 %v5697
    %6078 = vmatprep.subr.bf16.mxu0 0
    %6079 = vmatpush1.bf16.xpose.msra.mxu0 %v5700
    %6080 = vmatprep.subr.bf16.mxu0 0
    %6081 = vmatpush1.bf16.xpose.msra.mxu0 %v5703
    %6082 = vmatprep.subr.bf16.mxu0 0
    %6083 = vmatpush1.bf16.xpose.msra.mxu0 %v5706
    %6084 = vmatprep.subr.bf16.mxu0 0
    %6085 = vmatpush1.bf16.xpose.msra.mxu0 %v5709
    %6086 = vmatprep.subr.bf16.mxu0 0
    %6087 = vmatpush1.bf16.xpose.msra.mxu0 %v5712
    %6088 = vmatprep.subr.bf16.mxu0 0
    %6089 = vmatpush1.bf16.xpose.msra.mxu0 %v5715
    %6090 = vmatprep.subr.bf16.mxu0 0
    %6091 = vmatpush1.bf16.xpose.msra.mxu0 %v5718
    %6092 = vmatprep.subr.bf16.mxu0 0
    %6093 = vmatpush1.bf16.xpose.msra.mxu0 %v5721
    %6094 = vmatprep.subr.bf16.mxu0 0
    %6095 = vmatpush1.bf16.xpose.msra.mxu0 %v5724
    %6096 = vmatprep.subr.bf16.mxu0 0
    %6097 = vmatpush1.bf16.xpose.msra.mxu0 %v5727
    %6098 = vmatprep.subr.bf16.mxu0 0
    %6099 = vmatpush1.bf16.xpose.msra.mxu0 %v5730
    %6100 = vmatprep.mubr.bf16.mxu0 0
    %6101 = vmatmul.mubr.bf16.gmra.mrb[0].mxu0 %v5682
    %v6102 = vpop.f32.mrb[0].mxu0
    %v6103 = vadd.f32 %v4980, %v6102
    %v6104 = vpop.f32.mrb[0].mxu0
    %v6105 = vadd.f32 %v4984, %v6104
    %v6106 = vpop.f32.mrb[0].mxu0
    %v6107 = vadd.f32 %v4980, %v6106
    %v6108 = vpop.f32.mrb[0].mxu0
    %v6109 = vadd.f32 %v4984, %v6108
    %6110 = vdwg.mxu0
    %6111 = vmatprep.subr.bf16.mxu0 0
    %6112 = vmatpush1.bf16.xpose.msra.mxu0 %v5733
    %6113 = vmatprep.subr.bf16.mxu0 0
    %6114 = vmatpush1.bf16.xpose.msra.mxu0 %v5736
    %6115 = vmatprep.subr.bf16.mxu0 0
    %6116 = vmatpush1.bf16.xpose.msra.mxu0 %v5739
    %6117 = vmatprep.subr.bf16.mxu0 0
    %6118 = vmatpush1.bf16.xpose.msra.mxu0 %v5742
    %6119 = vmatprep.subr.bf16.mxu0 0
    %6120 = vmatpush1.bf16.xpose.msra.mxu0 %v5745
    %6121 = vmatprep.subr.bf16.mxu0 0
    %6122 = vmatpush1.bf16.xpose.msra.mxu0 %v5748
    %6123 = vmatprep.subr.bf16.mxu0 0
    %6124 = vmatpush1.bf16.xpose.msra.mxu0 %v5751
    %6125 = vmatprep.subr.bf16.mxu0 0
    %6126 = vmatpush1.bf16.xpose.msra.mxu0 %v5754
    %6127 = vmatprep.subr.bf16.mxu0 0
    %6128 = vmatpush1.bf16.xpose.msra.mxu0 %v5757
    %6129 = vmatprep.subr.bf16.mxu0 0
    %6130 = vmatpush1.bf16.xpose.msra.mxu0 %v5760
    %6131 = vmatprep.subr.bf16.mxu0 0
    %6132 = vmatpush1.bf16.xpose.msra.mxu0 %v5763
    %6133 = vmatprep.subr.bf16.mxu0 0
    %6134 = vmatpush1.bf16.xpose.msra.mxu0 %v5766
    %6135 = vmatprep.subr.bf16.mxu0 0
    %6136 = vmatpush1.bf16.xpose.msra.mxu0 %v5769
    %6137 = vmatprep.subr.bf16.mxu0 0
    %6138 = vmatpush1.bf16.xpose.msra.mxu0 %v5772
    %6139 = vmatprep.subr.bf16.mxu0 0
    %6140 = vmatpush1.bf16.xpose.msra.mxu0 %v5775
    %6141 = vmatprep.subr.bf16.mxu0 0
    %6142 = vmatpush1.bf16.xpose.msra.mxu0 %v5778
    %6143 = vmatprep.mubr.bf16.mxu0 0
    %6144 = vmatmul.mubr.bf16.gmra.mrb[0].mxu0 %v5682
    %v6145 = vpop.f32.mrb[0].mxu0
    %v6146 = vadd.f32 %v4988, %v6145
    %v6147 = vpop.f32.mrb[0].mxu0
    %v6148 = vadd.f32 %v4992, %v6147
    %v6149 = vpop.f32.mrb[0].mxu0
    %v6150 = vadd.f32 %v4988, %v6149
    %v6151 = vpop.f32.mrb[0].mxu0
    %v6152 = vadd.f32 %v4992, %v6151
    %6153 = vdwg.mxu0
    %6154 = vmatprep.subr.bf16.mxu0 0
    %6155 = vmatpush1.bf16.xpose.msra.mxu0 %v5781
    %6156 = vmatprep.subr.bf16.mxu0 0
    %6157 = vmatpush1.bf16.xpose.msra.mxu0 %v5784
    %6158 = vmatprep.subr.bf16.mxu0 0
    %6159 = vmatpush1.bf16.xpose.msra.mxu0 %v5787
    %6160 = vmatprep.subr.bf16.mxu0 0
    %6161 = vmatpush1.bf16.xpose.msra.mxu0 %v5790
    %6162 = vmatprep.subr.bf16.mxu0 0
    %6163 = vmatpush1.bf16.xpose.msra.mxu0 %v5793
    %6164 = vmatprep.subr.bf16.mxu0 0
    %6165 = vmatpush1.bf16.xpose.msra.mxu0 %v5796
    %6166 = vmatprep.subr.bf16.mxu0 0
    %6167 = vmatpush1.bf16.xpose.msra.mxu0 %v5799
    %6168 = vmatprep.subr.bf16.mxu0 0
    %6169 = vmatpush1.bf16.xpose.msra.mxu0 %v5802
    %6170 = vmatprep.subr.bf16.mxu0 0
    %6171 = vmatpush1.bf16.xpose.msra.mxu0 %v5805
    %6172 = vmatprep.subr.bf16.mxu0 0
    %6173 = vmatpush1.bf16.xpose.msra.mxu0 %v5808
    %6174 = vmatprep.subr.bf16.mxu0 0
    %6175 = vmatpush1.bf16.xpose.msra.mxu0 %v5811
    %6176 = vmatprep.subr.bf16.mxu0 0
    %6177 = vmatpush1.bf16.xpose.msra.mxu0 %v5814
    %6178 = vmatprep.subr.bf16.mxu0 0
    %6179 = vmatpush1.bf16.xpose.msra.mxu0 %v5817
    %6180 = vmatprep.subr.bf16.mxu0 0
    %6181 = vmatpush1.bf16.xpose.msra.mxu0 %v5820
    %6182 = vmatprep.subr.bf16.mxu0 0
    %6183 = vmatpush1.bf16.xpose.msra.mxu0 %v5823
    %6184 = vmatprep.subr.bf16.mxu0 0
    %6185 = vmatpush1.bf16.xpose.msra.mxu0 %v5826
    %6186 = vmatprep.mubr.bf16.mxu0 0
    %6187 = vmatmul.mubr.bf16.gmra.mrb[0].mxu0 %v5682
    %v6188 = vpop.f32.mrb[0].mxu0
    %v6189 = vadd.f32 %v4996, %v6188
    %v6190 = vpop.f32.mrb[0].mxu0
    %v6191 = vadd.f32 %v5000, %v6190
    %v6192 = vpop.f32.mrb[0].mxu0
    %v6193 = vadd.f32 %v4996, %v6192
    %v6194 = vpop.f32.mrb[0].mxu0
    %v6195 = vadd.f32 %v5000, %v6194
    %6196 = vdwg.mxu0
    %6197 = vmatprep.subr.bf16.mxu0 0
    %6198 = vmatpush1.bf16.xpose.msra.mxu0 %v5829
    %6199 = vmatprep.subr.bf16.mxu0 0
    %6200 = vmatpush1.bf16.xpose.msra.mxu0 %v5832
    %6201 = vmatprep.subr.bf16.mxu0 0
    %6202 = vmatpush1.bf16.xpose.msra.mxu0 %v5835
    %6203 = vmatprep.subr.bf16.mxu0 0
    %6204 = vmatpush1.bf16.xpose.msra.mxu0 %v5838
    %6205 = vmatprep.subr.bf16.mxu0 0
    %6206 = vmatpush1.bf16.xpose.msra.mxu0 %v5841
    %6207 = vmatprep.subr.bf16.mxu0 0
    %6208 = vmatpush1.bf16.xpose.msra.mxu0 %v5844
    %6209 = vmatprep.subr.bf16.mxu0 0
    %6210 = vmatpush1.bf16.xpose.msra.mxu0 %v5847
    %6211 = vmatprep.subr.bf16.mxu0 0
    %6212 = vmatpush1.bf16.xpose.msra.mxu0 %v5850
    %6213 = vmatprep.subr.bf16.mxu0 0
    %6214 = vmatpush1.bf16.xpose.msra.mxu0 %v5853
    %6215 = vmatprep.subr.bf16.mxu0 0
    %6216 = vmatpush1.bf16.xpose.msra.mxu0 %v5856
    %6217 = vmatprep.subr.bf16.mxu0 0
    %6218 = vmatpush1.bf16.xpose.msra.mxu0 %v5859
    %6219 = vmatprep.subr.bf16.mxu0 0
    %6220 = vmatpush1.bf16.xpose.msra.mxu0 %v5862
    %6221 = vmatprep.subr.bf16.mxu0 0
    %6222 = vmatpush1.bf16.xpose.msra.mxu0 %v5865
    %6223 = vmatprep.subr.bf16.mxu0 0
    %6224 = vmatpush1.bf16.xpose.msra.mxu0 %v5868
    %6225 = vmatprep.subr.bf16.mxu0 0
    %6226 = vmatpush1.bf16.xpose.msra.mxu0 %v5871
    %6227 = vmatprep.subr.bf16.mxu0 0
    %6228 = vmatpush1.bf16.xpose.msra.mxu0 %v5874
    %6229 = vmatprep.mubr.bf16.mxu0 0
    %6230 = vmatmul.mubr.bf16.gmra.mrb[0].mxu0 %v5682
    %v6231 = vpop.f32.mrb[0].mxu0
    %v6232 = vadd.f32 %v5004, %v6231
    %v6233 = vpop.f32.mrb[0].mxu0
    %v6234 = vadd.f32 %v5008, %v6233
    %v6235 = vpop.f32.mrb[0].mxu0
    %v6236 = vadd.f32 %v5004, %v6235
    %v6237 = vpop.f32.mrb[0].mxu0
    %v6238 = vadd.f32 %v5008, %v6237
    %6239 = vdwg.mxu0
    %6240 = vmatprep.subr.bf16.mxu0 0
    %6241 = vmatpush1.bf16.xpose.msra.mxu0 %v5877
    %6242 = vmatprep.subr.bf16.mxu0 0
    %6243 = vmatpush1.bf16.xpose.msra.mxu0 %v5880
    %6244 = vmatprep.subr.bf16.mxu0 0
    %6245 = vmatpush1.bf16.xpose.msra.mxu0 %v5883
    %6246 = vmatprep.subr.bf16.mxu0 0
    %6247 = vmatpush1.bf16.xpose.msra.mxu0 %v5886
    %6248 = vmatprep.subr.bf16.mxu0 0
    %6249 = vmatpush1.bf16.xpose.msra.mxu0 %v5889
    %6250 = vmatprep.subr.bf16.mxu0 0
    %6251 = vmatpush1.bf16.xpose.msra.mxu0 %v5892
    %6252 = vmatprep.subr.bf16.mxu0 0
    %6253 = vmatpush1.bf16.xpose.msra.mxu0 %v5895
    %6254 = vmatprep.subr.bf16.mxu0 0
    %6255 = vmatpush1.bf16.xpose.msra.mxu0 %v5898
    %6256 = vmatprep.subr.bf16.mxu0 0
    %6257 = vmatpush1.bf16.xpose.msra.mxu0 %v5901
    %6258 = vmatprep.subr.bf16.mxu0 0
    %6259 = vmatpush1.bf16.xpose.msra.mxu0 %v5904
    %6260 = vmatprep.subr.bf16.mxu0 0
    %6261 = vmatpush1.bf16.xpose.msra.mxu0 %v5907
    %6262 = vmatprep.subr.bf16.mxu0 0
    %6263 = vmatpush1.bf16.xpose.msra.mxu0 %v5910
    %6264 = vmatprep.subr.bf16.mxu0 0
    %6265 = vmatpush1.bf16.xpose.msra.mxu0 %v5913
    %6266 = vmatprep.subr.bf16.mxu0 0
    %6267 = vmatpush1.bf16.xpose.msra.mxu0 %v5916
    %6268 = vmatprep.subr.bf16.mxu0 0
    %6269 = vmatpush1.bf16.xpose.msra.mxu0 %v5919
    %6270 = vmatprep.subr.bf16.mxu0 0
    %6271 = vmatpush1.bf16.xpose.msra.mxu0 %v5922
    %6272 = vmatprep.mubr.bf16.mxu0 0
    %6273 = vmatmul.mubr.bf16.gmra.mrb[0].mxu0 %v5682
    %v6274 = vpop.f32.mrb[0].mxu0
    %v6275 = vadd.f32 %v5012, %v6274
    %v6276 = vpop.f32.mrb[0].mxu0
    %v6277 = vadd.f32 %v5016, %v6276
    %v6278 = vpop.f32.mrb[0].mxu0
    %v6279 = vadd.f32 %v5012, %v6278
    %v6280 = vpop.f32.mrb[0].mxu0
    %v6281 = vadd.f32 %v5016, %v6280
    %6282 = vdwg.mxu0
    %6283 = vmatprep.subr.bf16.mxu0 0
    %6284 = vmatpush1.bf16.xpose.msra.mxu0 %v5925
    %6285 = vmatprep.subr.bf16.mxu0 0
    %6286 = vmatpush1.bf16.xpose.msra.mxu0 %v5928
    %6287 = vmatprep.subr.bf16.mxu0 0
    %6288 = vmatpush1.bf16.xpose.msra.mxu0 %v5931
    %6289 = vmatprep.subr.bf16.mxu0 0
    %6290 = vmatpush1.bf16.xpose.msra.mxu0 %v5934
    %6291 = vmatprep.subr.bf16.mxu0 0
    %6292 = vmatpush1.bf16.xpose.msra.mxu0 %v5937
    %6293 = vmatprep.subr.bf16.mxu0 0
    %6294 = vmatpush1.bf16.xpose.msra.mxu0 %v5940
    %6295 = vmatprep.subr.bf16.mxu0 0
    %6296 = vmatpush1.bf16.xpose.msra.mxu0 %v5943
    %6297 = vmatprep.subr.bf16.mxu0 0
    %6298 = vmatpush1.bf16.xpose.msra.mxu0 %v5946
    %6299 = vmatprep.subr.bf16.mxu0 0
    %6300 = vmatpush1.bf16.xpose.msra.mxu0 %v5949
    %6301 = vmatprep.subr.bf16.mxu0 0
    %6302 = vmatpush1.bf16.xpose.msra.mxu0 %v5952
    %6303 = vmatprep.subr.bf16.mxu0 0
    %6304 = vmatpush1.bf16.xpose.msra.mxu0 %v5955
    %6305 = vmatprep.subr.bf16.mxu0 0
    %6306 = vmatpush1.bf16.xpose.msra.mxu0 %v5958
    %6307 = vmatprep.subr.bf16.mxu0 0
    %6308 = vmatpush1.bf16.xpose.msra.mxu0 %v5961
    %6309 = vmatprep.subr.bf16.mxu0 0
    %6310 = vmatpush1.bf16.xpose.msra.mxu0 %v5964
    %6311 = vmatprep.subr.bf16.mxu0 0
    %6312 = vmatpush1.bf16.xpose.msra.mxu0 %v5967
    %6313 = vmatprep.subr.bf16.mxu0 0
    %6314 = vmatpush1.bf16.xpose.msra.mxu0 %v5970
    %6315 = vmatprep.mubr.bf16.mxu0 0
    %6316 = vmatmul.mubr.bf16.gmra.mrb[0].mxu0 %v5682
    %v6317 = vpop.f32.mrb[0].mxu0
    %v6318 = vadd.f32 %v5020, %v6317
    %v6319 = vpop.f32.mrb[0].mxu0
    %v6320 = vadd.f32 %v5024, %v6319
    %v6321 = vpop.f32.mrb[0].mxu0
    %v6322 = vadd.f32 %v5020, %v6321
    %v6323 = vpop.f32.mrb[0].mxu0
    %v6324 = vadd.f32 %v5024, %v6323
    %6325 = vdwg.mxu0
    %6326 = vmatprep.subr.bf16.mxu0 0
    %6327 = vmatpush1.bf16.xpose.msra.mxu0 %v5973
    %6328 = vmatprep.subr.bf16.mxu0 0
    %6329 = vmatpush1.bf16.xpose.msra.mxu0 %v5976
    %6330 = vmatprep.subr.bf16.mxu0 0
    %6331 = vmatpush1.bf16.xpose.msra.mxu0 %v5979
    %6332 = vmatprep.subr.bf16.mxu0 0
    %6333 = vmatpush1.bf16.xpose.msra.mxu0 %v5982
    %6334 = vmatprep.subr.bf16.mxu0 0
    %6335 = vmatpush1.bf16.xpose.msra.mxu0 %v5985
    %6336 = vmatprep.subr.bf16.mxu0 0
    %6337 = vmatpush1.bf16.xpose.msra.mxu0 %v5988
    %6338 = vmatprep.subr.bf16.mxu0 0
    %6339 = vmatpush1.bf16.xpose.msra.mxu0 %v5991
    %6340 = vmatprep.subr.bf16.mxu0 0
    %6341 = vmatpush1.bf16.xpose.msra.mxu0 %v5994
    %6342 = vmatprep.subr.bf16.mxu0 0
    %6343 = vmatpush1.bf16.xpose.msra.mxu0 %v5997
    %6344 = vmatprep.subr.bf16.mxu0 0
    %6345 = vmatpush1.bf16.xpose.msra.mxu0 %v6000
    %6346 = vmatprep.subr.bf16.mxu0 0
    %6347 = vmatpush1.bf16.xpose.msra.mxu0 %v6003
    %6348 = vmatprep.subr.bf16.mxu0 0
    %6349 = vmatpush1.bf16.xpose.msra.mxu0 %v6006
    %6350 = vmatprep.subr.bf16.mxu0 0
    %6351 = vmatpush1.bf16.xpose.msra.mxu0 %v6009
    %6352 = vmatprep.subr.bf16.mxu0 0
    %6353 = vmatpush1.bf16.xpose.msra.mxu0 %v6012
    %6354 = vmatprep.subr.bf16.mxu0 0
    %6355 = vmatpush1.bf16.xpose.msra.mxu0 %v6015
    %6356 = vmatprep.subr.bf16.mxu0 0
    %6357 = vmatpush1.bf16.xpose.msra.mxu0 %v6018
    %6358 = vmatprep.mubr.bf16.mxu0 0
    %6359 = vmatmul.mubr.bf16.gmra.mrb[0].mxu0 %v5682
    %v6360 = vpop.f32.mrb[0].mxu0
    %v6361 = vadd.f32 %v5028, %v6360
    %v6362 = vpop.f32.mrb[0].mxu0
    %v6363 = vadd.f32 %v5032, %v6362
    %v6364 = vpop.f32.mrb[0].mxu0
    %v6365 = vadd.f32 %v5028, %v6364
    %v6366 = vpop.f32.mrb[0].mxu0
    %v6367 = vadd.f32 %v5032, %v6366
    %6368 = vdwg.mxu0
    %6369 = vmatprep.subr.bf16.mxu0 0
    %6370 = vmatpush1.bf16.xpose.msra.mxu0 %v6021
    %6371 = vmatprep.subr.bf16.mxu0 0
    %6372 = vmatpush1.bf16.xpose.msra.mxu0 %v6024
    %6373 = vmatprep.subr.bf16.mxu0 0
    %6374 = vmatpush1.bf16.xpose.msra.mxu0 %v6027
    %6375 = vmatprep.subr.bf16.mxu0 0
    %6376 = vmatpush1.bf16.xpose.msra.mxu0 %v6030
    %6377 = vmatprep.subr.bf16.mxu0 0
    %6378 = vmatpush1.bf16.xpose.msra.mxu0 %v6033
    %6379 = vmatprep.subr.bf16.mxu0 0
    %6380 = vmatpush1.bf16.xpose.msra.mxu0 %v6036
    %6381 = vmatprep.subr.bf16.mxu0 0
    %6382 = vmatpush1.bf16.xpose.msra.mxu0 %v6039
    %6383 = vmatprep.subr.bf16.mxu0 0
    %6384 = vmatpush1.bf16.xpose.msra.mxu0 %v6042
    %6385 = vmatprep.subr.bf16.mxu0 0
    %6386 = vmatpush1.bf16.xpose.msra.mxu0 %v6045
    %6387 = vmatprep.subr.bf16.mxu0 0
    %6388 = vmatpush1.bf16.xpose.msra.mxu0 %v6048
    %6389 = vmatprep.subr.bf16.mxu0 0
    %6390 = vmatpush1.bf16.xpose.msra.mxu0 %v6051
    %6391 = vmatprep.subr.bf16.mxu0 0
    %6392 = vmatpush1.bf16.xpose.msra.mxu0 %v6054
    %6393 = vmatprep.subr.bf16.mxu0 0
    %6394 = vmatpush1.bf16.xpose.msra.mxu0 %v6057
    %6395 = vmatprep.subr.bf16.mxu0 0
    %6396 = vmatpush1.bf16.xpose.msra.mxu0 %v6060
    %6397 = vmatprep.subr.bf16.mxu0 0
    %6398 = vmatpush1.bf16.xpose.msra.mxu0 %v6063
    %6399 = vmatprep.subr.bf16.mxu0 0
    %6400 = vmatpush1.bf16.xpose.msra.mxu0 %v6066
    %6401 = vmatprep.mubr.bf16.mxu0 0
    %6402 = vmatmul.mubr.bf16.gmra.mrb[0].mxu0 %v5682
    %v6403 = vpop.f32.mrb[0].mxu0
    %v6404 = vadd.f32 %v5036, %v6403
    %v6405 = vpop.f32.mrb[0].mxu0
    %v6406 = vadd.f32 %v5040, %v6405
    %v6407 = vpop.f32.mrb[0].mxu0
    %v6408 = vadd.f32 %v5036, %v6407
    %v6409 = vpop.f32.mrb[0].mxu0
    %v6410 = vadd.f32 %v5040, %v6409
    %6411 = vdwg.mxu0
    %v6412 = vmax.f32 %v6103, 0.0
    %v6413 = vmax.f32 %v6105, 0.0
    %v6414 = vmax.f32 %v6146, 0.0
    %v6415 = vmax.f32 %v6148, 0.0
    %v6416 = vmax.f32 %v6189, 0.0
    %v6417 = vmax.f32 %v6191, 0.0
    %v6418 = vmax.f32 %v6232, 0.0
    %v6419 = vmax.f32 %v6234, 0.0
    %v6420 = vmax.f32 %v6275, 0.0
    %v6421 = vmax.f32 %v6277, 0.0
    %v6422 = vmax.f32 %v6318, 0.0
    %v6423 = vmax.f32 %v6320, 0.0
    %v6424 = vmax.f32 %v6361, 0.0
    %v6425 = vmax.f32 %v6363, 0.0
    %v6426 = vmax.f32 %v6404, 0.0
    %v6427 = vmax.f32 %v6406, 0.0
    %v6428 = vmax.f32 %v6107, 0.0
    %v6429 = vmax.f32 %v6109, 0.0
    %v6430 = vmax.f32 %v6150, 0.0
    %v6431 = vmax.f32 %v6152, 0.0
    %v6432 = vmax.f32 %v6193, 0.0
    %v6433 = vmax.f32 %v6195, 0.0
    %v6434 = vmax.f32 %v6236, 0.0
    %v6435 = vmax.f32 %v6238, 0.0
    %v6436 = vmax.f32 %v6279, 0.0
    %v6437 = vmax.f32 %v6281, 0.0
    %v6438 = vmax.f32 %v6322, 0.0
    %v6439 = vmax.f32 %v6324, 0.0
    %v6440 = vmax.f32 %v6365, 0.0
    %v6441 = vmax.f32 %v6367, 0.0
    %v6442 = vmax.f32 %v6408, 0.0
    %v6443 = vmax.f32 %v6410, 0.0
    %v6444 = vpack.c.bf16 %v6428, %v6412
    %v6445 = vpack.c.bf16 %v6429, %v6413
    %v6446 = vpack.c.bf16 %v6430, %v6414
    %v6447 = vpack.c.bf16 %v6431, %v6415
    %v6448 = vpack.c.bf16 %v6432, %v6416
    %v6449 = vpack.c.bf16 %v6433, %v6417
    %v6450 = vpack.c.bf16 %v6434, %v6418
    %v6451 = vpack.c.bf16 %v6435, %v6419
    %v6452 = vpack.c.bf16 %v6436, %v6420
    %v6453 = vpack.c.bf16 %v6437, %v6421
    %v6454 = vpack.c.bf16 %v6438, %v6422
    %v6455 = vpack.c.bf16 %v6439, %v6423
    %v6456 = vpack.c.bf16 %v6440, %v6424
    %v6457 = vpack.c.bf16 %v6441, %v6425
    %v6458 = vpack.c.bf16 %v6442, %v6426
    %v6459 = vpack.c.bf16 %v6443, %v6427
    %v6460 = vlaneseq
    %v6461 = vshrl.u32 %v6460, 7
    %v6462 = vsub.s32 1, %v6461
    %v6463 = vrot.slane %v746, %v6462
    %v6496 = vunpack.c.l.b16 %v714
    %v6497 = vunpack.c.h.b16 %v714
    %v6498 = vunpack.c.l.b16 %v715
    %v6499 = vunpack.c.h.b16 %v715
    %v6500 = vunpack.c.l.b16 %v716
    %v6501 = vunpack.c.h.b16 %v716
    %v6502 = vunpack.c.l.b16 %v717
    %v6503 = vunpack.c.h.b16 %v717
    %v6504 = vunpack.c.l.b16 %v718
    %v6505 = vunpack.c.h.b16 %v718
    %v6506 = vunpack.c.l.b16 %v719
    %v6507 = vunpack.c.h.b16 %v719
    %v6508 = vunpack.c.l.b16 %v720
    %v6509 = vunpack.c.h.b16 %v720
    %v6510 = vunpack.c.l.b16 %v721
    %v6511 = vunpack.c.h.b16 %v721
    %v6512 = vunpack.c.l.b16 %v722
    %v6513 = vunpack.c.h.b16 %v722
    %v6514 = vunpack.c.l.b16 %v723
    %v6515 = vunpack.c.h.b16 %v723
    %v6516 = vunpack.c.l.b16 %v724
    %v6517 = vunpack.c.h.b16 %v724
    %v6518 = vunpack.c.l.b16 %v725
    %v6519 = vunpack.c.h.b16 %v725
    %v6520 = vunpack.c.l.b16 %v726
    %v6521 = vunpack.c.h.b16 %v726
    %v6522 = vunpack.c.l.b16 %v727
    %v6523 = vunpack.c.h.b16 %v727
    %v6524 = vunpack.c.l.b16 %v728
    %v6525 = vunpack.c.h.b16 %v728
    %v6526 = vunpack.c.l.b16 %v729
    %v6527 = vunpack.c.h.b16 %v729
    %v6528 = vunpack.c.l.b16 %v730
    %v6529 = vunpack.c.h.b16 %v730
    %v6530 = vunpack.c.l.b16 %v731
    %v6531 = vunpack.c.h.b16 %v731
    %v6532 = vunpack.c.l.b16 %v732
    %v6533 = vunpack.c.h.b16 %v732
    %v6534 = vunpack.c.l.b16 %v733
    %v6535 = vunpack.c.h.b16 %v733
    %v6536 = vunpack.c.l.b16 %v734
    %v6537 = vunpack.c.h.b16 %v734
    %v6538 = vunpack.c.l.b16 %v735
    %v6539 = vunpack.c.h.b16 %v735
    %v6540 = vunpack.c.l.b16 %v736
    %v6541 = vunpack.c.h.b16 %v736
    %v6542 = vunpack.c.l.b16 %v737
    %v6543 = vunpack.c.h.b16 %v737
    %v6544 = vunpack.c.l.b16 %v738
    %v6545 = vunpack.c.h.b16 %v738
    %v6546 = vunpack.c.l.b16 %v739
    %v6547 = vunpack.c.h.b16 %v739
    %v6548 = vunpack.c.l.b16 %v740
    %v6549 = vunpack.c.h.b16 %v740
    %v6550 = vunpack.c.l.b16 %v741
    %v6551 = vunpack.c.h.b16 %v741
    %v6552 = vunpack.c.l.b16 %v742
    %v6553 = vunpack.c.h.b16 %v742
    %v6554 = vunpack.c.l.b16 %v743
    %v6555 = vunpack.c.h.b16 %v743
    %v6556 = vunpack.c.l.b16 %v744
    %v6557 = vunpack.c.h.b16 %v744
    %v6558 = vunpack.c.l.b16 %v745
    %v6559 = vunpack.c.h.b16 %v745
    %v6560 = vpack.c.b16 %v6512, %v6496
    %v6561 = vpack.c.b16 %v6513, %v6497
    %v6562 = vpack.c.b16 %v6514, %v6498
    %v6563 = vpack.c.b16 %v6515, %v6499
    %v6564 = vpack.c.b16 %v6516, %v6500
    %v6565 = vpack.c.b16 %v6517, %v6501
    %v6566 = vpack.c.b16 %v6518, %v6502
    %v6567 = vpack.c.b16 %v6519, %v6503
    %v6568 = vpack.c.b16 %v6520, %v6504
    %v6569 = vpack.c.b16 %v6521, %v6505
    %v6570 = vpack.c.b16 %v6522, %v6506
    %v6571 = vpack.c.b16 %v6523, %v6507
    %v6572 = vpack.c.b16 %v6524, %v6508
    %v6573 = vpack.c.b16 %v6525, %v6509
    %v6574 = vpack.c.b16 %v6526, %v6510
    %v6575 = vpack.c.b16 %v6527, %v6511
    %v6576 = vpack.c.b16 %v6544, %v6528
    %v6577 = vpack.c.b16 %v6545, %v6529
    %v6578 = vpack.c.b16 %v6546, %v6530
    %v6579 = vpack.c.b16 %v6547, %v6531
    %v6580 = vpack.c.b16 %v6548, %v6532
    %v6581 = vpack.c.b16 %v6549, %v6533
    %v6582 = vpack.c.b16 %v6550, %v6534
    %v6583 = vpack.c.b16 %v6551, %v6535
    %v6584 = vpack.c.b16 %v6552, %v6536
    %v6585 = vpack.c.b16 %v6553, %v6537
    %v6586 = vpack.c.b16 %v6554, %v6538
    %v6587 = vpack.c.b16 %v6555, %v6539
    %v6588 = vpack.c.b16 %v6556, %v6540
    %v6589 = vpack.c.b16 %v6557, %v6541
    %v6590 = vpack.c.b16 %v6558, %v6542
    %v6591 = vpack.c.b16 %v6559, %v6543
    %6624 = vmatprep.subr.bf16.mxu0 %v6561
    %6625 = vmatpush1.bf16.xpose.msra.mxu0 %v6560
    %6626 = vmatprep.subr.bf16.mxu0 %v6577
    %6627 = vmatpush1.bf16.xpose.msra.mxu0 %v6576
    %6628 = vmatprep.subr.bf16.mxu0 0
    %6629 = vmatpush1.bf16.xpose.msra.mxu0 0
    %6630 = vmatprep.subr.bf16.mxu0 0
    %6631 = vmatpush1.bf16.xpose.msra.mxu0 0
    %6632 = vmatprep.subr.bf16.mxu0 0
    %6633 = vmatpush1.bf16.xpose.msra.mxu0 0
    %6634 = vmatprep.subr.bf16.mxu0 0
    %6635 = vmatpush1.bf16.xpose.msra.mxu0 0
    %6636 = vmatprep.subr.bf16.mxu0 0
    %6637 = vmatpush1.bf16.xpose.msra.mxu0 0
    %6638 = vmatprep.subr.bf16.mxu0 0
    %6639 = vmatpush1.bf16.xpose.msra.mxu0 0
    %6640 = vmatprep.subr.bf16.mxu0 0
    %6641 = vmatpush1.bf16.xpose.msra.mxu0 0
    %6642 = vmatprep.subr.bf16.mxu0 0
    %6643 = vmatpush1.bf16.xpose.msra.mxu0 0
    %6644 = vmatprep.subr.bf16.mxu0 0
    %6645 = vmatpush1.bf16.xpose.msra.mxu0 0
    %6646 = vmatprep.subr.bf16.mxu0 0
    %6647 = vmatpush1.bf16.xpose.msra.mxu0 0
    %6648 = vmatprep.subr.bf16.mxu0 0
    %6649 = vmatpush1.bf16.xpose.msra.mxu0 0
    %6650 = vmatprep.subr.bf16.mxu0 0
    %6651 = vmatpush1.bf16.xpose.msra.mxu0 0
    %6652 = vmatprep.subr.bf16.mxu0 0
    %6653 = vmatpush1.bf16.xpose.msra.mxu0 0
    %6654 = vmatprep.subr.bf16.mxu0 0
    %6655 = vmatpush1.bf16.xpose.msra.mxu0 0
    %6656 = vmatprep.mubr.bf16.mxu0 %v6445
    %6657 = vmatmul.mubr.bf16.gmra.mrb[0].mxu0 %v6444
    %v6658 = vpop.f32.mrb[0].mxu0
    %v6659 = vadd.f32 %v6463, %v6658
    %v6660 = vpop.f32.mrb[0].mxu0
    %v6661 = vpop.f32.mrb[0].mxu0
    %v6662 = vadd.f32 %v6463, %v6661
    %v6663 = vpop.f32.mrb[0].mxu0
    %6664 = vdwg.mxu0
    %6665 = vmatprep.subr.bf16.mxu0 %v6563
    %6666 = vmatpush1.bf16.xpose.msra.mxu0 %v6562
    %6667 = vmatprep.subr.bf16.mxu0 %v6579
    %6668 = vmatpush1.bf16.xpose.msra.mxu0 %v6578
    %6669 = vmatprep.subr.bf16.mxu0 0
    %6670 = vmatpush1.bf16.xpose.msra.mxu0 0
    %6671 = vmatprep.subr.bf16.mxu0 0
    %6672 = vmatpush1.bf16.xpose.msra.mxu0 0
    %6673 = vmatprep.subr.bf16.mxu0 0
    %6674 = vmatpush1.bf16.xpose.msra.mxu0 0
    %6675 = vmatprep.subr.bf16.mxu0 0
    %6676 = vmatpush1.bf16.xpose.msra.mxu0 0
    %6677 = vmatprep.subr.bf16.mxu0 0
    %6678 = vmatpush1.bf16.xpose.msra.mxu0 0
    %6679 = vmatprep.subr.bf16.mxu0 0
    %6680 = vmatpush1.bf16.xpose.msra.mxu0 0
    %6681 = vmatprep.subr.bf16.mxu0 0
    %6682 = vmatpush1.bf16.xpose.msra.mxu0 0
    %6683 = vmatprep.subr.bf16.mxu0 0
    %6684 = vmatpush1.bf16.xpose.msra.mxu0 0
    %6685 = vmatprep.subr.bf16.mxu0 0
    %6686 = vmatpush1.bf16.xpose.msra.mxu0 0
    %6687 = vmatprep.subr.bf16.mxu0 0
    %6688 = vmatpush1.bf16.xpose.msra.mxu0 0
    %6689 = vmatprep.subr.bf16.mxu0 0
    %6690 = vmatpush1.bf16.xpose.msra.mxu0 0
    %6691 = vmatprep.subr.bf16.mxu0 0
    %6692 = vmatpush1.bf16.xpose.msra.mxu0 0
    %6693 = vmatprep.subr.bf16.mxu0 0
    %6694 = vmatpush1.bf16.xpose.msra.mxu0 0
    %6695 = vmatprep.subr.bf16.mxu0 0
    %6696 = vmatpush1.bf16.xpose.msra.mxu0 0
    %6697 = vmatprep.mubr.bf16.mxu0 %v6447
    %6698 = vmatmul.mubr.bf16.gmra.mrb[0].mxu0 %v6446
    %v6699 = vpop.f32.mrb[0].mxu0
    %v6700 = vadd.f32 %v6659, %v6699
    %v6701 = vpop.f32.mrb[0].mxu0
    %v6702 = vpop.f32.mrb[0].mxu0
    %v6703 = vadd.f32 %v6662, %v6702
    %v6704 = vpop.f32.mrb[0].mxu0
    %6705 = vdwg.mxu0
    %6706 = vmatprep.subr.bf16.mxu0 %v6565
    %6707 = vmatpush1.bf16.xpose.msra.mxu0 %v6564
    %6708 = vmatprep.subr.bf16.mxu0 %v6581
    %6709 = vmatpush1.bf16.xpose.msra.mxu0 %v6580
    %6710 = vmatprep.subr.bf16.mxu0 0
    %6711 = vmatpush1.bf16.xpose.msra.mxu0 0
    %6712 = vmatprep.subr.bf16.mxu0 0
    %6713 = vmatpush1.bf16.xpose.msra.mxu0 0
    %6714 = vmatprep.subr.bf16.mxu0 0
    %6715 = vmatpush1.bf16.xpose.msra.mxu0 0
    %6716 = vmatprep.subr.bf16.mxu0 0
    %6717 = vmatpush1.bf16.xpose.msra.mxu0 0
    %6718 = vmatprep.subr.bf16.mxu0 0
    %6719 = vmatpush1.bf16.xpose.msra.mxu0 0
    %6720 = vmatprep.subr.bf16.mxu0 0
    %6721 = vmatpush1.bf16.xpose.msra.mxu0 0
    %6722 = vmatprep.subr.bf16.mxu0 0
    %6723 = vmatpush1.bf16.xpose.msra.mxu0 0
    %6724 = vmatprep.subr.bf16.mxu0 0
    %6725 = vmatpush1.bf16.xpose.msra.mxu0 0
    %6726 = vmatprep.subr.bf16.mxu0 0
    %6727 = vmatpush1.bf16.xpose.msra.mxu0 0
    %6728 = vmatprep.subr.bf16.mxu0 0
    %6729 = vmatpush1.bf16.xpose.msra.mxu0 0
    %6730 = vmatprep.subr.bf16.mxu0 0
    %6731 = vmatpush1.bf16.xpose.msra.mxu0 0
    %6732 = vmatprep.subr.bf16.mxu0 0
    %6733 = vmatpush1.bf16.xpose.msra.mxu0 0
    %6734 = vmatprep.subr.bf16.mxu0 0
    %6735 = vmatpush1.bf16.xpose.msra.mxu0 0
    %6736 = vmatprep.subr.bf16.mxu0 0
    %6737 = vmatpush1.bf16.xpose.msra.mxu0 0
    %6738 = vmatprep.mubr.bf16.mxu0 %v6449
    %6739 = vmatmul.mubr.bf16.gmra.mrb[0].mxu0 %v6448
    %v6740 = vpop.f32.mrb[0].mxu0
    %v6741 = vadd.f32 %v6700, %v6740
    %v6742 = vpop.f32.mrb[0].mxu0
    %v6743 = vpop.f32.mrb[0].mxu0
    %v6744 = vadd.f32 %v6703, %v6743
    %v6745 = vpop.f32.mrb[0].mxu0
    %6746 = vdwg.mxu0
    %6747 = vmatprep.subr.bf16.mxu0 %v6567
    %6748 = vmatpush1.bf16.xpose.msra.mxu0 %v6566
    %6749 = vmatprep.subr.bf16.mxu0 %v6583
    %6750 = vmatpush1.bf16.xpose.msra.mxu0 %v6582
    %6751 = vmatprep.subr.bf16.mxu0 0
    %6752 = vmatpush1.bf16.xpose.msra.mxu0 0
    %6753 = vmatprep.subr.bf16.mxu0 0
    %6754 = vmatpush1.bf16.xpose.msra.mxu0 0
    %6755 = vmatprep.subr.bf16.mxu0 0
    %6756 = vmatpush1.bf16.xpose.msra.mxu0 0
    %6757 = vmatprep.subr.bf16.mxu0 0
    %6758 = vmatpush1.bf16.xpose.msra.mxu0 0
    %6759 = vmatprep.subr.bf16.mxu0 0
    %6760 = vmatpush1.bf16.xpose.msra.mxu0 0
    %6761 = vmatprep.subr.bf16.mxu0 0
    %6762 = vmatpush1.bf16.xpose.msra.mxu0 0
    %6763 = vmatprep.subr.bf16.mxu0 0
    %6764 = vmatpush1.bf16.xpose.msra.mxu0 0
    %6765 = vmatprep.subr.bf16.mxu0 0
    %6766 = vmatpush1.bf16.xpose.msra.mxu0 0
    %6767 = vmatprep.subr.bf16.mxu0 0
    %6768 = vmatpush1.bf16.xpose.msra.mxu0 0
    %6769 = vmatprep.subr.bf16.mxu0 0
    %6770 = vmatpush1.bf16.xpose.msra.mxu0 0
    %6771 = vmatprep.subr.bf16.mxu0 0
    %6772 = vmatpush1.bf16.xpose.msra.mxu0 0
    %6773 = vmatprep.subr.bf16.mxu0 0
    %6774 = vmatpush1.bf16.xpose.msra.mxu0 0
    %6775 = vmatprep.subr.bf16.mxu0 0
    %6776 = vmatpush1.bf16.xpose.msra.mxu0 0
    %6777 = vmatprep.subr.bf16.mxu0 0
    %6778 = vmatpush1.bf16.xpose.msra.mxu0 0
    %6779 = vmatprep.mubr.bf16.mxu0 %v6451
    %6780 = vmatmul.mubr.bf16.gmra.mrb[0].mxu0 %v6450
    %v6781 = vpop.f32.mrb[0].mxu0
    %v6782 = vadd.f32 %v6741, %v6781
    %v6783 = vpop.f32.mrb[0].mxu0
    %v6784 = vpop.f32.mrb[0].mxu0
    %v6785 = vadd.f32 %v6744, %v6784
    %v6786 = vpop.f32.mrb[0].mxu0
    %6787 = vdwg.mxu0
    %6788 = vmatprep.subr.bf16.mxu0 %v6569
    %6789 = vmatpush1.bf16.xpose.msra.mxu0 %v6568
    %6790 = vmatprep.subr.bf16.mxu0 %v6585
    %6791 = vmatpush1.bf16.xpose.msra.mxu0 %v6584
    %6792 = vmatprep.subr.bf16.mxu0 0
    %6793 = vmatpush1.bf16.xpose.msra.mxu0 0
    %6794 = vmatprep.subr.bf16.mxu0 0
    %6795 = vmatpush1.bf16.xpose.msra.mxu0 0
    %6796 = vmatprep.subr.bf16.mxu0 0
    %6797 = vmatpush1.bf16.xpose.msra.mxu0 0
    %6798 = vmatprep.subr.bf16.mxu0 0
    %6799 = vmatpush1.bf16.xpose.msra.mxu0 0
    %6800 = vmatprep.subr.bf16.mxu0 0
    %6801 = vmatpush1.bf16.xpose.msra.mxu0 0
    %6802 = vmatprep.subr.bf16.mxu0 0
    %6803 = vmatpush1.bf16.xpose.msra.mxu0 0
    %6804 = vmatprep.subr.bf16.mxu0 0
    %6805 = vmatpush1.bf16.xpose.msra.mxu0 0
    %6806 = vmatprep.subr.bf16.mxu0 0
    %6807 = vmatpush1.bf16.xpose.msra.mxu0 0
    %6808 = vmatprep.subr.bf16.mxu0 0
    %6809 = vmatpush1.bf16.xpose.msra.mxu0 0
    %6810 = vmatprep.subr.bf16.mxu0 0
    %6811 = vmatpush1.bf16.xpose.msra.mxu0 0
    %6812 = vmatprep.subr.bf16.mxu0 0
    %6813 = vmatpush1.bf16.xpose.msra.mxu0 0
    %6814 = vmatprep.subr.bf16.mxu0 0
    %6815 = vmatpush1.bf16.xpose.msra.mxu0 0
    %6816 = vmatprep.subr.bf16.mxu0 0
    %6817 = vmatpush1.bf16.xpose.msra.mxu0 0
    %6818 = vmatprep.subr.bf16.mxu0 0
    %6819 = vmatpush1.bf16.xpose.msra.mxu0 0
    %6820 = vmatprep.mubr.bf16.mxu0 %v6453
    %6821 = vmatmul.mubr.bf16.gmra.mrb[0].mxu0 %v6452
    %v6822 = vpop.f32.mrb[0].mxu0
    %v6823 = vadd.f32 %v6782, %v6822
    %v6824 = vpop.f32.mrb[0].mxu0
    %v6825 = vpop.f32.mrb[0].mxu0
    %v6826 = vadd.f32 %v6785, %v6825
    %v6827 = vpop.f32.mrb[0].mxu0
    %6828 = vdwg.mxu0
    %6829 = vmatprep.subr.bf16.mxu0 %v6571
    %6830 = vmatpush1.bf16.xpose.msra.mxu0 %v6570
    %6831 = vmatprep.subr.bf16.mxu0 %v6587
    %6832 = vmatpush1.bf16.xpose.msra.mxu0 %v6586
    %6833 = vmatprep.subr.bf16.mxu0 0
    %6834 = vmatpush1.bf16.xpose.msra.mxu0 0
    %6835 = vmatprep.subr.bf16.mxu0 0
    %6836 = vmatpush1.bf16.xpose.msra.mxu0 0
    %6837 = vmatprep.subr.bf16.mxu0 0
    %6838 = vmatpush1.bf16.xpose.msra.mxu0 0
    %6839 = vmatprep.subr.bf16.mxu0 0
    %6840 = vmatpush1.bf16.xpose.msra.mxu0 0
    %6841 = vmatprep.subr.bf16.mxu0 0
    %6842 = vmatpush1.bf16.xpose.msra.mxu0 0
    %6843 = vmatprep.subr.bf16.mxu0 0
    %6844 = vmatpush1.bf16.xpose.msra.mxu0 0
    %6845 = vmatprep.subr.bf16.mxu0 0
    %6846 = vmatpush1.bf16.xpose.msra.mxu0 0
    %6847 = vmatprep.subr.bf16.mxu0 0
    %6848 = vmatpush1.bf16.xpose.msra.mxu0 0
    %6849 = vmatprep.subr.bf16.mxu0 0
    %6850 = vmatpush1.bf16.xpose.msra.mxu0 0
    %6851 = vmatprep.subr.bf16.mxu0 0
    %6852 = vmatpush1.bf16.xpose.msra.mxu0 0
    %6853 = vmatprep.subr.bf16.mxu0 0
    %6854 = vmatpush1.bf16.xpose.msra.mxu0 0
    %6855 = vmatprep.subr.bf16.mxu0 0
    %6856 = vmatpush1.bf16.xpose.msra.mxu0 0
    %6857 = vmatprep.subr.bf16.mxu0 0
    %6858 = vmatpush1.bf16.xpose.msra.mxu0 0
    %6859 = vmatprep.subr.bf16.mxu0 0
    %6860 = vmatpush1.bf16.xpose.msra.mxu0 0
    %6861 = vmatprep.mubr.bf16.mxu0 %v6455
    %6862 = vmatmul.mubr.bf16.gmra.mrb[0].mxu0 %v6454
    %v6863 = vpop.f32.mrb[0].mxu0
    %v6864 = vadd.f32 %v6823, %v6863
    %v6865 = vpop.f32.mrb[0].mxu0
    %v6866 = vpop.f32.mrb[0].mxu0
    %v6867 = vadd.f32 %v6826, %v6866
    %v6868 = vpop.f32.mrb[0].mxu0
    %6869 = vdwg.mxu0
    %6870 = vmatprep.subr.bf16.mxu0 %v6573
    %6871 = vmatpush1.bf16.xpose.msra.mxu0 %v6572
    %6872 = vmatprep.subr.bf16.mxu0 %v6589
    %6873 = vmatpush1.bf16.xpose.msra.mxu0 %v6588
    %6874 = vmatprep.subr.bf16.mxu0 0
    %6875 = vmatpush1.bf16.xpose.msra.mxu0 0
    %6876 = vmatprep.subr.bf16.mxu0 0
    %6877 = vmatpush1.bf16.xpose.msra.mxu0 0
    %6878 = vmatprep.subr.bf16.mxu0 0
    %6879 = vmatpush1.bf16.xpose.msra.mxu0 0
    %6880 = vmatprep.subr.bf16.mxu0 0
    %6881 = vmatpush1.bf16.xpose.msra.mxu0 0
    %6882 = vmatprep.subr.bf16.mxu0 0
    %6883 = vmatpush1.bf16.xpose.msra.mxu0 0
    %6884 = vmatprep.subr.bf16.mxu0 0
    %6885 = vmatpush1.bf16.xpose.msra.mxu0 0
    %6886 = vmatprep.subr.bf16.mxu0 0
    %6887 = vmatpush1.bf16.xpose.msra.mxu0 0
    %6888 = vmatprep.subr.bf16.mxu0 0
    %6889 = vmatpush1.bf16.xpose.msra.mxu0 0
    %6890 = vmatprep.subr.bf16.mxu0 0
    %6891 = vmatpush1.bf16.xpose.msra.mxu0 0
    %6892 = vmatprep.subr.bf16.mxu0 0
    %6893 = vmatpush1.bf16.xpose.msra.mxu0 0
    %6894 = vmatprep.subr.bf16.mxu0 0
    %6895 = vmatpush1.bf16.xpose.msra.mxu0 0
    %6896 = vmatprep.subr.bf16.mxu0 0
    %6897 = vmatpush1.bf16.xpose.msra.mxu0 0
    %6898 = vmatprep.subr.bf16.mxu0 0
    %6899 = vmatpush1.bf16.xpose.msra.mxu0 0
    %6900 = vmatprep.subr.bf16.mxu0 0
    %6901 = vmatpush1.bf16.xpose.msra.mxu0 0
    %6902 = vmatprep.mubr.bf16.mxu0 %v6457
    %6903 = vmatmul.mubr.bf16.gmra.mrb[0].mxu0 %v6456
    %v6904 = vpop.f32.mrb[0].mxu0
    %v6905 = vadd.f32 %v6864, %v6904
    %v6906 = vpop.f32.mrb[0].mxu0
    %v6907 = vpop.f32.mrb[0].mxu0
    %v6908 = vadd.f32 %v6867, %v6907
    %v6909 = vpop.f32.mrb[0].mxu0
    %6910 = vdwg.mxu0
    %6911 = vmatprep.subr.bf16.mxu0 %v6575
    %6912 = vmatpush1.bf16.xpose.msra.mxu0 %v6574
    %6913 = vmatprep.subr.bf16.mxu0 %v6591
    %6914 = vmatpush1.bf16.xpose.msra.mxu0 %v6590
    %6915 = vmatprep.subr.bf16.mxu0 0
    %6916 = vmatpush1.bf16.xpose.msra.mxu0 0
    %6917 = vmatprep.subr.bf16.mxu0 0
    %6918 = vmatpush1.bf16.xpose.msra.mxu0 0
    %6919 = vmatprep.subr.bf16.mxu0 0
    %6920 = vmatpush1.bf16.xpose.msra.mxu0 0
    %6921 = vmatprep.subr.bf16.mxu0 0
    %6922 = vmatpush1.bf16.xpose.msra.mxu0 0
    %6923 = vmatprep.subr.bf16.mxu0 0
    %6924 = vmatpush1.bf16.xpose.msra.mxu0 0
    %6925 = vmatprep.subr.bf16.mxu0 0
    %6926 = vmatpush1.bf16.xpose.msra.mxu0 0
    %6927 = vmatprep.subr.bf16.mxu0 0
    %6928 = vmatpush1.bf16.xpose.msra.mxu0 0
    %6929 = vmatprep.subr.bf16.mxu0 0
    %6930 = vmatpush1.bf16.xpose.msra.mxu0 0
    %6931 = vmatprep.subr.bf16.mxu0 0
    %6932 = vmatpush1.bf16.xpose.msra.mxu0 0
    %6933 = vmatprep.subr.bf16.mxu0 0
    %6934 = vmatpush1.bf16.xpose.msra.mxu0 0
    %6935 = vmatprep.subr.bf16.mxu0 0
    %6936 = vmatpush1.bf16.xpose.msra.mxu0 0
    %6937 = vmatprep.subr.bf16.mxu0 0
    %6938 = vmatpush1.bf16.xpose.msra.mxu0 0
    %6939 = vmatprep.subr.bf16.mxu0 0
    %6940 = vmatpush1.bf16.xpose.msra.mxu0 0
    %6941 = vmatprep.subr.bf16.mxu0 0
    %6942 = vmatpush1.bf16.xpose.msra.mxu0 0
    %6943 = vmatprep.mubr.bf16.mxu0 %v6459
    %6944 = vmatmul.mubr.bf16.gmra.mrb[0].mxu0 %v6458
    %v6945 = vpop.f32.mrb[0].mxu0
    %v6946 = vadd.f32 %v6905, %v6945
    %v6947 = vpop.f32.mrb[0].mxu0
    %v6948 = vpop.f32.mrb[0].mxu0
    %v6949 = vadd.f32 %v6908, %v6948
    %v6950 = vpop.f32.mrb[0].mxu0
    %6951 = vdwg.mxu0
    %v6952 = vadd.f32 %v4894, %v6946
    %v6953 = vadd.f32 %v4895, %v6949
    %v6954 = vsel %vm966, %v6952, 0.0
    %6955 = vadd.xlane.f32.xlu0 %v6954
    %v6956 = vpop.xlane.xlu0 %6955
    %v6957 = vsel %vm966, %v6953, 0.0
    %6958 = vadd.xlane.f32.xlu0 %v6957
    %v6959 = vpop.xlane.xlu0 %6958
    %v6960 = vmul.f32 %v6956, %v1837
    %v6961 = vmul.f32 %v6959, %v1837
    %v6962 = vmul.f32 %v6952, %v6952
    %v6963 = vmul.f32 %v6953, %v6953
    %v6964 = vsel %vm966, %v6962, 0.0
    %6965 = vadd.xlane.f32.xlu0 %v6964
    %v6966 = vpop.xlane.xlu0 %6965
    %v6967 = vsel %vm966, %v6963, 0.0
    %6968 = vadd.xlane.f32.xlu0 %v6967
    %v6969 = vpop.xlane.xlu0 %6968
    %v6970 = vmul.f32 %v6966, %v1837
    %v6971 = vmul.f32 %v6969, %v1837
    %v6972 = vmul.f32 %v6960, %v6960
    %v6973 = vmul.f32 %v6961, %v6961
    %v6974 = vsub.f32 %v6970, %v6972
    %v6975 = vsub.f32 %v6971, %v6973
    %v6976 = vsub.f32 %v6952, %v6960
    %v6977 = vsub.f32 %v6953, %v6961
    %v6978 = vadd.f32 %v6974, 1e-05
    %v6979 = vadd.f32 %v6975, 1e-05
    %v6980 = vrsqrt.pop %v6978
    %v6981 = vrsqrt.pop %v6979
    %v6982 = vmul.f32 %v6976, %v6980
    %v6983 = vmul.f32 %v6977, %v6981
    %v6984 = vlaneseq
    %v6985 = vshrl.u32 %v6984, 7
    %v6986 = vsub.s32 1, %v6985
    %v6987 = vrot.slane %v749, %v6986
    %v6988 = vmul.f32 %v6982, %v6987
    %v6989 = vmul.f32 %v6983, %v6987
    %v6990 = vlaneseq
    %v6991 = vshrl.u32 %v6990, 7
    %v6992 = vsub.s32 1, %v6991
    %v6993 = vrot.slane %v750, %v6992
    %v6994 = vadd.f32 %v6988, %v6993
    %v6995 = vadd.f32 %v6989, %v6993
    %v6997 = vrot.slane %v6994, 7
    %v7000 = vrot.slane %v6995, 6
    %vm7002 = vcmask 1040384
    %v7003 = vsel %vm7002, %v6997, %v7000
    %7005 = vset.pattern.permute.xlu0 0
    %7006 = vperm.xlu0 %7005, %v127
    %v7007 = vpop.permute.xlu0 %7006
    %v7010 = vlaneseq
    %v7011 = vshrl.u32 %v7010, 7
    %v7012 = vsub.s32 0, %v7011
    %v7013 = vrot.slane %v751, %v7012
    %v7015 = vmul.f32 %v7007, %v7013
    %v7017 = vlaneseq
    %v7018 = vshrl.u32 %v7017, 7
    %v7019 = vsub.s32 0, %v7018
    %v7020 = vrot.slane %v752, %v7019
    %v7022 = vadd.f32 %v7015, %v7020
    %v7023 = vpack.c.bf16 %v7003, %v7003
    %v7024 = vpack.c.bf16 %v7022, %v7022
    %v7089 = vunpack.c.l.b16 %v817
    %v7090 = vunpack.c.l.b16 %v818
    %v7091 = vunpack.c.l.b16 %v819
    %v7092 = vunpack.c.l.b16 %v820
    %v7093 = vunpack.c.l.b16 %v821
    %v7094 = vunpack.c.l.b16 %v822
    %v7095 = vunpack.c.l.b16 %v823
    %v7096 = vunpack.c.l.b16 %v824
    %v7097 = vunpack.c.l.b16 %v825
    %v7098 = vunpack.c.l.b16 %v826
    %v7099 = vunpack.c.l.b16 %v827
    %v7100 = vunpack.c.l.b16 %v828
    %v7101 = vunpack.c.l.b16 %v829
    %v7102 = vunpack.c.l.b16 %v830
    %v7103 = vunpack.c.l.b16 %v831
    %v7104 = vunpack.c.l.b16 %v832
    %v7105 = vunpack.c.l.b16 %v833
    %v7106 = vunpack.c.l.b16 %v834
    %v7107 = vunpack.c.l.b16 %v835
    %v7108 = vunpack.c.l.b16 %v836
    %v7109 = vunpack.c.l.b16 %v837
    %v7110 = vunpack.c.l.b16 %v838
    %v7111 = vunpack.c.l.b16 %v839
    %v7112 = vunpack.c.l.b16 %v840
    %v7113 = vunpack.c.l.b16 %v841
    %v7114 = vunpack.c.l.b16 %v842
    %v7115 = vunpack.c.l.b16 %v843
    %v7116 = vunpack.c.l.b16 %v844
    %v7117 = vunpack.c.l.b16 %v845
    %v7118 = vunpack.c.l.b16 %v846
    %v7119 = vunpack.c.l.b16 %v847
    %v7120 = vunpack.c.l.b16 %v848
    %v7121 = vunpack.c.l.b16 %v849
    %v7122 = vunpack.c.l.b16 %v850
    %v7123 = vunpack.c.l.b16 %v851
    %v7124 = vunpack.c.l.b16 %v852
    %v7125 = vunpack.c.l.b16 %v853
    %v7126 = vunpack.c.l.b16 %v854
    %v7127 = vunpack.c.l.b16 %v855
    %v7128 = vunpack.c.l.b16 %v856
    %v7129 = vunpack.c.l.b16 %v857
    %v7130 = vunpack.c.l.b16 %v858
    %v7131 = vunpack.c.l.b16 %v859
    %v7132 = vunpack.c.l.b16 %v860
    %v7133 = vunpack.c.l.b16 %v861
    %v7134 = vunpack.c.l.b16 %v862
    %v7135 = vunpack.c.l.b16 %v863
    %v7136 = vunpack.c.l.b16 %v864
    %v7137 = vunpack.c.l.b16 %v865
    %v7138 = vunpack.c.l.b16 %v866
    %v7139 = vunpack.c.l.b16 %v867
    %v7140 = vunpack.c.l.b16 %v868
    %v7141 = vunpack.c.l.b16 %v869
    %v7142 = vunpack.c.l.b16 %v870
    %v7143 = vunpack.c.l.b16 %v871
    %v7144 = vunpack.c.l.b16 %v872
    %v7145 = vunpack.c.l.b16 %v873
    %v7146 = vunpack.c.l.b16 %v874
    %v7147 = vunpack.c.l.b16 %v875
    %v7148 = vunpack.c.l.b16 %v876
    %v7149 = vunpack.c.l.b16 %v877
    %v7150 = vunpack.c.l.b16 %v878
    %v7151 = vunpack.c.l.b16 %v879
    %v7152 = vunpack.c.l.b16 %v880
    %v7153 = vpack.c.b16 %v7090, %v7089
    %v7154 = vpack.c.b16 %v7092, %v7091
    %v7155 = vpack.c.b16 %v7094, %v7093
    %v7156 = vpack.c.b16 %v7096, %v7095
    %v7157 = vpack.c.b16 %v7098, %v7097
    %v7158 = vpack.c.b16 %v7100, %v7099
    %v7159 = vpack.c.b16 %v7102, %v7101
    %v7160 = vpack.c.b16 %v7104, %v7103
    %v7161 = vpack.c.b16 %v7106, %v7105
    %v7162 = vpack.c.b16 %v7108, %v7107
    %v7163 = vpack.c.b16 %v7110, %v7109
    %v7164 = vpack.c.b16 %v7112, %v7111
    %v7165 = vpack.c.b16 %v7114, %v7113
    %v7166 = vpack.c.b16 %v7116, %v7115
    %v7167 = vpack.c.b16 %v7118, %v7117
    %v7168 = vpack.c.b16 %v7120, %v7119
    %v7169 = vpack.c.b16 %v7122, %v7121
    %v7170 = vpack.c.b16 %v7124, %v7123
    %v7171 = vpack.c.b16 %v7126, %v7125
    %v7172 = vpack.c.b16 %v7128, %v7127
    %v7173 = vpack.c.b16 %v7130, %v7129
    %v7174 = vpack.c.b16 %v7132, %v7131
    %v7175 = vpack.c.b16 %v7134, %v7133
    %v7176 = vpack.c.b16 %v7136, %v7135
    %v7177 = vpack.c.b16 %v7138, %v7137
    %v7178 = vpack.c.b16 %v7140, %v7139
    %v7179 = vpack.c.b16 %v7142, %v7141
    %v7180 = vpack.c.b16 %v7144, %v7143
    %v7181 = vpack.c.b16 %v7146, %v7145
    %v7182 = vpack.c.b16 %v7148, %v7147
    %v7183 = vpack.c.b16 %v7150, %v7149
    %v7184 = vpack.c.b16 %v7152, %v7151
    %v7186 = vsel %vm966, %v7024, 0
    %v7189 = vsel %vm966, %v7153, 0
    %v7192 = vsel %vm966, %v7154, 0
    %v7195 = vsel %vm966, %v7155, 0
    %v7198 = vsel %vm966, %v7156, 0
    %v7201 = vsel %vm966, %v7157, 0
    %v7204 = vsel %vm966, %v7158, 0
    %v7207 = vsel %vm966, %v7159, 0
    %v7210 = vsel %vm966, %v7160, 0
    %v7213 = vsel %vm966, %v7161, 0
    %v7216 = vsel %vm966, %v7162, 0
    %v7219 = vsel %vm966, %v7163, 0
    %v7222 = vsel %vm966, %v7164, 0
    %v7225 = vsel %vm966, %v7165, 0
    %v7228 = vsel %vm966, %v7166, 0
    %v7231 = vsel %vm966, %v7167, 0
    %v7234 = vsel %vm966, %v7168, 0
    %v7237 = vsel %vm966, %v7169, 0
    %v7240 = vsel %vm966, %v7170, 0
    %v7243 = vsel %vm966, %v7171, 0
    %v7246 = vsel %vm966, %v7172, 0
    %v7249 = vsel %vm966, %v7173, 0
    %v7252 = vsel %vm966, %v7174, 0
    %v7255 = vsel %vm966, %v7175, 0
    %v7258 = vsel %vm966, %v7176, 0
    %v7261 = vsel %vm966, %v7177, 0
    %v7264 = vsel %vm966, %v7178, 0
    %v7267 = vsel %vm966, %v7179, 0
    %v7270 = vsel %vm966, %v7180, 0
    %v7273 = vsel %vm966, %v7181, 0
    %v7276 = vsel %vm966, %v7182, 0
    %v7279 = vsel %vm966, %v7183, 0
    %v7282 = vsel %vm966, %v7184, 0
    %7284 = vmatprep.subr.bf16.mxu0 0
    %7285 = vmatpush1.bf16.xpose.msra.mxu0 %v7189
    %7286 = vmatprep.subr.bf16.mxu0 0
    %7287 = vmatpush1.bf16.xpose.msra.mxu0 %v7192
    %7288 = vmatprep.subr.bf16.mxu0 0
    %7289 = vmatpush1.bf16.xpose.msra.mxu0 %v7195
    %7290 = vmatprep.subr.bf16.mxu0 0
    %7291 = vmatpush1.bf16.xpose.msra.mxu0 %v7198
    %7292 = vmatprep.subr.bf16.mxu0 0
    %7293 = vmatpush1.bf16.xpose.msra.mxu0 %v7201
    %7294 = vmatprep.subr.bf16.mxu0 0
    %7295 = vmatpush1.bf16.xpose.msra.mxu0 %v7204
    %7296 = vmatprep.subr.bf16.mxu0 0
    %7297 = vmatpush1.bf16.xpose.msra.mxu0 %v7207
    %7298 = vmatprep.subr.bf16.mxu0 0
    %7299 = vmatpush1.bf16.xpose.msra.mxu0 %v7210
    %7300 = vmatprep.subr.bf16.mxu0 0
    %7301 = vmatpush1.bf16.xpose.msra.mxu0 %v7213
    %7302 = vmatprep.subr.bf16.mxu0 0
    %7303 = vmatpush1.bf16.xpose.msra.mxu0 %v7216
    %7304 = vmatprep.subr.bf16.mxu0 0
    %7305 = vmatpush1.bf16.xpose.msra.mxu0 %v7219
    %7306 = vmatprep.subr.bf16.mxu0 0
    %7307 = vmatpush1.bf16.xpose.msra.mxu0 %v7222
    %7308 = vmatprep.subr.bf16.mxu0 0
    %7309 = vmatpush1.bf16.xpose.msra.mxu0 %v7225
    %7310 = vmatprep.subr.bf16.mxu0 0
    %7311 = vmatpush1.bf16.xpose.msra.mxu0 %v7228
    %7312 = vmatprep.subr.bf16.mxu0 0
    %7313 = vmatpush1.bf16.xpose.msra.mxu0 %v7231
    %7314 = vmatprep.subr.bf16.mxu0 0
    %7315 = vmatpush1.bf16.xpose.msra.mxu0 %v7234
    %7316 = vmatprep.mubr.bf16.mxu0 0
    %7317 = vmatmul.mubr.bf16.gmra.mrb[0].mxu0 %v7186
    %v7318 = vpop.f32.mrb[0].mxu0
    %v7319 = vadd.f32 0.0, %v7318
    %v7320 = vpop.f32.mrb[0].mxu0
    %v7321 = vadd.f32 0.0, %v7320
    %v7322 = vpop.f32.mrb[0].mxu0
    %v7323 = vpop.f32.mrb[0].mxu0
    %7324 = vdwg.mxu0
    %7325 = vmatprep.subr.bf16.mxu0 0
    %7326 = vmatpush1.bf16.xpose.msra.mxu0 %v7237
    %7327 = vmatprep.subr.bf16.mxu0 0
    %7328 = vmatpush1.bf16.xpose.msra.mxu0 %v7240
    %7329 = vmatprep.subr.bf16.mxu0 0
    %7330 = vmatpush1.bf16.xpose.msra.mxu0 %v7243
    %7331 = vmatprep.subr.bf16.mxu0 0
    %7332 = vmatpush1.bf16.xpose.msra.mxu0 %v7246
    %7333 = vmatprep.subr.bf16.mxu0 0
    %7334 = vmatpush1.bf16.xpose.msra.mxu0 %v7249
    %7335 = vmatprep.subr.bf16.mxu0 0
    %7336 = vmatpush1.bf16.xpose.msra.mxu0 %v7252
    %7337 = vmatprep.subr.bf16.mxu0 0
    %7338 = vmatpush1.bf16.xpose.msra.mxu0 %v7255
    %7339 = vmatprep.subr.bf16.mxu0 0
    %7340 = vmatpush1.bf16.xpose.msra.mxu0 %v7258
    %7341 = vmatprep.subr.bf16.mxu0 0
    %7342 = vmatpush1.bf16.xpose.msra.mxu0 %v7261
    %7343 = vmatprep.subr.bf16.mxu0 0
    %7344 = vmatpush1.bf16.xpose.msra.mxu0 %v7264
    %7345 = vmatprep.subr.bf16.mxu0 0
    %7346 = vmatpush1.bf16.xpose.msra.mxu0 %v7267
    %7347 = vmatprep.subr.bf16.mxu0 0
    %7348 = vmatpush1.bf16.xpose.msra.mxu0 %v7270
    %7349 = vmatprep.subr.bf16.mxu0 0
    %7350 = vmatpush1.bf16.xpose.msra.mxu0 %v7273
    %7351 = vmatprep.subr.bf16.mxu0 0
    %7352 = vmatpush1.bf16.xpose.msra.mxu0 %v7276
    %7353 = vmatprep.subr.bf16.mxu0 0
    %7354 = vmatpush1.bf16.xpose.msra.mxu0 %v7279
    %7355 = vmatprep.subr.bf16.mxu0 0
    %7356 = vmatpush1.bf16.xpose.msra.mxu0 %v7282
    %7357 = vmatprep.mubr.bf16.mxu0 0
    %7358 = vmatmul.mubr.bf16.gmra.mrb[0].mxu0 %v7186
    %v7359 = vpop.f32.mrb[0].mxu0
    %v7360 = vadd.f32 0.0, %v7359
    %v7361 = vpop.f32.mrb[0].mxu0
    %v7362 = vadd.f32 0.0, %v7361
    %v7363 = vpop.f32.mrb[0].mxu0
    %v7364 = vpop.f32.mrb[0].mxu0
    %7365 = vdwg.mxu0
    %v7430 = vunpack.c.l.b16 %v753
    %v7431 = vunpack.c.l.b16 %v754
    %v7432 = vunpack.c.l.b16 %v755
    %v7433 = vunpack.c.l.b16 %v756
    %v7434 = vunpack.c.l.b16 %v757
    %v7435 = vunpack.c.l.b16 %v758
    %v7436 = vunpack.c.l.b16 %v759
    %v7437 = vunpack.c.l.b16 %v760
    %v7438 = vunpack.c.l.b16 %v761
    %v7439 = vunpack.c.l.b16 %v762
    %v7440 = vunpack.c.l.b16 %v763
    %v7441 = vunpack.c.l.b16 %v764
    %v7442 = vunpack.c.l.b16 %v765
    %v7443 = vunpack.c.l.b16 %v766
    %v7444 = vunpack.c.l.b16 %v767
    %v7445 = vunpack.c.l.b16 %v768
    %v7446 = vunpack.c.l.b16 %v769
    %v7447 = vunpack.c.l.b16 %v770
    %v7448 = vunpack.c.l.b16 %v771
    %v7449 = vunpack.c.l.b16 %v772
    %v7450 = vunpack.c.l.b16 %v773
    %v7451 = vunpack.c.l.b16 %v774
    %v7452 = vunpack.c.l.b16 %v775
    %v7453 = vunpack.c.l.b16 %v776
    %v7454 = vunpack.c.l.b16 %v777
    %v7455 = vunpack.c.l.b16 %v778
    %v7456 = vunpack.c.l.b16 %v779
    %v7457 = vunpack.c.l.b16 %v780
    %v7458 = vunpack.c.l.b16 %v781
    %v7459 = vunpack.c.l.b16 %v782
    %v7460 = vunpack.c.l.b16 %v783
    %v7461 = vunpack.c.l.b16 %v784
    %v7462 = vunpack.c.l.b16 %v785
    %v7463 = vunpack.c.l.b16 %v786
    %v7464 = vunpack.c.l.b16 %v787
    %v7465 = vunpack.c.l.b16 %v788
    %v7466 = vunpack.c.l.b16 %v789
    %v7467 = vunpack.c.l.b16 %v790
    %v7468 = vunpack.c.l.b16 %v791
    %v7469 = vunpack.c.l.b16 %v792
    %v7470 = vunpack.c.l.b16 %v793
    %v7471 = vunpack.c.l.b16 %v794
    %v7472 = vunpack.c.l.b16 %v795
    %v7473 = vunpack.c.l.b16 %v796
    %v7474 = vunpack.c.l.b16 %v797
    %v7475 = vunpack.c.l.b16 %v798
    %v7476 = vunpack.c.l.b16 %v799
    %v7477 = vunpack.c.l.b16 %v800
    %v7478 = vunpack.c.l.b16 %v801
    %v7479 = vunpack.c.l.b16 %v802
    %v7480 = vunpack.c.l.b16 %v803
    %v7481 = vunpack.c.l.b16 %v804
    %v7482 = vunpack.c.l.b16 %v805
    %v7483 = vunpack.c.l.b16 %v806
    %v7484 = vunpack.c.l.b16 %v807
    %v7485 = vunpack.c.l.b16 %v808
    %v7486 = vunpack.c.l.b16 %v809
    %v7487 = vunpack.c.l.b16 %v810
    %v7488 = vunpack.c.l.b16 %v811
    %v7489 = vunpack.c.l.b16 %v812
    %v7490 = vunpack.c.l.b16 %v813
    %v7491 = vunpack.c.l.b16 %v814
    %v7492 = vunpack.c.l.b16 %v815
    %v7493 = vunpack.c.l.b16 %v816
    %v7494 = vpack.c.b16 %v7431, %v7430
    %v7495 = vpack.c.b16 %v7433, %v7432
    %v7496 = vpack.c.b16 %v7435, %v7434
    %v7497 = vpack.c.b16 %v7437, %v7436
    %v7498 = vpack.c.b16 %v7439, %v7438
    %v7499 = vpack.c.b16 %v7441, %v7440
    %v7500 = vpack.c.b16 %v7443, %v7442
    %v7501 = vpack.c.b16 %v7445, %v7444
    %v7502 = vpack.c.b16 %v7447, %v7446
    %v7503 = vpack.c.b16 %v7449, %v7448
    %v7504 = vpack.c.b16 %v7451, %v7450
    %v7505 = vpack.c.b16 %v7453, %v7452
    %v7506 = vpack.c.b16 %v7455, %v7454
    %v7507 = vpack.c.b16 %v7457, %v7456
    %v7508 = vpack.c.b16 %v7459, %v7458
    %v7509 = vpack.c.b16 %v7461, %v7460
    %v7510 = vpack.c.b16 %v7463, %v7462
    %v7511 = vpack.c.b16 %v7465, %v7464
    %v7512 = vpack.c.b16 %v7467, %v7466
    %v7513 = vpack.c.b16 %v7469, %v7468
    %v7514 = vpack.c.b16 %v7471, %v7470
    %v7515 = vpack.c.b16 %v7473, %v7472
    %v7516 = vpack.c.b16 %v7475, %v7474
    %v7517 = vpack.c.b16 %v7477, %v7476
    %v7518 = vpack.c.b16 %v7479, %v7478
    %v7519 = vpack.c.b16 %v7481, %v7480
    %v7520 = vpack.c.b16 %v7483, %v7482
    %v7521 = vpack.c.b16 %v7485, %v7484
    %v7522 = vpack.c.b16 %v7487, %v7486
    %v7523 = vpack.c.b16 %v7489, %v7488
    %v7524 = vpack.c.b16 %v7491, %v7490
    %v7525 = vpack.c.b16 %v7493, %v7492
    %v7527 = vsel %vm966, %v7023, 0
    %v7530 = vsel %vm966, %v7494, 0
    %v7533 = vsel %vm966, %v7495, 0
    %v7536 = vsel %vm966, %v7496, 0
    %v7539 = vsel %vm966, %v7497, 0
    %v7542 = vsel %vm966, %v7498, 0
    %v7545 = vsel %vm966, %v7499, 0
    %v7548 = vsel %vm966, %v7500, 0
    %v7551 = vsel %vm966, %v7501, 0
    %v7554 = vsel %vm966, %v7502, 0
    %v7557 = vsel %vm966, %v7503, 0
    %v7560 = vsel %vm966, %v7504, 0
    %v7563 = vsel %vm966, %v7505, 0
    %v7566 = vsel %vm966, %v7506, 0
    %v7569 = vsel %vm966, %v7507, 0
    %v7572 = vsel %vm966, %v7508, 0
    %v7575 = vsel %vm966, %v7509, 0
    %v7578 = vsel %vm966, %v7510, 0
    %v7581 = vsel %vm966, %v7511, 0
    %v7584 = vsel %vm966, %v7512, 0
    %v7587 = vsel %vm966, %v7513, 0
    %v7590 = vsel %vm966, %v7514, 0
    %v7593 = vsel %vm966, %v7515, 0
    %v7596 = vsel %vm966, %v7516, 0
    %v7599 = vsel %vm966, %v7517, 0
    %v7602 = vsel %vm966, %v7518, 0
    %v7605 = vsel %vm966, %v7519, 0
    %v7608 = vsel %vm966, %v7520, 0
    %v7611 = vsel %vm966, %v7521, 0
    %v7614 = vsel %vm966, %v7522, 0
    %v7617 = vsel %vm966, %v7523, 0
    %v7620 = vsel %vm966, %v7524, 0
    %v7623 = vsel %vm966, %v7525, 0
    %7625 = vmatprep.subr.bf16.mxu0 0
    %7626 = vmatpush1.bf16.xpose.msra.mxu0 %v7530
    %7627 = vmatprep.subr.bf16.mxu0 0
    %7628 = vmatpush1.bf16.xpose.msra.mxu0 %v7533
    %7629 = vmatprep.subr.bf16.mxu0 0
    %7630 = vmatpush1.bf16.xpose.msra.mxu0 %v7536
    %7631 = vmatprep.subr.bf16.mxu0 0
    %7632 = vmatpush1.bf16.xpose.msra.mxu0 %v7539
    %7633 = vmatprep.subr.bf16.mxu0 0
    %7634 = vmatpush1.bf16.xpose.msra.mxu0 %v7542
    %7635 = vmatprep.subr.bf16.mxu0 0
    %7636 = vmatpush1.bf16.xpose.msra.mxu0 %v7545
    %7637 = vmatprep.subr.bf16.mxu0 0
    %7638 = vmatpush1.bf16.xpose.msra.mxu0 %v7548
    %7639 = vmatprep.subr.bf16.mxu0 0
    %7640 = vmatpush1.bf16.xpose.msra.mxu0 %v7551
    %7641 = vmatprep.subr.bf16.mxu0 0
    %7642 = vmatpush1.bf16.xpose.msra.mxu0 %v7554
    %7643 = vmatprep.subr.bf16.mxu0 0
    %7644 = vmatpush1.bf16.xpose.msra.mxu0 %v7557
    %7645 = vmatprep.subr.bf16.mxu0 0
    %7646 = vmatpush1.bf16.xpose.msra.mxu0 %v7560
    %7647 = vmatprep.subr.bf16.mxu0 0
    %7648 = vmatpush1.bf16.xpose.msra.mxu0 %v7563
    %7649 = vmatprep.subr.bf16.mxu0 0
    %7650 = vmatpush1.bf16.xpose.msra.mxu0 %v7566
    %7651 = vmatprep.subr.bf16.mxu0 0
    %7652 = vmatpush1.bf16.xpose.msra.mxu0 %v7569
    %7653 = vmatprep.subr.bf16.mxu0 0
    %7654 = vmatpush1.bf16.xpose.msra.mxu0 %v7572
    %7655 = vmatprep.subr.bf16.mxu0 0
    %7656 = vmatpush1.bf16.xpose.msra.mxu0 %v7575
    %7657 = vmatprep.mubr.bf16.mxu0 0
    %7658 = vmatmul.mubr.bf16.gmra.mrb[0].mxu0 %v7527
    %v7659 = vpop.f32.mrb[0].mxu0
    %v7660 = vadd.f32 %v7319, %v7659
    %v7661 = vpop.f32.mrb[0].mxu0
    %v7662 = vadd.f32 %v7321, %v7661
    %v7663 = vpop.f32.mrb[0].mxu0
    %v7664 = vpop.f32.mrb[0].mxu0
    %7665 = vdwg.mxu0
    %7666 = vmatprep.subr.bf16.mxu0 0
    %7667 = vmatpush1.bf16.xpose.msra.mxu0 %v7578
    %7668 = vmatprep.subr.bf16.mxu0 0
    %7669 = vmatpush1.bf16.xpose.msra.mxu0 %v7581
    %7670 = vmatprep.subr.bf16.mxu0 0
    %7671 = vmatpush1.bf16.xpose.msra.mxu0 %v7584
    %7672 = vmatprep.subr.bf16.mxu0 0
    %7673 = vmatpush1.bf16.xpose.msra.mxu0 %v7587
    %7674 = vmatprep.subr.bf16.mxu0 0
    %7675 = vmatpush1.bf16.xpose.msra.mxu0 %v7590
    %7676 = vmatprep.subr.bf16.mxu0 0
    %7677 = vmatpush1.bf16.xpose.msra.mxu0 %v7593
    %7678 = vmatprep.subr.bf16.mxu0 0
    %7679 = vmatpush1.bf16.xpose.msra.mxu0 %v7596
    %7680 = vmatprep.subr.bf16.mxu0 0
    %7681 = vmatpush1.bf16.xpose.msra.mxu0 %v7599
    %7682 = vmatprep.subr.bf16.mxu0 0
    %7683 = vmatpush1.bf16.xpose.msra.mxu0 %v7602
    %7684 = vmatprep.subr.bf16.mxu0 0
    %7685 = vmatpush1.bf16.xpose.msra.mxu0 %v7605
    %7686 = vmatprep.subr.bf16.mxu0 0
    %7687 = vmatpush1.bf16.xpose.msra.mxu0 %v7608
    %7688 = vmatprep.subr.bf16.mxu0 0
    %7689 = vmatpush1.bf16.xpose.msra.mxu0 %v7611
    %7690 = vmatprep.subr.bf16.mxu0 0
    %7691 = vmatpush1.bf16.xpose.msra.mxu0 %v7614
    %7692 = vmatprep.subr.bf16.mxu0 0
    %7693 = vmatpush1.bf16.xpose.msra.mxu0 %v7617
    %7694 = vmatprep.subr.bf16.mxu0 0
    %7695 = vmatpush1.bf16.xpose.msra.mxu0 %v7620
    %7696 = vmatprep.subr.bf16.mxu0 0
    %7697 = vmatpush1.bf16.xpose.msra.mxu0 %v7623
    %7698 = vmatprep.mubr.bf16.mxu0 0
    %7699 = vmatmul.mubr.bf16.gmra.mrb[0].mxu0 %v7527
    %v7700 = vpop.f32.mrb[0].mxu0
    %v7701 = vadd.f32 %v7360, %v7700
    %v7702 = vpop.f32.mrb[0].mxu0
    %v7703 = vadd.f32 %v7362, %v7702
    %v7704 = vpop.f32.mrb[0].mxu0
    %v7705 = vpop.f32.mrb[0].mxu0
    %7706 = vdwg.mxu0
    %v7708 = vlaneseq
    %v7709 = vshrl.u32 %v7708, 7
    %v7710 = vsub.s32 0, %v7709
    %v7711 = vrot.slane %v881, %v7710
    %v7712 = vlaneseq
    %v7713 = vshrl.u32 %v7712, 7
    %v7714 = vsub.s32 1, %v7713
    %v7715 = vrot.slane %v881, %v7714
    %v7716 = vlaneseq
    %v7717 = vshrl.u32 %v7716, 7
    %v7718 = vsub.s32 2, %v7717
    %v7719 = vrot.slane %v881, %v7718
    %v7720 = vlaneseq
    %v7721 = vshrl.u32 %v7720, 7
    %v7722 = vsub.s32 3, %v7721
    %v7723 = vrot.slane %v881, %v7722
    %v7728 = vadd.f32 %v7660, %v7711
    %v7729 = vadd.f32 %v7662, %v7715
    %v7730 = vadd.f32 %v7701, %v7719
    %v7731 = vadd.f32 %v7703, %v7723
    %vm7732 = vcmp.ge.f32.partialorder %v7728, 0.0
    %vm7733 = vcmp.ge.f32.partialorder %v7729, 0.0
    %vm7734 = vcmp.ge.f32.partialorder %v7730, 0.0
    %vm7735 = vcmp.ge.f32.partialorder %v7731, 0.0
    %v7736 = vmul.f32 %v7728, 0.01
    %v7737 = vmul.f32 %v7729, 0.01
    %v7738 = vmul.f32 %v7730, 0.01
    %v7739 = vmul.f32 %v7731, 0.01
    %v7740 = vsel %vm7732, %v7728, %v7736
    %v7741 = vsel %vm7733, %v7729, %v7737
    %v7742 = vsel %vm7734, %v7730, %v7738
    %v7743 = vsel %vm7735, %v7731, %v7739
    %v7744 = vpack.c.bf16 %v7740, %v7740
    %v7745 = vpack.c.bf16 %v7741, %v7741
    %v7746 = vpack.c.bf16 %v7742, %v7742
    %v7747 = vpack.c.bf16 %v7743, %v7743
    %v7749 = vlaneseq
    %v7750 = vshrl.u32 %v7749, 7
    %v7751 = vsub.s32 0, %v7750
    %v7752 = vrot.slane %v946, %v7751
    %v7753 = vlaneseq
    %v7754 = vshrl.u32 %v7753, 7
    %v7755 = vsub.s32 1, %v7754
    %v7756 = vrot.slane %v946, %v7755
    %v7823 = vunpack.c.l.b16 %v882
    %v7824 = vunpack.c.h.b16 %v882
    %v7825 = vunpack.c.l.b16 %v883
    %v7826 = vunpack.c.h.b16 %v883
    %v7827 = vunpack.c.l.b16 %v884
    %v7828 = vunpack.c.h.b16 %v884
    %v7829 = vunpack.c.l.b16 %v885
    %v7830 = vunpack.c.h.b16 %v885
    %v7831 = vunpack.c.l.b16 %v886
    %v7832 = vunpack.c.h.b16 %v886
    %v7833 = vunpack.c.l.b16 %v887
    %v7834 = vunpack.c.h.b16 %v887
    %v7835 = vunpack.c.l.b16 %v888
    %v7836 = vunpack.c.h.b16 %v888
    %v7837 = vunpack.c.l.b16 %v889
    %v7838 = vunpack.c.h.b16 %v889
    %v7839 = vunpack.c.l.b16 %v890
    %v7840 = vunpack.c.h.b16 %v890
    %v7841 = vunpack.c.l.b16 %v891
    %v7842 = vunpack.c.h.b16 %v891
    %v7843 = vunpack.c.l.b16 %v892
    %v7844 = vunpack.c.h.b16 %v892
    %v7845 = vunpack.c.l.b16 %v893
    %v7846 = vunpack.c.h.b16 %v893
    %v7847 = vunpack.c.l.b16 %v894
    %v7848 = vunpack.c.h.b16 %v894
    %v7849 = vunpack.c.l.b16 %v895
    %v7850 = vunpack.c.h.b16 %v895
    %v7851 = vunpack.c.l.b16 %v896
    %v7852 = vunpack.c.h.b16 %v896
    %v7853 = vunpack.c.l.b16 %v897
    %v7854 = vunpack.c.h.b16 %v897
    %v7855 = vunpack.c.l.b16 %v898
    %v7856 = vunpack.c.h.b16 %v898
    %v7857 = vunpack.c.l.b16 %v899
    %v7858 = vunpack.c.h.b16 %v899
    %v7859 = vunpack.c.l.b16 %v900
    %v7860 = vunpack.c.h.b16 %v900
    %v7861 = vunpack.c.l.b16 %v901
    %v7862 = vunpack.c.h.b16 %v901
    %v7863 = vunpack.c.l.b16 %v902
    %v7864 = vunpack.c.h.b16 %v902
    %v7865 = vunpack.c.l.b16 %v903
    %v7866 = vunpack.c.h.b16 %v903
    %v7867 = vunpack.c.l.b16 %v904
    %v7868 = vunpack.c.h.b16 %v904
    %v7869 = vunpack.c.l.b16 %v905
    %v7870 = vunpack.c.h.b16 %v905
    %v7871 = vunpack.c.l.b16 %v906
    %v7872 = vunpack.c.h.b16 %v906
    %v7873 = vunpack.c.l.b16 %v907
    %v7874 = vunpack.c.h.b16 %v907
    %v7875 = vunpack.c.l.b16 %v908
    %v7876 = vunpack.c.h.b16 %v908
    %v7877 = vunpack.c.l.b16 %v909
    %v7878 = vunpack.c.h.b16 %v909
    %v7879 = vunpack.c.l.b16 %v910
    %v7880 = vunpack.c.h.b16 %v910
    %v7881 = vunpack.c.l.b16 %v911
    %v7882 = vunpack.c.h.b16 %v911
    %v7883 = vunpack.c.l.b16 %v912
    %v7884 = vunpack.c.h.b16 %v912
    %v7885 = vunpack.c.l.b16 %v913
    %v7886 = vunpack.c.h.b16 %v913
    %v7887 = vunpack.c.l.b16 %v914
    %v7888 = vunpack.c.h.b16 %v914
    %v7889 = vunpack.c.l.b16 %v915
    %v7890 = vunpack.c.h.b16 %v915
    %v7891 = vunpack.c.l.b16 %v916
    %v7892 = vunpack.c.h.b16 %v916
    %v7893 = vunpack.c.l.b16 %v917
    %v7894 = vunpack.c.h.b16 %v917
    %v7895 = vunpack.c.l.b16 %v918
    %v7896 = vunpack.c.h.b16 %v918
    %v7897 = vunpack.c.l.b16 %v919
    %v7898 = vunpack.c.h.b16 %v919
    %v7899 = vunpack.c.l.b16 %v920
    %v7900 = vunpack.c.h.b16 %v920
    %v7901 = vunpack.c.l.b16 %v921
    %v7902 = vunpack.c.h.b16 %v921
    %v7903 = vunpack.c.l.b16 %v922
    %v7904 = vunpack.c.h.b16 %v922
    %v7905 = vunpack.c.l.b16 %v923
    %v7906 = vunpack.c.h.b16 %v923
    %v7907 = vunpack.c.l.b16 %v924
    %v7908 = vunpack.c.h.b16 %v924
    %v7909 = vunpack.c.l.b16 %v925
    %v7910 = vunpack.c.h.b16 %v925
    %v7911 = vunpack.c.l.b16 %v926
    %v7912 = vunpack.c.h.b16 %v926
    %v7913 = vunpack.c.l.b16 %v927
    %v7914 = vunpack.c.h.b16 %v927
    %v7915 = vunpack.c.l.b16 %v928
    %v7916 = vunpack.c.h.b16 %v928
    %v7917 = vunpack.c.l.b16 %v929
    %v7918 = vunpack.c.h.b16 %v929
    %v7919 = vunpack.c.l.b16 %v930
    %v7920 = vunpack.c.h.b16 %v930
    %v7921 = vunpack.c.l.b16 %v931
    %v7922 = vunpack.c.h.b16 %v931
    %v7923 = vunpack.c.l.b16 %v932
    %v7924 = vunpack.c.h.b16 %v932
    %v7925 = vunpack.c.l.b16 %v933
    %v7926 = vunpack.c.h.b16 %v933
    %v7927 = vunpack.c.l.b16 %v934
    %v7928 = vunpack.c.h.b16 %v934
    %v7929 = vunpack.c.l.b16 %v935
    %v7930 = vunpack.c.h.b16 %v935
    %v7931 = vunpack.c.l.b16 %v936
    %v7932 = vunpack.c.h.b16 %v936
    %v7933 = vunpack.c.l.b16 %v937
    %v7934 = vunpack.c.h.b16 %v937
    %v7935 = vunpack.c.l.b16 %v938
    %v7936 = vunpack.c.h.b16 %v938
    %v7937 = vunpack.c.l.b16 %v939
    %v7938 = vunpack.c.h.b16 %v939
    %v7939 = vunpack.c.l.b16 %v940
    %v7940 = vunpack.c.h.b16 %v940
    %v7941 = vunpack.c.l.b16 %v941
    %v7942 = vunpack.c.h.b16 %v941
    %v7943 = vunpack.c.l.b16 %v942
    %v7944 = vunpack.c.h.b16 %v942
    %v7945 = vunpack.c.l.b16 %v943
    %v7946 = vunpack.c.h.b16 %v943
    %v7947 = vunpack.c.l.b16 %v944
    %v7948 = vunpack.c.h.b16 %v944
    %v7949 = vunpack.c.l.b16 %v945
    %v7950 = vunpack.c.h.b16 %v945
    %v7951 = vpack.c.b16 %v7827, %v7823
    %v7952 = vpack.c.b16 %v7828, %v7824
    %v7953 = vpack.c.b16 %v7829, %v7825
    %v7954 = vpack.c.b16 %v7830, %v7826
    %v7955 = vpack.c.b16 %v7835, %v7831
    %v7956 = vpack.c.b16 %v7836, %v7832
    %v7957 = vpack.c.b16 %v7837, %v7833
    %v7958 = vpack.c.b16 %v7838, %v7834
    %v7959 = vpack.c.b16 %v7843, %v7839
    %v7960 = vpack.c.b16 %v7844, %v7840
    %v7961 = vpack.c.b16 %v7845, %v7841
    %v7962 = vpack.c.b16 %v7846, %v7842
    %v7963 = vpack.c.b16 %v7851, %v7847
    %v7964 = vpack.c.b16 %v7852, %v7848
    %v7965 = vpack.c.b16 %v7853, %v7849
    %v7966 = vpack.c.b16 %v7854, %v7850
    %v7967 = vpack.c.b16 %v7859, %v7855
    %v7968 = vpack.c.b16 %v7860, %v7856
    %v7969 = vpack.c.b16 %v7861, %v7857
    %v7970 = vpack.c.b16 %v7862, %v7858
    %v7971 = vpack.c.b16 %v7867, %v7863
    %v7972 = vpack.c.b16 %v7868, %v7864
    %v7973 = vpack.c.b16 %v7869, %v7865
    %v7974 = vpack.c.b16 %v7870, %v7866
    %v7975 = vpack.c.b16 %v7875, %v7871
    %v7976 = vpack.c.b16 %v7876, %v7872
    %v7977 = vpack.c.b16 %v7877, %v7873
    %v7978 = vpack.c.b16 %v7878, %v7874
    %v7979 = vpack.c.b16 %v7883, %v7879
    %v7980 = vpack.c.b16 %v7884, %v7880
    %v7981 = vpack.c.b16 %v7885, %v7881
    %v7982 = vpack.c.b16 %v7886, %v7882
    %v7983 = vpack.c.b16 %v7891, %v7887
    %v7984 = vpack.c.b16 %v7892, %v7888
    %v7985 = vpack.c.b16 %v7893, %v7889
    %v7986 = vpack.c.b16 %v7894, %v7890
    %v7987 = vpack.c.b16 %v7899, %v7895
    %v7988 = vpack.c.b16 %v7900, %v7896
    %v7989 = vpack.c.b16 %v7901, %v7897
    %v7990 = vpack.c.b16 %v7902, %v7898
    %v7991 = vpack.c.b16 %v7907, %v7903
    %v7992 = vpack.c.b16 %v7908, %v7904
    %v7993 = vpack.c.b16 %v7909, %v7905
    %v7994 = vpack.c.b16 %v7910, %v7906
    %v7995 = vpack.c.b16 %v7915, %v7911
    %v7996 = vpack.c.b16 %v7916, %v7912
    %v7997 = vpack.c.b16 %v7917, %v7913
    %v7998 = vpack.c.b16 %v7918, %v7914
    %v7999 = vpack.c.b16 %v7923, %v7919
    %v8000 = vpack.c.b16 %v7924, %v7920
    %v8001 = vpack.c.b16 %v7925, %v7921
    %v8002 = vpack.c.b16 %v7926, %v7922
    %v8003 = vpack.c.b16 %v7931, %v7927
    %v8004 = vpack.c.b16 %v7932, %v7928
    %v8005 = vpack.c.b16 %v7933, %v7929
    %v8006 = vpack.c.b16 %v7934, %v7930
    %v8007 = vpack.c.b16 %v7939, %v7935
    %v8008 = vpack.c.b16 %v7940, %v7936
    %v8009 = vpack.c.b16 %v7941, %v7937
    %v8010 = vpack.c.b16 %v7942, %v7938
    %v8011 = vpack.c.b16 %v7947, %v7943
    %v8012 = vpack.c.b16 %v7948, %v7944
    %v8013 = vpack.c.b16 %v7949, %v7945
    %v8014 = vpack.c.b16 %v7950, %v7946
    %8079 = vmatprep.subr.bf16.mxu0 %v7952
    %8080 = vmatpush1.bf16.xpose.msra.mxu0 %v7951
    %8081 = vmatprep.subr.bf16.mxu0 %v7956
    %8082 = vmatpush1.bf16.xpose.msra.mxu0 %v7955
    %8083 = vmatprep.subr.bf16.mxu0 %v7960
    %8084 = vmatpush1.bf16.xpose.msra.mxu0 %v7959
    %8085 = vmatprep.subr.bf16.mxu0 %v7964
    %8086 = vmatpush1.bf16.xpose.msra.mxu0 %v7963
    %8087 = vmatprep.subr.bf16.mxu0 %v7968
    %8088 = vmatpush1.bf16.xpose.msra.mxu0 %v7967
    %8089 = vmatprep.subr.bf16.mxu0 %v7972
    %8090 = vmatpush1.bf16.xpose.msra.mxu0 %v7971
    %8091 = vmatprep.subr.bf16.mxu0 %v7976
    %8092 = vmatpush1.bf16.xpose.msra.mxu0 %v7975
    %8093 = vmatprep.subr.bf16.mxu0 %v7980
    %8094 = vmatpush1.bf16.xpose.msra.mxu0 %v7979
    %8095 = vmatprep.subr.bf16.mxu0 %v7984
    %8096 = vmatpush1.bf16.xpose.msra.mxu0 %v7983
    %8097 = vmatprep.subr.bf16.mxu0 %v7988
    %8098 = vmatpush1.bf16.xpose.msra.mxu0 %v7987
    %8099 = vmatprep.subr.bf16.mxu0 %v7992
    %8100 = vmatpush1.bf16.xpose.msra.mxu0 %v7991
    %8101 = vmatprep.subr.bf16.mxu0 %v7996
    %8102 = vmatpush1.bf16.xpose.msra.mxu0 %v7995
    %8103 = vmatprep.subr.bf16.mxu0 %v8000
    %8104 = vmatpush1.bf16.xpose.msra.mxu0 %v7999
    %8105 = vmatprep.subr.bf16.mxu0 %v8004
    %8106 = vmatpush1.bf16.xpose.msra.mxu0 %v8003
    %8107 = vmatprep.subr.bf16.mxu0 %v8008
    %8108 = vmatpush1.bf16.xpose.msra.mxu0 %v8007
    %8109 = vmatprep.subr.bf16.mxu0 %v8012
    %8110 = vmatpush1.bf16.xpose.msra.mxu0 %v8011
    %8111 = vmatprep.mubr.bf16.mxu0 %v7745
    %8112 = vmatmul.mubr.bf16.gmra.mrb[0].mxu0 %v7744
    %v8113 = vpop.f32.mrb[0].mxu0
    %v8114 = vadd.f32 %v7752, %v8113
    %v8115 = vpop.f32.mrb[0].mxu0
    %v8116 = vadd.f32 %v7756, %v8115
    %v8117 = vpop.f32.mrb[0].mxu0
    %v8118 = vpop.f32.mrb[0].mxu0
    %8119 = vdwg.mxu0
    %8120 = vmatprep.subr.bf16.mxu0 %v7954
    %8121 = vmatpush1.bf16.xpose.msra.mxu0 %v7953
    %8122 = vmatprep.subr.bf16.mxu0 %v7958
    %8123 = vmatpush1.bf16.xpose.msra.mxu0 %v7957
    %8124 = vmatprep.subr.bf16.mxu0 %v7962
    %8125 = vmatpush1.bf16.xpose.msra.mxu0 %v7961
    %8126 = vmatprep.subr.bf16.mxu0 %v7966
    %8127 = vmatpush1.bf16.xpose.msra.mxu0 %v7965
    %8128 = vmatprep.subr.bf16.mxu0 %v7970
    %8129 = vmatpush1.bf16.xpose.msra.mxu0 %v7969
    %8130 = vmatprep.subr.bf16.mxu0 %v7974
    %8131 = vmatpush1.bf16.xpose.msra.mxu0 %v7973
    %8132 = vmatprep.subr.bf16.mxu0 %v7978
    %8133 = vmatpush1.bf16.xpose.msra.mxu0 %v7977
    %8134 = vmatprep.subr.bf16.mxu0 %v7982
    %8135 = vmatpush1.bf16.xpose.msra.mxu0 %v7981
    %8136 = vmatprep.subr.bf16.mxu0 %v7986
    %8137 = vmatpush1.bf16.xpose.msra.mxu0 %v7985
    %8138 = vmatprep.subr.bf16.mxu0 %v7990
    %8139 = vmatpush1.bf16.xpose.msra.mxu0 %v7989
    %8140 = vmatprep.subr.bf16.mxu0 %v7994
    %8141 = vmatpush1.bf16.xpose.msra.mxu0 %v7993
    %8142 = vmatprep.subr.bf16.mxu0 %v7998
    %8143 = vmatpush1.bf16.xpose.msra.mxu0 %v7997
    %8144 = vmatprep.subr.bf16.mxu0 %v8002
    %8145 = vmatpush1.bf16.xpose.msra.mxu0 %v8001
    %8146 = vmatprep.subr.bf16.mxu0 %v8006
    %8147 = vmatpush1.bf16.xpose.msra.mxu0 %v8005
    %8148 = vmatprep.subr.bf16.mxu0 %v8010
    %8149 = vmatpush1.bf16.xpose.msra.mxu0 %v8009
    %8150 = vmatprep.subr.bf16.mxu0 %v8014
    %8151 = vmatpush1.bf16.xpose.msra.mxu0 %v8013
    %8152 = vmatprep.mubr.bf16.mxu0 %v7747
    %8153 = vmatmul.mubr.bf16.gmra.mrb[0].mxu0 %v7746
    %v8154 = vpop.f32.mrb[0].mxu0
    %v8155 = vadd.f32 %v8114, %v8154
    %v8156 = vpop.f32.mrb[0].mxu0
    %v8157 = vadd.f32 %v8116, %v8156
    %v8158 = vpop.f32.mrb[0].mxu0
    %v8159 = vpop.f32.mrb[0].mxu0
    %8160 = vdwg.mxu0
    %vm8161 = vcmp.ge.f32.partialorder %v8155, 0.0
    %vm8162 = vcmp.ge.f32.partialorder %v8157, 0.0
    %v8163 = vmul.f32 %v8155, 0.01
    %v8164 = vmul.f32 %v8157, 0.01
    %v8165 = vsel %vm8161, %v8155, %v8163
    %v8166 = vsel %vm8162, %v8157, %v8164
    %v8167 = vpack.c.bf16 %v8165, %v8165
    %v8168 = vpack.c.bf16 %v8166, %v8166
    %v8170 = vlaneseq
    %v8171 = vshrl.u32 %v8170, 7
    %v8172 = vsub.s32 0, %v8171
    %v8173 = vrot.slane %v948, %v8172
    %v8177 = vunpack.c.l.s4 1983009808
    %v8178 = vunpack.c.0.s8 %v8177
    %v8179 = vlaneseq
    %v8180 = vshrl.u32 %v8179, 7
    %v8181 = vsub.s32 %v8178, %v8180
    %v8182 = vrot.slane %v947, %v8181
    %v8183 = vcombine.high %v8182, %v8182
    %8186 = vmatprep.subr.bf16.mxu0 %v8183
    %8187 = vmatpush1.bf16.xpose.msra.mxu0 %v8182
    %8188 = vmatprep.subr.bf16.mxu0 0
    %8189 = vmatpush1.bf16.xpose.msra.mxu0 0
    %8190 = vmatprep.subr.bf16.mxu0 0
    %8191 = vmatpush1.bf16.xpose.msra.mxu0 0
    %8192 = vmatprep.subr.bf16.mxu0 0
    %8193 = vmatpush1.bf16.xpose.msra.mxu0 0
    %8194 = vmatprep.subr.bf16.mxu0 0
    %8195 = vmatpush1.bf16.xpose.msra.mxu0 0
    %8196 = vmatprep.subr.bf16.mxu0 0
    %8197 = vmatpush1.bf16.xpose.msra.mxu0 0
    %8198 = vmatprep.subr.bf16.mxu0 0
    %8199 = vmatpush1.bf16.xpose.msra.mxu0 0
    %8200 = vmatprep.subr.bf16.mxu0 0
    %8201 = vmatpush1.bf16.xpose.msra.mxu0 0
    %8202 = vmatprep.subr.bf16.mxu0 0
    %8203 = vmatpush1.bf16.xpose.msra.mxu0 0
    %8204 = vmatprep.subr.bf16.mxu0 0
    %8205 = vmatpush1.bf16.xpose.msra.mxu0 0
    %8206 = vmatprep.subr.bf16.mxu0 0
    %8207 = vmatpush1.bf16.xpose.msra.mxu0 0
    %8208 = vmatprep.subr.bf16.mxu0 0
    %8209 = vmatpush1.bf16.xpose.msra.mxu0 0
    %8210 = vmatprep.subr.bf16.mxu0 0
    %8211 = vmatpush1.bf16.xpose.msra.mxu0 0
    %8212 = vmatprep.subr.bf16.mxu0 0
    %8213 = vmatpush1.bf16.xpose.msra.mxu0 0
    %8214 = vmatprep.subr.bf16.mxu0 0
    %8215 = vmatpush1.bf16.xpose.msra.mxu0 0
    %8216 = vmatprep.subr.bf16.mxu0 0
    %8217 = vmatpush1.bf16.xpose.msra.mxu0 0
    %8218 = vmatprep.mubr.bf16.mxu0 %v8168
    %8219 = vmatmul.mubr.bf16.gmra.mrb[0].mxu0 %v8167
    %v8220 = vpop.f32.mrb[0].mxu0
    %v8221 = vadd.f32 %v8173, %v8220
    %v8222 = vpop.f32.mrb[0].mxu0
    %v8223 = vpop.f32.mrb[0].mxu0
    %v8224 = vpop.f32.mrb[0].mxu0
    %8225 = vdwg.mxu0
    %vm8226 = vcmask 25600
    %v8227 = vsel %vm8226, %v8221, -inf
    %8228 = vmax.xlane.f32.xlu0 %v8227
    %v8229 = vpop.xlane.xlu0 %8228
    %v8230 = vsub.f32 %v8221, %v8229
    %v8231 = vmul.f32 %v8230, 1.442695
    %v8232 = vpow.pop %v8231
    %v8233 = vsel %vm8226, %v8232, 0.0
    %8234 = vadd.xlane.f32.xlu0 %v8233
    %v8235 = vpop.xlane.xlu0 %8234
    %v8236 = vrcp.pop %v8235
    %v8237 = vmul.f32 %v8232, %v8236
    %8238 = vst.msk [vmem:[#allocation2] sm:$0x3] %vm8226, %v8237
    // Predicated region
    $region118: #{tpu_custom_call.1} parent=1 // pred_check
      _
    $region119: #{tpu_custom_call.1} parent=1 // pred_check_branch
      %8240 = sbr.rel (0) target = $region121
    $region120: #{tpu_custom_call.1} parent=1 // pred_region
      %s8242 = ssub.s32 32, 32
      %8243 = vsyncadd [#allocation3], %s8242
      %s8245 = sshll.u32 [#allocation2], 4
      %s8246 = int_to_ptr.vmem [resolvable:$true] %s8245
      %8248 = dma.vmem_to_hbm [thread:$0]  %s8246, 32, %s59, [#allocation3]
    $region121: #{tpu_custom_call.1} parent=1 // pred_fallthru
      _
    // Predicated region
    $region122: #{tpu_custom_call.1} parent=1 // pred_check
      _
    $region123: #{tpu_custom_call.1} parent=1 // pred_check_branch
      %8250 = sbr.rel (0) target = $region125
    $region124: #{tpu_custom_call.1} parent=1 // pred_region
      %8251 = dma.done [#allocation3], 32
    $region125: #{tpu_custom_call.1} parent=1 // pred_fallthru
      _
    %8252 = vsyncpa [#allocation3], 1

</llo_original>
